<compile_context>
chip_gen: v5e
topology: v5e:2x2
jax: 0.10.0
libtpu: 0.0.40
codegen_flags: <defaults>
</compile_context>

<pallas_src>
import functools

import jax
import jax.numpy as jnp
from jax import lax
from jax.experimental import pallas as pl
from jax.experimental.pallas import tpu as pltpu


# ----------------------------------------------------------------------------
# In-kernel helpers (traced inside the Pallas kernel)
# ----------------------------------------------------------------------------

def _lrelu(x):
    return jnp.where(x >= 0, x, 0.1 * x)


def _conv_same(x_hwc, K, wk, b, act):
    """'Same' KxK conv (stride 1) on one image held in VMEM/vregs.

    x_hwc : [H, W, Cin] value (any float dtype).
    wk(kh): [K*Cin, Cout] bf16 row slab of the weights (kw-major, cin-minor).
    b     : [1, Cout] f32.
    Returns [H*W, Cout] f32.

    Width-im2col: only the kh axis is sliced; the kw taps are packed into the
    contraction dimension, giving K deep matmuls (contraction K*Cin) instead
    of K*K shallow ones.  The slab is cast to bf16 right before the dot so
    the MXU runs at bf16 rate while accumulation stays f32.
    """
    H, W, Cin = x_hwc.shape
    Cout = b.shape[-1]
    p = (K - 1) // 2
    x = x_hwc.astype(jnp.float32)
    zc = jnp.zeros((H, p, Cin), jnp.float32)
    xp = jnp.concatenate([zc, x, zc], axis=1)                    # [H, W+2p, Cin]
    zr = jnp.zeros((p, W + 2 * p, Cin), jnp.float32)
    xp = jnp.concatenate([zr, xp, zr], axis=0)                   # [H+2p, W+2p, Cin]

    acc = jnp.zeros((H * W, Cout), jnp.float32)
    for kh in range(K):
        band = xp[kh:kh + H]                                     # [H, W+2p, Cin]
        slab = jnp.concatenate([band[:, kw:kw + W, :] for kw in range(K)],
                               axis=-1)                          # [H, W, K*Cin]
        acc = acc + jnp.dot(
            slab.reshape(H * W, K * Cin).astype(jnp.bfloat16),
            wk(kh),                                              # bf16
            preferred_element_type=jnp.float32)
    acc = acc + b
    if act == "relu":
        acc = jnp.maximum(acc, 0.0)
    elif act == "lrelu":
        acc = _lrelu(acc)
    return acc


# ----------------------------------------------------------------------------
# The fused kernel: CondNet + conv_0 + 16x ResBlock_SFT + tail + recon head
# ----------------------------------------------------------------------------

def _sft_net_kernel(H, W,
                    x0_ref, cin_ref,
                    cnw0, cnb0, cnwm, cnbm, cnw4, cnb4,
                    h0w, h0b,
                    cw, cb, sw0, sb0, sw1, sb1,
                    tw0, tb0, tw1, tb1, tcw, tcb,
                    rw1, rb1, rw2, rb2, rw3, rb3, rw4, rb4,
                    o_ref,
                    cond_sc, fea_sc, fea0_sc):
    r = pl.program_id(1)
    R = pl.num_programs(1)

    @pl.when(r == 0)
    def _():
        # ---- CondNet (stride-4 4x4 conv == space-to-depth done in wrapper,
        #      then 5 dense layers).  Result cached in VMEM as bf16. ----
        h = cin_ref[0].astype(jnp.bfloat16)                      # [HW, 32]
        h = _lrelu(jnp.dot(h, cnw0[...],
                           preferred_element_type=jnp.float32) + cnb0[...])
        for l in range(3):
            h = _lrelu(jnp.dot(h.astype(jnp.bfloat16), cnwm[l],
                               preferred_element_type=jnp.float32) + cnbm[l])
        cond = jnp.dot(h.astype(jnp.bfloat16), cnw4[...],
                       preferred_element_type=jnp.float32) + cnb4[...]
        cond_sc[...] = cond.astype(jnp.bfloat16)                 # [HW, 32]

        # ---- head conv_0 (3x3, Cin zero-padded 1 -> 8) ----
        fea0 = _conv_same(x0_ref[0], 3, lambda kh: h0w[kh], h0b[...], None)
        fea0_sc[...] = fea0
        fea_sc[...] = fea0

    # ---- ResBlock_SFT #r --------------------------------------------------
    cond = cond_sc[...]                                          # [HW, 32] bf16
    fea = fea_sc[...]                                            # [HW, 64] f32

    # Both SFT modulations of this block depend only on cond -> compute them
    # with two fat matmuls:
    #   hid [HW,128] = lrelu(cond @ [s0_scale_w0|s0_shift_w0|s1_scale_w0|s1_shift_w0])
    #   ss  [HW,256] = hid @ blockdiag(...) = [scale0 | shift0 | scale1 | shift1]
    hid = _lrelu(jnp.dot(cond, sw0[0],
                         preferred_element_type=jnp.float32) + sb0[0])
    ss = jnp.dot(hid.astype(jnp.bfloat16), sw1[0],
                 preferred_element_type=jnp.float32) + sb1[0]    # [HW, 256] f32

    t = fea * (ss[:, 0:64] + 1.0) + ss[:, 64:128]                # sft0
    t = _conv_same(t.reshape(H, W, 64), 3, lambda kh: cw[0, kh],
                   cb[0, 0], "relu")                             # conv0 + relu
    t = t * (ss[:, 128:192] + 1.0) + ss[:, 192:256]              # sft1
    t = _conv_same(t.reshape(H, W, 64), 3, lambda kh: cw[0, 3 + kh],
                   cb[0, 1], None)                               # conv1
    fea_sc[...] = fea + t                                        # residual

    @pl.when(r == R - 1)
    def _():
        fea = fea_sc[...]
        cond = cond_sc[...]
        # ---- branch tail: SFTLayer (merged scale|shift) + 3x3 conv ----
        hid = _lrelu(jnp.dot(cond, tw0[...],
                             preferred_element_type=jnp.float32) + tb0[...])
        ss = jnp.dot(hid.astype(jnp.bfloat16), tw1[...],
                     preferred_element_type=jnp.float32) + tb1[...]   # [HW,128]
        t = fea * (ss[:, 0:64] + 1.0) + ss[:, 64:128]
        res = _conv_same(t.reshape(H, W, 64), 3, lambda kh: tcw[kh],
                         tcb[...], None)
        f = fea0_sc[...] + res                                   # long residual

        # ---- reconstruction head ----
        y = _conv_same(f.reshape(H, W, 64), 5, lambda kh: rw1[kh], rb1[...],
                       "relu")
        y = _conv_same(y.reshape(H, W, 64), 3, lambda kh: rw2[kh], rb2[...],
                       "relu")
        y = _conv_same(y.reshape(H, W, 64), 3, lambda kh: rw3[kh], rb3[...],
                       "relu")
        y = _conv_same(y.reshape(H, W, 32), 3, lambda kh: rw4[kh], rb4[...],
                       None)
        o_ref[0] = y.astype(o_ref.dtype)                         # [HW, 16]


def _sft_net_call(x0p, cond_in, b):
    """x0p: [N,H,W,8] f32, cond_in: [N,HW,32] f32 -> [N, HW, 16] f32."""
    N, H, W, _ = x0p.shape
    HW = H * W
    R = b["sw0"].shape[0]

    def full(a):
        nd = a.ndim
        return pl.BlockSpec(a.shape, lambda n, r: (0,) * nd)

    def per_block(a):
        nd = a.ndim
        return pl.BlockSpec((1,) + a.shape[1:],
                            lambda n, r: (r,) + (0,) * (nd - 1))

    full_pre = (b["cnw0"], b["cnb0"], b["cnwm"], b["cnbm"], b["cnw4"], b["cnb4"],
                b["h0w"], b["h0b"])
    blk_args = (b["cw"], b["cb"], b["sw0"], b["sb0"], b["sw1"], b["sb1"])
    full_post = (b["tw0"], b["tb0"], b["tw1"], b["tb1"], b["tcw"], b["tcb"],
                 b["rw1"], b["rb1"], b["rw2"], b["rb2"], b["rw3"], b["rb3"],
                 b["rw4"], b["rb4"])

    in_specs = ([pl.BlockSpec((1, H, W, 8), lambda n, r: (n, 0, 0, 0)),
                 pl.BlockSpec((1, HW, 32), lambda n, r: (n, 0, 0))]
                + [full(a) for a in full_pre]
                + [per_block(a) for a in blk_args]
                + [full(a) for a in full_post])

    # NOTE: toy shapes fit the default scoped-VMEM budget on all generations;
    # for realistic H,W set vmem_limit_bytes explicitly (see TODOs above).
    return pl.pallas_call(
        functools.partial(_sft_net_kernel, H, W),
        grid=(N, R),
        out_shape=jax.ShapeDtypeStruct((N, HW, 16), x0p.dtype),
        in_specs=in_specs,
        out_specs=pl.BlockSpec((1, HW, 16), lambda n, r: (n, 0, 0)),
        scratch_shapes=[pltpu.VMEM((HW, 32), jnp.bfloat16),   # cond (resident)
                        pltpu.VMEM((HW, 64), jnp.float32),    # fea  (running)
                        pltpu.VMEM((HW, 64), jnp.float32)],   # fea0 (head out)
        compiler_params=pltpu.CompilerParams(
            dimension_semantics=("parallel", "arbitrary")),
    )(x0p, cond_in, *full_pre, *blk_args, *full_post)


# ----------------------------------------------------------------------------
# Parameters (deterministic synthetic init) + kernel-layout preparation
# ----------------------------------------------------------------------------

class _KeyGen:
    def __init__(self, seed):
        self.key = jax.random.PRNGKey(seed)

    def __call__(self):
        self.key, sub = jax.random.split(self.key)
        return sub


def init_params(seed=42):
    kg = _KeyGen(seed)

    def w(shape, std=0.02):
        return std * jax.random.normal(kg(), shape, dtype=jnp.float32)

    def b(n):
        return jnp.zeros((n,), jnp.float32)

    def sft():
        return dict(ws0=w((32, 32)), bs0=b(32), ws1=w((32, 64)), bs1=b(64),
                    wh0=w((32, 32)), bh0=b(32), wh1=w((32, 64)), bh1=b(64))

    def resblock():
        return dict(sft0=sft(), c0_w=w((3, 3, 64, 64)), c0_b=b(64),
                    sft1=sft(), c1_w=w((3, 3, 64, 64)), c1_b=b(64))

    res_list = [resblock() for _ in range(16)]
    res = jax.tree_util.tree_map(lambda *xs: jnp.stack(xs), *res_list)

    # NOTE: conv weights use [KH, KW, Cin, Cout]; loading real PyTorch
    # [Cout, Cin, KH, KW] weights would require w.transpose(2, 3, 1, 0).
    return dict(
        conv_0_w=w((3, 3, 1, 64)), conv_0_b=b(64),
        res=res,
        sft_tail=sft(),
        tail_w=w((3, 3, 64, 64)), tail_b=b(64),
        conv1_w=w((5, 5, 64, 64)), conv1_b=b(64),
        conv2_w=w((3, 3, 64, 64)), conv2_b=b(64),
        conv3_w=w((3, 3, 64, 32)), conv3_b=b(32),
        conv4_w=w((3, 3, 32, 16)), conv4_b=b(16),
        cond=dict(
            # Conv2d(2,128,4,stride=4) parameterized as space-to-depth + dense.
            w0=w((32, 128)), b0=b(128),
            w1=w((128, 128)), b1=b(128),
            w2=w((128, 128)), b2=b(128),
            w3=w((128, 128)), b3=b(128),
            w4=w((128, 32)), b4=b(32),
        ),
    )


def prepare_params(p):
    """Merge/reshape raw params into the fused-kernel layouts (runs once).

    Matmul weights are stored in bf16 (MXU-native on all TPU generations,
    half the DMA / double-buffer bytes); biases stay f32 (added post-matmul).
    """
    bf16 = jnp.bfloat16
    f32 = jnp.float32

    def conv_slab(wt):
        # [..., K, K, Cin, Cout] -> bf16 [..., K, K*Cin, Cout]
        s = wt.shape
        return wt.reshape(s[:-3] + (s[-3] * s[-2], s[-1])).astype(bf16)

    def bias2d(bb):
        return bb.reshape(bb.shape[:-1] + (1, bb.shape[-1])).astype(f32)

    res = p["res"]
    sA, sB = res["sft0"], res["sft1"]

    # --- fat per-block SFT merge: both modulations from cond in 2 matmuls ---
    sw0 = jnp.concatenate([sA["ws0"], sA["wh0"], sB["ws0"], sB["wh0"]],
                          axis=-1)                                   # [16,32,128]
    sb0 = jnp.concatenate([sA["bs0"], sA["bh0"], sB["bs0"], sB["bh0"]],
                          axis=-1)                                   # [16,128]
    blocks = [sA["ws1"], sA["wh1"], sB["ws1"], sB["wh1"]]            # [16,32,64]
    z = jnp.zeros_like(sA["ws1"])
    rows = []
    for i, blk in enumerate(blocks):
        row = [z, z, z, z]
        row[i] = blk
        rows.append(jnp.concatenate(row, axis=-1))                   # [16,32,256]
    sw1 = jnp.concatenate(rows, axis=-2)                             # [16,128,256]
    sb1 = jnp.concatenate([sA["bs1"], sA["bh1"], sB["bs1"], sB["bh1"]],
                          axis=-1)                                   # [16,256]

    # --- packed per-block conv weights: [16, 6, 192, 64] (conv0 | conv1) ---
    cw = jnp.concatenate([conv_slab(res["c0_w"]), conv_slab(res["c1_w"])],
                         axis=1)                                     # bf16
    cb = jnp.stack([res["c0_b"], res["c1_b"]], axis=1)               # [16,2,64]
    cb = cb[:, :, None, :].astype(f32)                               # [16,2,1,64]

    # --- tail SFT (merged scale|shift branches) ---
    st = p["sft_tail"]
    tw0 = jnp.concatenate([st["ws0"], st["wh0"]], axis=-1).astype(bf16)   # [32,64]
    tb0 = bias2d(jnp.concatenate([st["bs0"], st["bh0"]], axis=-1))
    zt = jnp.zeros_like(st["ws1"])
    tw1 = jnp.concatenate(
        [jnp.concatenate([st["ws1"], zt], axis=-1),
         jnp.concatenate([zt, st["wh1"]], axis=-1)], axis=-2).astype(bf16)  # [64,128]
    tb1 = bias2d(jnp.concatenate([st["bs1"], st["bh1"]], axis=-1))

    # --- head conv_0: zero-pad Cin 1 -> 8 (identical output) ---
    h0w = conv_slab(jnp.pad(p["conv_0_w"], ((0, 0), (0, 0), (0, 7), (0, 0))))

    # --- CondNet (packed middle layers) ---
    pc = p["cond"]
    cnwm = jnp.stack([pc["w1"], pc["w2"], pc["w3"]]).astype(bf16)    # [3,128,128]
    cnbm = jnp.stack([bias2d(pc["b1"]), bias2d(pc["b2"]), bias2d(pc["b3"])])

    return dict(
        cnw0=pc["w0"].astype(bf16), cnb0=bias2d(pc["b0"]),
        cnwm=cnwm, cnbm=cnbm,
        cnw4=pc["w4"].astype(bf16), cnb4=bias2d(pc["b4"]),
        h0w=h0w, h0b=bias2d(p["conv_0_b"]),
        cw=cw, cb=cb,
        sw0=sw0.astype(bf16), sb0=bias2d(sb0),
        sw1=sw1.astype(bf16), sb1=bias2d(sb1),
        tw0=tw0, tb0=tb0, tw1=tw1, tb1=tb1,
        tcw=conv_slab(p["tail_w"]), tcb=bias2d(p["tail_b"]),
        rw1=conv_slab(p["conv1_w"]), rb1=bias2d(p["conv1_b"]),
        rw2=conv_slab(p["conv2_w"]), rb2=bias2d(p["conv2_b"]),
        rw3=conv_slab(p["conv3_w"]), rb3=bias2d(p["conv3_b"]),
        rw4=conv_slab(p["conv4_w"]), rb4=bias2d(p["conv4_b"]),
    )


# ----------------------------------------------------------------------------
# Forward pass (one Pallas kernel + layout glue)
# ----------------------------------------------------------------------------

def sft_net_forward(prepared, x0_nchw, x1_nchw):
    # x0: [N,1,H,W] LR image; x1: [N,2,4H,4W] condition maps (NCHW like PyTorch)
    x0 = jnp.transpose(x0_nchw, (0, 2, 3, 1))                    # [N,H,W,1]
    x1 = jnp.transpose(x1_nchw, (0, 2, 3, 1))                    # [N,4H,4W,2]
    N, H, W, _ = x0.shape
    HW = H * W

    # CondNet stride-4 4x4 conv == space-to-depth (layout glue) + in-kernel dense
    c = x1.reshape(N, H, 4, W, 4, 2).transpose(0, 1, 3, 2, 4, 5).reshape(N, HW, 32)
    x0p = jnp.pad(x0, ((0, 0), (0, 0), (0, 0), (0, 7)))          # Cin 1 -> 8

    y = _sft_net_call(x0p, c, prepared)                          # [N, HW, 16]

    # PixelShuffle(4): pure reindexing, done as layout glue in JAX (see TODO).
    y = y.reshape(N, H, W, 4, 4).transpose(0, 1, 3, 2, 4).reshape(N, 4 * H, 4 * W)
    return y[:, None, :, :]                                      # [N,1,4H,4W]


# ----------------------------------------------------------------------------
# Pure-JAX reference (mirrors the PyTorch forward) for validation
# ----------------------------------------------------------------------------

def _ref_conv(x, w, b, act=None):
    K = w.shape[0]
    p = (K - 1) // 2
    y = lax.conv_general_dilated(
        x, w, window_strides=(1, 1), padding=[(p, p), (p, p)],
        dimension_numbers=("NHWC", "HWIO", "NHWC"),
        precision=lax.Precision.HIGHEST) + b
    if act == "relu":
        y = jnp.maximum(y, 0.0)
    return y


def _ref_sft(fea, cond, s):
    dot = functools.partial(jnp.einsum, precision=lax.Precision.HIGHEST)
    h_s = dot("nhwc,cd->nhwd", cond, s["ws0"]) + s["bs0"]
    h_s = jnp.where(h_s >= 0, h_s, 0.1 * h_s)
    scale = dot("nhwc,cd->nhwd", h_s, s["ws1"]) + s["bs1"]
    h_h = dot("nhwc,cd->nhwd", cond, s["wh0"]) + s["bh0"]
    h_h = jnp.where(h_h >= 0, h_h, 0.1 * h_h)
    shift = dot("nhwc,cd->nhwd", h_h, s["wh1"]) + s["bh1"]
    return fea * (scale + 1.0) + shift


def sft_net_reference(params, x0_nchw, x1_nchw):
    x0 = jnp.transpose(x0_nchw, (0, 2, 3, 1))
    x1 = jnp.transpose(x1_nchw, (0, 2, 3, 1))
    N, H, W, _ = x0.shape
    dot = functools.partial(jnp.einsum, precision=lax.Precision.HIGHEST)

    def lrelu(v):
        return jnp.where(v >= 0, v, 0.1 * v)

    c = x1.reshape(N, H, 4, W, 4, 2).transpose(0, 1, 3, 2, 4, 5).reshape(N, H, W, 32)
    pc = params["cond"]
    c = lrelu(dot("nhwc,cd->nhwd", c, pc["w0"]) + pc["b0"])
    c = lrelu(dot("nhwc,cd->nhwd", c, pc["w1"]) + pc["b1"])
    c = lrelu(dot("nhwc,cd->nhwd", c, pc["w2"]) + pc["b2"])
    c = lrelu(dot("nhwc,cd->nhwd", c, pc["w3"]) + pc["b3"])
    cond = dot("nhwc,cd->nhwd", c, pc["w4"]) + pc["b4"]

    fea0 = _ref_conv(x0, params["conv_0_w"], params["conv_0_b"])
    fea = fea0
    for i in range(params["res"]["c0_w"].shape[0]):
        blk = jax.tree_util.tree_map(lambda a: a[i], params["res"])
        t = _ref_sft(fea, cond, blk["sft0"])
        t = _ref_conv(t, blk["c0_w"], blk["c0_b"], act="relu")
        t = _ref_sft(t, cond, blk["sft1"])
        t = _ref_conv(t, blk["c1_w"], blk["c1_b"])
        fea = fea + t
    t = _ref_sft(fea, cond, params["sft_tail"])
    res = _ref_conv(t, params["tail_w"], params["tail_b"])
    fea = fea0 + res

    y = _ref_conv(fea, params["conv1_w"], params["conv1_b"], act="relu")
    y = _ref_conv(y, params["conv2_w"], params["conv2_b"], act="relu")
    y = _ref_conv(y, params["conv3_w"], params["conv3_b"], act="relu")
    y = _ref_conv(y, params["conv4_w"], params["conv4_b"])
    y = y.reshape(N, H, W, 4, 4).transpose(0, 1, 3, 2, 4).reshape(N, 4 * H, 4 * W)
    return y[:, None, :, :]


# ----------------------------------------------------------------------------
if __name__ == "__main__":
    key = jax.random.PRNGKey(0)
    k0, k1 = jax.random.split(key)
    N, H, W = 2, 8, 8
    x0 = jax.random.normal(k0, (N, 1, H, W), dtype=jnp.float32)          # LR
    x1 = jax.random.normal(k1, (N, 2, 4 * H, 4 * W), dtype=jnp.float32)  # cond

    params = init_params(42)
    prepared = prepare_params(params)

    fwd = jax.jit(sft_net_forward)
    out = fwd(prepared, x0, x1)
    jax.block_until_ready(out)
    assert out.shape == (N, 1, 4 * H, 4 * W), out.shape
    assert bool(jnp.all(jnp.isfinite(out)))

    # Validate against the pure-JAX reference of the PyTorch forward.
    # Tolerance accounts for bf16 matmul operands (MXU-native) vs the f32
    # HIGHEST-precision reference over ~40 stacked matmul stages.
    ref = jax.jit(sft_net_reference)(params, x0, x1)
    jax.block_until_ready(ref)
    err = float(jnp.max(jnp.abs(out - ref)) / (jnp.max(jnp.abs(ref)) + 1e-12))
    assert err < 5e-2, f"mismatch vs reference: rel_max_err={err}"

    print("KERNEL_OK")
</pallas_src>

<mosaic_0001>
module attributes {stable_mosaic.version = 11 : i64} {
  func.func @_sft_net_kernel(%arg0: i32, %arg1: i32, %arg2: memref<1x8x8x8xf32, #tpu.memory_space<vmem>>, %arg3: memref<1x64x32xf32, #tpu.memory_space<vmem>>, %arg4: memref<32x128xbf16, #tpu.memory_space<vmem>>, %arg5: memref<1x128xf32, #tpu.memory_space<vmem>>, %arg6: memref<3x128x128xbf16, #tpu.memory_space<vmem>>, %arg7: memref<3x1x128xf32, #tpu.memory_space<vmem>>, %arg8: memref<128x32xbf16, #tpu.memory_space<vmem>>, %arg9: memref<1x32xf32, #tpu.memory_space<vmem>>, %arg10: memref<3x24x64xbf16, #tpu.memory_space<vmem>>, %arg11: memref<1x64xf32, #tpu.memory_space<vmem>>, %arg12: memref<1x6x192x64xbf16, #tpu.memory_space<vmem>>, %arg13: memref<1x2x1x64xf32, #tpu.memory_space<vmem>>, %arg14: memref<1x32x128xbf16, #tpu.memory_space<vmem>>, %arg15: memref<1x1x128xf32, #tpu.memory_space<vmem>>, %arg16: memref<1x128x256xbf16, #tpu.memory_space<vmem>>, %arg17: memref<1x1x256xf32, #tpu.memory_space<vmem>>, %arg18: memref<32x64xbf16, #tpu.memory_space<vmem>>, %arg19: memref<1x64xf32, #tpu.memory_space<vmem>>, %arg20: memref<64x128xbf16, #tpu.memory_space<vmem>>, %arg21: memref<1x128xf32, #tpu.memory_space<vmem>>, %arg22: memref<3x192x64xbf16, #tpu.memory_space<vmem>>, %arg23: memref<1x64xf32, #tpu.memory_space<vmem>>, %arg24: memref<5x320x64xbf16, #tpu.memory_space<vmem>>, %arg25: memref<1x64xf32, #tpu.memory_space<vmem>>, %arg26: memref<3x192x64xbf16, #tpu.memory_space<vmem>>, %arg27: memref<1x64xf32, #tpu.memory_space<vmem>>, %arg28: memref<3x192x32xbf16, #tpu.memory_space<vmem>>, %arg29: memref<1x32xf32, #tpu.memory_space<vmem>>, %arg30: memref<3x96x16xbf16, #tpu.memory_space<vmem>>, %arg31: memref<1x16xf32, #tpu.memory_space<vmem>>, %arg32: memref<1x64x16xf32, #tpu.memory_space<vmem>>, %arg33: memref<64x32xbf16, #tpu.memory_space<vmem>>, %arg34: memref<64x64xf32, #tpu.memory_space<vmem>>, %arg35: memref<64x64xf32, #tpu.memory_space<vmem>>) attributes {dimension_semantics = [#tpu.dimension_semantics<parallel>, #tpu.dimension_semantics<arbitrary>], iteration_bounds = array<i64: 2, 16>, scalar_prefetch = 0 : i64, scratch_operands = 3 : i64, tpu.core_type = #tpu.core_type<tc>, window_params = [{transform_indices = @transform_0, window_bounds = array<i64: 1, 8, 8, 8>}, {transform_indices = @transform_1, window_bounds = array<i64: 1, 64, 32>}, {pipeline_mode = #tpu.pipeline_mode<synchronous>, transform_indices = @transform_2, window_bounds = array<i64: 32, 128>}, {pipeline_mode = #tpu.pipeline_mode<synchronous>, transform_indices = @transform_3, window_bounds = array<i64: 1, 128>}, {pipeline_mode = #tpu.pipeline_mode<synchronous>, transform_indices = @transform_4, window_bounds = array<i64: 3, 128, 128>}, {pipeline_mode = #tpu.pipeline_mode<synchronous>, transform_indices = @transform_5, window_bounds = array<i64: 3, 1, 128>}, {pipeline_mode = #tpu.pipeline_mode<synchronous>, transform_indices = @transform_6, window_bounds = array<i64: 128, 32>}, {pipeline_mode = #tpu.pipeline_mode<synchronous>, transform_indices = @transform_7, window_bounds = array<i64: 1, 32>}, {pipeline_mode = #tpu.pipeline_mode<synchronous>, transform_indices = @transform_8, window_bounds = array<i64: 3, 24, 64>}, {pipeline_mode = #tpu.pipeline_mode<synchronous>, transform_indices = @transform_9, window_bounds = array<i64: 1, 64>}, {transform_indices = @transform_10, window_bounds = array<i64: 1, 6, 192, 64>}, {transform_indices = @transform_11, window_bounds = array<i64: 1, 2, 1, 64>}, {transform_indices = @transform_12, window_bounds = array<i64: 1, 32, 128>}, {transform_indices = @transform_13, window_bounds = array<i64: 1, 1, 128>}, {transform_indices = @transform_14, window_bounds = array<i64: 1, 128, 256>}, {transform_indices = @transform_15, window_bounds = array<i64: 1, 1, 256>}, {pipeline_mode = #tpu.pipeline_mode<synchronous>, transform_indices = @transform_16, window_bounds = array<i64: 32, 64>}, {pipeline_mode = #tpu.pipeline_mode<synchronous>, transform_indices = @transform_17, window_bounds = array<i64: 1, 64>}, {pipeline_mode = #tpu.pipeline_mode<synchronous>, transform_indices = @transform_18, window_bounds = array<i64: 64, 128>}, {pipeline_mode = #tpu.pipeline_mode<synchronous>, transform_indices = @transform_19, window_bounds = array<i64: 1, 128>}, {pipeline_mode = #tpu.pipeline_mode<synchronous>, transform_indices = @transform_20, window_bounds = array<i64: 3, 192, 64>}, {pipeline_mode = #tpu.pipeline_mode<synchronous>, transform_indices = @transform_21, window_bounds = array<i64: 1, 64>}, {pipeline_mode = #tpu.pipeline_mode<synchronous>, transform_indices = @transform_22, window_bounds = array<i64: 5, 320, 64>}, {pipeline_mode = #tpu.pipeline_mode<synchronous>, transform_indices = @transform_23, window_bounds = array<i64: 1, 64>}, {pipeline_mode = #tpu.pipeline_mode<synchronous>, transform_indices = @transform_24, window_bounds = array<i64: 3, 192, 64>}, {pipeline_mode = #tpu.pipeline_mode<synchronous>, transform_indices = @transform_25, window_bounds = array<i64: 1, 64>}, {pipeline_mode = #tpu.pipeline_mode<synchronous>, transform_indices = @transform_26, window_bounds = array<i64: 3, 192, 32>}, {pipeline_mode = #tpu.pipeline_mode<synchronous>, transform_indices = @transform_27, window_bounds = array<i64: 1, 32>}, {pipeline_mode = #tpu.pipeline_mode<synchronous>, transform_indices = @transform_28, window_bounds = array<i64: 3, 96, 16>}, {pipeline_mode = #tpu.pipeline_mode<synchronous>, transform_indices = @transform_29, window_bounds = array<i64: 1, 16>}, {transform_indices = @transform_30, window_bounds = array<i64: 1, 64, 16>}]} {
    %c0_i32 = arith.constant 0 : i32
    %0 = arith.cmpi eq, %arg1, %c0_i32 : i32
    %1 = arith.extui %0 : i1 to i32
    %c0_i32_0 = arith.constant 0 : i32
    %2 = arith.cmpi ne, %1, %c0_i32_0 : i32
    scf.if %2 {
      %c0_64 = arith.constant 0 : index
      %c0_65 = arith.constant 0 : index
      %c0_66 = arith.constant 0 : index
      %130 = vector.load %arg3[%c0_64, %c0_65, %c0_66] : memref<1x64x32xf32, #tpu.memory_space<vmem>>, vector<1x64x32xf32>
      %131 = vector.shape_cast %130 : vector<1x64x32xf32> to vector<64x32xf32>
      %132 = arith.truncf %131 : vector<64x32xf32> to vector<64x32xbf16>
      %c0_67 = arith.constant 0 : index
      %c0_68 = arith.constant 0 : index
      %133 = vector.load %arg4[%c0_67, %c0_68] : memref<32x128xbf16, #tpu.memory_space<vmem>>, vector<32x128xbf16>
      %cst_69 = arith.constant dense<0.000000e+00> : vector<64x128xf32>
      %134 = tpu.matmul %132, %133, %cst_69 {dimension_numbers = #tpu.dot_dimension_numbers<[1], [0], [0], [1], [0, 0, 1, 1], [], []>} : vector<64x32xbf16>, vector<32x128xbf16>, vector<64x128xf32> -> vector<64x128xf32>
      %c0_70 = arith.constant 0 : index
      %c0_71 = arith.constant 0 : index
      %135 = vector.load %arg5[%c0_70, %c0_71] : memref<1x128xf32, #tpu.memory_space<vmem>>, vector<1x128xf32>
      %136 = vector.broadcast %135 : vector<1x128xf32> to vector<64x128xf32>
      %137 = arith.addf %134, %136 : vector<64x128xf32>
      %cst_72 = arith.constant 0.000000e+00 : f32
      %138 = vector.broadcast %cst_72 : f32 to vector<64x128xf32>
      %139 = arith.cmpf oge, %137, %138 : vector<64x128xf32>
      %cst_73 = arith.constant 1.000000e-01 : f32
      %140 = vector.broadcast %cst_73 : f32 to vector<64x128xf32>
      %141 = arith.mulf %140, %137 : vector<64x128xf32>
      %142 = arith.select %139, %137, %141 : vector<64x128xi1>, vector<64x128xf32>
      %143 = arith.truncf %142 : vector<64x128xf32> to vector<64x128xbf16>
      %c0_74 = arith.constant 0 : index
      %c0_75 = arith.constant 0 : index
      %c0_76 = arith.constant 0 : index
      %144 = vector.load %arg6[%c0_74, %c0_75, %c0_76] : memref<3x128x128xbf16, #tpu.memory_space<vmem>>, vector<1x128x128xbf16>
      %145 = vector.shape_cast %144 : vector<1x128x128xbf16> to vector<128x128xbf16>
      %cst_77 = arith.constant dense<0.000000e+00> : vector<64x128xf32>
      %146 = tpu.matmul %143, %145, %cst_77 {dimension_numbers = #tpu.dot_dimension_numbers<[1], [0], [0], [1], [0, 0, 1, 1], [], []>} : vector<64x128xbf16>, vector<128x128xbf16>, vector<64x128xf32> -> vector<64x128xf32>
      %c0_78 = arith.constant 0 : index
      %c0_79 = arith.constant 0 : index
      %c0_80 = arith.constant 0 : index
      %147 = vector.load %arg7[%c0_78, %c0_79, %c0_80] : memref<3x1x128xf32, #tpu.memory_space<vmem>>, vector<1x1x128xf32>
      %148 = vector.shape_cast %147 : vector<1x1x128xf32> to vector<1x128xf32>
      %149 = vector.broadcast %148 : vector<1x128xf32> to vector<64x128xf32>
      %150 = arith.addf %146, %149 : vector<64x128xf32>
      %cst_81 = arith.constant 0.000000e+00 : f32
      %151 = vector.broadcast %cst_81 : f32 to vector<64x128xf32>
      %152 = arith.cmpf oge, %150, %151 : vector<64x128xf32>
      %cst_82 = arith.constant 1.000000e-01 : f32
      %153 = vector.broadcast %cst_82 : f32 to vector<64x128xf32>
      %154 = arith.mulf %153, %150 : vector<64x128xf32>
      %155 = arith.select %152, %150, %154 : vector<64x128xi1>, vector<64x128xf32>
      %156 = arith.truncf %155 : vector<64x128xf32> to vector<64x128xbf16>
      %c1_83 = arith.constant 1 : index
      %c0_84 = arith.constant 0 : index
      %c0_85 = arith.constant 0 : index
      %157 = vector.load %arg6[%c1_83, %c0_84, %c0_85] : memref<3x128x128xbf16, #tpu.memory_space<vmem>>, vector<1x128x128xbf16>
      %158 = vector.shape_cast %157 : vector<1x128x128xbf16> to vector<128x128xbf16>
      %cst_86 = arith.constant dense<0.000000e+00> : vector<64x128xf32>
      %159 = tpu.matmul %156, %158, %cst_86 {dimension_numbers = #tpu.dot_dimension_numbers<[1], [0], [0], [1], [0, 0, 1, 1], [], []>} : vector<64x128xbf16>, vector<128x128xbf16>, vector<64x128xf32> -> vector<64x128xf32>
      %c1_87 = arith.constant 1 : index
      %c0_88 = arith.constant 0 : index
      %c0_89 = arith.constant 0 : index
      %160 = vector.load %arg7[%c1_87, %c0_88, %c0_89] : memref<3x1x128xf32, #tpu.memory_space<vmem>>, vector<1x1x128xf32>
      %161 = vector.shape_cast %160 : vector<1x1x128xf32> to vector<1x128xf32>
      %162 = vector.broadcast %161 : vector<1x128xf32> to vector<64x128xf32>
      %163 = arith.addf %159, %162 : vector<64x128xf32>
      %cst_90 = arith.constant 0.000000e+00 : f32
      %164 = vector.broadcast %cst_90 : f32 to vector<64x128xf32>
      %165 = arith.cmpf oge, %163, %164 : vector<64x128xf32>
      %cst_91 = arith.constant 1.000000e-01 : f32
      %166 = vector.broadcast %cst_91 : f32 to vector<64x128xf32>
      %167 = arith.mulf %166, %163 : vector<64x128xf32>
      %168 = arith.select %165, %163, %167 : vector<64x128xi1>, vector<64x128xf32>
      %169 = arith.truncf %168 : vector<64x128xf32> to vector<64x128xbf16>
      %c2_92 = arith.constant 2 : index
      %c0_93 = arith.constant 0 : index
      %c0_94 = arith.constant 0 : index
      %170 = vector.load %arg6[%c2_92, %c0_93, %c0_94] : memref<3x128x128xbf16, #tpu.memory_space<vmem>>, vector<1x128x128xbf16>
      %171 = vector.shape_cast %170 : vector<1x128x128xbf16> to vector<128x128xbf16>
      %cst_95 = arith.constant dense<0.000000e+00> : vector<64x128xf32>
      %172 = tpu.matmul %169, %171, %cst_95 {dimension_numbers = #tpu.dot_dimension_numbers<[1], [0], [0], [1], [0, 0, 1, 1], [], []>} : vector<64x128xbf16>, vector<128x128xbf16>, vector<64x128xf32> -> vector<64x128xf32>
      %c2_96 = arith.constant 2 : index
      %c0_97 = arith.constant 0 : index
      %c0_98 = arith.constant 0 : index
      %173 = vector.load %arg7[%c2_96, %c0_97, %c0_98] : memref<3x1x128xf32, #tpu.memory_space<vmem>>, vector<1x1x128xf32>
      %174 = vector.shape_cast %173 : vector<1x1x128xf32> to vector<1x128xf32>
      %175 = vector.broadcast %174 : vector<1x128xf32> to vector<64x128xf32>
      %176 = arith.addf %172, %175 : vector<64x128xf32>
      %cst_99 = arith.constant 0.000000e+00 : f32
      %177 = vector.broadcast %cst_99 : f32 to vector<64x128xf32>
      %178 = arith.cmpf oge, %176, %177 : vector<64x128xf32>
      %cst_100 = arith.constant 1.000000e-01 : f32
      %179 = vector.broadcast %cst_100 : f32 to vector<64x128xf32>
      %180 = arith.mulf %179, %176 : vector<64x128xf32>
      %181 = arith.select %178, %176, %180 : vector<64x128xi1>, vector<64x128xf32>
      %182 = arith.truncf %181 : vector<64x128xf32> to vector<64x128xbf16>
      %c0_101 = arith.constant 0 : index
      %c0_102 = arith.constant 0 : index
      %183 = vector.load %arg8[%c0_101, %c0_102] : memref<128x32xbf16, #tpu.memory_space<vmem>>, vector<128x32xbf16>
      %cst_103 = arith.constant dense<0.000000e+00> : vector<64x32xf32>
      %184 = tpu.matmul %182, %183, %cst_103 {dimension_numbers = #tpu.dot_dimension_numbers<[1], [0], [0], [1], [0, 0, 1, 1], [], []>} : vector<64x128xbf16>, vector<128x32xbf16>, vector<64x32xf32> -> vector<64x32xf32>
      %c0_104 = arith.constant 0 : index
      %c0_105 = arith.constant 0 : index
      %185 = vector.load %arg9[%c0_104, %c0_105] : memref<1x32xf32, #tpu.memory_space<vmem>>, vector<1x32xf32>
      %186 = vector.broadcast %185 : vector<1x32xf32> to vector<64x32xf32>
      %187 = arith.addf %184, %186 : vector<64x32xf32>
      %188 = arith.truncf %187 : vector<64x32xf32> to vector<64x32xbf16>
      %c0_106 = arith.constant 0 : index
      %c0_107 = arith.constant 0 : index
      %189 = vector.load %arg33[%c0_106, %c0_107] : memref<64x32xbf16, #tpu.memory_space<vmem>>, vector<64x32xbf16>
      tpu.vector_store %arg33[%c0_106, %c0_107], %188 {strides = array<i32>} : memref<64x32xbf16, #tpu.memory_space<vmem>>, vector<64x32xbf16>,
      %c0_108 = arith.constant 0 : index
      %c0_109 = arith.constant 0 : index
      %c0_110 = arith.constant 0 : index
      %c0_111 = arith.constant 0 : index
      %190 = vector.load %arg2[%c0_108, %c0_109, %c0_110, %c0_111] : memref<1x8x8x8xf32, #tpu.memory_space<vmem>>, vector<1x8x8x8xf32>
      %191 = vector.shape_cast %190 : vector<1x8x8x8xf32> to vector<8x8x8xf32>
      %c0_112 = arith.constant 0 : index
      %c0_113 = arith.constant 0 : index
      %192 = vector.load %arg11[%c0_112, %c0_113] : memref<1x64xf32, #tpu.memory_space<vmem>>, vector<1x64xf32>
      %cst_114 = arith.constant 0.000000e+00 : f32
      %193 = vector.broadcast %cst_114 : f32 to vector<8x1x8xf32>
      %194 = tpu.concatenate %193, %191, %193 in 1 : vector<8x1x8xf32>, vector<8x8x8xf32>, vector<8x1x8xf32> -> vector<8x10x8xf32>
      %cst_115 = arith.constant 0.000000e+00 : f32
      %195 = vector.broadcast %cst_115 : f32 to vector<1x10x8xf32>
      %196 = tpu.concatenate %195, %194, %195 in 0 : vector<1x10x8xf32>, vector<8x10x8xf32>, vector<1x10x8xf32> -> vector<10x10x8xf32>
      %cst_116 = arith.constant 0.000000e+00 : f32
      %197 = vector.broadcast %cst_116 : f32 to vector<64x64xf32>
      %198 = vector.extract_strided_slice %196 {offsets = [0, 0, 0], sizes = [8, 10, 8], strides = [1, 1, 1]} : vector<10x10x8xf32> to vector<8x10x8xf32>
      %199 = vector.extract_strided_slice %198 {offsets = [0, 0, 0], sizes = [8, 8, 8], strides = [1, 1, 1]} : vector<8x10x8xf32> to vector<8x8x8xf32>
      %200 = vector.extract_strided_slice %198 {offsets = [0, 1, 0], sizes = [8, 8, 8], strides = [1, 1, 1]} : vector<8x10x8xf32> to vector<8x8x8xf32>
      %201 = vector.extract_strided_slice %198 {offsets = [0, 2, 0], sizes = [8, 8, 8], strides = [1, 1, 1]} : vector<8x10x8xf32> to vector<8x8x8xf32>
      %202 = tpu.concatenate %199, %200, %201 in 2 : vector<8x8x8xf32>, vector<8x8x8xf32>, vector<8x8x8xf32> -> vector<8x8x24xf32>
      %203 = vector.shape_cast %202 : vector<8x8x24xf32> to vector<64x24xf32>
      %204 = arith.truncf %203 : vector<64x24xf32> to vector<64x24xbf16>
      %c0_117 = arith.constant 0 : index
      %c0_118 = arith.constant 0 : index
      %c0_119 = arith.constant 0 : index
      %205 = vector.load %arg10[%c0_117, %c0_118, %c0_119] : memref<3x24x64xbf16, #tpu.memory_space<vmem>>, vector<1x24x64xbf16>
      %206 = vector.shape_cast %205 : vector<1x24x64xbf16> to vector<24x64xbf16>
      %cst_120 = arith.constant dense<0.000000e+00> : vector<64x64xf32>
      %207 = tpu.matmul %204, %206, %cst_120 {dimension_numbers = #tpu.dot_dimension_numbers<[1], [0], [0], [1], [0, 0, 1, 1], [], []>} : vector<64x24xbf16>, vector<24x64xbf16>, vector<64x64xf32> -> vector<64x64xf32>
      %208 = arith.addf %197, %207 : vector<64x64xf32>
      %209 = vector.extract_strided_slice %196 {offsets = [1, 0, 0], sizes = [8, 10, 8], strides = [1, 1, 1]} : vector<10x10x8xf32> to vector<8x10x8xf32>
      %210 = vector.extract_strided_slice %209 {offsets = [0, 0, 0], sizes = [8, 8, 8], strides = [1, 1, 1]} : vector<8x10x8xf32> to vector<8x8x8xf32>
      %211 = vector.extract_strided_slice %209 {offsets = [0, 1, 0], sizes = [8, 8, 8], strides = [1, 1, 1]} : vector<8x10x8xf32> to vector<8x8x8xf32>
      %212 = vector.extract_strided_slice %209 {offsets = [0, 2, 0], sizes = [8, 8, 8], strides = [1, 1, 1]} : vector<8x10x8xf32> to vector<8x8x8xf32>
      %213 = tpu.concatenate %210, %211, %212 in 2 : vector<8x8x8xf32>, vector<8x8x8xf32>, vector<8x8x8xf32> -> vector<8x8x24xf32>
      %214 = vector.shape_cast %213 : vector<8x8x24xf32> to vector<64x24xf32>
      %215 = arith.truncf %214 : vector<64x24xf32> to vector<64x24xbf16>
      %c1_121 = arith.constant 1 : index
      %c0_122 = arith.constant 0 : index
      %c0_123 = arith.constant 0 : index
      %216 = vector.load %arg10[%c1_121, %c0_122, %c0_123] : memref<3x24x64xbf16, #tpu.memory_space<vmem>>, vector<1x24x64xbf16>
      %217 = vector.shape_cast %216 : vector<1x24x64xbf16> to vector<24x64xbf16>
      %cst_124 = arith.constant dense<0.000000e+00> : vector<64x64xf32>
      %218 = tpu.matmul %215, %217, %cst_124 {dimension_numbers = #tpu.dot_dimension_numbers<[1], [0], [0], [1], [0, 0, 1, 1], [], []>} : vector<64x24xbf16>, vector<24x64xbf16>, vector<64x64xf32> -> vector<64x64xf32>
      %219 = arith.addf %208, %218 : vector<64x64xf32>
      %220 = vector.extract_strided_slice %196 {offsets = [2, 0, 0], sizes = [8, 10, 8], strides = [1, 1, 1]} : vector<10x10x8xf32> to vector<8x10x8xf32>
      %221 = vector.extract_strided_slice %220 {offsets = [0, 0, 0], sizes = [8, 8, 8], strides = [1, 1, 1]} : vector<8x10x8xf32> to vector<8x8x8xf32>
      %222 = vector.extract_strided_slice %220 {offsets = [0, 1, 0], sizes = [8, 8, 8], strides = [1, 1, 1]} : vector<8x10x8xf32> to vector<8x8x8xf32>
      %223 = vector.extract_strided_slice %220 {offsets = [0, 2, 0], sizes = [8, 8, 8], strides = [1, 1, 1]} : vector<8x10x8xf32> to vector<8x8x8xf32>
      %224 = tpu.concatenate %221, %222, %223 in 2 : vector<8x8x8xf32>, vector<8x8x8xf32>, vector<8x8x8xf32> -> vector<8x8x24xf32>
      %225 = vector.shape_cast %224 : vector<8x8x24xf32> to vector<64x24xf32>
      %226 = arith.truncf %225 : vector<64x24xf32> to vector<64x24xbf16>
      %c2_125 = arith.constant 2 : index
      %c0_126 = arith.constant 0 : index
      %c0_127 = arith.constant 0 : index
      %227 = vector.load %arg10[%c2_125, %c0_126, %c0_127] : memref<3x24x64xbf16, #tpu.memory_space<vmem>>, vector<1x24x64xbf16>
      %228 = vector.shape_cast %227 : vector<1x24x64xbf16> to vector<24x64xbf16>
      %cst_128 = arith.constant dense<0.000000e+00> : vector<64x64xf32>
      %229 = tpu.matmul %226, %228, %cst_128 {dimension_numbers = #tpu.dot_dimension_numbers<[1], [0], [0], [1], [0, 0, 1, 1], [], []>} : vector<64x24xbf16>, vector<24x64xbf16>, vector<64x64xf32> -> vector<64x64xf32>
      %230 = arith.addf %219, %229 : vector<64x64xf32>
      %231 = vector.broadcast %192 : vector<1x64xf32> to vector<64x64xf32>
      %232 = arith.addf %230, %231 : vector<64x64xf32>
      %c0_129 = arith.constant 0 : index
      %c0_130 = arith.constant 0 : index
      %233 = vector.load %arg35[%c0_129, %c0_130] : memref<64x64xf32, #tpu.memory_space<vmem>>, vector<64x64xf32>
      tpu.vector_store %arg35[%c0_129, %c0_130], %232 {strides = array<i32>} : memref<64x64xf32, #tpu.memory_space<vmem>>, vector<64x64xf32>,
      %c0_131 = arith.constant 0 : index
      %c0_132 = arith.constant 0 : index
      %234 = vector.load %arg34[%c0_131, %c0_132] : memref<64x64xf32, #tpu.memory_space<vmem>>, vector<64x64xf32>
      tpu.vector_store %arg34[%c0_131, %c0_132], %232 {strides = array<i32>} : memref<64x64xf32, #tpu.memory_space<vmem>>, vector<64x64xf32>,
    } else {
    }
    %c0 = arith.constant 0 : index
    %c0_1 = arith.constant 0 : index
    %3 = vector.load %arg33[%c0, %c0_1] : memref<64x32xbf16, #tpu.memory_space<vmem>>, vector<64x32xbf16>
    %c0_2 = arith.constant 0 : index
    %c0_3 = arith.constant 0 : index
    %4 = vector.load %arg34[%c0_2, %c0_3] : memref<64x64xf32, #tpu.memory_space<vmem>>, vector<64x64xf32>
    %c0_4 = arith.constant 0 : index
    %c0_5 = arith.constant 0 : index
    %c0_6 = arith.constant 0 : index
    %5 = vector.load %arg14[%c0_4, %c0_5, %c0_6] : memref<1x32x128xbf16, #tpu.memory_space<vmem>>, vector<1x32x128xbf16>
    %6 = vector.shape_cast %5 : vector<1x32x128xbf16> to vector<32x128xbf16>
    %cst = arith.constant dense<0.000000e+00> : vector<64x128xf32>
    %7 = tpu.matmul %3, %6, %cst {dimension_numbers = #tpu.dot_dimension_numbers<[1], [0], [0], [1], [0, 0, 1, 1], [], []>} : vector<64x32xbf16>, vector<32x128xbf16>, vector<64x128xf32> -> vector<64x128xf32>
    %c0_7 = arith.constant 0 : index
    %c0_8 = arith.constant 0 : index
    %c0_9 = arith.constant 0 : index
    %8 = vector.load %arg15[%c0_7, %c0_8, %c0_9] : memref<1x1x128xf32, #tpu.memory_space<vmem>>, vector<1x1x128xf32>
    %9 = vector.shape_cast %8 : vector<1x1x128xf32> to vector<1x128xf32>
    %10 = vector.broadcast %9 : vector<1x128xf32> to vector<64x128xf32>
    %11 = arith.addf %7, %10 : vector<64x128xf32>
    %cst_10 = arith.constant 0.000000e+00 : f32
    %12 = vector.broadcast %cst_10 : f32 to vector<64x128xf32>
    %13 = arith.cmpf oge, %11, %12 : vector<64x128xf32>
    %cst_11 = arith.constant 1.000000e-01 : f32
    %14 = vector.broadcast %cst_11 : f32 to vector<64x128xf32>
    %15 = arith.mulf %14, %11 : vector<64x128xf32>
    %16 = arith.select %13, %11, %15 : vector<64x128xi1>, vector<64x128xf32>
    %17 = arith.truncf %16 : vector<64x128xf32> to vector<64x128xbf16>
    %c0_12 = arith.constant 0 : index
    %c0_13 = arith.constant 0 : index
    %c0_14 = arith.constant 0 : index
    %18 = vector.load %arg16[%c0_12, %c0_13, %c0_14] : memref<1x128x256xbf16, #tpu.memory_space<vmem>>, vector<1x128x256xbf16>
    %19 = vector.shape_cast %18 : vector<1x128x256xbf16> to vector<128x256xbf16>
    %cst_15 = arith.constant dense<0.000000e+00> : vector<64x256xf32>
    %20 = tpu.matmul %17, %19, %cst_15 {dimension_numbers = #tpu.dot_dimension_numbers<[1], [0], [0], [1], [0, 0, 1, 1], [], []>} : vector<64x128xbf16>, vector<128x256xbf16>, vector<64x256xf32> -> vector<64x256xf32>
    %c0_16 = arith.constant 0 : index
    %c0_17 = arith.constant 0 : index
    %c0_18 = arith.constant 0 : index
    %21 = vector.load %arg17[%c0_16, %c0_17, %c0_18] : memref<1x1x256xf32, #tpu.memory_space<vmem>>, vector<1x1x256xf32>
    %22 = vector.shape_cast %21 : vector<1x1x256xf32> to vector<1x256xf32>
    %23 = vector.broadcast %22 : vector<1x256xf32> to vector<64x256xf32>
    %24 = arith.addf %20, %23 : vector<64x256xf32>
    %25 = vector.extract_strided_slice %24 {offsets = [0, 0], sizes = [64, 64], strides = [1, 1]} : vector<64x256xf32> to vector<64x64xf32>
    %cst_19 = arith.constant 1.000000e+00 : f32
    %26 = vector.broadcast %cst_19 : f32 to vector<64x64xf32>
    %27 = arith.addf %25, %26 : vector<64x64xf32>
    %28 = arith.mulf %4, %27 : vector<64x64xf32>
    %29 = vector.extract_strided_slice %24 {offsets = [0, 64], sizes = [64, 64], strides = [1, 1]} : vector<64x256xf32> to vector<64x64xf32>
    %30 = arith.addf %28, %29 : vector<64x64xf32>
    %31 = vector.shape_cast %30 : vector<64x64xf32> to vector<8x8x64xf32>
    %c0_20 = arith.constant 0 : index
    %c0_21 = arith.constant 0 : index
    %c0_22 = arith.constant 0 : index
    %c0_23 = arith.constant 0 : index
    %32 = vector.load %arg13[%c0_20, %c0_21, %c0_22, %c0_23] : memref<1x2x1x64xf32, #tpu.memory_space<vmem>>, vector<1x1x1x64xf32>
    %33 = vector.shape_cast %32 : vector<1x1x1x64xf32> to vector<1x64xf32>
    %cst_24 = arith.constant 0.000000e+00 : f32
    %34 = vector.broadcast %cst_24 : f32 to vector<8x1x64xf32>
    %35 = tpu.concatenate %34, %31, %34 in 1 : vector<8x1x64xf32>, vector<8x8x64xf32>, vector<8x1x64xf32> -> vector<8x10x64xf32>
    %cst_25 = arith.constant 0.000000e+00 : f32
    %36 = vector.broadcast %cst_25 : f32 to vector<1x10x64xf32>
    %37 = tpu.concatenate %36, %35, %36 in 0 : vector<1x10x64xf32>, vector<8x10x64xf32>, vector<1x10x64xf32> -> vector<10x10x64xf32>
    %cst_26 = arith.constant 0.000000e+00 : f32
    %38 = vector.broadcast %cst_26 : f32 to vector<64x64xf32>
    %39 = vector.extract_strided_slice %37 {offsets = [0, 0, 0], sizes = [8, 10, 64], strides = [1, 1, 1]} : vector<10x10x64xf32> to vector<8x10x64xf32>
    %40 = vector.extract_strided_slice %39 {offsets = [0, 0, 0], sizes = [8, 8, 64], strides = [1, 1, 1]} : vector<8x10x64xf32> to vector<8x8x64xf32>
    %41 = vector.extract_strided_slice %39 {offsets = [0, 1, 0], sizes = [8, 8, 64], strides = [1, 1, 1]} : vector<8x10x64xf32> to vector<8x8x64xf32>
    %42 = vector.extract_strided_slice %39 {offsets = [0, 2, 0], sizes = [8, 8, 64], strides = [1, 1, 1]} : vector<8x10x64xf32> to vector<8x8x64xf32>
    %43 = tpu.concatenate %40, %41, %42 in 2 : vector<8x8x64xf32>, vector<8x8x64xf32>, vector<8x8x64xf32> -> vector<8x8x192xf32>
    %44 = vector.shape_cast %43 : vector<8x8x192xf32> to vector<64x192xf32>
    %45 = arith.truncf %44 : vector<64x192xf32> to vector<64x192xbf16>
    %c0_27 = arith.constant 0 : index
    %c0_28 = arith.constant 0 : index
    %c0_29 = arith.constant 0 : index
    %c0_30 = arith.constant 0 : index
    %46 = vector.load %arg12[%c0_27, %c0_28, %c0_29, %c0_30] : memref<1x6x192x64xbf16, #tpu.memory_space<vmem>>, vector<1x1x192x64xbf16>
    %47 = vector.shape_cast %46 : vector<1x1x192x64xbf16> to vector<192x64xbf16>
    %cst_31 = arith.constant dense<0.000000e+00> : vector<64x64xf32>
    %48 = tpu.matmul %45, %47, %cst_31 {dimension_numbers = #tpu.dot_dimension_numbers<[1], [0], [0], [1], [0, 0, 1, 1], [], []>} : vector<64x192xbf16>, vector<192x64xbf16>, vector<64x64xf32> -> vector<64x64xf32>
    %49 = arith.addf %38, %48 : vector<64x64xf32>
    %50 = vector.extract_strided_slice %37 {offsets = [1, 0, 0], sizes = [8, 10, 64], strides = [1, 1, 1]} : vector<10x10x64xf32> to vector<8x10x64xf32>
    %51 = vector.extract_strided_slice %50 {offsets = [0, 0, 0], sizes = [8, 8, 64], strides = [1, 1, 1]} : vector<8x10x64xf32> to vector<8x8x64xf32>
    %52 = vector.extract_strided_slice %50 {offsets = [0, 1, 0], sizes = [8, 8, 64], strides = [1, 1, 1]} : vector<8x10x64xf32> to vector<8x8x64xf32>
    %53 = vector.extract_strided_slice %50 {offsets = [0, 2, 0], sizes = [8, 8, 64], strides = [1, 1, 1]} : vector<8x10x64xf32> to vector<8x8x64xf32>
    %54 = tpu.concatenate %51, %52, %53 in 2 : vector<8x8x64xf32>, vector<8x8x64xf32>, vector<8x8x64xf32> -> vector<8x8x192xf32>
    %55 = vector.shape_cast %54 : vector<8x8x192xf32> to vector<64x192xf32>
    %56 = arith.truncf %55 : vector<64x192xf32> to vector<64x192xbf16>
    %c0_32 = arith.constant 0 : index
    %c1 = arith.constant 1 : index
    %c0_33 = arith.constant 0 : index
    %c0_34 = arith.constant 0 : index
    %57 = vector.load %arg12[%c0_32, %c1, %c0_33, %c0_34] : memref<1x6x192x64xbf16, #tpu.memory_space<vmem>>, vector<1x1x192x64xbf16>
    %58 = vector.shape_cast %57 : vector<1x1x192x64xbf16> to vector<192x64xbf16>
    %cst_35 = arith.constant dense<0.000000e+00> : vector<64x64xf32>
    %59 = tpu.matmul %56, %58, %cst_35 {dimension_numbers = #tpu.dot_dimension_numbers<[1], [0], [0], [1], [0, 0, 1, 1], [], []>} : vector<64x192xbf16>, vector<192x64xbf16>, vector<64x64xf32> -> vector<64x64xf32>
    %60 = arith.addf %49, %59 : vector<64x64xf32>
    %61 = vector.extract_strided_slice %37 {offsets = [2, 0, 0], sizes = [8, 10, 64], strides = [1, 1, 1]} : vector<10x10x64xf32> to vector<8x10x64xf32>
    %62 = vector.extract_strided_slice %61 {offsets = [0, 0, 0], sizes = [8, 8, 64], strides = [1, 1, 1]} : vector<8x10x64xf32> to vector<8x8x64xf32>
    %63 = vector.extract_strided_slice %61 {offsets = [0, 1, 0], sizes = [8, 8, 64], strides = [1, 1, 1]} : vector<8x10x64xf32> to vector<8x8x64xf32>
    %64 = vector.extract_strided_slice %61 {offsets = [0, 2, 0], sizes = [8, 8, 64], strides = [1, 1, 1]} : vector<8x10x64xf32> to vector<8x8x64xf32>
    %65 = tpu.concatenate %62, %63, %64 in 2 : vector<8x8x64xf32>, vector<8x8x64xf32>, vector<8x8x64xf32> -> vector<8x8x192xf32>
    %66 = vector.shape_cast %65 : vector<8x8x192xf32> to vector<64x192xf32>
    %67 = arith.truncf %66 : vector<64x192xf32> to vector<64x192xbf16>
    %c0_36 = arith.constant 0 : index
    %c2 = arith.constant 2 : index
    %c0_37 = arith.constant 0 : index
    %c0_38 = arith.constant 0 : index
    %68 = vector.load %arg12[%c0_36, %c2, %c0_37, %c0_38] : memref<1x6x192x64xbf16, #tpu.memory_space<vmem>>, vector<1x1x192x64xbf16>
    %69 = vector.shape_cast %68 : vector<1x1x192x64xbf16> to vector<192x64xbf16>
    %cst_39 = arith.constant dense<0.000000e+00> : vector<64x64xf32>
    %70 = tpu.matmul %67, %69, %cst_39 {dimension_numbers = #tpu.dot_dimension_numbers<[1], [0], [0], [1], [0, 0, 1, 1], [], []>} : vector<64x192xbf16>, vector<192x64xbf16>, vector<64x64xf32> -> vector<64x64xf32>
    %71 = arith.addf %60, %70 : vector<64x64xf32>
    %72 = vector.broadcast %33 : vector<1x64xf32> to vector<64x64xf32>
    %73 = arith.addf %71, %72 : vector<64x64xf32>
    %cst_40 = arith.constant 0.000000e+00 : f32
    %74 = vector.broadcast %cst_40 : f32 to vector<64x64xf32>
    %75 = arith.maximumf %73, %74 : vector<64x64xf32>
    %76 = vector.extract_strided_slice %24 {offsets = [0, 128], sizes = [64, 64], strides = [1, 1]} : vector<64x256xf32> to vector<64x64xf32>
    %cst_41 = arith.constant 1.000000e+00 : f32
    %77 = vector.broadcast %cst_41 : f32 to vector<64x64xf32>
    %78 = arith.addf %76, %77 : vector<64x64xf32>
    %79 = arith.mulf %75, %78 : vector<64x64xf32>
    %80 = vector.extract_strided_slice %24 {offsets = [0, 192], sizes = [64, 64], strides = [1, 1]} : vector<64x256xf32> to vector<64x64xf32>
    %81 = arith.addf %79, %80 : vector<64x64xf32>
    %82 = vector.shape_cast %81 : vector<64x64xf32> to vector<8x8x64xf32>
    %c0_42 = arith.constant 0 : index
    %c1_43 = arith.constant 1 : index
    %c0_44 = arith.constant 0 : index
    %c0_45 = arith.constant 0 : index
    %83 = vector.load %arg13[%c0_42, %c1_43, %c0_44, %c0_45] : memref<1x2x1x64xf32, #tpu.memory_space<vmem>>, vector<1x1x1x64xf32>
    %84 = vector.shape_cast %83 : vector<1x1x1x64xf32> to vector<1x64xf32>
    %cst_46 = arith.constant 0.000000e+00 : f32
    %85 = vector.broadcast %cst_46 : f32 to vector<8x1x64xf32>
    %86 = tpu.concatenate %85, %82, %85 in 1 : vector<8x1x64xf32>, vector<8x8x64xf32>, vector<8x1x64xf32> -> vector<8x10x64xf32>
    %cst_47 = arith.constant 0.000000e+00 : f32
    %87 = vector.broadcast %cst_47 : f32 to vector<1x10x64xf32>
    %88 = tpu.concatenate %87, %86, %87 in 0 : vector<1x10x64xf32>, vector<8x10x64xf32>, vector<1x10x64xf32> -> vector<10x10x64xf32>
    %cst_48 = arith.constant 0.000000e+00 : f32
    %89 = vector.broadcast %cst_48 : f32 to vector<64x64xf32>
    %90 = vector.extract_strided_slice %88 {offsets = [0, 0, 0], sizes = [8, 10, 64], strides = [1, 1, 1]} : vector<10x10x64xf32> to vector<8x10x64xf32>
    %91 = vector.extract_strided_slice %90 {offsets = [0, 0, 0], sizes = [8, 8, 64], strides = [1, 1, 1]} : vector<8x10x64xf32> to vector<8x8x64xf32>
    %92 = vector.extract_strided_slice %90 {offsets = [0, 1, 0], sizes = [8, 8, 64], strides = [1, 1, 1]} : vector<8x10x64xf32> to vector<8x8x64xf32>
    %93 = vector.extract_strided_slice %90 {offsets = [0, 2, 0], sizes = [8, 8, 64], strides = [1, 1, 1]} : vector<8x10x64xf32> to vector<8x8x64xf32>
    %94 = tpu.concatenate %91, %92, %93 in 2 : vector<8x8x64xf32>, vector<8x8x64xf32>, vector<8x8x64xf32> -> vector<8x8x192xf32>
    %95 = vector.shape_cast %94 : vector<8x8x192xf32> to vector<64x192xf32>
    %96 = arith.truncf %95 : vector<64x192xf32> to vector<64x192xbf16>
    %c0_49 = arith.constant 0 : index
    %c3 = arith.constant 3 : index
    %c0_50 = arith.constant 0 : index
    %c0_51 = arith.constant 0 : index
    %97 = vector.load %arg12[%c0_49, %c3, %c0_50, %c0_51] : memref<1x6x192x64xbf16, #tpu.memory_space<vmem>>, vector<1x1x192x64xbf16>
    %98 = vector.shape_cast %97 : vector<1x1x192x64xbf16> to vector<192x64xbf16>
    %cst_52 = arith.constant dense<0.000000e+00> : vector<64x64xf32>
    %99 = tpu.matmul %96, %98, %cst_52 {dimension_numbers = #tpu.dot_dimension_numbers<[1], [0], [0], [1], [0, 0, 1, 1], [], []>} : vector<64x192xbf16>, vector<192x64xbf16>, vector<64x64xf32> -> vector<64x64xf32>
    %100 = arith.addf %89, %99 : vector<64x64xf32>
    %101 = vector.extract_strided_slice %88 {offsets = [1, 0, 0], sizes = [8, 10, 64], strides = [1, 1, 1]} : vector<10x10x64xf32> to vector<8x10x64xf32>
    %102 = vector.extract_strided_slice %101 {offsets = [0, 0, 0], sizes = [8, 8, 64], strides = [1, 1, 1]} : vector<8x10x64xf32> to vector<8x8x64xf32>
    %103 = vector.extract_strided_slice %101 {offsets = [0, 1, 0], sizes = [8, 8, 64], strides = [1, 1, 1]} : vector<8x10x64xf32> to vector<8x8x64xf32>
    %104 = vector.extract_strided_slice %101 {offsets = [0, 2, 0], sizes = [8, 8, 64], strides = [1, 1, 1]} : vector<8x10x64xf32> to vector<8x8x64xf32>
    %105 = tpu.concatenate %102, %103, %104 in 2 : vector<8x8x64xf32>, vector<8x8x64xf32>, vector<8x8x64xf32> -> vector<8x8x192xf32>
    %106 = vector.shape_cast %105 : vector<8x8x192xf32> to vector<64x192xf32>
    %107 = arith.truncf %106 : vector<64x192xf32> to vector<64x192xbf16>
    %c0_53 = arith.constant 0 : index
    %c4 = arith.constant 4 : index
    %c0_54 = arith.constant 0 : index
    %c0_55 = arith.constant 0 : index
    %108 = vector.load %arg12[%c0_53, %c4, %c0_54, %c0_55] : memref<1x6x192x64xbf16, #tpu.memory_space<vmem>>, vector<1x1x192x64xbf16>
    %109 = vector.shape_cast %108 : vector<1x1x192x64xbf16> to vector<192x64xbf16>
    %cst_56 = arith.constant dense<0.000000e+00> : vector<64x64xf32>
    %110 = tpu.matmul %107, %109, %cst_56 {dimension_numbers = #tpu.dot_dimension_numbers<[1], [0], [0], [1], [0, 0, 1, 1], [], []>} : vector<64x192xbf16>, vector<192x64xbf16>, vector<64x64xf32> -> vector<64x64xf32>
    %111 = arith.addf %100, %110 : vector<64x64xf32>
    %112 = vector.extract_strided_slice %88 {offsets = [2, 0, 0], sizes = [8, 10, 64], strides = [1, 1, 1]} : vector<10x10x64xf32> to vector<8x10x64xf32>
    %113 = vector.extract_strided_slice %112 {offsets = [0, 0, 0], sizes = [8, 8, 64], strides = [1, 1, 1]} : vector<8x10x64xf32> to vector<8x8x64xf32>
    %114 = vector.extract_strided_slice %112 {offsets = [0, 1, 0], sizes = [8, 8, 64], strides = [1, 1, 1]} : vector<8x10x64xf32> to vector<8x8x64xf32>
    %115 = vector.extract_strided_slice %112 {offsets = [0, 2, 0], sizes = [8, 8, 64], strides = [1, 1, 1]} : vector<8x10x64xf32> to vector<8x8x64xf32>
    %116 = tpu.concatenate %113, %114, %115 in 2 : vector<8x8x64xf32>, vector<8x8x64xf32>, vector<8x8x64xf32> -> vector<8x8x192xf32>
    %117 = vector.shape_cast %116 : vector<8x8x192xf32> to vector<64x192xf32>
    %118 = arith.truncf %117 : vector<64x192xf32> to vector<64x192xbf16>
    %c0_57 = arith.constant 0 : index
    %c5 = arith.constant 5 : index
    %c0_58 = arith.constant 0 : index
    %c0_59 = arith.constant 0 : index
    %119 = vector.load %arg12[%c0_57, %c5, %c0_58, %c0_59] : memref<1x6x192x64xbf16, #tpu.memory_space<vmem>>, vector<1x1x192x64xbf16>
    %120 = vector.shape_cast %119 : vector<1x1x192x64xbf16> to vector<192x64xbf16>
    %cst_60 = arith.constant dense<0.000000e+00> : vector<64x64xf32>
    %121 = tpu.matmul %118, %120, %cst_60 {dimension_numbers = #tpu.dot_dimension_numbers<[1], [0], [0], [1], [0, 0, 1, 1], [], []>} : vector<64x192xbf16>, vector<192x64xbf16>, vector<64x64xf32> -> vector<64x64xf32>
    %122 = arith.addf %111, %121 : vector<64x64xf32>
    %123 = vector.broadcast %84 : vector<1x64xf32> to vector<64x64xf32>
    %124 = arith.addf %122, %123 : vector<64x64xf32>
    %125 = arith.addf %4, %124 : vector<64x64xf32>
    %c0_61 = arith.constant 0 : index
    %c0_62 = arith.constant 0 : index
    %126 = vector.load %arg34[%c0_61, %c0_62] : memref<64x64xf32, #tpu.memory_space<vmem>>, vector<64x64xf32>
    tpu.vector_store %arg34[%c0_61, %c0_62], %125 {strides = array<i32>} : memref<64x64xf32, #tpu.memory_space<vmem>>, vector<64x64xf32>,
    %c15_i32 = arith.constant 15 : i32
    %127 = arith.cmpi eq, %arg1, %c15_i32 : i32
    %128 = arith.extui %127 : i1 to i32
    %c0_i32_63 = arith.constant 0 : i32
    %129 = arith.cmpi ne, %128, %c0_i32_63 : i32
    scf.if %129 {
      %c0_64 = arith.constant 0 : index
      %c0_65 = arith.constant 0 : index
      %130 = vector.load %arg34[%c0_64, %c0_65] : memref<64x64xf32, #tpu.memory_space<vmem>>, vector<64x64xf32>
      %c0_66 = arith.constant 0 : index
      %c0_67 = arith.constant 0 : index
      %131 = vector.load %arg33[%c0_66, %c0_67] : memref<64x32xbf16, #tpu.memory_space<vmem>>, vector<64x32xbf16>
      %c0_68 = arith.constant 0 : index
      %c0_69 = arith.constant 0 : index
      %132 = vector.load %arg18[%c0_68, %c0_69] : memref<32x64xbf16, #tpu.memory_space<vmem>>, vector<32x64xbf16>
      %cst_70 = arith.constant dense<0.000000e+00> : vector<64x64xf32>
      %133 = tpu.matmul %131, %132, %cst_70 {dimension_numbers = #tpu.dot_dimension_numbers<[1], [0], [0], [1], [0, 0, 1, 1], [], []>} : vector<64x32xbf16>, vector<32x64xbf16>, vector<64x64xf32> -> vector<64x64xf32>
      %c0_71 = arith.constant 0 : index
      %c0_72 = arith.constant 0 : index
      %134 = vector.load %arg19[%c0_71, %c0_72] : memref<1x64xf32, #tpu.memory_space<vmem>>, vector<1x64xf32>
      %135 = vector.broadcast %134 : vector<1x64xf32> to vector<64x64xf32>
      %136 = arith.addf %133, %135 : vector<64x64xf32>
      %cst_73 = arith.constant 0.000000e+00 : f32
      %137 = vector.broadcast %cst_73 : f32 to vector<64x64xf32>
      %138 = arith.cmpf oge, %136, %137 : vector<64x64xf32>
      %cst_74 = arith.constant 1.000000e-01 : f32
      %139 = vector.broadcast %cst_74 : f32 to vector<64x64xf32>
      %140 = arith.mulf %139, %136 : vector<64x64xf32>
      %141 = arith.select %138, %136, %140 : vector<64x64xi1>, vector<64x64xf32>
      %142 = arith.truncf %141 : vector<64x64xf32> to vector<64x64xbf16>
      %c0_75 = arith.constant 0 : index
      %c0_76 = arith.constant 0 : index
      %143 = vector.load %arg20[%c0_75, %c0_76] : memref<64x128xbf16, #tpu.memory_space<vmem>>, vector<64x128xbf16>
      %cst_77 = arith.constant dense<0.000000e+00> : vector<64x128xf32>
      %144 = tpu.matmul %142, %143, %cst_77 {dimension_numbers = #tpu.dot_dimension_numbers<[1], [0], [0], [1], [0, 0, 1, 1], [], []>} : vector<64x64xbf16>, vector<64x128xbf16>, vector<64x128xf32> -> vector<64x128xf32>
      %c0_78 = arith.constant 0 : index
      %c0_79 = arith.constant 0 : index
      %145 = vector.load %arg21[%c0_78, %c0_79] : memref<1x128xf32, #tpu.memory_space<vmem>>, vector<1x128xf32>
      %146 = vector.broadcast %145 : vector<1x128xf32> to vector<64x128xf32>
      %147 = arith.addf %144, %146 : vector<64x128xf32>
      %148 = vector.extract_strided_slice %147 {offsets = [0, 0], sizes = [64, 64], strides = [1, 1]} : vector<64x128xf32> to vector<64x64xf32>
      %cst_80 = arith.constant 1.000000e+00 : f32
      %149 = vector.broadcast %cst_80 : f32 to vector<64x64xf32>
      %150 = arith.addf %148, %149 : vector<64x64xf32>
      %151 = arith.mulf %130, %150 : vector<64x64xf32>
      %152 = vector.extract_strided_slice %147 {offsets = [0, 64], sizes = [64, 64], strides = [1, 1]} : vector<64x128xf32> to vector<64x64xf32>
      %153 = arith.addf %151, %152 : vector<64x64xf32>
      %154 = vector.shape_cast %153 : vector<64x64xf32> to vector<8x8x64xf32>
      %c0_81 = arith.constant 0 : index
      %c0_82 = arith.constant 0 : index
      %155 = vector.load %arg23[%c0_81, %c0_82] : memref<1x64xf32, #tpu.memory_space<vmem>>, vector<1x64xf32>
      %cst_83 = arith.constant 0.000000e+00 : f32
      %156 = vector.broadcast %cst_83 : f32 to vector<8x1x64xf32>
      %157 = tpu.concatenate %156, %154, %156 in 1 : vector<8x1x64xf32>, vector<8x8x64xf32>, vector<8x1x64xf32> -> vector<8x10x64xf32>
      %cst_84 = arith.constant 0.000000e+00 : f32
      %158 = vector.broadcast %cst_84 : f32 to vector<1x10x64xf32>
      %159 = tpu.concatenate %158, %157, %158 in 0 : vector<1x10x64xf32>, vector<8x10x64xf32>, vector<1x10x64xf32> -> vector<10x10x64xf32>
      %cst_85 = arith.constant 0.000000e+00 : f32
      %160 = vector.broadcast %cst_85 : f32 to vector<64x64xf32>
      %161 = vector.extract_strided_slice %159 {offsets = [0, 0, 0], sizes = [8, 10, 64], strides = [1, 1, 1]} : vector<10x10x64xf32> to vector<8x10x64xf32>
      %162 = vector.extract_strided_slice %161 {offsets = [0, 0, 0], sizes = [8, 8, 64], strides = [1, 1, 1]} : vector<8x10x64xf32> to vector<8x8x64xf32>
      %163 = vector.extract_strided_slice %161 {offsets = [0, 1, 0], sizes = [8, 8, 64], strides = [1, 1, 1]} : vector<8x10x64xf32> to vector<8x8x64xf32>
      %164 = vector.extract_strided_slice %161 {offsets = [0, 2, 0], sizes = [8, 8, 64], strides = [1, 1, 1]} : vector<8x10x64xf32> to vector<8x8x64xf32>
      %165 = tpu.concatenate %162, %163, %164 in 2 : vector<8x8x64xf32>, vector<8x8x64xf32>, vector<8x8x64xf32> -> vector<8x8x192xf32>
      %166 = vector.shape_cast %165 : vector<8x8x192xf32> to vector<64x192xf32>
      %167 = arith.truncf %166 : vector<64x192xf32> to vector<64x192xbf16>
      %c0_86 = arith.constant 0 : index
      %c0_87 = arith.constant 0 : index
      %c0_88 = arith.constant 0 : index
      %168 = vector.load %arg22[%c0_86, %c0_87, %c0_88] : memref<3x192x64xbf16, #tpu.memory_space<vmem>>, vector<1x192x64xbf16>
      %169 = vector.shape_cast %168 : vector<1x192x64xbf16> to vector<192x64xbf16>
      %cst_89 = arith.constant dense<0.000000e+00> : vector<64x64xf32>
      %170 = tpu.matmul %167, %169, %cst_89 {dimension_numbers = #tpu.dot_dimension_numbers<[1], [0], [0], [1], [0, 0, 1, 1], [], []>} : vector<64x192xbf16>, vector<192x64xbf16>, vector<64x64xf32> -> vector<64x64xf32>
      %171 = arith.addf %160, %170 : vector<64x64xf32>
      %172 = vector.extract_strided_slice %159 {offsets = [1, 0, 0], sizes = [8, 10, 64], strides = [1, 1, 1]} : vector<10x10x64xf32> to vector<8x10x64xf32>
      %173 = vector.extract_strided_slice %172 {offsets = [0, 0, 0], sizes = [8, 8, 64], strides = [1, 1, 1]} : vector<8x10x64xf32> to vector<8x8x64xf32>
      %174 = vector.extract_strided_slice %172 {offsets = [0, 1, 0], sizes = [8, 8, 64], strides = [1, 1, 1]} : vector<8x10x64xf32> to vector<8x8x64xf32>
      %175 = vector.extract_strided_slice %172 {offsets = [0, 2, 0], sizes = [8, 8, 64], strides = [1, 1, 1]} : vector<8x10x64xf32> to vector<8x8x64xf32>
      %176 = tpu.concatenate %173, %174, %175 in 2 : vector<8x8x64xf32>, vector<8x8x64xf32>, vector<8x8x64xf32> -> vector<8x8x192xf32>
      %177 = vector.shape_cast %176 : vector<8x8x192xf32> to vector<64x192xf32>
      %178 = arith.truncf %177 : vector<64x192xf32> to vector<64x192xbf16>
      %c1_90 = arith.constant 1 : index
      %c0_91 = arith.constant 0 : index
      %c0_92 = arith.constant 0 : index
      %179 = vector.load %arg22[%c1_90, %c0_91, %c0_92] : memref<3x192x64xbf16, #tpu.memory_space<vmem>>, vector<1x192x64xbf16>
      %180 = vector.shape_cast %179 : vector<1x192x64xbf16> to vector<192x64xbf16>
      %cst_93 = arith.constant dense<0.000000e+00> : vector<64x64xf32>
      %181 = tpu.matmul %178, %180, %cst_93 {dimension_numbers = #tpu.dot_dimension_numbers<[1], [0], [0], [1], [0, 0, 1, 1], [], []>} : vector<64x192xbf16>, vector<192x64xbf16>, vector<64x64xf32> -> vector<64x64xf32>
      %182 = arith.addf %171, %181 : vector<64x64xf32>
      %183 = vector.extract_strided_slice %159 {offsets = [2, 0, 0], sizes = [8, 10, 64], strides = [1, 1, 1]} : vector<10x10x64xf32> to vector<8x10x64xf32>
      %184 = vector.extract_strided_slice %183 {offsets = [0, 0, 0], sizes = [8, 8, 64], strides = [1, 1, 1]} : vector<8x10x64xf32> to vector<8x8x64xf32>
      %185 = vector.extract_strided_slice %183 {offsets = [0, 1, 0], sizes = [8, 8, 64], strides = [1, 1, 1]} : vector<8x10x64xf32> to vector<8x8x64xf32>
      %186 = vector.extract_strided_slice %183 {offsets = [0, 2, 0], sizes = [8, 8, 64], strides = [1, 1, 1]} : vector<8x10x64xf32> to vector<8x8x64xf32>
      %187 = tpu.concatenate %184, %185, %186 in 2 : vector<8x8x64xf32>, vector<8x8x64xf32>, vector<8x8x64xf32> -> vector<8x8x192xf32>
      %188 = vector.shape_cast %187 : vector<8x8x192xf32> to vector<64x192xf32>
      %189 = arith.truncf %188 : vector<64x192xf32> to vector<64x192xbf16>
      %c2_94 = arith.constant 2 : index
      %c0_95 = arith.constant 0 : index
      %c0_96 = arith.constant 0 : index
      %190 = vector.load %arg22[%c2_94, %c0_95, %c0_96] : memref<3x192x64xbf16, #tpu.memory_space<vmem>>, vector<1x192x64xbf16>
      %191 = vector.shape_cast %190 : vector<1x192x64xbf16> to vector<192x64xbf16>
      %cst_97 = arith.constant dense<0.000000e+00> : vector<64x64xf32>
      %192 = tpu.matmul %189, %191, %cst_97 {dimension_numbers = #tpu.dot_dimension_numbers<[1], [0], [0], [1], [0, 0, 1, 1], [], []>} : vector<64x192xbf16>, vector<192x64xbf16>, vector<64x64xf32> -> vector<64x64xf32>
      %193 = arith.addf %182, %192 : vector<64x64xf32>
      %194 = vector.broadcast %155 : vector<1x64xf32> to vector<64x64xf32>
      %195 = arith.addf %193, %194 : vector<64x64xf32>
      %c0_98 = arith.constant 0 : index
      %c0_99 = arith.constant 0 : index
      %196 = vector.load %arg35[%c0_98, %c0_99] : memref<64x64xf32, #tpu.memory_space<vmem>>, vector<64x64xf32>
      %197 = arith.addf %196, %195 : vector<64x64xf32>
      %198 = vector.shape_cast %197 : vector<64x64xf32> to vector<8x8x64xf32>
      %c0_100 = arith.constant 0 : index
      %c0_101 = arith.constant 0 : index
      %199 = vector.load %arg25[%c0_100, %c0_101] : memref<1x64xf32, #tpu.memory_space<vmem>>, vector<1x64xf32>
      %cst_102 = arith.constant 0.000000e+00 : f32
      %200 = vector.broadcast %cst_102 : f32 to vector<8x2x64xf32>
      %201 = tpu.concatenate %200, %198, %200 in 1 : vector<8x2x64xf32>, vector<8x8x64xf32>, vector<8x2x64xf32> -> vector<8x12x64xf32>
      %cst_103 = arith.constant 0.000000e+00 : f32
      %202 = vector.broadcast %cst_103 : f32 to vector<2x12x64xf32>
      %203 = tpu.concatenate %202, %201, %202 in 0 : vector<2x12x64xf32>, vector<8x12x64xf32>, vector<2x12x64xf32> -> vector<12x12x64xf32>
      %cst_104 = arith.constant 0.000000e+00 : f32
      %204 = vector.broadcast %cst_104 : f32 to vector<64x64xf32>
      %205 = vector.extract_strided_slice %203 {offsets = [0, 0, 0], sizes = [8, 12, 64], strides = [1, 1, 1]} : vector<12x12x64xf32> to vector<8x12x64xf32>
      %206 = vector.extract_strided_slice %205 {offsets = [0, 0, 0], sizes = [8, 8, 64], strides = [1, 1, 1]} : vector<8x12x64xf32> to vector<8x8x64xf32>
      %207 = vector.extract_strided_slice %205 {offsets = [0, 1, 0], sizes = [8, 8, 64], strides = [1, 1, 1]} : vector<8x12x64xf32> to vector<8x8x64xf32>
      %208 = vector.extract_strided_slice %205 {offsets = [0, 2, 0], sizes = [8, 8, 64], strides = [1, 1, 1]} : vector<8x12x64xf32> to vector<8x8x64xf32>
      %209 = vector.extract_strided_slice %205 {offsets = [0, 3, 0], sizes = [8, 8, 64], strides = [1, 1, 1]} : vector<8x12x64xf32> to vector<8x8x64xf32>
      %210 = vector.extract_strided_slice %205 {offsets = [0, 4, 0], sizes = [8, 8, 64], strides = [1, 1, 1]} : vector<8x12x64xf32> to vector<8x8x64xf32>
      %211 = tpu.concatenate %206, %207, %208, %209, %210 in 2 : vector<8x8x64xf32>, vector<8x8x64xf32>, vector<8x8x64xf32>, vector<8x8x64xf32>, vector<8x8x64xf32> -> vector<8x8x320xf32>
      %212 = vector.shape_cast %211 : vector<8x8x320xf32> to vector<64x320xf32>
      %213 = arith.truncf %212 : vector<64x320xf32> to vector<64x320xbf16>
      %c0_105 = arith.constant 0 : index
      %c0_106 = arith.constant 0 : index
      %c0_107 = arith.constant 0 : index
      %214 = vector.load %arg24[%c0_105, %c0_106, %c0_107] : memref<5x320x64xbf16, #tpu.memory_space<vmem>>, vector<1x320x64xbf16>
      %215 = vector.shape_cast %214 : vector<1x320x64xbf16> to vector<320x64xbf16>
      %cst_108 = arith.constant dense<0.000000e+00> : vector<64x64xf32>
      %216 = tpu.matmul %213, %215, %cst_108 {dimension_numbers = #tpu.dot_dimension_numbers<[1], [0], [0], [1], [0, 0, 1, 1], [], []>} : vector<64x320xbf16>, vector<320x64xbf16>, vector<64x64xf32> -> vector<64x64xf32>
      %217 = arith.addf %204, %216 : vector<64x64xf32>
      %218 = vector.extract_strided_slice %203 {offsets = [1, 0, 0], sizes = [8, 12, 64], strides = [1, 1, 1]} : vector<12x12x64xf32> to vector<8x12x64xf32>
      %219 = vector.extract_strided_slice %218 {offsets = [0, 0, 0], sizes = [8, 8, 64], strides = [1, 1, 1]} : vector<8x12x64xf32> to vector<8x8x64xf32>
      %220 = vector.extract_strided_slice %218 {offsets = [0, 1, 0], sizes = [8, 8, 64], strides = [1, 1, 1]} : vector<8x12x64xf32> to vector<8x8x64xf32>
      %221 = vector.extract_strided_slice %218 {offsets = [0, 2, 0], sizes = [8, 8, 64], strides = [1, 1, 1]} : vector<8x12x64xf32> to vector<8x8x64xf32>
      %222 = vector.extract_strided_slice %218 {offsets = [0, 3, 0], sizes = [8, 8, 64], strides = [1, 1, 1]} : vector<8x12x64xf32> to vector<8x8x64xf32>
      %223 = vector.extract_strided_slice %218 {offsets = [0, 4, 0], sizes = [8, 8, 64], strides = [1, 1, 1]} : vector<8x12x64xf32> to vector<8x8x64xf32>
      %224 = tpu.concatenate %219, %220, %221, %222, %223 in 2 : vector<8x8x64xf32>, vector<8x8x64xf32>, vector<8x8x64xf32>, vector<8x8x64xf32>, vector<8x8x64xf32> -> vector<8x8x320xf32>
      %225 = vector.shape_cast %224 : vector<8x8x320xf32> to vector<64x320xf32>
      %226 = arith.truncf %225 : vector<64x320xf32> to vector<64x320xbf16>
      %c1_109 = arith.constant 1 : index
      %c0_110 = arith.constant 0 : index
      %c0_111 = arith.constant 0 : index
      %227 = vector.load %arg24[%c1_109, %c0_110, %c0_111] : memref<5x320x64xbf16, #tpu.memory_space<vmem>>, vector<1x320x64xbf16>
      %228 = vector.shape_cast %227 : vector<1x320x64xbf16> to vector<320x64xbf16>
      %cst_112 = arith.constant dense<0.000000e+00> : vector<64x64xf32>
      %229 = tpu.matmul %226, %228, %cst_112 {dimension_numbers = #tpu.dot_dimension_numbers<[1], [0], [0], [1], [0, 0, 1, 1], [], []>} : vector<64x320xbf16>, vector<320x64xbf16>, vector<64x64xf32> -> vector<64x64xf32>
      %230 = arith.addf %217, %229 : vector<64x64xf32>
      %231 = vector.extract_strided_slice %203 {offsets = [2, 0, 0], sizes = [8, 12, 64], strides = [1, 1, 1]} : vector<12x12x64xf32> to vector<8x12x64xf32>
      %232 = vector.extract_strided_slice %231 {offsets = [0, 0, 0], sizes = [8, 8, 64], strides = [1, 1, 1]} : vector<8x12x64xf32> to vector<8x8x64xf32>
      %233 = vector.extract_strided_slice %231 {offsets = [0, 1, 0], sizes = [8, 8, 64], strides = [1, 1, 1]} : vector<8x12x64xf32> to vector<8x8x64xf32>
      %234 = vector.extract_strided_slice %231 {offsets = [0, 2, 0], sizes = [8, 8, 64], strides = [1, 1, 1]} : vector<8x12x64xf32> to vector<8x8x64xf32>
      %235 = vector.extract_strided_slice %231 {offsets = [0, 3, 0], sizes = [8, 8, 64], strides = [1, 1, 1]} : vector<8x12x64xf32> to vector<8x8x64xf32>
      %236 = vector.extract_strided_slice %231 {offsets = [0, 4, 0], sizes = [8, 8, 64], strides = [1, 1, 1]} : vector<8x12x64xf32> to vector<8x8x64xf32>
      %237 = tpu.concatenate %232, %233, %234, %235, %236 in 2 : vector<8x8x64xf32>, vector<8x8x64xf32>, vector<8x8x64xf32>, vector<8x8x64xf32>, vector<8x8x64xf32> -> vector<8x8x320xf32>
      %238 = vector.shape_cast %237 : vector<8x8x320xf32> to vector<64x320xf32>
      %239 = arith.truncf %238 : vector<64x320xf32> to vector<64x320xbf16>
      %c2_113 = arith.constant 2 : index
      %c0_114 = arith.constant 0 : index
      %c0_115 = arith.constant 0 : index
      %240 = vector.load %arg24[%c2_113, %c0_114, %c0_115] : memref<5x320x64xbf16, #tpu.memory_space<vmem>>, vector<1x320x64xbf16>
      %241 = vector.shape_cast %240 : vector<1x320x64xbf16> to vector<320x64xbf16>
      %cst_116 = arith.constant dense<0.000000e+00> : vector<64x64xf32>
      %242 = tpu.matmul %239, %241, %cst_116 {dimension_numbers = #tpu.dot_dimension_numbers<[1], [0], [0], [1], [0, 0, 1, 1], [], []>} : vector<64x320xbf16>, vector<320x64xbf16>, vector<64x64xf32> -> vector<64x64xf32>
      %243 = arith.addf %230, %242 : vector<64x64xf32>
      %244 = vector.extract_strided_slice %203 {offsets = [3, 0, 0], sizes = [8, 12, 64], strides = [1, 1, 1]} : vector<12x12x64xf32> to vector<8x12x64xf32>
      %245 = vector.extract_strided_slice %244 {offsets = [0, 0, 0], sizes = [8, 8, 64], strides = [1, 1, 1]} : vector<8x12x64xf32> to vector<8x8x64xf32>
      %246 = vector.extract_strided_slice %244 {offsets = [0, 1, 0], sizes = [8, 8, 64], strides = [1, 1, 1]} : vector<8x12x64xf32> to vector<8x8x64xf32>
      %247 = vector.extract_strided_slice %244 {offsets = [0, 2, 0], sizes = [8, 8, 64], strides = [1, 1, 1]} : vector<8x12x64xf32> to vector<8x8x64xf32>
      %248 = vector.extract_strided_slice %244 {offsets = [0, 3, 0], sizes = [8, 8, 64], strides = [1, 1, 1]} : vector<8x12x64xf32> to vector<8x8x64xf32>
      %249 = vector.extract_strided_slice %244 {offsets = [0, 4, 0], sizes = [8, 8, 64], strides = [1, 1, 1]} : vector<8x12x64xf32> to vector<8x8x64xf32>
      %250 = tpu.concatenate %245, %246, %247, %248, %249 in 2 : vector<8x8x64xf32>, vector<8x8x64xf32>, vector<8x8x64xf32>, vector<8x8x64xf32>, vector<8x8x64xf32> -> vector<8x8x320xf32>
      %251 = vector.shape_cast %250 : vector<8x8x320xf32> to vector<64x320xf32>
      %252 = arith.truncf %251 : vector<64x320xf32> to vector<64x320xbf16>
      %c3_117 = arith.constant 3 : index
      %c0_118 = arith.constant 0 : index
      %c0_119 = arith.constant 0 : index
      %253 = vector.load %arg24[%c3_117, %c0_118, %c0_119] : memref<5x320x64xbf16, #tpu.memory_space<vmem>>, vector<1x320x64xbf16>
      %254 = vector.shape_cast %253 : vector<1x320x64xbf16> to vector<320x64xbf16>
      %cst_120 = arith.constant dense<0.000000e+00> : vector<64x64xf32>
      %255 = tpu.matmul %252, %254, %cst_120 {dimension_numbers = #tpu.dot_dimension_numbers<[1], [0], [0], [1], [0, 0, 1, 1], [], []>} : vector<64x320xbf16>, vector<320x64xbf16>, vector<64x64xf32> -> vector<64x64xf32>
      %256 = arith.addf %243, %255 : vector<64x64xf32>
      %257 = vector.extract_strided_slice %203 {offsets = [4, 0, 0], sizes = [8, 12, 64], strides = [1, 1, 1]} : vector<12x12x64xf32> to vector<8x12x64xf32>
      %258 = vector.extract_strided_slice %257 {offsets = [0, 0, 0], sizes = [8, 8, 64], strides = [1, 1, 1]} : vector<8x12x64xf32> to vector<8x8x64xf32>
      %259 = vector.extract_strided_slice %257 {offsets = [0, 1, 0], sizes = [8, 8, 64], strides = [1, 1, 1]} : vector<8x12x64xf32> to vector<8x8x64xf32>
      %260 = vector.extract_strided_slice %257 {offsets = [0, 2, 0], sizes = [8, 8, 64], strides = [1, 1, 1]} : vector<8x12x64xf32> to vector<8x8x64xf32>
      %261 = vector.extract_strided_slice %257 {offsets = [0, 3, 0], sizes = [8, 8, 64], strides = [1, 1, 1]} : vector<8x12x64xf32> to vector<8x8x64xf32>
      %262 = vector.extract_strided_slice %257 {offsets = [0, 4, 0], sizes = [8, 8, 64], strides = [1, 1, 1]} : vector<8x12x64xf32> to vector<8x8x64xf32>
      %263 = tpu.concatenate %258, %259, %260, %261, %262 in 2 : vector<8x8x64xf32>, vector<8x8x64xf32>, vector<8x8x64xf32>, vector<8x8x64xf32>, vector<8x8x64xf32> -> vector<8x8x320xf32>
      %264 = vector.shape_cast %263 : vector<8x8x320xf32> to vector<64x320xf32>
      %265 = arith.truncf %264 : vector<64x320xf32> to vector<64x320xbf16>
      %c4_121 = arith.constant 4 : index
      %c0_122 = arith.constant 0 : index
      %c0_123 = arith.constant 0 : index
      %266 = vector.load %arg24[%c4_121, %c0_122, %c0_123] : memref<5x320x64xbf16, #tpu.memory_space<vmem>>, vector<1x320x64xbf16>
      %267 = vector.shape_cast %266 : vector<1x320x64xbf16> to vector<320x64xbf16>
      %cst_124 = arith.constant dense<0.000000e+00> : vector<64x64xf32>
      %268 = tpu.matmul %265, %267, %cst_124 {dimension_numbers = #tpu.dot_dimension_numbers<[1], [0], [0], [1], [0, 0, 1, 1], [], []>} : vector<64x320xbf16>, vector<320x64xbf16>, vector<64x64xf32> -> vector<64x64xf32>
      %269 = arith.addf %256, %268 : vector<64x64xf32>
      %270 = vector.broadcast %199 : vector<1x64xf32> to vector<64x64xf32>
      %271 = arith.addf %269, %270 : vector<64x64xf32>
      %cst_125 = arith.constant 0.000000e+00 : f32
      %272 = vector.broadcast %cst_125 : f32 to vector<64x64xf32>
      %273 = arith.maximumf %271, %272 : vector<64x64xf32>
      %274 = vector.shape_cast %273 : vector<64x64xf32> to vector<8x8x64xf32>
      %c0_126 = arith.constant 0 : index
      %c0_127 = arith.constant 0 : index
      %275 = vector.load %arg27[%c0_126, %c0_127] : memref<1x64xf32, #tpu.memory_space<vmem>>, vector<1x64xf32>
      %cst_128 = arith.constant 0.000000e+00 : f32
      %276 = vector.broadcast %cst_128 : f32 to vector<8x1x64xf32>
      %277 = tpu.concatenate %276, %274, %276 in 1 : vector<8x1x64xf32>, vector<8x8x64xf32>, vector<8x1x64xf32> -> vector<8x10x64xf32>
      %cst_129 = arith.constant 0.000000e+00 : f32
      %278 = vector.broadcast %cst_129 : f32 to vector<1x10x64xf32>
      %279 = tpu.concatenate %278, %277, %278 in 0 : vector<1x10x64xf32>, vector<8x10x64xf32>, vector<1x10x64xf32> -> vector<10x10x64xf32>
      %cst_130 = arith.constant 0.000000e+00 : f32
      %280 = vector.broadcast %cst_130 : f32 to vector<64x64xf32>
      %281 = vector.extract_strided_slice %279 {offsets = [0, 0, 0], sizes = [8, 10, 64], strides = [1, 1, 1]} : vector<10x10x64xf32> to vector<8x10x64xf32>
      %282 = vector.extract_strided_slice %281 {offsets = [0, 0, 0], sizes = [8, 8, 64], strides = [1, 1, 1]} : vector<8x10x64xf32> to vector<8x8x64xf32>
      %283 = vector.extract_strided_slice %281 {offsets = [0, 1, 0], sizes = [8, 8, 64], strides = [1, 1, 1]} : vector<8x10x64xf32> to vector<8x8x64xf32>
      %284 = vector.extract_strided_slice %281 {offsets = [0, 2, 0], sizes = [8, 8, 64], strides = [1, 1, 1]} : vector<8x10x64xf32> to vector<8x8x64xf32>
      %285 = tpu.concatenate %282, %283, %284 in 2 : vector<8x8x64xf32>, vector<8x8x64xf32>, vector<8x8x64xf32> -> vector<8x8x192xf32>
      %286 = vector.shape_cast %285 : vector<8x8x192xf32> to vector<64x192xf32>
      %287 = arith.truncf %286 : vector<64x192xf32> to vector<64x192xbf16>
      %c0_131 = arith.constant 0 : index
      %c0_132 = arith.constant 0 : index
      %c0_133 = arith.constant 0 : index
      %288 = vector.load %arg26[%c0_131, %c0_132, %c0_133] : memref<3x192x64xbf16, #tpu.memory_space<vmem>>, vector<1x192x64xbf16>
      %289 = vector.shape_cast %288 : vector<1x192x64xbf16> to vector<192x64xbf16>
      %cst_134 = arith.constant dense<0.000000e+00> : vector<64x64xf32>
      %290 = tpu.matmul %287, %289, %cst_134 {dimension_numbers = #tpu.dot_dimension_numbers<[1], [0], [0], [1], [0, 0, 1, 1], [], []>} : vector<64x192xbf16>, vector<192x64xbf16>, vector<64x64xf32> -> vector<64x64xf32>
      %291 = arith.addf %280, %290 : vector<64x64xf32>
      %292 = vector.extract_strided_slice %279 {offsets = [1, 0, 0], sizes = [8, 10, 64], strides = [1, 1, 1]} : vector<10x10x64xf32> to vector<8x10x64xf32>
      %293 = vector.extract_strided_slice %292 {offsets = [0, 0, 0], sizes = [8, 8, 64], strides = [1, 1, 1]} : vector<8x10x64xf32> to vector<8x8x64xf32>
      %294 = vector.extract_strided_slice %292 {offsets = [0, 1, 0], sizes = [8, 8, 64], strides = [1, 1, 1]} : vector<8x10x64xf32> to vector<8x8x64xf32>
      %295 = vector.extract_strided_slice %292 {offsets = [0, 2, 0], sizes = [8, 8, 64], strides = [1, 1, 1]} : vector<8x10x64xf32> to vector<8x8x64xf32>
      %296 = tpu.concatenate %293, %294, %295 in 2 : vector<8x8x64xf32>, vector<8x8x64xf32>, vector<8x8x64xf32> -> vector<8x8x192xf32>
      %297 = vector.shape_cast %296 : vector<8x8x192xf32> to vector<64x192xf32>
      %298 = arith.truncf %297 : vector<64x192xf32> to vector<64x192xbf16>
      %c1_135 = arith.constant 1 : index
      %c0_136 = arith.constant 0 : index
      %c0_137 = arith.constant 0 : index
      %299 = vector.load %arg26[%c1_135, %c0_136, %c0_137] : memref<3x192x64xbf16, #tpu.memory_space<vmem>>, vector<1x192x64xbf16>
      %300 = vector.shape_cast %299 : vector<1x192x64xbf16> to vector<192x64xbf16>
      %cst_138 = arith.constant dense<0.000000e+00> : vector<64x64xf32>
      %301 = tpu.matmul %298, %300, %cst_138 {dimension_numbers = #tpu.dot_dimension_numbers<[1], [0], [0], [1], [0, 0, 1, 1], [], []>} : vector<64x192xbf16>, vector<192x64xbf16>, vector<64x64xf32> -> vector<64x64xf32>
      %302 = arith.addf %291, %301 : vector<64x64xf32>
      %303 = vector.extract_strided_slice %279 {offsets = [2, 0, 0], sizes = [8, 10, 64], strides = [1, 1, 1]} : vector<10x10x64xf32> to vector<8x10x64xf32>
      %304 = vector.extract_strided_slice %303 {offsets = [0, 0, 0], sizes = [8, 8, 64], strides = [1, 1, 1]} : vector<8x10x64xf32> to vector<8x8x64xf32>
      %305 = vector.extract_strided_slice %303 {offsets = [0, 1, 0], sizes = [8, 8, 64], strides = [1, 1, 1]} : vector<8x10x64xf32> to vector<8x8x64xf32>
      %306 = vector.extract_strided_slice %303 {offsets = [0, 2, 0], sizes = [8, 8, 64], strides = [1, 1, 1]} : vector<8x10x64xf32> to vector<8x8x64xf32>
      %307 = tpu.concatenate %304, %305, %306 in 2 : vector<8x8x64xf32>, vector<8x8x64xf32>, vector<8x8x64xf32> -> vector<8x8x192xf32>
      %308 = vector.shape_cast %307 : vector<8x8x192xf32> to vector<64x192xf32>
      %309 = arith.truncf %308 : vector<64x192xf32> to vector<64x192xbf16>
      %c2_139 = arith.constant 2 : index
      %c0_140 = arith.constant 0 : index
      %c0_141 = arith.constant 0 : index
      %310 = vector.load %arg26[%c2_139, %c0_140, %c0_141] : memref<3x192x64xbf16, #tpu.memory_space<vmem>>, vector<1x192x64xbf16>
      %311 = vector.shape_cast %310 : vector<1x192x64xbf16> to vector<192x64xbf16>
      %cst_142 = arith.constant dense<0.000000e+00> : vector<64x64xf32>
      %312 = tpu.matmul %309, %311, %cst_142 {dimension_numbers = #tpu.dot_dimension_numbers<[1], [0], [0], [1], [0, 0, 1, 1], [], []>} : vector<64x192xbf16>, vector<192x64xbf16>, vector<64x64xf32> -> vector<64x64xf32>
      %313 = arith.addf %302, %312 : vector<64x64xf32>
      %314 = vector.broadcast %275 : vector<1x64xf32> to vector<64x64xf32>
      %315 = arith.addf %313, %314 : vector<64x64xf32>
      %cst_143 = arith.constant 0.000000e+00 : f32
      %316 = vector.broadcast %cst_143 : f32 to vector<64x64xf32>
      %317 = arith.maximumf %315, %316 : vector<64x64xf32>
      %318 = vector.shape_cast %317 : vector<64x64xf32> to vector<8x8x64xf32>
      %c0_144 = arith.constant 0 : index
      %c0_145 = arith.constant 0 : index
      %319 = vector.load %arg29[%c0_144, %c0_145] : memref<1x32xf32, #tpu.memory_space<vmem>>, vector<1x32xf32>
      %cst_146 = arith.constant 0.000000e+00 : f32
      %320 = vector.broadcast %cst_146 : f32 to vector<8x1x64xf32>
      %321 = tpu.concatenate %320, %318, %320 in 1 : vector<8x1x64xf32>, vector<8x8x64xf32>, vector<8x1x64xf32> -> vector<8x10x64xf32>
      %cst_147 = arith.constant 0.000000e+00 : f32
      %322 = vector.broadcast %cst_147 : f32 to vector<1x10x64xf32>
      %323 = tpu.concatenate %322, %321, %322 in 0 : vector<1x10x64xf32>, vector<8x10x64xf32>, vector<1x10x64xf32> -> vector<10x10x64xf32>
      %cst_148 = arith.constant 0.000000e+00 : f32
      %324 = vector.broadcast %cst_148 : f32 to vector<64x32xf32>
      %325 = vector.extract_strided_slice %323 {offsets = [0, 0, 0], sizes = [8, 10, 64], strides = [1, 1, 1]} : vector<10x10x64xf32> to vector<8x10x64xf32>
      %326 = vector.extract_strided_slice %325 {offsets = [0, 0, 0], sizes = [8, 8, 64], strides = [1, 1, 1]} : vector<8x10x64xf32> to vector<8x8x64xf32>
      %327 = vector.extract_strided_slice %325 {offsets = [0, 1, 0], sizes = [8, 8, 64], strides = [1, 1, 1]} : vector<8x10x64xf32> to vector<8x8x64xf32>
      %328 = vector.extract_strided_slice %325 {offsets = [0, 2, 0], sizes = [8, 8, 64], strides = [1, 1, 1]} : vector<8x10x64xf32> to vector<8x8x64xf32>
      %329 = tpu.concatenate %326, %327, %328 in 2 : vector<8x8x64xf32>, vector<8x8x64xf32>, vector<8x8x64xf32> -> vector<8x8x192xf32>
      %330 = vector.shape_cast %329 : vector<8x8x192xf32> to vector<64x192xf32>
      %331 = arith.truncf %330 : vector<64x192xf32> to vector<64x192xbf16>
      %c0_149 = arith.constant 0 : index
      %c0_150 = arith.constant 0 : index
      %c0_151 = arith.constant 0 : index
      %332 = vector.load %arg28[%c0_149, %c0_150, %c0_151] : memref<3x192x32xbf16, #tpu.memory_space<vmem>>, vector<1x192x32xbf16>
      %333 = vector.shape_cast %332 : vector<1x192x32xbf16> to vector<192x32xbf16>
      %cst_152 = arith.constant dense<0.000000e+00> : vector<64x32xf32>
      %334 = tpu.matmul %331, %333, %cst_152 {dimension_numbers = #tpu.dot_dimension_numbers<[1], [0], [0], [1], [0, 0, 1, 1], [], []>} : vector<64x192xbf16>, vector<192x32xbf16>, vector<64x32xf32> -> vector<64x32xf32>
      %335 = arith.addf %324, %334 : vector<64x32xf32>
      %336 = vector.extract_strided_slice %323 {offsets = [1, 0, 0], sizes = [8, 10, 64], strides = [1, 1, 1]} : vector<10x10x64xf32> to vector<8x10x64xf32>
      %337 = vector.extract_strided_slice %336 {offsets = [0, 0, 0], sizes = [8, 8, 64], strides = [1, 1, 1]} : vector<8x10x64xf32> to vector<8x8x64xf32>
      %338 = vector.extract_strided_slice %336 {offsets = [0, 1, 0], sizes = [8, 8, 64], strides = [1, 1, 1]} : vector<8x10x64xf32> to vector<8x8x64xf32>
      %339 = vector.extract_strided_slice %336 {offsets = [0, 2, 0], sizes = [8, 8, 64], strides = [1, 1, 1]} : vector<8x10x64xf32> to vector<8x8x64xf32>
      %340 = tpu.concatenate %337, %338, %339 in 2 : vector<8x8x64xf32>, vector<8x8x64xf32>, vector<8x8x64xf32> -> vector<8x8x192xf32>
      %341 = vector.shape_cast %340 : vector<8x8x192xf32> to vector<64x192xf32>
      %342 = arith.truncf %341 : vector<64x192xf32> to vector<64x192xbf16>
      %c1_153 = arith.constant 1 : index
      %c0_154 = arith.constant 0 : index
      %c0_155 = arith.constant 0 : index
      %343 = vector.load %arg28[%c1_153, %c0_154, %c0_155] : memref<3x192x32xbf16, #tpu.memory_space<vmem>>, vector<1x192x32xbf16>
      %344 = vector.shape_cast %343 : vector<1x192x32xbf16> to vector<192x32xbf16>
      %cst_156 = arith.constant dense<0.000000e+00> : vector<64x32xf32>
      %345 = tpu.matmul %342, %344, %cst_156 {dimension_numbers = #tpu.dot_dimension_numbers<[1], [0], [0], [1], [0, 0, 1, 1], [], []>} : vector<64x192xbf16>, vector<192x32xbf16>, vector<64x32xf32> -> vector<64x32xf32>
      %346 = arith.addf %335, %345 : vector<64x32xf32>
      %347 = vector.extract_strided_slice %323 {offsets = [2, 0, 0], sizes = [8, 10, 64], strides = [1, 1, 1]} : vector<10x10x64xf32> to vector<8x10x64xf32>
      %348 = vector.extract_strided_slice %347 {offsets = [0, 0, 0], sizes = [8, 8, 64], strides = [1, 1, 1]} : vector<8x10x64xf32> to vector<8x8x64xf32>
      %349 = vector.extract_strided_slice %347 {offsets = [0, 1, 0], sizes = [8, 8, 64], strides = [1, 1, 1]} : vector<8x10x64xf32> to vector<8x8x64xf32>
      %350 = vector.extract_strided_slice %347 {offsets = [0, 2, 0], sizes = [8, 8, 64], strides = [1, 1, 1]} : vector<8x10x64xf32> to vector<8x8x64xf32>
      %351 = tpu.concatenate %348, %349, %350 in 2 : vector<8x8x64xf32>, vector<8x8x64xf32>, vector<8x8x64xf32> -> vector<8x8x192xf32>
      %352 = vector.shape_cast %351 : vector<8x8x192xf32> to vector<64x192xf32>
      %353 = arith.truncf %352 : vector<64x192xf32> to vector<64x192xbf16>
      %c2_157 = arith.constant 2 : index
      %c0_158 = arith.constant 0 : index
      %c0_159 = arith.constant 0 : index
      %354 = vector.load %arg28[%c2_157, %c0_158, %c0_159] : memref<3x192x32xbf16, #tpu.memory_space<vmem>>, vector<1x192x32xbf16>
      %355 = vector.shape_cast %354 : vector<1x192x32xbf16> to vector<192x32xbf16>
      %cst_160 = arith.constant dense<0.000000e+00> : vector<64x32xf32>
      %356 = tpu.matmul %353, %355, %cst_160 {dimension_numbers = #tpu.dot_dimension_numbers<[1], [0], [0], [1], [0, 0, 1, 1], [], []>} : vector<64x192xbf16>, vector<192x32xbf16>, vector<64x32xf32> -> vector<64x32xf32>
      %357 = arith.addf %346, %356 : vector<64x32xf32>
      %358 = vector.broadcast %319 : vector<1x32xf32> to vector<64x32xf32>
      %359 = arith.addf %357, %358 : vector<64x32xf32>
      %cst_161 = arith.constant 0.000000e+00 : f32
      %360 = vector.broadcast %cst_161 : f32 to vector<64x32xf32>
      %361 = arith.maximumf %359, %360 : vector<64x32xf32>
      %362 = vector.shape_cast %361 : vector<64x32xf32> to vector<8x8x32xf32>
      %c0_162 = arith.constant 0 : index
      %c0_163 = arith.constant 0 : index
      %363 = vector.load %arg31[%c0_162, %c0_163] : memref<1x16xf32, #tpu.memory_space<vmem>>, vector<1x16xf32>
      %cst_164 = arith.constant 0.000000e+00 : f32
      %364 = vector.broadcast %cst_164 : f32 to vector<8x1x32xf32>
      %365 = tpu.concatenate %364, %362, %364 in 1 : vector<8x1x32xf32>, vector<8x8x32xf32>, vector<8x1x32xf32> -> vector<8x10x32xf32>
      %cst_165 = arith.constant 0.000000e+00 : f32
      %366 = vector.broadcast %cst_165 : f32 to vector<1x10x32xf32>
      %367 = tpu.concatenate %366, %365, %366 in 0 : vector<1x10x32xf32>, vector<8x10x32xf32>, vector<1x10x32xf32> -> vector<10x10x32xf32>
      %cst_166 = arith.constant 0.000000e+00 : f32
      %368 = vector.broadcast %cst_166 : f32 to vector<64x16xf32>
      %369 = vector.extract_strided_slice %367 {offsets = [0, 0, 0], sizes = [8, 10, 32], strides = [1, 1, 1]} : vector<10x10x32xf32> to vector<8x10x32xf32>
      %370 = vector.extract_strided_slice %369 {offsets = [0, 0, 0], sizes = [8, 8, 32], strides = [1, 1, 1]} : vector<8x10x32xf32> to vector<8x8x32xf32>
      %371 = vector.extract_strided_slice %369 {offsets = [0, 1, 0], sizes = [8, 8, 32], strides = [1, 1, 1]} : vector<8x10x32xf32> to vector<8x8x32xf32>
      %372 = vector.extract_strided_slice %369 {offsets = [0, 2, 0], sizes = [8, 8, 32], strides = [1, 1, 1]} : vector<8x10x32xf32> to vector<8x8x32xf32>
      %373 = tpu.concatenate %370, %371, %372 in 2 : vector<8x8x32xf32>, vector<8x8x32xf32>, vector<8x8x32xf32> -> vector<8x8x96xf32>
      %374 = vector.shape_cast %373 : vector<8x8x96xf32> to vector<64x96xf32>
      %375 = arith.truncf %374 : vector<64x96xf32> to vector<64x96xbf16>
      %c0_167 = arith.constant 0 : index
      %c0_168 = arith.constant 0 : index
      %c0_169 = arith.constant 0 : index
      %376 = vector.load %arg30[%c0_167, %c0_168, %c0_169] : memref<3x96x16xbf16, #tpu.memory_space<vmem>>, vector<1x96x16xbf16>
      %377 = vector.shape_cast %376 : vector<1x96x16xbf16> to vector<96x16xbf16>
      %cst_170 = arith.constant dense<0.000000e+00> : vector<64x16xf32>
      %378 = tpu.matmul %375, %377, %cst_170 {dimension_numbers = #tpu.dot_dimension_numbers<[1], [0], [0], [1], [0, 0, 1, 1], [], []>} : vector<64x96xbf16>, vector<96x16xbf16>, vector<64x16xf32> -> vector<64x16xf32>
      %379 = arith.addf %368, %378 : vector<64x16xf32>
      %380 = vector.extract_strided_slice %367 {offsets = [1, 0, 0], sizes = [8, 10, 32], strides = [1, 1, 1]} : vector<10x10x32xf32> to vector<8x10x32xf32>
      %381 = vector.extract_strided_slice %380 {offsets = [0, 0, 0], sizes = [8, 8, 32], strides = [1, 1, 1]} : vector<8x10x32xf32> to vector<8x8x32xf32>
      %382 = vector.extract_strided_slice %380 {offsets = [0, 1, 0], sizes = [8, 8, 32], strides = [1, 1, 1]} : vector<8x10x32xf32> to vector<8x8x32xf32>
      %383 = vector.extract_strided_slice %380 {offsets = [0, 2, 0], sizes = [8, 8, 32], strides = [1, 1, 1]} : vector<8x10x32xf32> to vector<8x8x32xf32>
      %384 = tpu.concatenate %381, %382, %383 in 2 : vector<8x8x32xf32>, vector<8x8x32xf32>, vector<8x8x32xf32> -> vector<8x8x96xf32>
      %385 = vector.shape_cast %384 : vector<8x8x96xf32> to vector<64x96xf32>
      %386 = arith.truncf %385 : vector<64x96xf32> to vector<64x96xbf16>
      %c1_171 = arith.constant 1 : index
      %c0_172 = arith.constant 0 : index
      %c0_173 = arith.constant 0 : index
      %387 = vector.load %arg30[%c1_171, %c0_172, %c0_173] : memref<3x96x16xbf16, #tpu.memory_space<vmem>>, vector<1x96x16xbf16>
      %388 = vector.shape_cast %387 : vector<1x96x16xbf16> to vector<96x16xbf16>
      %cst_174 = arith.constant dense<0.000000e+00> : vector<64x16xf32>
      %389 = tpu.matmul %386, %388, %cst_174 {dimension_numbers = #tpu.dot_dimension_numbers<[1], [0], [0], [1], [0, 0, 1, 1], [], []>} : vector<64x96xbf16>, vector<96x16xbf16>, vector<64x16xf32> -> vector<64x16xf32>
      %390 = arith.addf %379, %389 : vector<64x16xf32>
      %391 = vector.extract_strided_slice %367 {offsets = [2, 0, 0], sizes = [8, 10, 32], strides = [1, 1, 1]} : vector<10x10x32xf32> to vector<8x10x32xf32>
      %392 = vector.extract_strided_slice %391 {offsets = [0, 0, 0], sizes = [8, 8, 32], strides = [1, 1, 1]} : vector<8x10x32xf32> to vector<8x8x32xf32>
      %393 = vector.extract_strided_slice %391 {offsets = [0, 1, 0], sizes = [8, 8, 32], strides = [1, 1, 1]} : vector<8x10x32xf32> to vector<8x8x32xf32>
      %394 = vector.extract_strided_slice %391 {offsets = [0, 2, 0], sizes = [8, 8, 32], strides = [1, 1, 1]} : vector<8x10x32xf32> to vector<8x8x32xf32>
      %395 = tpu.concatenate %392, %393, %394 in 2 : vector<8x8x32xf32>, vector<8x8x32xf32>, vector<8x8x32xf32> -> vector<8x8x96xf32>
      %396 = vector.shape_cast %395 : vector<8x8x96xf32> to vector<64x96xf32>
      %397 = arith.truncf %396 : vector<64x96xf32> to vector<64x96xbf16>
      %c2_175 = arith.constant 2 : index
      %c0_176 = arith.constant 0 : index
      %c0_177 = arith.constant 0 : index
      %398 = vector.load %arg30[%c2_175, %c0_176, %c0_177] : memref<3x96x16xbf16, #tpu.memory_space<vmem>>, vector<1x96x16xbf16>
      %399 = vector.shape_cast %398 : vector<1x96x16xbf16> to vector<96x16xbf16>
      %cst_178 = arith.constant dense<0.000000e+00> : vector<64x16xf32>
      %400 = tpu.matmul %397, %399, %cst_178 {dimension_numbers = #tpu.dot_dimension_numbers<[1], [0], [0], [1], [0, 0, 1, 1], [], []>} : vector<64x96xbf16>, vector<96x16xbf16>, vector<64x16xf32> -> vector<64x16xf32>
      %401 = arith.addf %390, %400 : vector<64x16xf32>
      %402 = vector.broadcast %363 : vector<1x16xf32> to vector<64x16xf32>
      %403 = arith.addf %401, %402 : vector<64x16xf32>
      %c0_179 = arith.constant 0 : index
      %c0_180 = arith.constant 0 : index
      %c0_181 = arith.constant 0 : index
      %404 = vector.load %arg32[%c0_179, %c0_180, %c0_181] : memref<1x64x16xf32, #tpu.memory_space<vmem>>, vector<1x64x16xf32>
      %405 = vector.shape_cast %404 : vector<1x64x16xf32> to vector<64x16xf32>
      %406 = vector.shape_cast %403 : vector<64x16xf32> to vector<1x64x16xf32>
      tpu.vector_store %arg32[%c0_179, %c0_180, %c0_181], %406 {strides = array<i32>} : memref<1x64x16xf32, #tpu.memory_space<vmem>>, vector<1x64x16xf32>,
    } else {
    }
    return
  }
  func.func @transform_0(%arg0: i32, %arg1: i32) -> (i32, i32, i32, i32) {
    %c0_i32 = arith.constant 0 : i32
    %c0_i32_0 = arith.constant 0 : i32
    %c0_i32_1 = arith.constant 0 : i32
    %c0_i32_2 = arith.constant 0 : i32
    return %arg0, %c0_i32, %c0_i32_0, %c0_i32_1 : i32, i32, i32, i32
  }
  func.func @transform_1(%arg0: i32, %arg1: i32) -> (i32, i32, i32) {
    %c0_i32 = arith.constant 0 : i32
    %c0_i32_0 = arith.constant 0 : i32
    %c0_i32_1 = arith.constant 0 : i32
    return %arg0, %c0_i32, %c0_i32_0 : i32, i32, i32
  }
  func.func @transform_2(%arg0: i32, %arg1: i32) -> (i32, i32) {
    %c0_i32 = arith.constant 0 : i32
    %c0_i32_0 = arith.constant 0 : i32
    %c0_i32_1 = arith.constant 0 : i32
    return %c0_i32, %c0_i32_0 : i32, i32
  }
  func.func @transform_3(%arg0: i32, %arg1: i32) -> (i32, i32) {
    %c0_i32 = arith.constant 0 : i32
    %c0_i32_0 = arith.constant 0 : i32
    %c0_i32_1 = arith.constant 0 : i32
    return %c0_i32, %c0_i32_0 : i32, i32
  }
  func.func @transform_4(%arg0: i32, %arg1: i32) -> (i32, i32, i32) {
    %c0_i32 = arith.constant 0 : i32
    %c0_i32_0 = arith.constant 0 : i32
    %c0_i32_1 = arith.constant 0 : i32
    %c0_i32_2 = arith.constant 0 : i32
    return %c0_i32, %c0_i32_0, %c0_i32_1 : i32, i32, i32
  }
  func.func @transform_5(%arg0: i32, %arg1: i32) -> (i32, i32, i32) {
    %c0_i32 = arith.constant 0 : i32
    %c0_i32_0 = arith.constant 0 : i32
    %c0_i32_1 = arith.constant 0 : i32
    %c0_i32_2 = arith.constant 0 : i32
    return %c0_i32, %c0_i32_0, %c0_i32_1 : i32, i32, i32
  }
  func.func @transform_6(%arg0: i32, %arg1: i32) -> (i32, i32) {
    %c0_i32 = arith.constant 0 : i32
    %c0_i32_0 = arith.constant 0 : i32
    %c0_i32_1 = arith.constant 0 : i32
    return %c0_i32, %c0_i32_0 : i32, i32
  }
  func.func @transform_7(%arg0: i32, %arg1: i32) -> (i32, i32) {
    %c0_i32 = arith.constant 0 : i32
    %c0_i32_0 = arith.constant 0 : i32
    %c0_i32_1 = arith.constant 0 : i32
    return %c0_i32, %c0_i32_0 : i32, i32
  }
  func.func @transform_8(%arg0: i32, %arg1: i32) -> (i32, i32, i32) {
    %c0_i32 = arith.constant 0 : i32
    %c0_i32_0 = arith.constant 0 : i32
    %c0_i32_1 = arith.constant 0 : i32
    %c0_i32_2 = arith.constant 0 : i32
    return %c0_i32, %c0_i32_0, %c0_i32_1 : i32, i32, i32
  }
  func.func @transform_9(%arg0: i32, %arg1: i32) -> (i32, i32) {
    %c0_i32 = arith.constant 0 : i32
    %c0_i32_0 = arith.constant 0 : i32
    %c0_i32_1 = arith.constant 0 : i32
    return %c0_i32, %c0_i32_0 : i32, i32
  }
  func.func @transform_10(%arg0: i32, %arg1: i32) -> (i32, i32, i32, i32) {
    %c0_i32 = arith.constant 0 : i32
    %c0_i32_0 = arith.constant 0 : i32
    %c0_i32_1 = arith.constant 0 : i32
    %c0_i32_2 = arith.constant 0 : i32
    return %arg1, %c0_i32, %c0_i32_0, %c0_i32_1 : i32, i32, i32, i32
  }
  func.func @transform_11(%arg0: i32, %arg1: i32) -> (i32, i32, i32, i32) {
    %c0_i32 = arith.constant 0 : i32
    %c0_i32_0 = arith.constant 0 : i32
    %c0_i32_1 = arith.constant 0 : i32
    %c0_i32_2 = arith.constant 0 : i32
    return %arg1, %c0_i32, %c0_i32_0, %c0_i32_1 : i32, i32, i32, i32
  }
  func.func @transform_12(%arg0: i32, %arg1: i32) -> (i32, i32, i32) {
    %c0_i32 = arith.constant 0 : i32
    %c0_i32_0 = arith.constant 0 : i32
    %c0_i32_1 = arith.constant 0 : i32
    return %arg1, %c0_i32, %c0_i32_0 : i32, i32, i32
  }
  func.func @transform_13(%arg0: i32, %arg1: i32) -> (i32, i32, i32) {
    %c0_i32 = arith.constant 0 : i32
    %c0_i32_0 = arith.constant 0 : i32
    %c0_i32_1 = arith.constant 0 : i32
    return %arg1, %c0_i32, %c0_i32_0 : i32, i32, i32
  }
  func.func @transform_14(%arg0: i32, %arg1: i32) -> (i32, i32, i32) {
    %c0_i32 = arith.constant 0 : i32
    %c0_i32_0 = arith.constant 0 : i32
    %c0_i32_1 = arith.constant 0 : i32
    return %arg1, %c0_i32, %c0_i32_0 : i32, i32, i32
  }
  func.func @transform_15(%arg0: i32, %arg1: i32) -> (i32, i32, i32) {
    %c0_i32 = arith.constant 0 : i32
    %c0_i32_0 = arith.constant 0 : i32
    %c0_i32_1 = arith.constant 0 : i32
    return %arg1, %c0_i32, %c0_i32_0 : i32, i32, i32
  }
  func.func @transform_16(%arg0: i32, %arg1: i32) -> (i32, i32) {
    %c0_i32 = arith.constant 0 : i32
    %c0_i32_0 = arith.constant 0 : i32
    %c0_i32_1 = arith.constant 0 : i32
    return %c0_i32, %c0_i32_0 : i32, i32
  }
  func.func @transform_17(%arg0: i32, %arg1: i32) -> (i32, i32) {
    %c0_i32 = arith.constant 0 : i32
    %c0_i32_0 = arith.constant 0 : i32
    %c0_i32_1 = arith.constant 0 : i32
    return %c0_i32, %c0_i32_0 : i32, i32
  }
  func.func @transform_18(%arg0: i32, %arg1: i32) -> (i32, i32) {
    %c0_i32 = arith.constant 0 : i32
    %c0_i32_0 = arith.constant 0 : i32
    %c0_i32_1 = arith.constant 0 : i32
    return %c0_i32, %c0_i32_0 : i32, i32
  }
  func.func @transform_19(%arg0: i32, %arg1: i32) -> (i32, i32) {
    %c0_i32 = arith.constant 0 : i32
    %c0_i32_0 = arith.constant 0 : i32
    %c0_i32_1 = arith.constant 0 : i32
    return %c0_i32, %c0_i32_0 : i32, i32
  }
  func.func @transform_20(%arg0: i32, %arg1: i32) -> (i32, i32, i32) {
    %c0_i32 = arith.constant 0 : i32
    %c0_i32_0 = arith.constant 0 : i32
    %c0_i32_1 = arith.constant 0 : i32
    %c0_i32_2 = arith.constant 0 : i32
    return %c0_i32, %c0_i32_0, %c0_i32_1 : i32, i32, i32
  }
  func.func @transform_21(%arg0: i32, %arg1: i32) -> (i32, i32) {
    %c0_i32 = arith.constant 0 : i32
    %c0_i32_0 = arith.constant 0 : i32
    %c0_i32_1 = arith.constant 0 : i32
    return %c0_i32, %c0_i32_0 : i32, i32
  }
  func.func @transform_22(%arg0: i32, %arg1: i32) -> (i32, i32, i32) {
    %c0_i32 = arith.constant 0 : i32
    %c0_i32_0 = arith.constant 0 : i32
    %c0_i32_1 = arith.constant 0 : i32
    %c0_i32_2 = arith.constant 0 : i32
    return %c0_i32, %c0_i32_0, %c0_i32_1 : i32, i32, i32
  }
  func.func @transform_23(%arg0: i32, %arg1: i32) -> (i32, i32) {
    %c0_i32 = arith.constant 0 : i32
    %c0_i32_0 = arith.constant 0 : i32
    %c0_i32_1 = arith.constant 0 : i32
    return %c0_i32, %c0_i32_0 : i32, i32
  }
  func.func @transform_24(%arg0: i32, %arg1: i32) -> (i32, i32, i32) {
    %c0_i32 = arith.constant 0 : i32
    %c0_i32_0 = arith.constant 0 : i32
    %c0_i32_1 = arith.constant 0 : i32
    %c0_i32_2 = arith.constant 0 : i32
    return %c0_i32, %c0_i32_0, %c0_i32_1 : i32, i32, i32
  }
  func.func @transform_25(%arg0: i32, %arg1: i32) -> (i32, i32) {
    %c0_i32 = arith.constant 0 : i32
    %c0_i32_0 = arith.constant 0 : i32
    %c0_i32_1 = arith.constant 0 : i32
    return %c0_i32, %c0_i32_0 : i32, i32
  }
  func.func @transform_26(%arg0: i32, %arg1: i32) -> (i32, i32, i32) {
    %c0_i32 = arith.constant 0 : i32
    %c0_i32_0 = arith.constant 0 : i32
    %c0_i32_1 = arith.constant 0 : i32
    %c0_i32_2 = arith.constant 0 : i32
    return %c0_i32, %c0_i32_0, %c0_i32_1 : i32, i32, i32
  }
  func.func @transform_27(%arg0: i32, %arg1: i32) -> (i32, i32) {
    %c0_i32 = arith.constant 0 : i32
    %c0_i32_0 = arith.constant 0 : i32
    %c0_i32_1 = arith.constant 0 : i32
    return %c0_i32, %c0_i32_0 : i32, i32
  }
  func.func @transform_28(%arg0: i32, %arg1: i32) -> (i32, i32, i32) {
    %c0_i32 = arith.constant 0 : i32
    %c0_i32_0 = arith.constant 0 : i32
    %c0_i32_1 = arith.constant 0 : i32
    %c0_i32_2 = arith.constant 0 : i32
    return %c0_i32, %c0_i32_0, %c0_i32_1 : i32, i32, i32
  }
  func.func @transform_29(%arg0: i32, %arg1: i32) -> (i32, i32) {
    %c0_i32 = arith.constant 0 : i32
    %c0_i32_0 = arith.constant 0 : i32
    %c0_i32_1 = arith.constant 0 : i32
    return %c0_i32, %c0_i32_0 : i32, i32
  }
  func.func @transform_30(%arg0: i32, %arg1: i32) -> (i32, i32, i32) {
    %c0_i32 = arith.constant 0 : i32
    %c0_i32_0 = arith.constant 0 : i32
    %c0_i32_1 = arith.constant 0 : i32
    return %arg0, %c0_i32, %c0_i32_0 : i32, i32, i32
  }
}

</mosaic_0001>

<llo_original>
// kernel: sft_net_forward.1
$region0: #{sft_net_forward.1}
  #allocation0 [shape = 'u32[]', space=smem, size = 0x4, offset = 0x4, fixed_abs, tag = 'smem constant byte address 0x4 - core index']
  #allocation1 [shape = 'u32[72,128]{1,0:T(1,128)}', space=vmem, size = 0x9000, scoped, tag = 'internal scratch']
  #allocation2 [shape = 'bf16[64,32]{1,0:T(8,128)(2,1)}', space=vmem, size = 0x4000, scoped, tag = 'scratch operand']
  #allocation3 [shape = 'f32[64,64]{1,0:T(8,128)}', space=vmem, size = 0x8000, scoped, tag = 'scratch operand']
  #allocation4 [shape = 'f32[64,64]{1,0:T(8,128)}', space=vmem, size = 0x8000, scoped, tag = 'scratch operand']
  %s0 = inlined_call_operand.smem [shape: u32[31], index: -1, kind: input, shape index: {}]
  %s1 = sld [smem:[%s0]]
  %s2 = scalar_lea.smem %s0, 1
  %s3 = sld [smem:[%s2]]
  %s4 = scalar_lea.smem %s0, 2
  %s5 = sld [smem:[%s4]]
  %s6 = scalar_lea.smem %s0, 3
  %s7 = sld [smem:[%s6]]
  %s8 = scalar_lea.smem %s0, 4
  %s9 = sld [smem:[%s8]]
  %s10 = scalar_lea.smem %s0, 5
  %s11 = sld [smem:[%s10]]
  %s12 = scalar_lea.smem %s0, 6
  %s13 = sld [smem:[%s12]]
  %s14 = scalar_lea.smem %s0, 7
  %s15 = sld [smem:[%s14]]
  %s16 = scalar_lea.smem %s0, 8
  %s17 = sld [smem:[%s16]]
  %s18 = scalar_lea.smem %s0, 9
  %s19 = sld [smem:[%s18]]
  %s20 = scalar_lea.smem %s0, 10
  %s21 = sld [smem:[%s20]]
  %s22 = scalar_lea.smem %s0, 11
  %s23 = sld [smem:[%s22]]
  %s24 = scalar_lea.smem %s0, 12
  %s25 = sld [smem:[%s24]]
  %s26 = scalar_lea.smem %s0, 13
  %s27 = sld [smem:[%s26]]
  %s28 = scalar_lea.smem %s0, 14
  %s29 = sld [smem:[%s28]]
  %s30 = scalar_lea.smem %s0, 15
  %s31 = sld [smem:[%s30]]
  %s32 = scalar_lea.smem %s0, 16
  %s33 = sld [smem:[%s32]]
  %s34 = scalar_lea.smem %s0, 17
  %s35 = sld [smem:[%s34]]
  %s36 = scalar_lea.smem %s0, 18
  %s37 = sld [smem:[%s36]]
  %s38 = scalar_lea.smem %s0, 19
  %s39 = sld [smem:[%s38]]
  %s40 = scalar_lea.smem %s0, 20
  %s41 = sld [smem:[%s40]]
  %s42 = scalar_lea.smem %s0, 21
  %s43 = sld [smem:[%s42]]
  %s44 = scalar_lea.smem %s0, 22
  %s45 = sld [smem:[%s44]]
  %s46 = scalar_lea.smem %s0, 23
  %s47 = sld [smem:[%s46]]
  %s48 = scalar_lea.smem %s0, 24
  %s49 = sld [smem:[%s48]]
  %s50 = scalar_lea.smem %s0, 25
  %s51 = sld [smem:[%s50]]
  %s52 = scalar_lea.smem %s0, 26
  %s53 = sld [smem:[%s52]]
  %s54 = scalar_lea.smem %s0, 27
  %s55 = sld [smem:[%s54]]
  %s56 = scalar_lea.smem %s0, 28
  %s57 = sld [smem:[%s56]]
  %s58 = scalar_lea.smem %s0, 29
  %s59 = sld [smem:[%s58]]
  %s60 = scalar_lea.smem %s0, 30
  %s61 = sld [smem:[%s60]]
  %s62 = sld [smem:[#allocation0]]
  $region161: #{sft_net_forward.1} parent=0
    _
  %s64 = ssub.s32 1, %s62
  %s65 = scalar_select 0, %s64, %s62
  loop: start=0, step=1, limit=34
  $region2: #{sft_net_forward.1} parent=0 // loop_pre_header
    _
  $region3: #{sft_net_forward.1} parent=0 // loop_header
    %s67 = sphi 0, %s71
    %p68 = scmp.ge.s32.totalorder %s67, 34
    %s74 = sphi 0, %s86
    %s75 = sphi 0, %s82
    %s76 = sphi 0, %s74
    %s77 = sphi 0, %s75
    %s78 = sphi 0, %s76
    %s79 = sphi 0, %s77
    %s89 = sphi 0, %s91
    %s92 = sphi 0, %s89
    %s93 = sphi 0, %s92
    %s109 = sphi 0, %s93
    %s115 = sphi 0, %s117
    %s118 = sphi 0, %s115
    %s119 = sphi 0, %s118
    %s135 = sphi 0, %s119
    %s139 = sphi 0, %s139
    %s141 = sphi 0, %s139
    %s142 = sphi 0, %s141
    %s156 = sphi 0, %s142
    %s160 = sphi 0, %s160
    %s162 = sphi 0, %s160
    %s163 = sphi 0, %s162
    %s177 = sphi 0, %s163
    %s181 = sphi 0, %s181
    %s183 = sphi 0, %s181
    %s184 = sphi 0, %s183
    %s198 = sphi 0, %s184
    %s202 = sphi 0, %s202
    %s204 = sphi 0, %s202
    %s205 = sphi 0, %s204
    %s219 = sphi 0, %s205
    %s223 = sphi 0, %s223
    %s225 = sphi 0, %s223
    %s226 = sphi 0, %s225
    %s240 = sphi 0, %s226
    %s244 = sphi 0, %s244
    %s246 = sphi 0, %s244
    %s247 = sphi 0, %s246
    %s261 = sphi 0, %s247
    %s265 = sphi 0, %s265
    %s267 = sphi 0, %s265
    %s268 = sphi 0, %s267
    %s282 = sphi 0, %s268
    %s286 = sphi 0, %s286
    %s288 = sphi 0, %s286
    %s289 = sphi 0, %s288
    %s303 = sphi 0, %s289
    %s309 = sphi 0, %s311
    %s312 = sphi 0, %s309
    %s313 = sphi 0, %s312
    %s329 = sphi 0, %s313
    %s335 = sphi 0, %s337
    %s338 = sphi 0, %s335
    %s339 = sphi 0, %s338
    %s355 = sphi 0, %s339
    %s361 = sphi 0, %s363
    %s364 = sphi 0, %s361
    %s365 = sphi 0, %s364
    %s381 = sphi 0, %s365
    %s387 = sphi 0, %s389
    %s390 = sphi 0, %s387
    %s391 = sphi 0, %s390
    %s407 = sphi 0, %s391
    %s413 = sphi 0, %s415
    %s416 = sphi 0, %s413
    %s417 = sphi 0, %s416
    %s433 = sphi 0, %s417
    %s439 = sphi 0, %s441
    %s442 = sphi 0, %s439
    %s443 = sphi 0, %s442
    %s459 = sphi 0, %s443
    %s463 = sphi 0, %s463
    %s465 = sphi 0, %s463
    %s466 = sphi 0, %s465
    %s480 = sphi 0, %s466
    %s484 = sphi 0, %s484
    %s486 = sphi 0, %s484
    %s487 = sphi 0, %s486
    %s501 = sphi 0, %s487
    %s505 = sphi 0, %s505
    %s507 = sphi 0, %s505
    %s508 = sphi 0, %s507
    %s522 = sphi 0, %s508
    %s526 = sphi 0, %s526
    %s528 = sphi 0, %s526
    %s529 = sphi 0, %s528
    %s543 = sphi 0, %s529
    %s547 = sphi 0, %s547
    %s549 = sphi 0, %s547
    %s550 = sphi 0, %s549
    %s564 = sphi 0, %s550
    %s568 = sphi 0, %s568
    %s570 = sphi 0, %s568
    %s571 = sphi 0, %s570
    %s585 = sphi 0, %s571
    %s589 = sphi 0, %s589
    %s591 = sphi 0, %s589
    %s592 = sphi 0, %s591
    %s606 = sphi 0, %s592
    %s610 = sphi 0, %s610
    %s612 = sphi 0, %s610
    %s613 = sphi 0, %s612
    %s627 = sphi 0, %s613
    %s631 = sphi 0, %s631
    %s633 = sphi 0, %s631
    %s634 = sphi 0, %s633
    %s648 = sphi 0, %s634
    %s652 = sphi 0, %s652
    %s654 = sphi 0, %s652
    %s655 = sphi 0, %s654
    %s669 = sphi 0, %s655
    %s673 = sphi 0, %s673
    %s675 = sphi 0, %s673
    %s676 = sphi 0, %s675
    %s690 = sphi 0, %s676
    %s694 = sphi 0, %s694
    %s696 = sphi 0, %s694
    %s697 = sphi 0, %s696
    %s711 = sphi 0, %s697
    %s715 = sphi 0, %s715
    %s717 = sphi 0, %s715
    %s718 = sphi 0, %s717
    %s732 = sphi 0, %s718
    %s736 = sphi 0, %s736
    %s738 = sphi 0, %s736
    %s739 = sphi 0, %s738
    %s753 = sphi 0, %s739
    %s759 = sphi 0, %s761
    %s762 = sphi 0, %s759
    %s763 = sphi 0, %s762
    %s779 = sphi 0, %s763
  $region4: #{sft_net_forward.1} parent=0 // loop_header_branch
    %70 = sbr.rel (%p68) target = $region8
  $region5: #{sft_net_forward.1} parent=0 // loop_body
    %s72 = ssub.s32 %s67, 1
    %s73 = ssub.s32 %s67, 2
    %s80 = sadd.s32 1, %s75
    %p81 = scmp.ge.s32.totalorder %s80, 16
    %s82 = scalar_select %p81, 0, %s80
    %s83 = sadd.s32 1, %s74
    %s84 = scalar_select %p81, %s83, %s74
    %p85 = scmp.ge.s32.totalorder %s84, 2
    %s86 = scalar_select %p85, 0, %s84
    %s87 = ssub.s32 %s74, %s86
    %p88 = scmp.eq.s32.totalorder %s87, 0
    %s90 = sadd.s32 %s89, 1
    %s91 = scalar_select %p88, %s89, %s90
    %p94 = pneg %p88
    %p95 = scmp.eq.s32.totalorder %s67, 31
    %p96 = por %p94, %p95
    %p97 = scmp.ne.s32.totalorder %s89, %s92
    %p98 = scmp.eq.s32.totalorder %s67, 0
    %p99 = por %p97, %p98
    %p100 = scmp.ne.s32.totalorder %s89, %s92
    %p101 = scmp.eq.s32.totalorder %s72, 31
    %p102 = por %p100, %p101
    %p103 = scmp.ne.s32.totalorder %s92, %s93
    %p104 = scmp.eq.s32.totalorder %s72, 0
    %p105 = por %p103, %p104
    %p106 = scmp.ne.s32.totalorder %s92, %s93
    %p107 = scmp.eq.s32.totalorder %s73, 31
    %p108 = por %p106, %p107
    %p110 = scmp.ne.s32.totalorder %s93, %s109
    %p111 = scmp.eq.s32.totalorder %s73, 0
    %p112 = por %p110, %p111
    %s113 = ssub.s32 %s74, %s86
    %p114 = scmp.eq.s32.totalorder %s113, 0
    %s116 = sadd.s32 %s115, 1
    %s117 = scalar_select %p114, %s115, %s116
    %p120 = pneg %p114
    %p121 = scmp.eq.s32.totalorder %s67, 31
    %p122 = por %p120, %p121
    %p123 = scmp.ne.s32.totalorder %s115, %s118
    %p124 = scmp.eq.s32.totalorder %s67, 0
    %p125 = por %p123, %p124
    %p126 = scmp.ne.s32.totalorder %s115, %s118
    %p127 = scmp.eq.s32.totalorder %s72, 31
    %p128 = por %p126, %p127
    %p129 = scmp.ne.s32.totalorder %s118, %s119
    %p130 = scmp.eq.s32.totalorder %s72, 0
    %p131 = por %p129, %p130
    %p132 = scmp.ne.s32.totalorder %s118, %s119
    %p133 = scmp.eq.s32.totalorder %s73, 31
    %p134 = por %p132, %p133
    %p136 = scmp.ne.s32.totalorder %s119, %s135
    %p137 = scmp.eq.s32.totalorder %s73, 0
    %p138 = por %p136, %p137
    %s140 = sadd.s32 %s139, 1
    %p143 = scmp.eq.s32.totalorder %s67, 31
    %p144 = scmp.ne.s32.totalorder %s139, %s141
    %p145 = scmp.eq.s32.totalorder %s67, 0
    %p146 = por %p144, %p145
    %p147 = scmp.ne.s32.totalorder %s139, %s141
    %p148 = scmp.eq.s32.totalorder %s72, 31
    %p149 = por %p147, %p148
    %p150 = scmp.ne.s32.totalorder %s141, %s142
    %p151 = scmp.eq.s32.totalorder %s72, 0
    %p152 = por %p150, %p151
    %p153 = scmp.ne.s32.totalorder %s141, %s142
    %p154 = scmp.eq.s32.totalorder %s73, 31
    %p155 = por %p153, %p154
    %p157 = scmp.ne.s32.totalorder %s142, %s156
    %p158 = scmp.eq.s32.totalorder %s73, 0
    %p159 = por %p157, %p158
    %s161 = sadd.s32 %s160, 1
    %p164 = scmp.eq.s32.totalorder %s67, 31
    %p165 = scmp.ne.s32.totalorder %s160, %s162
    %p166 = scmp.eq.s32.totalorder %s67, 0
    %p167 = por %p165, %p166
    %p168 = scmp.ne.s32.totalorder %s160, %s162
    %p169 = scmp.eq.s32.totalorder %s72, 31
    %p170 = por %p168, %p169
    %p171 = scmp.ne.s32.totalorder %s162, %s163
    %p172 = scmp.eq.s32.totalorder %s72, 0
    %p173 = por %p171, %p172
    %p174 = scmp.ne.s32.totalorder %s162, %s163
    %p175 = scmp.eq.s32.totalorder %s73, 31
    %p176 = por %p174, %p175
    %p178 = scmp.ne.s32.totalorder %s163, %s177
    %p179 = scmp.eq.s32.totalorder %s73, 0
    %p180 = por %p178, %p179
    %s182 = sadd.s32 %s181, 1
    %p185 = scmp.eq.s32.totalorder %s67, 31
    %p186 = scmp.ne.s32.totalorder %s181, %s183
    %p187 = scmp.eq.s32.totalorder %s67, 0
    %p188 = por %p186, %p187
    %p189 = scmp.ne.s32.totalorder %s181, %s183
    %p190 = scmp.eq.s32.totalorder %s72, 31
    %p191 = por %p189, %p190
    %p192 = scmp.ne.s32.totalorder %s183, %s184
    %p193 = scmp.eq.s32.totalorder %s72, 0
    %p194 = por %p192, %p193
    %p195 = scmp.ne.s32.totalorder %s183, %s184
    %p196 = scmp.eq.s32.totalorder %s73, 31
    %p197 = por %p195, %p196
    %p199 = scmp.ne.s32.totalorder %s184, %s198
    %p200 = scmp.eq.s32.totalorder %s73, 0
    %p201 = por %p199, %p200
    %s203 = sadd.s32 %s202, 1
    %p206 = scmp.eq.s32.totalorder %s67, 31
    %p207 = scmp.ne.s32.totalorder %s202, %s204
    %p208 = scmp.eq.s32.totalorder %s67, 0
    %p209 = por %p207, %p208
    %p210 = scmp.ne.s32.totalorder %s202, %s204
    %p211 = scmp.eq.s32.totalorder %s72, 31
    %p212 = por %p210, %p211
    %p213 = scmp.ne.s32.totalorder %s204, %s205
    %p214 = scmp.eq.s32.totalorder %s72, 0
    %p215 = por %p213, %p214
    %p216 = scmp.ne.s32.totalorder %s204, %s205
    %p217 = scmp.eq.s32.totalorder %s73, 31
    %p218 = por %p216, %p217
    %p220 = scmp.ne.s32.totalorder %s205, %s219
    %p221 = scmp.eq.s32.totalorder %s73, 0
    %p222 = por %p220, %p221
    %s224 = sadd.s32 %s223, 1
    %p227 = scmp.eq.s32.totalorder %s67, 31
    %p228 = scmp.ne.s32.totalorder %s223, %s225
    %p229 = scmp.eq.s32.totalorder %s67, 0
    %p230 = por %p228, %p229
    %p231 = scmp.ne.s32.totalorder %s223, %s225
    %p232 = scmp.eq.s32.totalorder %s72, 31
    %p233 = por %p231, %p232
    %p234 = scmp.ne.s32.totalorder %s225, %s226
    %p235 = scmp.eq.s32.totalorder %s72, 0
    %p236 = por %p234, %p235
    %p237 = scmp.ne.s32.totalorder %s225, %s226
    %p238 = scmp.eq.s32.totalorder %s73, 31
    %p239 = por %p237, %p238
    %p241 = scmp.ne.s32.totalorder %s226, %s240
    %p242 = scmp.eq.s32.totalorder %s73, 0
    %p243 = por %p241, %p242
    %s245 = sadd.s32 %s244, 1
    %p248 = scmp.eq.s32.totalorder %s67, 31
    %p249 = scmp.ne.s32.totalorder %s244, %s246
    %p250 = scmp.eq.s32.totalorder %s67, 0
    %p251 = por %p249, %p250
    %p252 = scmp.ne.s32.totalorder %s244, %s246
    %p253 = scmp.eq.s32.totalorder %s72, 31
    %p254 = por %p252, %p253
    %p255 = scmp.ne.s32.totalorder %s246, %s247
    %p256 = scmp.eq.s32.totalorder %s72, 0
    %p257 = por %p255, %p256
    %p258 = scmp.ne.s32.totalorder %s246, %s247
    %p259 = scmp.eq.s32.totalorder %s73, 31
    %p260 = por %p258, %p259
    %p262 = scmp.ne.s32.totalorder %s247, %s261
    %p263 = scmp.eq.s32.totalorder %s73, 0
    %p264 = por %p262, %p263
    %s266 = sadd.s32 %s265, 1
    %p269 = scmp.eq.s32.totalorder %s67, 31
    %p270 = scmp.ne.s32.totalorder %s265, %s267
    %p271 = scmp.eq.s32.totalorder %s67, 0
    %p272 = por %p270, %p271
    %p273 = scmp.ne.s32.totalorder %s265, %s267
    %p274 = scmp.eq.s32.totalorder %s72, 31
    %p275 = por %p273, %p274
    %p276 = scmp.ne.s32.totalorder %s267, %s268
    %p277 = scmp.eq.s32.totalorder %s72, 0
    %p278 = por %p276, %p277
    %p279 = scmp.ne.s32.totalorder %s267, %s268
    %p280 = scmp.eq.s32.totalorder %s73, 31
    %p281 = por %p279, %p280
    %p283 = scmp.ne.s32.totalorder %s268, %s282
    %p284 = scmp.eq.s32.totalorder %s73, 0
    %p285 = por %p283, %p284
    %s287 = sadd.s32 %s286, 1
    %p290 = scmp.eq.s32.totalorder %s67, 31
    %p291 = scmp.ne.s32.totalorder %s286, %s288
    %p292 = scmp.eq.s32.totalorder %s67, 0
    %p293 = por %p291, %p292
    %p294 = scmp.ne.s32.totalorder %s286, %s288
    %p295 = scmp.eq.s32.totalorder %s72, 31
    %p296 = por %p294, %p295
    %p297 = scmp.ne.s32.totalorder %s288, %s289
    %p298 = scmp.eq.s32.totalorder %s72, 0
    %p299 = por %p297, %p298
    %p300 = scmp.ne.s32.totalorder %s288, %s289
    %p301 = scmp.eq.s32.totalorder %s73, 31
    %p302 = por %p300, %p301
    %p304 = scmp.ne.s32.totalorder %s289, %s303
    %p305 = scmp.eq.s32.totalorder %s73, 0
    %p306 = por %p304, %p305
    %s307 = ssub.s32 %s75, %s82
    %p308 = scmp.eq.s32.totalorder %s307, 0
    %s310 = sadd.s32 %s309, 1
    %s311 = scalar_select %p308, %s309, %s310
    %p314 = pneg %p308
    %p315 = scmp.eq.s32.totalorder %s67, 31
    %p316 = por %p314, %p315
    %p317 = scmp.ne.s32.totalorder %s309, %s312
    %p318 = scmp.eq.s32.totalorder %s67, 0
    %p319 = por %p317, %p318
    %p320 = scmp.ne.s32.totalorder %s309, %s312
    %p321 = scmp.eq.s32.totalorder %s72, 31
    %p322 = por %p320, %p321
    %p323 = scmp.ne.s32.totalorder %s312, %s313
    %p324 = scmp.eq.s32.totalorder %s72, 0
    %p325 = por %p323, %p324
    %p326 = scmp.ne.s32.totalorder %s312, %s313
    %p327 = scmp.eq.s32.totalorder %s73, 31
    %p328 = por %p326, %p327
    %p330 = scmp.ne.s32.totalorder %s313, %s329
    %p331 = scmp.eq.s32.totalorder %s73, 0
    %p332 = por %p330, %p331
    %s333 = ssub.s32 %s75, %s82
    %p334 = scmp.eq.s32.totalorder %s333, 0
    %s336 = sadd.s32 %s335, 1
    %s337 = scalar_select %p334, %s335, %s336
    %p340 = pneg %p334
    %p341 = scmp.eq.s32.totalorder %s67, 31
    %p342 = por %p340, %p341
    %p343 = scmp.ne.s32.totalorder %s335, %s338
    %p344 = scmp.eq.s32.totalorder %s67, 0
    %p345 = por %p343, %p344
    %p346 = scmp.ne.s32.totalorder %s335, %s338
    %p347 = scmp.eq.s32.totalorder %s72, 31
    %p348 = por %p346, %p347
    %p349 = scmp.ne.s32.totalorder %s338, %s339
    %p350 = scmp.eq.s32.totalorder %s72, 0
    %p351 = por %p349, %p350
    %p352 = scmp.ne.s32.totalorder %s338, %s339
    %p353 = scmp.eq.s32.totalorder %s73, 31
    %p354 = por %p352, %p353
    %p356 = scmp.ne.s32.totalorder %s339, %s355
    %p357 = scmp.eq.s32.totalorder %s73, 0
    %p358 = por %p356, %p357
    %s359 = ssub.s32 %s75, %s82
    %p360 = scmp.eq.s32.totalorder %s359, 0
    %s362 = sadd.s32 %s361, 1
    %s363 = scalar_select %p360, %s361, %s362
    %p366 = pneg %p360
    %p367 = scmp.eq.s32.totalorder %s67, 31
    %p368 = por %p366, %p367
    %p369 = scmp.ne.s32.totalorder %s361, %s364
    %p370 = scmp.eq.s32.totalorder %s67, 0
    %p371 = por %p369, %p370
    %p372 = scmp.ne.s32.totalorder %s361, %s364
    %p373 = scmp.eq.s32.totalorder %s72, 31
    %p374 = por %p372, %p373
    %p375 = scmp.ne.s32.totalorder %s364, %s365
    %p376 = scmp.eq.s32.totalorder %s72, 0
    %p377 = por %p375, %p376
    %p378 = scmp.ne.s32.totalorder %s364, %s365
    %p379 = scmp.eq.s32.totalorder %s73, 31
    %p380 = por %p378, %p379
    %p382 = scmp.ne.s32.totalorder %s365, %s381
    %p383 = scmp.eq.s32.totalorder %s73, 0
    %p384 = por %p382, %p383
    %s385 = ssub.s32 %s75, %s82
    %p386 = scmp.eq.s32.totalorder %s385, 0
    %s388 = sadd.s32 %s387, 1
    %s389 = scalar_select %p386, %s387, %s388
    %p392 = pneg %p386
    %p393 = scmp.eq.s32.totalorder %s67, 31
    %p394 = por %p392, %p393
    %p395 = scmp.ne.s32.totalorder %s387, %s390
    %p396 = scmp.eq.s32.totalorder %s67, 0
    %p397 = por %p395, %p396
    %p398 = scmp.ne.s32.totalorder %s387, %s390
    %p399 = scmp.eq.s32.totalorder %s72, 31
    %p400 = por %p398, %p399
    %p401 = scmp.ne.s32.totalorder %s390, %s391
    %p402 = scmp.eq.s32.totalorder %s72, 0
    %p403 = por %p401, %p402
    %p404 = scmp.ne.s32.totalorder %s390, %s391
    %p405 = scmp.eq.s32.totalorder %s73, 31
    %p406 = por %p404, %p405
    %p408 = scmp.ne.s32.totalorder %s391, %s407
    %p409 = scmp.eq.s32.totalorder %s73, 0
    %p410 = por %p408, %p409
    %s411 = ssub.s32 %s75, %s82
    %p412 = scmp.eq.s32.totalorder %s411, 0
    %s414 = sadd.s32 %s413, 1
    %s415 = scalar_select %p412, %s413, %s414
    %p418 = pneg %p412
    %p419 = scmp.eq.s32.totalorder %s67, 31
    %p420 = por %p418, %p419
    %p421 = scmp.ne.s32.totalorder %s413, %s416
    %p422 = scmp.eq.s32.totalorder %s67, 0
    %p423 = por %p421, %p422
    %p424 = scmp.ne.s32.totalorder %s413, %s416
    %p425 = scmp.eq.s32.totalorder %s72, 31
    %p426 = por %p424, %p425
    %p427 = scmp.ne.s32.totalorder %s416, %s417
    %p428 = scmp.eq.s32.totalorder %s72, 0
    %p429 = por %p427, %p428
    %p430 = scmp.ne.s32.totalorder %s416, %s417
    %p431 = scmp.eq.s32.totalorder %s73, 31
    %p432 = por %p430, %p431
    %p434 = scmp.ne.s32.totalorder %s417, %s433
    %p435 = scmp.eq.s32.totalorder %s73, 0
    %p436 = por %p434, %p435
    %s437 = ssub.s32 %s75, %s82
    %p438 = scmp.eq.s32.totalorder %s437, 0
    %s440 = sadd.s32 %s439, 1
    %s441 = scalar_select %p438, %s439, %s440
    %p444 = pneg %p438
    %p445 = scmp.eq.s32.totalorder %s67, 31
    %p446 = por %p444, %p445
    %p447 = scmp.ne.s32.totalorder %s439, %s442
    %p448 = scmp.eq.s32.totalorder %s67, 0
    %p449 = por %p447, %p448
    %p450 = scmp.ne.s32.totalorder %s439, %s442
    %p451 = scmp.eq.s32.totalorder %s72, 31
    %p452 = por %p450, %p451
    %p453 = scmp.ne.s32.totalorder %s442, %s443
    %p454 = scmp.eq.s32.totalorder %s72, 0
    %p455 = por %p453, %p454
    %p456 = scmp.ne.s32.totalorder %s442, %s443
    %p457 = scmp.eq.s32.totalorder %s73, 31
    %p458 = por %p456, %p457
    %p460 = scmp.ne.s32.totalorder %s443, %s459
    %p461 = scmp.eq.s32.totalorder %s73, 0
    %p462 = por %p460, %p461
    %s464 = sadd.s32 %s463, 1
    %p467 = scmp.eq.s32.totalorder %s67, 31
    %p468 = scmp.ne.s32.totalorder %s463, %s465
    %p469 = scmp.eq.s32.totalorder %s67, 0
    %p470 = por %p468, %p469
    %p471 = scmp.ne.s32.totalorder %s463, %s465
    %p472 = scmp.eq.s32.totalorder %s72, 31
    %p473 = por %p471, %p472
    %p474 = scmp.ne.s32.totalorder %s465, %s466
    %p475 = scmp.eq.s32.totalorder %s72, 0
    %p476 = por %p474, %p475
    %p477 = scmp.ne.s32.totalorder %s465, %s466
    %p478 = scmp.eq.s32.totalorder %s73, 31
    %p479 = por %p477, %p478
    %p481 = scmp.ne.s32.totalorder %s466, %s480
    %p482 = scmp.eq.s32.totalorder %s73, 0
    %p483 = por %p481, %p482
    %s485 = sadd.s32 %s484, 1
    %p488 = scmp.eq.s32.totalorder %s67, 31
    %p489 = scmp.ne.s32.totalorder %s484, %s486
    %p490 = scmp.eq.s32.totalorder %s67, 0
    %p491 = por %p489, %p490
    %p492 = scmp.ne.s32.totalorder %s484, %s486
    %p493 = scmp.eq.s32.totalorder %s72, 31
    %p494 = por %p492, %p493
    %p495 = scmp.ne.s32.totalorder %s486, %s487
    %p496 = scmp.eq.s32.totalorder %s72, 0
    %p497 = por %p495, %p496
    %p498 = scmp.ne.s32.totalorder %s486, %s487
    %p499 = scmp.eq.s32.totalorder %s73, 31
    %p500 = por %p498, %p499
    %p502 = scmp.ne.s32.totalorder %s487, %s501
    %p503 = scmp.eq.s32.totalorder %s73, 0
    %p504 = por %p502, %p503
    %s506 = sadd.s32 %s505, 1
    %p509 = scmp.eq.s32.totalorder %s67, 31
    %p510 = scmp.ne.s32.totalorder %s505, %s507
    %p511 = scmp.eq.s32.totalorder %s67, 0
    %p512 = por %p510, %p511
    %p513 = scmp.ne.s32.totalorder %s505, %s507
    %p514 = scmp.eq.s32.totalorder %s72, 31
    %p515 = por %p513, %p514
    %p516 = scmp.ne.s32.totalorder %s507, %s508
    %p517 = scmp.eq.s32.totalorder %s72, 0
    %p518 = por %p516, %p517
    %p519 = scmp.ne.s32.totalorder %s507, %s508
    %p520 = scmp.eq.s32.totalorder %s73, 31
    %p521 = por %p519, %p520
    %p523 = scmp.ne.s32.totalorder %s508, %s522
    %p524 = scmp.eq.s32.totalorder %s73, 0
    %p525 = por %p523, %p524
    %s527 = sadd.s32 %s526, 1
    %p530 = scmp.eq.s32.totalorder %s67, 31
    %p531 = scmp.ne.s32.totalorder %s526, %s528
    %p532 = scmp.eq.s32.totalorder %s67, 0
    %p533 = por %p531, %p532
    %p534 = scmp.ne.s32.totalorder %s526, %s528
    %p535 = scmp.eq.s32.totalorder %s72, 31
    %p536 = por %p534, %p535
    %p537 = scmp.ne.s32.totalorder %s528, %s529
    %p538 = scmp.eq.s32.totalorder %s72, 0
    %p539 = por %p537, %p538
    %p540 = scmp.ne.s32.totalorder %s528, %s529
    %p541 = scmp.eq.s32.totalorder %s73, 31
    %p542 = por %p540, %p541
    %p544 = scmp.ne.s32.totalorder %s529, %s543
    %p545 = scmp.eq.s32.totalorder %s73, 0
    %p546 = por %p544, %p545
    %s548 = sadd.s32 %s547, 1
    %p551 = scmp.eq.s32.totalorder %s67, 31
    %p552 = scmp.ne.s32.totalorder %s547, %s549
    %p553 = scmp.eq.s32.totalorder %s67, 0
    %p554 = por %p552, %p553
    %p555 = scmp.ne.s32.totalorder %s547, %s549
    %p556 = scmp.eq.s32.totalorder %s72, 31
    %p557 = por %p555, %p556
    %p558 = scmp.ne.s32.totalorder %s549, %s550
    %p559 = scmp.eq.s32.totalorder %s72, 0
    %p560 = por %p558, %p559
    %p561 = scmp.ne.s32.totalorder %s549, %s550
    %p562 = scmp.eq.s32.totalorder %s73, 31
    %p563 = por %p561, %p562
    %p565 = scmp.ne.s32.totalorder %s550, %s564
    %p566 = scmp.eq.s32.totalorder %s73, 0
    %p567 = por %p565, %p566
    %s569 = sadd.s32 %s568, 1
    %p572 = scmp.eq.s32.totalorder %s67, 31
    %p573 = scmp.ne.s32.totalorder %s568, %s570
    %p574 = scmp.eq.s32.totalorder %s67, 0
    %p575 = por %p573, %p574
    %p576 = scmp.ne.s32.totalorder %s568, %s570
    %p577 = scmp.eq.s32.totalorder %s72, 31
    %p578 = por %p576, %p577
    %p579 = scmp.ne.s32.totalorder %s570, %s571
    %p580 = scmp.eq.s32.totalorder %s72, 0
    %p581 = por %p579, %p580
    %p582 = scmp.ne.s32.totalorder %s570, %s571
    %p583 = scmp.eq.s32.totalorder %s73, 31
    %p584 = por %p582, %p583
    %p586 = scmp.ne.s32.totalorder %s571, %s585
    %p587 = scmp.eq.s32.totalorder %s73, 0
    %p588 = por %p586, %p587
    %s590 = sadd.s32 %s589, 1
    %p593 = scmp.eq.s32.totalorder %s67, 31
    %p594 = scmp.ne.s32.totalorder %s589, %s591
    %p595 = scmp.eq.s32.totalorder %s67, 0
    %p596 = por %p594, %p595
    %p597 = scmp.ne.s32.totalorder %s589, %s591
    %p598 = scmp.eq.s32.totalorder %s72, 31
    %p599 = por %p597, %p598
    %p600 = scmp.ne.s32.totalorder %s591, %s592
    %p601 = scmp.eq.s32.totalorder %s72, 0
    %p602 = por %p600, %p601
    %p603 = scmp.ne.s32.totalorder %s591, %s592
    %p604 = scmp.eq.s32.totalorder %s73, 31
    %p605 = por %p603, %p604
    %p607 = scmp.ne.s32.totalorder %s592, %s606
    %p608 = scmp.eq.s32.totalorder %s73, 0
    %p609 = por %p607, %p608
    %s611 = sadd.s32 %s610, 1
    %p614 = scmp.eq.s32.totalorder %s67, 31
    %p615 = scmp.ne.s32.totalorder %s610, %s612
    %p616 = scmp.eq.s32.totalorder %s67, 0
    %p617 = por %p615, %p616
    %p618 = scmp.ne.s32.totalorder %s610, %s612
    %p619 = scmp.eq.s32.totalorder %s72, 31
    %p620 = por %p618, %p619
    %p621 = scmp.ne.s32.totalorder %s612, %s613
    %p622 = scmp.eq.s32.totalorder %s72, 0
    %p623 = por %p621, %p622
    %p624 = scmp.ne.s32.totalorder %s612, %s613
    %p625 = scmp.eq.s32.totalorder %s73, 31
    %p626 = por %p624, %p625
    %p628 = scmp.ne.s32.totalorder %s613, %s627
    %p629 = scmp.eq.s32.totalorder %s73, 0
    %p630 = por %p628, %p629
    %s632 = sadd.s32 %s631, 1
    %p635 = scmp.eq.s32.totalorder %s67, 31
    %p636 = scmp.ne.s32.totalorder %s631, %s633
    %p637 = scmp.eq.s32.totalorder %s67, 0
    %p638 = por %p636, %p637
    %p639 = scmp.ne.s32.totalorder %s631, %s633
    %p640 = scmp.eq.s32.totalorder %s72, 31
    %p641 = por %p639, %p640
    %p642 = scmp.ne.s32.totalorder %s633, %s634
    %p643 = scmp.eq.s32.totalorder %s72, 0
    %p644 = por %p642, %p643
    %p645 = scmp.ne.s32.totalorder %s633, %s634
    %p646 = scmp.eq.s32.totalorder %s73, 31
    %p647 = por %p645, %p646
    %p649 = scmp.ne.s32.totalorder %s634, %s648
    %p650 = scmp.eq.s32.totalorder %s73, 0
    %p651 = por %p649, %p650
    %s653 = sadd.s32 %s652, 1
    %p656 = scmp.eq.s32.totalorder %s67, 31
    %p657 = scmp.ne.s32.totalorder %s652, %s654
    %p658 = scmp.eq.s32.totalorder %s67, 0
    %p659 = por %p657, %p658
    %p660 = scmp.ne.s32.totalorder %s652, %s654
    %p661 = scmp.eq.s32.totalorder %s72, 31
    %p662 = por %p660, %p661
    %p663 = scmp.ne.s32.totalorder %s654, %s655
    %p664 = scmp.eq.s32.totalorder %s72, 0
    %p665 = por %p663, %p664
    %p666 = scmp.ne.s32.totalorder %s654, %s655
    %p667 = scmp.eq.s32.totalorder %s73, 31
    %p668 = por %p666, %p667
    %p670 = scmp.ne.s32.totalorder %s655, %s669
    %p671 = scmp.eq.s32.totalorder %s73, 0
    %p672 = por %p670, %p671
    %s674 = sadd.s32 %s673, 1
    %p677 = scmp.eq.s32.totalorder %s67, 31
    %p678 = scmp.ne.s32.totalorder %s673, %s675
    %p679 = scmp.eq.s32.totalorder %s67, 0
    %p680 = por %p678, %p679
    %p681 = scmp.ne.s32.totalorder %s673, %s675
    %p682 = scmp.eq.s32.totalorder %s72, 31
    %p683 = por %p681, %p682
    %p684 = scmp.ne.s32.totalorder %s675, %s676
    %p685 = scmp.eq.s32.totalorder %s72, 0
    %p686 = por %p684, %p685
    %p687 = scmp.ne.s32.totalorder %s675, %s676
    %p688 = scmp.eq.s32.totalorder %s73, 31
    %p689 = por %p687, %p688
    %p691 = scmp.ne.s32.totalorder %s676, %s690
    %p692 = scmp.eq.s32.totalorder %s73, 0
    %p693 = por %p691, %p692
    %s695 = sadd.s32 %s694, 1
    %p698 = scmp.eq.s32.totalorder %s67, 31
    %p699 = scmp.ne.s32.totalorder %s694, %s696
    %p700 = scmp.eq.s32.totalorder %s67, 0
    %p701 = por %p699, %p700
    %p702 = scmp.ne.s32.totalorder %s694, %s696
    %p703 = scmp.eq.s32.totalorder %s72, 31
    %p704 = por %p702, %p703
    %p705 = scmp.ne.s32.totalorder %s696, %s697
    %p706 = scmp.eq.s32.totalorder %s72, 0
    %p707 = por %p705, %p706
    %p708 = scmp.ne.s32.totalorder %s696, %s697
    %p709 = scmp.eq.s32.totalorder %s73, 31
    %p710 = por %p708, %p709
    %p712 = scmp.ne.s32.totalorder %s697, %s711
    %p713 = scmp.eq.s32.totalorder %s73, 0
    %p714 = por %p712, %p713
    %s716 = sadd.s32 %s715, 1
    %p719 = scmp.eq.s32.totalorder %s67, 31
    %p720 = scmp.ne.s32.totalorder %s715, %s717
    %p721 = scmp.eq.s32.totalorder %s67, 0
    %p722 = por %p720, %p721
    %p723 = scmp.ne.s32.totalorder %s715, %s717
    %p724 = scmp.eq.s32.totalorder %s72, 31
    %p725 = por %p723, %p724
    %p726 = scmp.ne.s32.totalorder %s717, %s718
    %p727 = scmp.eq.s32.totalorder %s72, 0
    %p728 = por %p726, %p727
    %p729 = scmp.ne.s32.totalorder %s717, %s718
    %p730 = scmp.eq.s32.totalorder %s73, 31
    %p731 = por %p729, %p730
    %p733 = scmp.ne.s32.totalorder %s718, %s732
    %p734 = scmp.eq.s32.totalorder %s73, 0
    %p735 = por %p733, %p734
    %s737 = sadd.s32 %s736, 1
    %p740 = scmp.eq.s32.totalorder %s67, 31
    %p741 = scmp.ne.s32.totalorder %s736, %s738
    %p742 = scmp.eq.s32.totalorder %s67, 0
    %p743 = por %p741, %p742
    %p744 = scmp.ne.s32.totalorder %s736, %s738
    %p745 = scmp.eq.s32.totalorder %s72, 31
    %p746 = por %p744, %p745
    %p747 = scmp.ne.s32.totalorder %s738, %s739
    %p748 = scmp.eq.s32.totalorder %s72, 0
    %p749 = por %p747, %p748
    %p750 = scmp.ne.s32.totalorder %s738, %s739
    %p751 = scmp.eq.s32.totalorder %s73, 31
    %p752 = por %p750, %p751
    %p754 = scmp.ne.s32.totalorder %s739, %s753
    %p755 = scmp.eq.s32.totalorder %s73, 0
    %p756 = por %p754, %p755
    %s757 = ssub.s32 %s74, %s86
    %p758 = scmp.eq.s32.totalorder %s757, 0
    %s760 = sadd.s32 %s759, 1
    %s761 = scalar_select %p758, %s759, %s760
    %p764 = pneg %p758
    %p765 = scmp.eq.s32.totalorder %s67, 31
    %p766 = por %p764, %p765
    %p767 = scmp.ne.s32.totalorder %s759, %s762
    %p768 = scmp.eq.s32.totalorder %s67, 0
    %p769 = por %p767, %p768
    %p770 = scmp.ne.s32.totalorder %s759, %s762
    %p771 = scmp.eq.s32.totalorder %s72, 31
    %p772 = por %p770, %p771
    %p773 = scmp.ne.s32.totalorder %s762, %s763
    %p774 = scmp.eq.s32.totalorder %s72, 0
    %p775 = por %p773, %p774
    %p776 = scmp.ne.s32.totalorder %s762, %s763
    %p777 = scmp.eq.s32.totalorder %s73, 31
    %p778 = por %p776, %p777
    %p780 = scmp.ne.s32.totalorder %s763, %s779
    %p781 = scmp.eq.s32.totalorder %s73, 0
    %p782 = por %p780, %p781
    %p783 = scmp.le.s32.totalorder 1, %s67
    %p784 = scmp.lt.s32.totalorder %s67, 33
    %p785 = pnand %p783, %p784
    %p786 = pneg %p785
    // Predicated region
    $region9: #{sft_net_forward.1} parent=5 // pred_check
      _
    $region10: #{sft_net_forward.1} parent=5 // pred_check_branch
      %788 = sbr.rel (%p785) target = $region12
    $region11: #{sft_net_forward.1} parent=5 // pred_region
      %s789 = ssub.s32 %s67, 1
      // Predicated region
      $region13: #{sft_net_forward.1} parent=11 // pred_check
        %p790 = pneg %p152
      $region14: #{sft_net_forward.1} parent=11 // pred_check_branch
        %792 = sbr.rel (%p790) target = $region16
      $region15: #{sft_net_forward.1} parent=11 // pred_region
        _
      $region16: #{sft_net_forward.1} parent=11 // pred_fallthru
        _
      // Predicated region
      $region17: #{sft_net_forward.1} parent=11 // pred_check
        %p793 = pneg %p173
      $region18: #{sft_net_forward.1} parent=11 // pred_check_branch
        %795 = sbr.rel (%p793) target = $region20
      $region19: #{sft_net_forward.1} parent=11 // pred_region
        _
      $region20: #{sft_net_forward.1} parent=11 // pred_fallthru
        _
      // Predicated region
      $region21: #{sft_net_forward.1} parent=11 // pred_check
        %p796 = pneg %p194
      $region22: #{sft_net_forward.1} parent=11 // pred_check_branch
        %798 = sbr.rel (%p796) target = $region24
      $region23: #{sft_net_forward.1} parent=11 // pred_region
        _
      $region24: #{sft_net_forward.1} parent=11 // pred_fallthru
        _
      // Predicated region
      $region25: #{sft_net_forward.1} parent=11 // pred_check
        %p799 = pneg %p215
      $region26: #{sft_net_forward.1} parent=11 // pred_check_branch
        %801 = sbr.rel (%p799) target = $region28
      $region27: #{sft_net_forward.1} parent=11 // pred_region
        _
      $region28: #{sft_net_forward.1} parent=11 // pred_fallthru
        _
      // Predicated region
      $region29: #{sft_net_forward.1} parent=11 // pred_check
        %p802 = pneg %p236
      $region30: #{sft_net_forward.1} parent=11 // pred_check_branch
        %804 = sbr.rel (%p802) target = $region32
      $region31: #{sft_net_forward.1} parent=11 // pred_region
        _
      $region32: #{sft_net_forward.1} parent=11 // pred_fallthru
        _
      // Predicated region
      $region33: #{sft_net_forward.1} parent=11 // pred_check
        %p805 = pneg %p257
      $region34: #{sft_net_forward.1} parent=11 // pred_check_branch
        %807 = sbr.rel (%p805) target = $region36
      $region35: #{sft_net_forward.1} parent=11 // pred_region
        _
      $region36: #{sft_net_forward.1} parent=11 // pred_fallthru
        _
      // Predicated region
      $region37: #{sft_net_forward.1} parent=11 // pred_check
        %p808 = pneg %p278
      $region38: #{sft_net_forward.1} parent=11 // pred_check_branch
        %810 = sbr.rel (%p808) target = $region40
      $region39: #{sft_net_forward.1} parent=11 // pred_region
        _
      $region40: #{sft_net_forward.1} parent=11 // pred_fallthru
        _
      // Predicated region
      $region41: #{sft_net_forward.1} parent=11 // pred_check
        %p811 = pneg %p299
      $region42: #{sft_net_forward.1} parent=11 // pred_check_branch
        %813 = sbr.rel (%p811) target = $region44
      $region43: #{sft_net_forward.1} parent=11 // pred_region
        _
      $region44: #{sft_net_forward.1} parent=11 // pred_fallthru
        _
      // Predicated region
      $region45: #{sft_net_forward.1} parent=11 // pred_check
        %p814 = pneg %p476
      $region46: #{sft_net_forward.1} parent=11 // pred_check_branch
        %816 = sbr.rel (%p814) target = $region48
      $region47: #{sft_net_forward.1} parent=11 // pred_region
        _
      $region48: #{sft_net_forward.1} parent=11 // pred_fallthru
        _
      // Predicated region
      $region49: #{sft_net_forward.1} parent=11 // pred_check
        %p817 = pneg %p497
      $region50: #{sft_net_forward.1} parent=11 // pred_check_branch
        %819 = sbr.rel (%p817) target = $region52
      $region51: #{sft_net_forward.1} parent=11 // pred_region
        _
      $region52: #{sft_net_forward.1} parent=11 // pred_fallthru
        _
      // Predicated region
      $region53: #{sft_net_forward.1} parent=11 // pred_check
        %p820 = pneg %p518
      $region54: #{sft_net_forward.1} parent=11 // pred_check_branch
        %822 = sbr.rel (%p820) target = $region56
      $region55: #{sft_net_forward.1} parent=11 // pred_region
        _
      $region56: #{sft_net_forward.1} parent=11 // pred_fallthru
        _
      // Predicated region
      $region57: #{sft_net_forward.1} parent=11 // pred_check
        %p823 = pneg %p539
      $region58: #{sft_net_forward.1} parent=11 // pred_check_branch
        %825 = sbr.rel (%p823) target = $region60
      $region59: #{sft_net_forward.1} parent=11 // pred_region
        _
      $region60: #{sft_net_forward.1} parent=11 // pred_fallthru
        _
      // Predicated region
      $region61: #{sft_net_forward.1} parent=11 // pred_check
        %p826 = pneg %p560
      $region62: #{sft_net_forward.1} parent=11 // pred_check_branch
        %828 = sbr.rel (%p826) target = $region64
      $region63: #{sft_net_forward.1} parent=11 // pred_region
        _
      $region64: #{sft_net_forward.1} parent=11 // pred_fallthru
        _
      // Predicated region
      $region65: #{sft_net_forward.1} parent=11 // pred_check
        %p829 = pneg %p581
      $region66: #{sft_net_forward.1} parent=11 // pred_check_branch
        %831 = sbr.rel (%p829) target = $region68
      $region67: #{sft_net_forward.1} parent=11 // pred_region
        _
      $region68: #{sft_net_forward.1} parent=11 // pred_fallthru
        _
      // Predicated region
      $region69: #{sft_net_forward.1} parent=11 // pred_check
        %p832 = pneg %p602
      $region70: #{sft_net_forward.1} parent=11 // pred_check_branch
        %834 = sbr.rel (%p832) target = $region72
      $region71: #{sft_net_forward.1} parent=11 // pred_region
        _
      $region72: #{sft_net_forward.1} parent=11 // pred_fallthru
        _
      // Predicated region
      $region73: #{sft_net_forward.1} parent=11 // pred_check
        %p835 = pneg %p623
      $region74: #{sft_net_forward.1} parent=11 // pred_check_branch
        %837 = sbr.rel (%p835) target = $region76
      $region75: #{sft_net_forward.1} parent=11 // pred_region
        _
      $region76: #{sft_net_forward.1} parent=11 // pred_fallthru
        _
      // Predicated region
      $region77: #{sft_net_forward.1} parent=11 // pred_check
        %p838 = pneg %p644
      $region78: #{sft_net_forward.1} parent=11 // pred_check_branch
        %840 = sbr.rel (%p838) target = $region80
      $region79: #{sft_net_forward.1} parent=11 // pred_region
        _
      $region80: #{sft_net_forward.1} parent=11 // pred_fallthru
        _
      // Predicated region
      $region81: #{sft_net_forward.1} parent=11 // pred_check
        %p841 = pneg %p665
      $region82: #{sft_net_forward.1} parent=11 // pred_check_branch
        %843 = sbr.rel (%p841) target = $region84
      $region83: #{sft_net_forward.1} parent=11 // pred_region
        _
      $region84: #{sft_net_forward.1} parent=11 // pred_fallthru
        _
      // Predicated region
      $region85: #{sft_net_forward.1} parent=11 // pred_check
        %p844 = pneg %p686
      $region86: #{sft_net_forward.1} parent=11 // pred_check_branch
        %846 = sbr.rel (%p844) target = $region88
      $region87: #{sft_net_forward.1} parent=11 // pred_region
        _
      $region88: #{sft_net_forward.1} parent=11 // pred_fallthru
        _
      // Predicated region
      $region89: #{sft_net_forward.1} parent=11 // pred_check
        %p847 = pneg %p707
      $region90: #{sft_net_forward.1} parent=11 // pred_check_branch
        %849 = sbr.rel (%p847) target = $region92
      $region91: #{sft_net_forward.1} parent=11 // pred_region
        _
      $region92: #{sft_net_forward.1} parent=11 // pred_fallthru
        _
      // Predicated region
      $region93: #{sft_net_forward.1} parent=11 // pred_check
        %p850 = pneg %p728
      $region94: #{sft_net_forward.1} parent=11 // pred_check_branch
        %852 = sbr.rel (%p850) target = $region96
      $region95: #{sft_net_forward.1} parent=11 // pred_region
        _
      $region96: #{sft_net_forward.1} parent=11 // pred_fallthru
        _
      // Predicated region
      $region97: #{sft_net_forward.1} parent=11 // pred_check
        %p853 = pneg %p749
      $region98: #{sft_net_forward.1} parent=11 // pred_check_branch
        %855 = sbr.rel (%p853) target = $region100
      $region99: #{sft_net_forward.1} parent=11 // pred_region
        _
      $region100: #{sft_net_forward.1} parent=11 // pred_fallthru
        _
    $region12: #{sft_net_forward.1} parent=5 // pred_fallthru
      _
    %p856 = scmp.lt.s32.totalorder %s67, 32
    // Predicated region
    $region101: #{sft_net_forward.1} parent=5 // pred_check
      %p857 = pneg %p856
    $region102: #{sft_net_forward.1} parent=5 // pred_check_branch
      %859 = sbr.rel (%p857) target = $region104
    $region103: #{sft_net_forward.1} parent=5 // pred_region
      // Predicated region
      $region105: #{sft_net_forward.1} parent=103 // pred_check
        %p860 = pneg %p99
      $region106: #{sft_net_forward.1} parent=103 // pred_check_branch
        %862 = sbr.rel (%p860) target = $region108
      $region107: #{sft_net_forward.1} parent=103 // pred_region
        %p863 = scmp.lt.s32.totalorder %s74, 1
        %s864 = scalar_select %p863, %s74, 1
        %s865 = smul.addr %s864, 8
        %s866 = smul.addr %s865, 8
        %s867 = scalar_lea.vmem %s1, %s866
      $region108: #{sft_net_forward.1} parent=103 // pred_fallthru
        _
      // Predicated region
      $region109: #{sft_net_forward.1} parent=103 // pred_check
        %p868 = pneg %p125
      $region110: #{sft_net_forward.1} parent=103 // pred_check_branch
        %870 = sbr.rel (%p868) target = $region112
      $region111: #{sft_net_forward.1} parent=103 // pred_region
        %p871 = scmp.lt.s32.totalorder %s74, 1
        %s872 = scalar_select %p871, %s74, 1
        %s873 = smul.addr %s872, 8
        %s874 = smul.addr %s873, 8
        %s875 = scalar_lea.vmem %s3, %s874
      $region112: #{sft_net_forward.1} parent=103 // pred_fallthru
        _
      // Predicated region
      $region113: #{sft_net_forward.1} parent=103 // pred_check
        %p876 = pneg %p319
      $region114: #{sft_net_forward.1} parent=103 // pred_check_branch
        %878 = sbr.rel (%p876) target = $region116
      $region115: #{sft_net_forward.1} parent=103 // pred_region
        %p879 = scmp.lt.s32.totalorder %s75, 15
        %s880 = scalar_select %p879, %s75, 15
        %s881 = smul.addr %s880, 144
        %s882 = smul.addr %s881, 4
        %s883 = scalar_lea.vmem %s21, %s882
      $region116: #{sft_net_forward.1} parent=103 // pred_fallthru
        _
      // Predicated region
      $region117: #{sft_net_forward.1} parent=103 // pred_check
        %p884 = pneg %p345
      $region118: #{sft_net_forward.1} parent=103 // pred_check_branch
        %886 = sbr.rel (%p884) target = $region120
      $region119: #{sft_net_forward.1} parent=103 // pred_region
        %p887 = scmp.lt.s32.totalorder %s75, 15
        %s888 = scalar_select %p887, %s75, 15
        %s889 = smul.addr %s888, 2
        %s890 = scalar_lea.vmem %s23, %s889
      $region120: #{sft_net_forward.1} parent=103 // pred_fallthru
        _
      // Predicated region
      $region121: #{sft_net_forward.1} parent=103 // pred_check
        %p891 = pneg %p371
      $region122: #{sft_net_forward.1} parent=103 // pred_check_branch
        %893 = sbr.rel (%p891) target = $region124
      $region123: #{sft_net_forward.1} parent=103 // pred_region
        %p894 = scmp.lt.s32.totalorder %s75, 15
        %s895 = scalar_select %p894, %s75, 15
        %s896 = smul.addr %s895, 4
        %s897 = smul.addr %s896, 4
        %s898 = scalar_lea.vmem %s25, %s897
      $region124: #{sft_net_forward.1} parent=103 // pred_fallthru
        _
      // Predicated region
      $region125: #{sft_net_forward.1} parent=103 // pred_check
        %p899 = pneg %p397
      $region126: #{sft_net_forward.1} parent=103 // pred_check_branch
        %901 = sbr.rel (%p899) target = $region128
      $region127: #{sft_net_forward.1} parent=103 // pred_region
        %p902 = scmp.lt.s32.totalorder %s75, 15
        %s903 = scalar_select %p902, %s75, 15
        %s904 = scalar_lea.vmem %s27, %s903
      $region128: #{sft_net_forward.1} parent=103 // pred_fallthru
        _
      // Predicated region
      $region129: #{sft_net_forward.1} parent=103 // pred_check
        %p905 = pneg %p423
      $region130: #{sft_net_forward.1} parent=103 // pred_check_branch
        %907 = sbr.rel (%p905) target = $region132
      $region131: #{sft_net_forward.1} parent=103 // pred_region
        %p908 = scmp.lt.s32.totalorder %s75, 15
        %s909 = scalar_select %p908, %s75, 15
        %s910 = smul.addr %s909, 32
        %s911 = smul.addr %s910, 4
        %s912 = scalar_lea.vmem %s29, %s911
      $region132: #{sft_net_forward.1} parent=103 // pred_fallthru
        _
      // Predicated region
      $region133: #{sft_net_forward.1} parent=103 // pred_check
        %p913 = pneg %p449
      $region134: #{sft_net_forward.1} parent=103 // pred_check_branch
        %915 = sbr.rel (%p913) target = $region136
      $region135: #{sft_net_forward.1} parent=103 // pred_region
        %p916 = scmp.lt.s32.totalorder %s75, 15
        %s917 = scalar_select %p916, %s75, 15
        %s918 = smul.addr %s917, 2
        %s919 = scalar_lea.vmem %s31, %s918
      $region136: #{sft_net_forward.1} parent=103 // pred_fallthru
        _
    $region104: #{sft_net_forward.1} parent=5 // pred_fallthru
      _
    %p920 = scmp.le.s32.totalorder 1, %s67
    %p921 = scmp.lt.s32.totalorder %s67, 33
    %p922 = pnand %p920, %p921
    %p923 = pneg %p922
    // Predicated region
    $region137: #{sft_net_forward.1} parent=5 // pred_check
      _
    $region138: #{sft_net_forward.1} parent=5 // pred_check_branch
      %925 = sbr.rel (%p922) target = $region140
    $region139: #{sft_net_forward.1} parent=5 // pred_region
      %s926 = ssub.s32 %s67, 1
      %p927 = scmp.lt.s32.totalorder %s76, 1
      %s928 = scalar_select %p927, %s76, 1
      %s929 = smul.addr %s928, 8
      %s930 = smul.addr %s929, 8
      %s931 = scalar_lea.vmem %s1, %s930
      %p932 = pneg %p105
      %p933 = pneg %p102
      %p934 = scmp.lt.s32.totalorder %s76, 1
      %s935 = scalar_select %p934, %s76, 1
      %s936 = smul.addr %s935, 8
      %s937 = smul.addr %s936, 8
      %s938 = scalar_lea.vmem %s3, %s937
      %p939 = pneg %p131
      %p940 = pneg %p128
      %p941 = pneg %p152
      %p942 = pneg %p149
      %p943 = pneg %p173
      %p944 = pneg %p170
      %p945 = pneg %p194
      %p946 = pneg %p191
      %p947 = pneg %p215
      %p948 = pneg %p212
      %p949 = pneg %p236
      %p950 = pneg %p233
      %p951 = pneg %p257
      %p952 = pneg %p254
      %p953 = pneg %p278
      %p954 = pneg %p275
      %p955 = pneg %p299
      %p956 = pneg %p296
      %p957 = scmp.lt.s32.totalorder %s77, 15
      %s958 = scalar_select %p957, %s77, 15
      %s959 = smul.addr %s958, 144
      %s960 = smul.addr %s959, 4
      %s961 = scalar_lea.vmem %s21, %s960
      %p962 = pneg %p325
      %p963 = pneg %p322
      %p964 = scmp.lt.s32.totalorder %s77, 15
      %s965 = scalar_select %p964, %s77, 15
      %s966 = smul.addr %s965, 2
      %s967 = scalar_lea.vmem %s23, %s966
      %p968 = pneg %p351
      %p969 = pneg %p348
      %p970 = scmp.lt.s32.totalorder %s77, 15
      %s971 = scalar_select %p970, %s77, 15
      %s972 = smul.addr %s971, 4
      %s973 = smul.addr %s972, 4
      %s974 = scalar_lea.vmem %s25, %s973
      %p975 = pneg %p377
      %p976 = pneg %p374
      %p977 = scmp.lt.s32.totalorder %s77, 15
      %s978 = scalar_select %p977, %s77, 15
      %s979 = scalar_lea.vmem %s27, %s978
      %p980 = pneg %p403
      %p981 = pneg %p400
      %p982 = scmp.lt.s32.totalorder %s77, 15
      %s983 = scalar_select %p982, %s77, 15
      %s984 = smul.addr %s983, 32
      %s985 = smul.addr %s984, 4
      %s986 = scalar_lea.vmem %s29, %s985
      %p987 = pneg %p429
      %p988 = pneg %p426
      %p989 = scmp.lt.s32.totalorder %s77, 15
      %s990 = scalar_select %p989, %s77, 15
      %s991 = smul.addr %s990, 2
      %s992 = scalar_lea.vmem %s31, %s991
      %p993 = pneg %p455
      %p994 = pneg %p452
      %p995 = pneg %p476
      %p996 = pneg %p473
      %p997 = pneg %p497
      %p998 = pneg %p494
      %p999 = pneg %p518
      %p1000 = pneg %p515
      %p1001 = pneg %p539
      %p1002 = pneg %p536
      %p1003 = pneg %p560
      %p1004 = pneg %p557
      %p1005 = pneg %p581
      %p1006 = pneg %p578
      %p1007 = pneg %p602
      %p1008 = pneg %p599
      %p1009 = pneg %p623
      %p1010 = pneg %p620
      %p1011 = pneg %p644
      %p1012 = pneg %p641
      %p1013 = pneg %p665
      %p1014 = pneg %p662
      %p1015 = pneg %p686
      %p1016 = pneg %p683
      %p1017 = pneg %p707
      %p1018 = pneg %p704
      %p1019 = pneg %p728
      %p1020 = pneg %p725
      %p1021 = pneg %p749
      %p1022 = pneg %p746
      %p1023 = pneg %p775
      %p1024 = pneg %p772
      %p1025 = scmp.lt.s32.totalorder %s76, 1
      %s1026 = scalar_select %p1025, %s76, 1
      %s1027 = smul.addr %s1026, 8
      %s1028 = smul.addr %s1027, 8
      %s1029 = scalar_lea.vmem %s61, %s1028
      %p1030 = scmp.lt.s32.totalorder %s76, 1
      %s1031 = scalar_select %p1030, %s76, 1
      %s1032 = smul.addr %s1031, 8
      %s1033 = smul.addr %s1032, 8
      %s1034 = scalar_lea.vmem %s1, %s1033
      %p1035 = scmp.lt.s32.totalorder %s76, 1
      %s1036 = scalar_select %p1035, %s76, 1
      %s1037 = smul.addr %s1036, 8
      %s1038 = smul.addr %s1037, 8
      %s1039 = scalar_lea.vmem %s3, %s1038
      %p1040 = scmp.lt.s32.totalorder %s77, 15
      %s1041 = scalar_select %p1040, %s77, 15
      %s1042 = smul.addr %s1041, 144
      %s1043 = smul.addr %s1042, 4
      %s1044 = scalar_lea.vmem %s21, %s1043
      %p1045 = scmp.lt.s32.totalorder %s77, 15
      %s1046 = scalar_select %p1045, %s77, 15
      %s1047 = smul.addr %s1046, 2
      %s1048 = scalar_lea.vmem %s23, %s1047
      %p1049 = scmp.lt.s32.totalorder %s77, 15
      %s1050 = scalar_select %p1049, %s77, 15
      %s1051 = smul.addr %s1050, 4
      %s1052 = smul.addr %s1051, 4
      %s1053 = scalar_lea.vmem %s25, %s1052
      %p1054 = scmp.lt.s32.totalorder %s77, 15
      %s1055 = scalar_select %p1054, %s77, 15
      %s1056 = scalar_lea.vmem %s27, %s1055
      %p1057 = scmp.lt.s32.totalorder %s77, 15
      %s1058 = scalar_select %p1057, %s77, 15
      %s1059 = smul.addr %s1058, 32
      %s1060 = smul.addr %s1059, 4
      %s1061 = scalar_lea.vmem %s29, %s1060
      %p1062 = scmp.lt.s32.totalorder %s77, 15
      %s1063 = scalar_select %p1062, %s77, 15
      %s1064 = smul.addr %s1063, 2
      %s1065 = scalar_lea.vmem %s31, %s1064
      %p1066 = scmp.lt.s32.totalorder %s76, 1
      %s1067 = scalar_select %p1066, %s76, 1
      %s1068 = smul.addr %s1067, 8
      %s1069 = smul.addr %s1068, 8
      %s1070 = scalar_lea.vmem %s61, %s1069
      %p1072 = scmp.eq.s32.totalorder %s77, 0
      // Predicated region
      $region141: #{sft_net_forward.1} parent=139 // pred_check
        %p1073 = pneg %p1072
      $region142: #{sft_net_forward.1} parent=139 // pred_check_branch
        %1075 = sbr.rel (%p1073) target = $region144
      $region143: #{sft_net_forward.1} parent=139 // pred_region
        %v1076 = vld [vmem:[%s1039] sm:$0xff]
        %v1077 = vld [vmem:[%s1039 + $0x8] sm:$0xff]
        %v1078 = vld [vmem:[%s1039 + $0x10] sm:$0xff]
        %v1079 = vld [vmem:[%s1039 + $0x18] sm:$0xff]
        %v1080 = vld [vmem:[%s1039 + $0x20] sm:$0xff]
        %v1081 = vld [vmem:[%s1039 + $0x28] sm:$0xff]
        %v1082 = vld [vmem:[%s1039 + $0x30] sm:$0xff]
        %v1083 = vld [vmem:[%s1039 + $0x38] sm:$0xff]
        %v1084 = vpack.c.bf16 %v1077, %v1076
        %v1085 = vpack.c.bf16 %v1079, %v1078
        %v1086 = vpack.c.bf16 %v1081, %v1080
        %v1087 = vpack.c.bf16 %v1083, %v1082
        %v1088 = vld [vmem:[%s5] sm:$0xf]
        %v1089 = vld [vmem:[%s5 + $0x4] sm:$0xf]
        %v1090 = vld [vmem:[%s5 + $0x8] sm:$0xf]
        %v1091 = vld [vmem:[%s5 + $0xc] sm:$0xf]
        %v1092 = vld [vmem:[%s7] sm:$0x1]
        %v1094 = vperm.slane %v1092, 0
        %v1100 = vunpack.c.l.b16 %v1088
        %v1101 = vunpack.c.l.b16 %v1089
        %v1102 = vunpack.c.l.b16 %v1090
        %v1103 = vunpack.c.l.b16 %v1091
        %v1104 = vpack.c.b16 %v1101, %v1100
        %v1105 = vpack.c.b16 %v1103, %v1102
        %vm1108 = vcmask 261120
        %v1110 = vsel %vm1108, %v1084, 0
        %v1113 = vsel %vm1108, %v1085, 0
        %v1116 = vsel %vm1108, %v1086, 0
        %v1119 = vsel %vm1108, %v1087, 0
        %1121 = vmatpush.bf16.msra.mxu0 0
        %1122 = vmatpush.bf16.msra.mxu0 0
        %1123 = vmatpush.bf16.msra.mxu0 0
        %1124 = vmatpush.bf16.msra.mxu0 0
        %1125 = vmatpush.bf16.msra.mxu0 0
        %1126 = vmatpush.bf16.msra.mxu0 0
        %1127 = vmatpush.bf16.msra.mxu0 %v1105
        %1128 = vmatpush.bf16.msra.mxu0 %v1104
        %1129 = vmatmul.bf16.gmra.mxu0 %v1110
        %v1130 = vpop.f32.mrf.mxu0
        %v1131 = vadd.f32 %v1094, %v1130
        %v1132 = vpop.f32.mrf.mxu0
        %v1133 = vadd.f32 %v1094, %v1132
        %1134 = vmatmul.bf16.gmra.mxu0 %v1113
        %v1135 = vpop.f32.mrf.mxu0
        %v1136 = vadd.f32 %v1094, %v1135
        %v1137 = vpop.f32.mrf.mxu0
        %v1138 = vadd.f32 %v1094, %v1137
        %1139 = vmatmul.bf16.gmra.mxu0 %v1116
        %v1140 = vpop.f32.mrf.mxu0
        %v1141 = vadd.f32 %v1094, %v1140
        %v1142 = vpop.f32.mrf.mxu0
        %v1143 = vadd.f32 %v1094, %v1142
        %1144 = vmatmul.bf16.gmra.mxu0 %v1119
        %v1145 = vpop.f32.mrf.mxu0
        %v1146 = vadd.f32 %v1094, %v1145
        %v1147 = vpop.f32.mrf.mxu0
        %v1148 = vadd.f32 %v1094, %v1147
        %1149 = vdwg.mxu0
        %vm1150 = vcmp.ge.f32.partialorder %v1131, 0.0
        %vm1151 = vcmp.ge.f32.partialorder %v1133, 0.0
        %vm1152 = vcmp.ge.f32.partialorder %v1136, 0.0
        %vm1153 = vcmp.ge.f32.partialorder %v1138, 0.0
        %vm1154 = vcmp.ge.f32.partialorder %v1141, 0.0
        %vm1155 = vcmp.ge.f32.partialorder %v1143, 0.0
        %vm1156 = vcmp.ge.f32.partialorder %v1146, 0.0
        %vm1157 = vcmp.ge.f32.partialorder %v1148, 0.0
        %v1158 = vmul.f32 %v1131, 0.1
        %v1159 = vmul.f32 %v1133, 0.1
        %v1160 = vmul.f32 %v1136, 0.1
        %v1161 = vmul.f32 %v1138, 0.1
        %v1162 = vmul.f32 %v1141, 0.1
        %v1163 = vmul.f32 %v1143, 0.1
        %v1164 = vmul.f32 %v1146, 0.1
        %v1165 = vmul.f32 %v1148, 0.1
        %v1166 = vsel %vm1150, %v1131, %v1158
        %v1167 = vsel %vm1151, %v1133, %v1159
        %v1168 = vsel %vm1152, %v1136, %v1160
        %v1169 = vsel %vm1153, %v1138, %v1161
        %v1170 = vsel %vm1154, %v1141, %v1162
        %v1171 = vsel %vm1155, %v1143, %v1163
        %v1172 = vsel %vm1156, %v1146, %v1164
        %v1173 = vsel %vm1157, %v1148, %v1165
        %v1174 = vpack.c.bf16 %v1167, %v1166
        %v1175 = vpack.c.bf16 %v1169, %v1168
        %v1176 = vpack.c.bf16 %v1171, %v1170
        %v1177 = vpack.c.bf16 %v1173, %v1172
        %v1178 = vld [vmem:[%s9] sm:$0xf]
        %v1179 = vld [vmem:[%s9 + $0x4] sm:$0xf]
        %v1180 = vld [vmem:[%s9 + $0x8] sm:$0xf]
        %v1181 = vld [vmem:[%s9 + $0xc] sm:$0xf]
        %v1182 = vld [vmem:[%s9 + $0x10] sm:$0xf]
        %v1183 = vld [vmem:[%s9 + $0x14] sm:$0xf]
        %v1184 = vld [vmem:[%s9 + $0x18] sm:$0xf]
        %v1185 = vld [vmem:[%s9 + $0x1c] sm:$0xf]
        %v1186 = vld [vmem:[%s9 + $0x20] sm:$0xf]
        %v1187 = vld [vmem:[%s9 + $0x24] sm:$0xf]
        %v1188 = vld [vmem:[%s9 + $0x28] sm:$0xf]
        %v1189 = vld [vmem:[%s9 + $0x2c] sm:$0xf]
        %v1190 = vld [vmem:[%s9 + $0x30] sm:$0xf]
        %v1191 = vld [vmem:[%s9 + $0x34] sm:$0xf]
        %v1192 = vld [vmem:[%s9 + $0x38] sm:$0xf]
        %v1193 = vld [vmem:[%s9 + $0x3c] sm:$0xf]
        %v1194 = vld [vmem:[%s11] sm:$0x1]
        %v1196 = vperm.slane %v1194, 0
        %v1214 = vunpack.c.l.b16 %v1178
        %v1215 = vunpack.c.l.b16 %v1179
        %v1216 = vunpack.c.l.b16 %v1180
        %v1217 = vunpack.c.l.b16 %v1181
        %v1218 = vunpack.c.l.b16 %v1182
        %v1219 = vunpack.c.l.b16 %v1183
        %v1220 = vunpack.c.l.b16 %v1184
        %v1221 = vunpack.c.l.b16 %v1185
        %v1222 = vunpack.c.l.b16 %v1186
        %v1223 = vunpack.c.l.b16 %v1187
        %v1224 = vunpack.c.l.b16 %v1188
        %v1225 = vunpack.c.l.b16 %v1189
        %v1226 = vunpack.c.l.b16 %v1190
        %v1227 = vunpack.c.l.b16 %v1191
        %v1228 = vunpack.c.l.b16 %v1192
        %v1229 = vunpack.c.l.b16 %v1193
        %v1230 = vpack.c.b16 %v1215, %v1214
        %v1231 = vpack.c.b16 %v1217, %v1216
        %v1232 = vpack.c.b16 %v1219, %v1218
        %v1233 = vpack.c.b16 %v1221, %v1220
        %v1234 = vpack.c.b16 %v1223, %v1222
        %v1235 = vpack.c.b16 %v1225, %v1224
        %v1236 = vpack.c.b16 %v1227, %v1226
        %v1237 = vpack.c.b16 %v1229, %v1228
        %1246 = vmatpush.bf16.msra.mxu0 %v1237
        %1247 = vmatpush.bf16.msra.mxu0 %v1236
        %1248 = vmatpush.bf16.msra.mxu0 %v1235
        %1249 = vmatpush.bf16.msra.mxu0 %v1234
        %1250 = vmatpush.bf16.msra.mxu0 %v1233
        %1251 = vmatpush.bf16.msra.mxu0 %v1232
        %1252 = vmatpush.bf16.msra.mxu0 %v1231
        %1253 = vmatpush.bf16.msra.mxu0 %v1230
        %1254 = vmatmul.bf16.gmra.mxu0 %v1174
        %v1255 = vpop.f32.mrf.mxu0
        %v1256 = vadd.f32 %v1196, %v1255
        %v1257 = vpop.f32.mrf.mxu0
        %v1258 = vadd.f32 %v1196, %v1257
        %1259 = vmatmul.bf16.gmra.mxu0 %v1175
        %v1260 = vpop.f32.mrf.mxu0
        %v1261 = vadd.f32 %v1196, %v1260
        %v1262 = vpop.f32.mrf.mxu0
        %v1263 = vadd.f32 %v1196, %v1262
        %1264 = vmatmul.bf16.gmra.mxu0 %v1176
        %v1265 = vpop.f32.mrf.mxu0
        %v1266 = vadd.f32 %v1196, %v1265
        %v1267 = vpop.f32.mrf.mxu0
        %v1268 = vadd.f32 %v1196, %v1267
        %1269 = vmatmul.bf16.gmra.mxu0 %v1177
        %v1270 = vpop.f32.mrf.mxu0
        %v1271 = vadd.f32 %v1196, %v1270
        %v1272 = vpop.f32.mrf.mxu0
        %v1273 = vadd.f32 %v1196, %v1272
        %1274 = vdwg.mxu0
        %vm1275 = vcmp.ge.f32.partialorder %v1256, 0.0
        %vm1276 = vcmp.ge.f32.partialorder %v1258, 0.0
        %vm1277 = vcmp.ge.f32.partialorder %v1261, 0.0
        %vm1278 = vcmp.ge.f32.partialorder %v1263, 0.0
        %vm1279 = vcmp.ge.f32.partialorder %v1266, 0.0
        %vm1280 = vcmp.ge.f32.partialorder %v1268, 0.0
        %vm1281 = vcmp.ge.f32.partialorder %v1271, 0.0
        %vm1282 = vcmp.ge.f32.partialorder %v1273, 0.0
        %v1283 = vmul.f32 %v1256, 0.1
        %v1284 = vmul.f32 %v1258, 0.1
        %v1285 = vmul.f32 %v1261, 0.1
        %v1286 = vmul.f32 %v1263, 0.1
        %v1287 = vmul.f32 %v1266, 0.1
        %v1288 = vmul.f32 %v1268, 0.1
        %v1289 = vmul.f32 %v1271, 0.1
        %v1290 = vmul.f32 %v1273, 0.1
        %v1291 = vsel %vm1275, %v1256, %v1283
        %v1292 = vsel %vm1276, %v1258, %v1284
        %v1293 = vsel %vm1277, %v1261, %v1285
        %v1294 = vsel %vm1278, %v1263, %v1286
        %v1295 = vsel %vm1279, %v1266, %v1287
        %v1296 = vsel %vm1280, %v1268, %v1288
        %v1297 = vsel %vm1281, %v1271, %v1289
        %v1298 = vsel %vm1282, %v1273, %v1290
        %v1299 = vpack.c.bf16 %v1292, %v1291
        %v1300 = vpack.c.bf16 %v1294, %v1293
        %v1301 = vpack.c.bf16 %v1296, %v1295
        %v1302 = vpack.c.bf16 %v1298, %v1297
        %s1303 = scalar_lea.vmem %s9, 64
        %v1304 = vld [vmem:[%s1303] sm:$0xf]
        %v1305 = vld [vmem:[%s1303 + $0x4] sm:$0xf]
        %v1306 = vld [vmem:[%s1303 + $0x8] sm:$0xf]
        %v1307 = vld [vmem:[%s1303 + $0xc] sm:$0xf]
        %v1308 = vld [vmem:[%s1303 + $0x10] sm:$0xf]
        %v1309 = vld [vmem:[%s1303 + $0x14] sm:$0xf]
        %v1310 = vld [vmem:[%s1303 + $0x18] sm:$0xf]
        %v1311 = vld [vmem:[%s1303 + $0x1c] sm:$0xf]
        %v1312 = vld [vmem:[%s1303 + $0x20] sm:$0xf]
        %v1313 = vld [vmem:[%s1303 + $0x24] sm:$0xf]
        %v1314 = vld [vmem:[%s1303 + $0x28] sm:$0xf]
        %v1315 = vld [vmem:[%s1303 + $0x2c] sm:$0xf]
        %v1316 = vld [vmem:[%s1303 + $0x30] sm:$0xf]
        %v1317 = vld [vmem:[%s1303 + $0x34] sm:$0xf]
        %v1318 = vld [vmem:[%s1303 + $0x38] sm:$0xf]
        %v1319 = vld [vmem:[%s1303 + $0x3c] sm:$0xf]
        %s1320 = scalar_lea.vmem %s11, 1
        %v1321 = vld [vmem:[%s1320] sm:$0x1]
        %v1323 = vperm.slane %v1321, 0
        %v1341 = vunpack.c.l.b16 %v1304
        %v1342 = vunpack.c.l.b16 %v1305
        %v1343 = vunpack.c.l.b16 %v1306
        %v1344 = vunpack.c.l.b16 %v1307
        %v1345 = vunpack.c.l.b16 %v1308
        %v1346 = vunpack.c.l.b16 %v1309
        %v1347 = vunpack.c.l.b16 %v1310
        %v1348 = vunpack.c.l.b16 %v1311
        %v1349 = vunpack.c.l.b16 %v1312
        %v1350 = vunpack.c.l.b16 %v1313
        %v1351 = vunpack.c.l.b16 %v1314
        %v1352 = vunpack.c.l.b16 %v1315
        %v1353 = vunpack.c.l.b16 %v1316
        %v1354 = vunpack.c.l.b16 %v1317
        %v1355 = vunpack.c.l.b16 %v1318
        %v1356 = vunpack.c.l.b16 %v1319
        %v1357 = vpack.c.b16 %v1342, %v1341
        %v1358 = vpack.c.b16 %v1344, %v1343
        %v1359 = vpack.c.b16 %v1346, %v1345
        %v1360 = vpack.c.b16 %v1348, %v1347
        %v1361 = vpack.c.b16 %v1350, %v1349
        %v1362 = vpack.c.b16 %v1352, %v1351
        %v1363 = vpack.c.b16 %v1354, %v1353
        %v1364 = vpack.c.b16 %v1356, %v1355
        %1373 = vmatpush.bf16.msra.mxu0 %v1364
        %1374 = vmatpush.bf16.msra.mxu0 %v1363
        %1375 = vmatpush.bf16.msra.mxu0 %v1362
        %1376 = vmatpush.bf16.msra.mxu0 %v1361
        %1377 = vmatpush.bf16.msra.mxu0 %v1360
        %1378 = vmatpush.bf16.msra.mxu0 %v1359
        %1379 = vmatpush.bf16.msra.mxu0 %v1358
        %1380 = vmatpush.bf16.msra.mxu0 %v1357
        %1381 = vmatmul.bf16.gmra.mxu0 %v1299
        %v1382 = vpop.f32.mrf.mxu0
        %v1383 = vadd.f32 %v1323, %v1382
        %v1384 = vpop.f32.mrf.mxu0
        %v1385 = vadd.f32 %v1323, %v1384
        %1386 = vmatmul.bf16.gmra.mxu0 %v1300
        %v1387 = vpop.f32.mrf.mxu0
        %v1388 = vadd.f32 %v1323, %v1387
        %v1389 = vpop.f32.mrf.mxu0
        %v1390 = vadd.f32 %v1323, %v1389
        %1391 = vmatmul.bf16.gmra.mxu0 %v1301
        %v1392 = vpop.f32.mrf.mxu0
        %v1393 = vadd.f32 %v1323, %v1392
        %v1394 = vpop.f32.mrf.mxu0
        %v1395 = vadd.f32 %v1323, %v1394
        %1396 = vmatmul.bf16.gmra.mxu0 %v1302
        %v1397 = vpop.f32.mrf.mxu0
        %v1398 = vadd.f32 %v1323, %v1397
        %v1399 = vpop.f32.mrf.mxu0
        %v1400 = vadd.f32 %v1323, %v1399
        %1401 = vdwg.mxu0
        %vm1402 = vcmp.ge.f32.partialorder %v1383, 0.0
        %vm1403 = vcmp.ge.f32.partialorder %v1385, 0.0
        %vm1404 = vcmp.ge.f32.partialorder %v1388, 0.0
        %vm1405 = vcmp.ge.f32.partialorder %v1390, 0.0
        %vm1406 = vcmp.ge.f32.partialorder %v1393, 0.0
        %vm1407 = vcmp.ge.f32.partialorder %v1395, 0.0
        %vm1408 = vcmp.ge.f32.partialorder %v1398, 0.0
        %vm1409 = vcmp.ge.f32.partialorder %v1400, 0.0
        %v1410 = vmul.f32 %v1383, 0.1
        %v1411 = vmul.f32 %v1385, 0.1
        %v1412 = vmul.f32 %v1388, 0.1
        %v1413 = vmul.f32 %v1390, 0.1
        %v1414 = vmul.f32 %v1393, 0.1
        %v1415 = vmul.f32 %v1395, 0.1
        %v1416 = vmul.f32 %v1398, 0.1
        %v1417 = vmul.f32 %v1400, 0.1
        %v1418 = vsel %vm1402, %v1383, %v1410
        %v1419 = vsel %vm1403, %v1385, %v1411
        %v1420 = vsel %vm1404, %v1388, %v1412
        %v1421 = vsel %vm1405, %v1390, %v1413
        %v1422 = vsel %vm1406, %v1393, %v1414
        %v1423 = vsel %vm1407, %v1395, %v1415
        %v1424 = vsel %vm1408, %v1398, %v1416
        %v1425 = vsel %vm1409, %v1400, %v1417
        %v1426 = vpack.c.bf16 %v1419, %v1418
        %v1427 = vpack.c.bf16 %v1421, %v1420
        %v1428 = vpack.c.bf16 %v1423, %v1422
        %v1429 = vpack.c.bf16 %v1425, %v1424
        %s1430 = scalar_lea.vmem %s9, 128
        %v1431 = vld [vmem:[%s1430] sm:$0xf]
        %v1432 = vld [vmem:[%s1430 + $0x4] sm:$0xf]
        %v1433 = vld [vmem:[%s1430 + $0x8] sm:$0xf]
        %v1434 = vld [vmem:[%s1430 + $0xc] sm:$0xf]
        %v1435 = vld [vmem:[%s1430 + $0x10] sm:$0xf]
        %v1436 = vld [vmem:[%s1430 + $0x14] sm:$0xf]
        %v1437 = vld [vmem:[%s1430 + $0x18] sm:$0xf]
        %v1438 = vld [vmem:[%s1430 + $0x1c] sm:$0xf]
        %v1439 = vld [vmem:[%s1430 + $0x20] sm:$0xf]
        %v1440 = vld [vmem:[%s1430 + $0x24] sm:$0xf]
        %v1441 = vld [vmem:[%s1430 + $0x28] sm:$0xf]
        %v1442 = vld [vmem:[%s1430 + $0x2c] sm:$0xf]
        %v1443 = vld [vmem:[%s1430 + $0x30] sm:$0xf]
        %v1444 = vld [vmem:[%s1430 + $0x34] sm:$0xf]
        %v1445 = vld [vmem:[%s1430 + $0x38] sm:$0xf]
        %v1446 = vld [vmem:[%s1430 + $0x3c] sm:$0xf]
        %s1447 = scalar_lea.vmem %s11, 2
        %v1448 = vld [vmem:[%s1447] sm:$0x1]
        %v1450 = vperm.slane %v1448, 0
        %v1468 = vunpack.c.l.b16 %v1431
        %v1469 = vunpack.c.l.b16 %v1432
        %v1470 = vunpack.c.l.b16 %v1433
        %v1471 = vunpack.c.l.b16 %v1434
        %v1472 = vunpack.c.l.b16 %v1435
        %v1473 = vunpack.c.l.b16 %v1436
        %v1474 = vunpack.c.l.b16 %v1437
        %v1475 = vunpack.c.l.b16 %v1438
        %v1476 = vunpack.c.l.b16 %v1439
        %v1477 = vunpack.c.l.b16 %v1440
        %v1478 = vunpack.c.l.b16 %v1441
        %v1479 = vunpack.c.l.b16 %v1442
        %v1480 = vunpack.c.l.b16 %v1443
        %v1481 = vunpack.c.l.b16 %v1444
        %v1482 = vunpack.c.l.b16 %v1445
        %v1483 = vunpack.c.l.b16 %v1446
        %v1484 = vpack.c.b16 %v1469, %v1468
        %v1485 = vpack.c.b16 %v1471, %v1470
        %v1486 = vpack.c.b16 %v1473, %v1472
        %v1487 = vpack.c.b16 %v1475, %v1474
        %v1488 = vpack.c.b16 %v1477, %v1476
        %v1489 = vpack.c.b16 %v1479, %v1478
        %v1490 = vpack.c.b16 %v1481, %v1480
        %v1491 = vpack.c.b16 %v1483, %v1482
        %1500 = vmatpush.bf16.msra.mxu0 %v1491
        %1501 = vmatpush.bf16.msra.mxu0 %v1490
        %1502 = vmatpush.bf16.msra.mxu0 %v1489
        %1503 = vmatpush.bf16.msra.mxu0 %v1488
        %1504 = vmatpush.bf16.msra.mxu0 %v1487
        %1505 = vmatpush.bf16.msra.mxu0 %v1486
        %1506 = vmatpush.bf16.msra.mxu0 %v1485
        %1507 = vmatpush.bf16.msra.mxu0 %v1484
        %1508 = vmatmul.bf16.gmra.mxu0 %v1426
        %v1509 = vpop.f32.mrf.mxu0
        %v1510 = vadd.f32 %v1450, %v1509
        %v1511 = vpop.f32.mrf.mxu0
        %v1512 = vadd.f32 %v1450, %v1511
        %1513 = vmatmul.bf16.gmra.mxu0 %v1427
        %v1514 = vpop.f32.mrf.mxu0
        %v1515 = vadd.f32 %v1450, %v1514
        %v1516 = vpop.f32.mrf.mxu0
        %v1517 = vadd.f32 %v1450, %v1516
        %1518 = vmatmul.bf16.gmra.mxu0 %v1428
        %v1519 = vpop.f32.mrf.mxu0
        %v1520 = vadd.f32 %v1450, %v1519
        %v1521 = vpop.f32.mrf.mxu0
        %v1522 = vadd.f32 %v1450, %v1521
        %1523 = vmatmul.bf16.gmra.mxu0 %v1429
        %v1524 = vpop.f32.mrf.mxu0
        %v1525 = vadd.f32 %v1450, %v1524
        %v1526 = vpop.f32.mrf.mxu0
        %v1527 = vadd.f32 %v1450, %v1526
        %1528 = vdwg.mxu0
        %vm1529 = vcmp.ge.f32.partialorder %v1510, 0.0
        %vm1530 = vcmp.ge.f32.partialorder %v1512, 0.0
        %vm1531 = vcmp.ge.f32.partialorder %v1515, 0.0
        %vm1532 = vcmp.ge.f32.partialorder %v1517, 0.0
        %vm1533 = vcmp.ge.f32.partialorder %v1520, 0.0
        %vm1534 = vcmp.ge.f32.partialorder %v1522, 0.0
        %vm1535 = vcmp.ge.f32.partialorder %v1525, 0.0
        %vm1536 = vcmp.ge.f32.partialorder %v1527, 0.0
        %v1537 = vmul.f32 %v1510, 0.1
        %v1538 = vmul.f32 %v1512, 0.1
        %v1539 = vmul.f32 %v1515, 0.1
        %v1540 = vmul.f32 %v1517, 0.1
        %v1541 = vmul.f32 %v1520, 0.1
        %v1542 = vmul.f32 %v1522, 0.1
        %v1543 = vmul.f32 %v1525, 0.1
        %v1544 = vmul.f32 %v1527, 0.1
        %v1545 = vsel %vm1529, %v1510, %v1537
        %v1546 = vsel %vm1530, %v1512, %v1538
        %v1547 = vsel %vm1531, %v1515, %v1539
        %v1548 = vsel %vm1532, %v1517, %v1540
        %v1549 = vsel %vm1533, %v1520, %v1541
        %v1550 = vsel %vm1534, %v1522, %v1542
        %v1551 = vsel %vm1535, %v1525, %v1543
        %v1552 = vsel %vm1536, %v1527, %v1544
        %v1553 = vpack.c.bf16 %v1546, %v1545
        %v1554 = vpack.c.bf16 %v1548, %v1547
        %v1555 = vpack.c.bf16 %v1550, %v1549
        %v1556 = vpack.c.bf16 %v1552, %v1551
        %v1557 = vld [vmem:[%s13] sm:$0xf]
        %v1558 = vld [vmem:[%s13 + $0x4] sm:$0xf]
        %v1559 = vld [vmem:[%s13 + $0x8] sm:$0xf]
        %v1560 = vld [vmem:[%s13 + $0xc] sm:$0xf]
        %v1561 = vld [vmem:[%s13 + $0x10] sm:$0xf]
        %v1562 = vld [vmem:[%s13 + $0x14] sm:$0xf]
        %v1563 = vld [vmem:[%s13 + $0x18] sm:$0xf]
        %v1564 = vld [vmem:[%s13 + $0x1c] sm:$0xf]
        %v1565 = vld [vmem:[%s13 + $0x20] sm:$0xf]
        %v1566 = vld [vmem:[%s13 + $0x24] sm:$0xf]
        %v1567 = vld [vmem:[%s13 + $0x28] sm:$0xf]
        %v1568 = vld [vmem:[%s13 + $0x2c] sm:$0xf]
        %v1569 = vld [vmem:[%s13 + $0x30] sm:$0xf]
        %v1570 = vld [vmem:[%s13 + $0x34] sm:$0xf]
        %v1571 = vld [vmem:[%s13 + $0x38] sm:$0xf]
        %v1572 = vld [vmem:[%s13 + $0x3c] sm:$0xf]
        %v1573 = vld [vmem:[%s15] sm:$0x1]
        %v1575 = vperm.slane %v1573, 0
        %v1593 = vunpack.c.l.b16 %v1557
        %v1594 = vunpack.c.l.b16 %v1558
        %v1595 = vunpack.c.l.b16 %v1559
        %v1596 = vunpack.c.l.b16 %v1560
        %v1597 = vunpack.c.l.b16 %v1561
        %v1598 = vunpack.c.l.b16 %v1562
        %v1599 = vunpack.c.l.b16 %v1563
        %v1600 = vunpack.c.l.b16 %v1564
        %v1601 = vunpack.c.l.b16 %v1565
        %v1602 = vunpack.c.l.b16 %v1566
        %v1603 = vunpack.c.l.b16 %v1567
        %v1604 = vunpack.c.l.b16 %v1568
        %v1605 = vunpack.c.l.b16 %v1569
        %v1606 = vunpack.c.l.b16 %v1570
        %v1607 = vunpack.c.l.b16 %v1571
        %v1608 = vunpack.c.l.b16 %v1572
        %v1609 = vpack.c.b16 %v1594, %v1593
        %v1610 = vpack.c.b16 %v1596, %v1595
        %v1611 = vpack.c.b16 %v1598, %v1597
        %v1612 = vpack.c.b16 %v1600, %v1599
        %v1613 = vpack.c.b16 %v1602, %v1601
        %v1614 = vpack.c.b16 %v1604, %v1603
        %v1615 = vpack.c.b16 %v1606, %v1605
        %v1616 = vpack.c.b16 %v1608, %v1607
        %1625 = vmatpush.bf16.msra.mxu0 %v1616
        %1626 = vmatpush.bf16.msra.mxu0 %v1615
        %1627 = vmatpush.bf16.msra.mxu0 %v1614
        %1628 = vmatpush.bf16.msra.mxu0 %v1613
        %1629 = vmatpush.bf16.msra.mxu0 %v1612
        %1630 = vmatpush.bf16.msra.mxu0 %v1611
        %1631 = vmatpush.bf16.msra.mxu0 %v1610
        %1632 = vmatpush.bf16.msra.mxu0 %v1609
        %1633 = vmatmul.bf16.gmra.mxu0 %v1553
        %v1634 = vpop.f32.mrf.mxu0
        %v1635 = vadd.f32 %v1575, %v1634
        %v1636 = vpop.f32.mrf.mxu0
        %v1637 = vadd.f32 %v1575, %v1636
        %1638 = vmatmul.bf16.gmra.mxu0 %v1554
        %v1639 = vpop.f32.mrf.mxu0
        %v1640 = vadd.f32 %v1575, %v1639
        %v1641 = vpop.f32.mrf.mxu0
        %v1642 = vadd.f32 %v1575, %v1641
        %1643 = vmatmul.bf16.gmra.mxu0 %v1555
        %v1644 = vpop.f32.mrf.mxu0
        %v1645 = vadd.f32 %v1575, %v1644
        %v1646 = vpop.f32.mrf.mxu0
        %v1647 = vadd.f32 %v1575, %v1646
        %1648 = vmatmul.bf16.gmra.mxu0 %v1556
        %v1649 = vpop.f32.mrf.mxu0
        %v1650 = vadd.f32 %v1575, %v1649
        %v1651 = vpop.f32.mrf.mxu0
        %v1652 = vadd.f32 %v1575, %v1651
        %1653 = vdwg.mxu0
        %v1654 = vpack.c.bf16 %v1635, %v1635
        %v1655 = vpack.c.bf16 %v1637, %v1637
        %v1656 = vpack.c.bf16 %v1640, %v1640
        %v1657 = vpack.c.bf16 %v1642, %v1642
        %v1658 = vpack.c.bf16 %v1645, %v1645
        %v1659 = vpack.c.bf16 %v1647, %v1647
        %v1660 = vpack.c.bf16 %v1650, %v1650
        %v1661 = vpack.c.bf16 %v1652, %v1652
        %vm1662 = vcmask 257024
        %1663 = vst.msk [vmem:[#allocation2] sm:$0xf] %vm1662, %v1654
        %1664 = vst.msk [vmem:[#allocation2 + $0x4] sm:$0xf] %vm1662, %v1655
        %1665 = vst.msk [vmem:[#allocation2 + $0x8] sm:$0xf] %vm1662, %v1656
        %1666 = vst.msk [vmem:[#allocation2 + $0xc] sm:$0xf] %vm1662, %v1657
        %1667 = vst.msk [vmem:[#allocation2 + $0x10] sm:$0xf] %vm1662, %v1658
        %1668 = vst.msk [vmem:[#allocation2 + $0x14] sm:$0xf] %vm1662, %v1659
        %1669 = vst.msk [vmem:[#allocation2 + $0x18] sm:$0xf] %vm1662, %v1660
        %1670 = vst.msk [vmem:[#allocation2 + $0x1c] sm:$0xf] %vm1662, %v1661
        %v1671 = vld [vmem:[%s1034] sm:$0xff]
        %v1672 = vld [vmem:[%s1034 + $0x8] sm:$0xff]
        %v1673 = vld [vmem:[%s1034 + $0x10] sm:$0xff]
        %v1674 = vld [vmem:[%s1034 + $0x18] sm:$0xff]
        %v1675 = vld [vmem:[%s1034 + $0x20] sm:$0xff]
        %v1676 = vld [vmem:[%s1034 + $0x28] sm:$0xff]
        %v1677 = vld [vmem:[%s1034 + $0x30] sm:$0xff]
        %v1678 = vld [vmem:[%s1034 + $0x38] sm:$0xff]
        %v1679 = vld [vmem:[%s19] sm:$0x1]
        %v1688 = vrot.slane %v1671, 7
        %v1689 = vrot.slane %v1672, 7
        %v1690 = vrot.slane %v1673, 7
        %v1691 = vrot.slane %v1674, 7
        %v1692 = vrot.slane %v1675, 7
        %v1693 = vrot.slane %v1676, 7
        %v1694 = vrot.slane %v1677, 7
        %v1695 = vrot.slane %v1678, 7
        %vm1704 = vcmask 1040384
        %v1705 = vsel %vm1704, 0.0, %v1688
        %v1706 = vsel %vm1704, 0.0, %v1689
        %v1707 = vsel %vm1704, 0.0, %v1690
        %v1708 = vsel %vm1704, 0.0, %v1691
        %v1709 = vsel %vm1704, 0.0, %v1692
        %v1710 = vsel %vm1704, 0.0, %v1693
        %v1711 = vsel %vm1704, 0.0, %v1694
        %v1712 = vsel %vm1704, 0.0, %v1695
        %v1713 = vsel %vm1704, %v1688, 0.0
        %v1714 = vsel %vm1704, %v1689, 0.0
        %v1715 = vsel %vm1704, %v1690, 0.0
        %v1716 = vsel %vm1704, %v1691, 0.0
        %v1717 = vsel %vm1704, %v1692, 0.0
        %v1718 = vsel %vm1704, %v1693, 0.0
        %v1719 = vsel %vm1704, %v1694, 0.0
        %v1720 = vsel %vm1704, %v1695, 0.0
        %vm1736 = vcmask 1046528
        %v1737 = vrot.slane 0.0, 1
        %v1738 = vsel %vm1736, %v1737, %v1737
        %v1739 = vrot.slane %v1705, 1
        %v1740 = vrot.slane %v1713, 1
        %v1741 = vsel %vm1736, %v1739, %v1740
        %v1742 = vrot.slane %v1706, 1
        %v1743 = vrot.slane %v1714, 1
        %v1744 = vsel %vm1736, %v1742, %v1743
        %v1745 = vrot.slane %v1707, 1
        %v1746 = vrot.slane %v1715, 1
        %v1747 = vsel %vm1736, %v1745, %v1746
        %v1748 = vrot.slane %v1708, 1
        %v1749 = vrot.slane %v1716, 1
        %v1750 = vsel %vm1736, %v1748, %v1749
        %v1751 = vrot.slane %v1709, 1
        %v1752 = vrot.slane %v1717, 1
        %v1753 = vsel %vm1736, %v1751, %v1752
        %v1754 = vrot.slane %v1710, 1
        %v1755 = vrot.slane %v1718, 1
        %v1756 = vsel %vm1736, %v1754, %v1755
        %v1757 = vrot.slane %v1711, 1
        %v1758 = vrot.slane %v1719, 1
        %v1759 = vsel %vm1736, %v1757, %v1758
        %1760 = vrot.lane.b32.xlu0 %v1738, 8
        %v1761 = vpop.permute.xlu0 %1760
        %1762 = vrot.lane.b32.xlu0 %v1741, 8
        %v1763 = vpop.permute.xlu0 %1762
        %1764 = vrot.lane.b32.xlu0 %v1744, 8
        %v1765 = vpop.permute.xlu0 %1764
        %1766 = vrot.lane.b32.xlu0 %v1747, 8
        %v1767 = vpop.permute.xlu0 %1766
        %1768 = vrot.lane.b32.xlu0 %v1750, 8
        %v1769 = vpop.permute.xlu0 %1768
        %1770 = vrot.lane.b32.xlu0 %v1753, 8
        %v1771 = vpop.permute.xlu0 %1770
        %1772 = vrot.lane.b32.xlu0 %v1756, 8
        %v1773 = vpop.permute.xlu0 %1772
        %1774 = vrot.lane.b32.xlu0 %v1759, 8
        %v1775 = vpop.permute.xlu0 %1774
        %vm1784 = vcmask 1045504
        %v1785 = vrot.slane 0.0, 2
        %v1786 = vsel %vm1784, %v1785, %v1785
        %v1787 = vrot.slane %v1705, 2
        %v1788 = vrot.slane %v1713, 2
        %v1789 = vsel %vm1784, %v1787, %v1788
        %v1790 = vrot.slane %v1706, 2
        %v1791 = vrot.slane %v1714, 2
        %v1792 = vsel %vm1784, %v1790, %v1791
        %v1793 = vrot.slane %v1707, 2
        %v1794 = vrot.slane %v1715, 2
        %v1795 = vsel %vm1784, %v1793, %v1794
        %v1796 = vrot.slane %v1708, 2
        %v1797 = vrot.slane %v1716, 2
        %v1798 = vsel %vm1784, %v1796, %v1797
        %v1799 = vrot.slane %v1709, 2
        %v1800 = vrot.slane %v1717, 2
        %v1801 = vsel %vm1784, %v1799, %v1800
        %v1802 = vrot.slane %v1710, 2
        %v1803 = vrot.slane %v1718, 2
        %v1804 = vsel %vm1784, %v1802, %v1803
        %v1805 = vrot.slane %v1711, 2
        %v1806 = vrot.slane %v1719, 2
        %v1807 = vsel %vm1784, %v1805, %v1806
        %1808 = vrot.lane.b32.xlu0 %v1786, 16
        %v1809 = vpop.permute.xlu0 %1808
        %1810 = vrot.lane.b32.xlu0 %v1789, 16
        %v1811 = vpop.permute.xlu0 %1810
        %1812 = vrot.lane.b32.xlu0 %v1792, 16
        %v1813 = vpop.permute.xlu0 %1812
        %1814 = vrot.lane.b32.xlu0 %v1795, 16
        %v1815 = vpop.permute.xlu0 %1814
        %1816 = vrot.lane.b32.xlu0 %v1798, 16
        %v1817 = vpop.permute.xlu0 %1816
        %1818 = vrot.lane.b32.xlu0 %v1801, 16
        %v1819 = vpop.permute.xlu0 %1818
        %1820 = vrot.lane.b32.xlu0 %v1804, 16
        %v1821 = vpop.permute.xlu0 %1820
        %1822 = vrot.lane.b32.xlu0 %v1807, 16
        %v1823 = vpop.permute.xlu0 %1822
        %vm1832 = vcmask 64512
        %v1833 = vsel %vm1832, 0.0, %v1761
        %v1834 = vsel %vm1832, %v1705, %v1763
        %v1835 = vsel %vm1832, %v1706, %v1765
        %v1836 = vsel %vm1832, %v1707, %v1767
        %v1837 = vsel %vm1832, %v1708, %v1769
        %v1838 = vsel %vm1832, %v1709, %v1771
        %v1839 = vsel %vm1832, %v1710, %v1773
        %v1840 = vsel %vm1832, %v1711, %v1775
        %vm1841 = vcmask 130048
        %v1842 = vsel %vm1841, %v1833, %v1809
        %v1843 = vsel %vm1841, %v1834, %v1811
        %v1844 = vsel %vm1841, %v1835, %v1813
        %v1845 = vsel %vm1841, %v1836, %v1815
        %v1846 = vsel %vm1841, %v1837, %v1817
        %v1847 = vsel %vm1841, %v1838, %v1819
        %v1848 = vsel %vm1841, %v1839, %v1821
        %v1849 = vsel %vm1841, %v1840, %v1823
        %v1850 = vpack.c.bf16 %v1843, %v1842
        %v1851 = vpack.c.bf16 %v1845, %v1844
        %v1852 = vpack.c.bf16 %v1847, %v1846
        %v1853 = vpack.c.bf16 %v1849, %v1848
        %v1854 = vld [vmem:[%s17] sm:$0xf]
        %v1855 = vld [vmem:[%s17 + $0x4] sm:$0xf]
        %v1856 = vld [vmem:[%s17 + $0x8] sm:$0xf]
        %v1859 = vrot.slane %v1712, 1
        %v1860 = vrot.slane %v1720, 1
        %v1861 = vsel %vm1736, %v1859, %v1860
        %1862 = vrot.lane.b32.xlu0 %v1861, 8
        %v1863 = vpop.permute.xlu0 %1862
        %v1865 = vrot.slane %v1712, 2
        %v1866 = vrot.slane %v1720, 2
        %v1867 = vsel %vm1784, %v1865, %v1866
        %1868 = vrot.lane.b32.xlu0 %v1867, 16
        %v1869 = vpop.permute.xlu0 %1868
        %v1871 = vsel %vm1832, %v1712, %v1863
        %v1872 = vsel %vm1841, %v1871, %v1869
        %v1873 = vpack.c.bf16 %v1844, %v1843
        %v1874 = vpack.c.bf16 %v1846, %v1845
        %v1875 = vpack.c.bf16 %v1848, %v1847
        %v1876 = vpack.c.bf16 %v1872, %v1849
        %s1877 = scalar_lea.vmem %s17, 12
        %v1878 = vld [vmem:[%s1877] sm:$0xf]
        %v1879 = vld [vmem:[%s1877 + $0x4] sm:$0xf]
        %v1880 = vld [vmem:[%s1877 + $0x8] sm:$0xf]
        %v1884 = vunpack.c.l.b16 %v1878
        %v1885 = vunpack.c.l.b16 %v1879
        %v1886 = vunpack.c.l.b16 %v1880
        %v1887 = vpack.c.b16 %v1885, %v1884
        %v1888 = vpack.c.b16 %v1886, %v1886
        %vm1890 = vcmask 195584
        %v1892 = vsel %vm1890, %v1873, 0
        %v1895 = vsel %vm1890, %v1874, 0
        %v1898 = vsel %vm1890, %v1875, 0
        %v1901 = vsel %vm1890, %v1876, 0
        %vm1903 = vcmask 1043456
        %v1905 = vsel %vm1903, %v1888, 0
        %1907 = vmatpush.bf16.msra.mxu0 0
        %1908 = vmatpush.bf16.msra.mxu0 0
        %1909 = vmatpush.bf16.msra.mxu0 0
        %1910 = vmatpush.bf16.msra.mxu0 0
        %1911 = vmatpush.bf16.msra.mxu0 0
        %1912 = vmatpush.bf16.msra.mxu0 0
        %1913 = vmatpush.bf16.msra.mxu0 %v1905
        %1914 = vmatpush.bf16.msra.mxu0 %v1887
        %1915 = vmatmul.bf16.gmra.mxu0 %v1892
        %v1916 = vpop.f32.mrf.mxu0
        %v1917 = vadd.f32 0.0, %v1916
        %v1918 = vpop.f32.mrf.mxu0
        %v1919 = vadd.f32 0.0, %v1918
        %1920 = vmatmul.bf16.gmra.mxu0 %v1895
        %v1921 = vpop.f32.mrf.mxu0
        %v1922 = vadd.f32 0.0, %v1921
        %v1923 = vpop.f32.mrf.mxu0
        %v1924 = vadd.f32 0.0, %v1923
        %1925 = vmatmul.bf16.gmra.mxu0 %v1898
        %v1926 = vpop.f32.mrf.mxu0
        %v1927 = vadd.f32 0.0, %v1926
        %v1928 = vpop.f32.mrf.mxu0
        %v1929 = vadd.f32 0.0, %v1928
        %1930 = vmatmul.bf16.gmra.mxu0 %v1901
        %v1931 = vpop.f32.mrf.mxu0
        %v1932 = vadd.f32 0.0, %v1931
        %v1933 = vpop.f32.mrf.mxu0
        %v1934 = vadd.f32 0.0, %v1933
        %1935 = vdwg.mxu0
        %v1939 = vunpack.c.l.b16 %v1854
        %v1940 = vunpack.c.l.b16 %v1855
        %v1941 = vunpack.c.l.b16 %v1856
        %v1942 = vpack.c.b16 %v1940, %v1939
        %v1943 = vpack.c.b16 %v1941, %v1941
        %v1946 = vsel %vm1890, %v1850, 0
        %v1949 = vsel %vm1890, %v1851, 0
        %v1952 = vsel %vm1890, %v1852, 0
        %v1955 = vsel %vm1890, %v1853, 0
        %v1958 = vsel %vm1903, %v1943, 0
        %1960 = vmatpush.bf16.msra.mxu0 0
        %1961 = vmatpush.bf16.msra.mxu0 0
        %1962 = vmatpush.bf16.msra.mxu0 0
        %1963 = vmatpush.bf16.msra.mxu0 0
        %1964 = vmatpush.bf16.msra.mxu0 0
        %1965 = vmatpush.bf16.msra.mxu0 0
        %1966 = vmatpush.bf16.msra.mxu0 %v1958
        %1967 = vmatpush.bf16.msra.mxu0 %v1942
        %1968 = vmatmul.bf16.gmra.mxu0 %v1946
        %v1969 = vpop.f32.mrf.mxu0
        %v1970 = vadd.f32 %v1917, %v1969
        %v1971 = vpop.f32.mrf.mxu0
        %v1972 = vadd.f32 %v1919, %v1971
        %1973 = vmatmul.bf16.gmra.mxu0 %v1949
        %v1974 = vpop.f32.mrf.mxu0
        %v1975 = vadd.f32 %v1922, %v1974
        %v1976 = vpop.f32.mrf.mxu0
        %v1977 = vadd.f32 %v1924, %v1976
        %1978 = vmatmul.bf16.gmra.mxu0 %v1952
        %v1979 = vpop.f32.mrf.mxu0
        %v1980 = vadd.f32 %v1927, %v1979
        %v1981 = vpop.f32.mrf.mxu0
        %v1982 = vadd.f32 %v1929, %v1981
        %1983 = vmatmul.bf16.gmra.mxu0 %v1955
        %v1984 = vpop.f32.mrf.mxu0
        %v1985 = vadd.f32 %v1932, %v1984
        %v1986 = vpop.f32.mrf.mxu0
        %v1987 = vadd.f32 %v1934, %v1986
        %1988 = vdwg.mxu0
        %v1989 = vpack.c.bf16 %v1842, %v1872
        %s1990 = scalar_lea.vmem %s17, 24
        %v1991 = vld [vmem:[%s1990] sm:$0xf]
        %v1992 = vld [vmem:[%s1990 + $0x4] sm:$0xf]
        %v1993 = vld [vmem:[%s1990 + $0x8] sm:$0xf]
        %v1997 = vunpack.c.l.b16 %v1991
        %v1998 = vunpack.c.l.b16 %v1992
        %v1999 = vunpack.c.l.b16 %v1993
        %v2000 = vpack.c.b16 %v1998, %v1997
        %v2001 = vpack.c.b16 %v1999, %v1999
        %v2004 = vsel %vm1890, %v1989, 0
        %v2007 = vsel %vm1903, %v2001, 0
        %2009 = vmatpush.bf16.msra.mxu0 0
        %2010 = vmatpush.bf16.msra.mxu0 0
        %2011 = vmatpush.bf16.msra.mxu0 0
        %2012 = vmatpush.bf16.msra.mxu0 0
        %2013 = vmatpush.bf16.msra.mxu0 0
        %2014 = vmatpush.bf16.msra.mxu0 0
        %2015 = vmatpush.bf16.msra.mxu0 %v2007
        %2016 = vmatpush.bf16.msra.mxu0 %v2000
        %2017 = vmatmul.bf16.gmra.mxu0 %v1949
        %v2018 = vpop.f32.mrf.mxu0
        %v2019 = vadd.f32 0.0, %v2018
        %v2020 = vpop.f32.mrf.mxu0
        %v2021 = vadd.f32 0.0, %v2020
        %2022 = vmatmul.bf16.gmra.mxu0 %v1952
        %v2023 = vpop.f32.mrf.mxu0
        %v2024 = vadd.f32 0.0, %v2023
        %v2025 = vpop.f32.mrf.mxu0
        %v2026 = vadd.f32 0.0, %v2025
        %2027 = vmatmul.bf16.gmra.mxu0 %v1955
        %v2028 = vpop.f32.mrf.mxu0
        %v2029 = vadd.f32 0.0, %v2028
        %v2030 = vpop.f32.mrf.mxu0
        %v2031 = vadd.f32 0.0, %v2030
        %2032 = vmatmul.bf16.gmra.mxu0 %v2004
        %v2033 = vpop.f32.mrf.mxu0
        %v2034 = vadd.f32 0.0, %v2033
        %v2035 = vpop.f32.mrf.mxu0
        %v2036 = vadd.f32 0.0, %v2035
        %2037 = vdwg.mxu0
        %v2038 = vadd.f32 %v1970, %v2019
        %v2039 = vadd.f32 %v1972, %v2021
        %v2040 = vadd.f32 %v1975, %v2024
        %v2041 = vadd.f32 %v1977, %v2026
        %v2042 = vadd.f32 %v1980, %v2029
        %v2043 = vadd.f32 %v1982, %v2031
        %v2044 = vadd.f32 %v1985, %v2034
        %v2045 = vadd.f32 %v1987, %v2036
        %v2047 = vperm.slane %v1679, 0
        %v2049 = vadd.f32 %v2038, %v2047
        %v2050 = vadd.f32 %v2039, %v2047
        %v2051 = vadd.f32 %v2040, %v2047
        %v2052 = vadd.f32 %v2041, %v2047
        %v2053 = vadd.f32 %v2042, %v2047
        %v2054 = vadd.f32 %v2043, %v2047
        %v2055 = vadd.f32 %v2044, %v2047
        %v2056 = vadd.f32 %v2045, %v2047
        %vm2057 = vcmask 523264
        %2058 = vst.msk [vmem:[#allocation4] sm:$0xff] %vm2057, %v2049
        %2059 = vst.msk [vmem:[#allocation4 + $0x8] sm:$0xff] %vm2057, %v2050
        %2060 = vst.msk [vmem:[#allocation4 + $0x10] sm:$0xff] %vm2057, %v2051
        %2061 = vst.msk [vmem:[#allocation4 + $0x18] sm:$0xff] %vm2057, %v2052
        %2062 = vst.msk [vmem:[#allocation4 + $0x20] sm:$0xff] %vm2057, %v2053
        %2063 = vst.msk [vmem:[#allocation4 + $0x28] sm:$0xff] %vm2057, %v2054
        %2064 = vst.msk [vmem:[#allocation4 + $0x30] sm:$0xff] %vm2057, %v2055
        %2065 = vst.msk [vmem:[#allocation4 + $0x38] sm:$0xff] %vm2057, %v2056
        %2066 = vst.msk [vmem:[#allocation3] sm:$0xff] %vm2057, %v2049
        %2067 = vst.msk [vmem:[#allocation3 + $0x8] sm:$0xff] %vm2057, %v2050
        %2068 = vst.msk [vmem:[#allocation3 + $0x10] sm:$0xff] %vm2057, %v2051
        %2069 = vst.msk [vmem:[#allocation3 + $0x18] sm:$0xff] %vm2057, %v2052
        %2070 = vst.msk [vmem:[#allocation3 + $0x20] sm:$0xff] %vm2057, %v2053
        %2071 = vst.msk [vmem:[#allocation3 + $0x28] sm:$0xff] %vm2057, %v2054
        %2072 = vst.msk [vmem:[#allocation3 + $0x30] sm:$0xff] %vm2057, %v2055
        %2073 = vst.msk [vmem:[#allocation3 + $0x38] sm:$0xff] %vm2057, %v2056
      $region144: #{sft_net_forward.1} parent=139 // pred_fallthru
        _
      %v2074 = vld [vmem:[#allocation2] sm:$0xf]
      %v2075 = vld [vmem:[#allocation2 + $0x4] sm:$0xf]
      %v2076 = vld [vmem:[#allocation2 + $0x8] sm:$0xf]
      %v2077 = vld [vmem:[#allocation2 + $0xc] sm:$0xf]
      %v2078 = vld [vmem:[#allocation2 + $0x10] sm:$0xf]
      %v2079 = vld [vmem:[#allocation2 + $0x14] sm:$0xf]
      %v2080 = vld [vmem:[#allocation2 + $0x18] sm:$0xf]
      %v2081 = vld [vmem:[#allocation2 + $0x1c] sm:$0xf]
      %v2082 = vld [vmem:[#allocation3] sm:$0xff]
      %v2083 = vld [vmem:[#allocation3 + $0x8] sm:$0xff]
      %v2084 = vld [vmem:[#allocation3 + $0x10] sm:$0xff]
      %v2085 = vld [vmem:[#allocation3 + $0x18] sm:$0xff]
      %v2086 = vld [vmem:[#allocation3 + $0x20] sm:$0xff]
      %v2087 = vld [vmem:[#allocation3 + $0x28] sm:$0xff]
      %v2088 = vld [vmem:[#allocation3 + $0x30] sm:$0xff]
      %v2089 = vld [vmem:[#allocation3 + $0x38] sm:$0xff]
      %v2090 = vld [vmem:[%s1053] sm:$0xf]
      %v2091 = vld [vmem:[%s1053 + $0x4] sm:$0xf]
      %v2092 = vld [vmem:[%s1053 + $0x8] sm:$0xf]
      %v2093 = vld [vmem:[%s1053 + $0xc] sm:$0xf]
      %v2094 = vld [vmem:[%s1056] sm:$0x1]
      %v2096 = vperm.slane %v2094, 0
      %v2106 = vunpack.c.l.b16 %v2074
      %v2107 = vunpack.c.l.b16 %v2075
      %v2108 = vunpack.c.l.b16 %v2076
      %v2109 = vunpack.c.l.b16 %v2077
      %v2110 = vunpack.c.l.b16 %v2078
      %v2111 = vunpack.c.l.b16 %v2079
      %v2112 = vunpack.c.l.b16 %v2080
      %v2113 = vunpack.c.l.b16 %v2081
      %v2114 = vpack.c.b16 %v2107, %v2106
      %v2115 = vpack.c.b16 %v2109, %v2108
      %v2116 = vpack.c.b16 %v2111, %v2110
      %v2117 = vpack.c.b16 %v2113, %v2112
      %v2122 = vunpack.c.l.b16 %v2090
      %v2123 = vunpack.c.l.b16 %v2091
      %v2124 = vunpack.c.l.b16 %v2092
      %v2125 = vunpack.c.l.b16 %v2093
      %v2126 = vpack.c.b16 %v2123, %v2122
      %v2127 = vpack.c.b16 %v2125, %v2124
      %vm2130 = vcmask 261120
      %v2132 = vsel %vm2130, %v2114, 0
      %v2135 = vsel %vm2130, %v2115, 0
      %v2138 = vsel %vm2130, %v2116, 0
      %v2141 = vsel %vm2130, %v2117, 0
      %2143 = vmatpush.bf16.msra.mxu0 0
      %2144 = vmatpush.bf16.msra.mxu0 0
      %2145 = vmatpush.bf16.msra.mxu0 0
      %2146 = vmatpush.bf16.msra.mxu0 0
      %2147 = vmatpush.bf16.msra.mxu0 0
      %2148 = vmatpush.bf16.msra.mxu0 0
      %2149 = vmatpush.bf16.msra.mxu0 %v2127
      %2150 = vmatpush.bf16.msra.mxu0 %v2126
      %2151 = vmatmul.bf16.gmra.mxu0 %v2132
      %v2152 = vpop.f32.mrf.mxu0
      %v2153 = vadd.f32 %v2096, %v2152
      %v2154 = vpop.f32.mrf.mxu0
      %v2155 = vadd.f32 %v2096, %v2154
      %2156 = vmatmul.bf16.gmra.mxu0 %v2135
      %v2157 = vpop.f32.mrf.mxu0
      %v2158 = vadd.f32 %v2096, %v2157
      %v2159 = vpop.f32.mrf.mxu0
      %v2160 = vadd.f32 %v2096, %v2159
      %2161 = vmatmul.bf16.gmra.mxu0 %v2138
      %v2162 = vpop.f32.mrf.mxu0
      %v2163 = vadd.f32 %v2096, %v2162
      %v2164 = vpop.f32.mrf.mxu0
      %v2165 = vadd.f32 %v2096, %v2164
      %2166 = vmatmul.bf16.gmra.mxu0 %v2141
      %v2167 = vpop.f32.mrf.mxu0
      %v2168 = vadd.f32 %v2096, %v2167
      %v2169 = vpop.f32.mrf.mxu0
      %v2170 = vadd.f32 %v2096, %v2169
      %2171 = vdwg.mxu0
      %vm2172 = vcmp.ge.f32.partialorder %v2153, 0.0
      %vm2173 = vcmp.ge.f32.partialorder %v2155, 0.0
      %vm2174 = vcmp.ge.f32.partialorder %v2158, 0.0
      %vm2175 = vcmp.ge.f32.partialorder %v2160, 0.0
      %vm2176 = vcmp.ge.f32.partialorder %v2163, 0.0
      %vm2177 = vcmp.ge.f32.partialorder %v2165, 0.0
      %vm2178 = vcmp.ge.f32.partialorder %v2168, 0.0
      %vm2179 = vcmp.ge.f32.partialorder %v2170, 0.0
      %v2180 = vmul.f32 %v2153, 0.1
      %v2181 = vmul.f32 %v2155, 0.1
      %v2182 = vmul.f32 %v2158, 0.1
      %v2183 = vmul.f32 %v2160, 0.1
      %v2184 = vmul.f32 %v2163, 0.1
      %v2185 = vmul.f32 %v2165, 0.1
      %v2186 = vmul.f32 %v2168, 0.1
      %v2187 = vmul.f32 %v2170, 0.1
      %v2188 = vsel %vm2172, %v2153, %v2180
      %v2189 = vsel %vm2173, %v2155, %v2181
      %v2190 = vsel %vm2174, %v2158, %v2182
      %v2191 = vsel %vm2175, %v2160, %v2183
      %v2192 = vsel %vm2176, %v2163, %v2184
      %v2193 = vsel %vm2177, %v2165, %v2185
      %v2194 = vsel %vm2178, %v2168, %v2186
      %v2195 = vsel %vm2179, %v2170, %v2187
      %v2196 = vpack.c.bf16 %v2189, %v2188
      %v2197 = vpack.c.bf16 %v2191, %v2190
      %v2198 = vpack.c.bf16 %v2193, %v2192
      %v2199 = vpack.c.bf16 %v2195, %v2194
      %v2200 = vld [vmem:[%s1061] sm:$0xff]
      %v2201 = vld [vmem:[%s1061 + $0x8] sm:$0xff]
      %v2202 = vld [vmem:[%s1061 + $0x10] sm:$0xff]
      %v2203 = vld [vmem:[%s1061 + $0x18] sm:$0xff]
      %v2204 = vld [vmem:[%s1061 + $0x20] sm:$0xff]
      %v2205 = vld [vmem:[%s1061 + $0x28] sm:$0xff]
      %v2206 = vld [vmem:[%s1061 + $0x30] sm:$0xff]
      %v2207 = vld [vmem:[%s1061 + $0x38] sm:$0xff]
      %v2208 = vld [vmem:[%s1061 + $0x40] sm:$0xff]
      %v2209 = vld [vmem:[%s1061 + $0x48] sm:$0xff]
      %v2210 = vld [vmem:[%s1061 + $0x50] sm:$0xff]
      %v2211 = vld [vmem:[%s1061 + $0x58] sm:$0xff]
      %v2212 = vld [vmem:[%s1061 + $0x60] sm:$0xff]
      %v2213 = vld [vmem:[%s1061 + $0x68] sm:$0xff]
      %v2214 = vld [vmem:[%s1061 + $0x70] sm:$0xff]
      %v2215 = vld [vmem:[%s1061 + $0x78] sm:$0xff]
      %v2216 = vld [vmem:[%s1065] sm:$0x3]
      %v2218 = vperm.slane %v2216, 0
      %v2219 = vperm.slane %v2216, 1
      %v2238 = vunpack.c.l.b16 %v2200
      %v2239 = vunpack.c.h.b16 %v2200
      %v2240 = vunpack.c.l.b16 %v2201
      %v2241 = vunpack.c.h.b16 %v2201
      %v2242 = vunpack.c.l.b16 %v2202
      %v2243 = vunpack.c.h.b16 %v2202
      %v2244 = vunpack.c.l.b16 %v2203
      %v2245 = vunpack.c.h.b16 %v2203
      %v2246 = vunpack.c.l.b16 %v2204
      %v2247 = vunpack.c.h.b16 %v2204
      %v2248 = vunpack.c.l.b16 %v2205
      %v2249 = vunpack.c.h.b16 %v2205
      %v2250 = vunpack.c.l.b16 %v2206
      %v2251 = vunpack.c.h.b16 %v2206
      %v2252 = vunpack.c.l.b16 %v2207
      %v2253 = vunpack.c.h.b16 %v2207
      %v2254 = vunpack.c.l.b16 %v2208
      %v2255 = vunpack.c.h.b16 %v2208
      %v2256 = vunpack.c.l.b16 %v2209
      %v2257 = vunpack.c.h.b16 %v2209
      %v2258 = vunpack.c.l.b16 %v2210
      %v2259 = vunpack.c.h.b16 %v2210
      %v2260 = vunpack.c.l.b16 %v2211
      %v2261 = vunpack.c.h.b16 %v2211
      %v2262 = vunpack.c.l.b16 %v2212
      %v2263 = vunpack.c.h.b16 %v2212
      %v2264 = vunpack.c.l.b16 %v2213
      %v2265 = vunpack.c.h.b16 %v2213
      %v2266 = vunpack.c.l.b16 %v2214
      %v2267 = vunpack.c.h.b16 %v2214
      %v2268 = vunpack.c.l.b16 %v2215
      %v2269 = vunpack.c.h.b16 %v2215
      %v2270 = vpack.c.b16 %v2240, %v2238
      %v2271 = vpack.c.b16 %v2241, %v2239
      %v2272 = vpack.c.b16 %v2244, %v2242
      %v2273 = vpack.c.b16 %v2245, %v2243
      %v2274 = vpack.c.b16 %v2248, %v2246
      %v2275 = vpack.c.b16 %v2249, %v2247
      %v2276 = vpack.c.b16 %v2252, %v2250
      %v2277 = vpack.c.b16 %v2253, %v2251
      %v2278 = vpack.c.b16 %v2256, %v2254
      %v2279 = vpack.c.b16 %v2257, %v2255
      %v2280 = vpack.c.b16 %v2260, %v2258
      %v2281 = vpack.c.b16 %v2261, %v2259
      %v2282 = vpack.c.b16 %v2264, %v2262
      %v2283 = vpack.c.b16 %v2265, %v2263
      %v2284 = vpack.c.b16 %v2268, %v2266
      %v2285 = vpack.c.b16 %v2269, %v2267
      %2302 = vmatpush.bf16.msra.mxu0 %v2284
      %2303 = vmatpush.bf16.msra.mxu0 %v2282
      %2304 = vmatpush.bf16.msra.mxu0 %v2280
      %2305 = vmatpush.bf16.msra.mxu0 %v2278
      %2306 = vmatpush.bf16.msra.mxu0 %v2276
      %2307 = vmatpush.bf16.msra.mxu0 %v2274
      %2308 = vmatpush.bf16.msra.mxu0 %v2272
      %2309 = vmatpush.bf16.msra.mxu0 %v2270
      %2310 = vmatmul.bf16.gmra.mxu0 %v2196
      %v2311 = vpop.f32.mrf.mxu0
      %v2312 = vadd.f32 %v2218, %v2311
      %v2313 = vpop.f32.mrf.mxu0
      %v2314 = vadd.f32 %v2218, %v2313
      %2315 = vmatmul.bf16.gmra.mxu0 %v2197
      %v2316 = vpop.f32.mrf.mxu0
      %v2317 = vadd.f32 %v2218, %v2316
      %v2318 = vpop.f32.mrf.mxu0
      %v2319 = vadd.f32 %v2218, %v2318
      %2320 = vmatmul.bf16.gmra.mxu0 %v2198
      %v2321 = vpop.f32.mrf.mxu0
      %v2322 = vadd.f32 %v2218, %v2321
      %v2323 = vpop.f32.mrf.mxu0
      %v2324 = vadd.f32 %v2218, %v2323
      %2325 = vmatmul.bf16.gmra.mxu0 %v2199
      %v2326 = vpop.f32.mrf.mxu0
      %v2327 = vadd.f32 %v2218, %v2326
      %v2328 = vpop.f32.mrf.mxu0
      %v2329 = vadd.f32 %v2218, %v2328
      %2330 = vdwg.mxu0
      %2331 = vmatpush.bf16.msra.mxu0 %v2285
      %2332 = vmatpush.bf16.msra.mxu0 %v2283
      %2333 = vmatpush.bf16.msra.mxu0 %v2281
      %2334 = vmatpush.bf16.msra.mxu0 %v2279
      %2335 = vmatpush.bf16.msra.mxu0 %v2277
      %2336 = vmatpush.bf16.msra.mxu0 %v2275
      %2337 = vmatpush.bf16.msra.mxu0 %v2273
      %2338 = vmatpush.bf16.msra.mxu0 %v2271
      %2339 = vmatmul.bf16.gmra.mxu0 %v2196
      %v2340 = vpop.f32.mrf.mxu0
      %v2341 = vadd.f32 %v2219, %v2340
      %v2342 = vpop.f32.mrf.mxu0
      %v2343 = vadd.f32 %v2219, %v2342
      %2344 = vmatmul.bf16.gmra.mxu0 %v2197
      %v2345 = vpop.f32.mrf.mxu0
      %v2346 = vadd.f32 %v2219, %v2345
      %v2347 = vpop.f32.mrf.mxu0
      %v2348 = vadd.f32 %v2219, %v2347
      %2349 = vmatmul.bf16.gmra.mxu0 %v2198
      %v2350 = vpop.f32.mrf.mxu0
      %v2351 = vadd.f32 %v2219, %v2350
      %v2352 = vpop.f32.mrf.mxu0
      %v2353 = vadd.f32 %v2219, %v2352
      %2354 = vmatmul.bf16.gmra.mxu0 %v2199
      %v2355 = vpop.f32.mrf.mxu0
      %v2356 = vadd.f32 %v2219, %v2355
      %v2357 = vpop.f32.mrf.mxu0
      %v2358 = vadd.f32 %v2219, %v2357
      %2359 = vdwg.mxu0
      %v2360 = vadd.f32 %v2312, 1.0
      %v2361 = vadd.f32 %v2314, 1.0
      %v2362 = vadd.f32 %v2317, 1.0
      %v2363 = vadd.f32 %v2319, 1.0
      %v2364 = vadd.f32 %v2322, 1.0
      %v2365 = vadd.f32 %v2324, 1.0
      %v2366 = vadd.f32 %v2327, 1.0
      %v2367 = vadd.f32 %v2329, 1.0
      %v2368 = vmul.f32 %v2082, %v2360
      %v2369 = vmul.f32 %v2083, %v2361
      %v2370 = vmul.f32 %v2084, %v2362
      %v2371 = vmul.f32 %v2085, %v2363
      %v2372 = vmul.f32 %v2086, %v2364
      %v2373 = vmul.f32 %v2087, %v2365
      %v2374 = vmul.f32 %v2088, %v2366
      %v2375 = vmul.f32 %v2089, %v2367
      %2384 = vrot.lane.b32.xlu0 %v2312, 64
      %v2385 = vpop.permute.xlu0 %2384
      %2386 = vrot.lane.b32.xlu0 %v2314, 64
      %v2387 = vpop.permute.xlu0 %2386
      %2388 = vrot.lane.b32.xlu0 %v2317, 64
      %v2389 = vpop.permute.xlu0 %2388
      %2390 = vrot.lane.b32.xlu0 %v2319, 64
      %v2391 = vpop.permute.xlu0 %2390
      %2392 = vrot.lane.b32.xlu0 %v2322, 64
      %v2393 = vpop.permute.xlu0 %2392
      %2394 = vrot.lane.b32.xlu0 %v2324, 64
      %v2395 = vpop.permute.xlu0 %2394
      %2396 = vrot.lane.b32.xlu0 %v2327, 64
      %v2397 = vpop.permute.xlu0 %2396
      %2398 = vrot.lane.b32.xlu0 %v2329, 64
      %v2399 = vpop.permute.xlu0 %2398
      %v2408 = vadd.f32 %v2368, %v2385
      %v2409 = vadd.f32 %v2369, %v2387
      %v2410 = vadd.f32 %v2370, %v2389
      %v2411 = vadd.f32 %v2371, %v2391
      %v2412 = vadd.f32 %v2372, %v2393
      %v2413 = vadd.f32 %v2373, %v2395
      %v2414 = vadd.f32 %v2374, %v2397
      %v2415 = vadd.f32 %v2375, %v2399
      %v2416 = vld [vmem:[%s1048] sm:$0x1]
      %v2425 = vrot.slane %v2408, 7
      %v2426 = vrot.slane %v2409, 7
      %v2427 = vrot.slane %v2410, 7
      %v2428 = vrot.slane %v2411, 7
      %v2429 = vrot.slane %v2412, 7
      %v2430 = vrot.slane %v2413, 7
      %v2431 = vrot.slane %v2414, 7
      %v2432 = vrot.slane %v2415, 7
      %vm2441 = vcmask 1040384
      %v2442 = vsel %vm2441, 0.0, %v2425
      %v2443 = vsel %vm2441, 0.0, %v2426
      %v2444 = vsel %vm2441, 0.0, %v2427
      %v2445 = vsel %vm2441, 0.0, %v2428
      %v2446 = vsel %vm2441, 0.0, %v2429
      %v2447 = vsel %vm2441, 0.0, %v2430
      %v2448 = vsel %vm2441, 0.0, %v2431
      %v2449 = vsel %vm2441, 0.0, %v2432
      %v2450 = vsel %vm2441, %v2425, 0.0
      %v2451 = vsel %vm2441, %v2426, 0.0
      %v2452 = vsel %vm2441, %v2427, 0.0
      %v2453 = vsel %vm2441, %v2428, 0.0
      %v2454 = vsel %vm2441, %v2429, 0.0
      %v2455 = vsel %vm2441, %v2430, 0.0
      %v2456 = vsel %vm2441, %v2431, 0.0
      %v2457 = vsel %vm2441, %v2432, 0.0
      %vm2473 = vcmask 1046528
      %v2474 = vrot.slane 0.0, 1
      %v2475 = vsel %vm2473, %v2474, %v2474
      %v2476 = vrot.slane %v2442, 1
      %v2477 = vrot.slane %v2450, 1
      %v2478 = vsel %vm2473, %v2476, %v2477
      %v2479 = vrot.slane %v2443, 1
      %v2480 = vrot.slane %v2451, 1
      %v2481 = vsel %vm2473, %v2479, %v2480
      %v2482 = vrot.slane %v2444, 1
      %v2483 = vrot.slane %v2452, 1
      %v2484 = vsel %vm2473, %v2482, %v2483
      %v2485 = vrot.slane %v2445, 1
      %v2486 = vrot.slane %v2453, 1
      %v2487 = vsel %vm2473, %v2485, %v2486
      %v2488 = vrot.slane %v2446, 1
      %v2489 = vrot.slane %v2454, 1
      %v2490 = vsel %vm2473, %v2488, %v2489
      %v2491 = vrot.slane %v2447, 1
      %v2492 = vrot.slane %v2455, 1
      %v2493 = vsel %vm2473, %v2491, %v2492
      %v2494 = vrot.slane %v2448, 1
      %v2495 = vrot.slane %v2456, 1
      %v2496 = vsel %vm2473, %v2494, %v2495
      %2497 = vrot.lane.b32.xlu0 %v2475, 64
      %v2498 = vpop.permute.xlu0 %2497
      %2499 = vrot.lane.b32.xlu0 %v2478, 64
      %v2500 = vpop.permute.xlu0 %2499
      %2501 = vrot.lane.b32.xlu0 %v2481, 64
      %v2502 = vpop.permute.xlu0 %2501
      %2503 = vrot.lane.b32.xlu0 %v2484, 64
      %v2504 = vpop.permute.xlu0 %2503
      %2505 = vrot.lane.b32.xlu0 %v2487, 64
      %v2506 = vpop.permute.xlu0 %2505
      %2507 = vrot.lane.b32.xlu0 %v2490, 64
      %v2508 = vpop.permute.xlu0 %2507
      %2509 = vrot.lane.b32.xlu0 %v2493, 64
      %v2510 = vpop.permute.xlu0 %2509
      %2511 = vrot.lane.b32.xlu0 %v2496, 64
      %v2512 = vpop.permute.xlu0 %2511
      %vm2521 = vcmask 1045504
      %v2522 = vrot.slane 0.0, 2
      %v2523 = vsel %vm2521, %v2522, %v2522
      %v2524 = vrot.slane %v2442, 2
      %v2525 = vrot.slane %v2450, 2
      %v2526 = vsel %vm2521, %v2524, %v2525
      %v2527 = vrot.slane %v2443, 2
      %v2528 = vrot.slane %v2451, 2
      %v2529 = vsel %vm2521, %v2527, %v2528
      %v2530 = vrot.slane %v2444, 2
      %v2531 = vrot.slane %v2452, 2
      %v2532 = vsel %vm2521, %v2530, %v2531
      %v2533 = vrot.slane %v2445, 2
      %v2534 = vrot.slane %v2453, 2
      %v2535 = vsel %vm2521, %v2533, %v2534
      %v2536 = vrot.slane %v2446, 2
      %v2537 = vrot.slane %v2454, 2
      %v2538 = vsel %vm2521, %v2536, %v2537
      %v2539 = vrot.slane %v2447, 2
      %v2540 = vrot.slane %v2455, 2
      %v2541 = vsel %vm2521, %v2539, %v2540
      %v2542 = vrot.slane %v2448, 2
      %v2543 = vrot.slane %v2456, 2
      %v2544 = vsel %vm2521, %v2542, %v2543
      %vm2553 = vcmask 523264
      %v2554 = vsel %vm2553, 0.0, %v2498
      %v2555 = vsel %vm2553, %v2442, %v2500
      %v2556 = vsel %vm2553, %v2443, %v2502
      %v2557 = vsel %vm2553, %v2444, %v2504
      %v2558 = vsel %vm2553, %v2445, %v2506
      %v2559 = vsel %vm2553, %v2446, %v2508
      %v2560 = vsel %vm2553, %v2447, %v2510
      %v2561 = vsel %vm2553, %v2448, %v2512
      %v2562 = vpack.c.bf16 %v2555, %v2554
      %v2563 = vpack.c.bf16 %v2526, %v2523
      %v2564 = vpack.c.bf16 %v2557, %v2556
      %v2565 = vpack.c.bf16 %v2532, %v2529
      %v2566 = vpack.c.bf16 %v2559, %v2558
      %v2567 = vpack.c.bf16 %v2538, %v2535
      %v2568 = vpack.c.bf16 %v2561, %v2560
      %v2569 = vpack.c.bf16 %v2544, %v2541
      %v2570 = vld [vmem:[%s1044] sm:$0xf]
      %v2571 = vld [vmem:[%s1044 + $0x4] sm:$0xf]
      %v2572 = vld [vmem:[%s1044 + $0x8] sm:$0xf]
      %v2573 = vld [vmem:[%s1044 + $0xc] sm:$0xf]
      %v2574 = vld [vmem:[%s1044 + $0x10] sm:$0xf]
      %v2575 = vld [vmem:[%s1044 + $0x14] sm:$0xf]
      %v2576 = vld [vmem:[%s1044 + $0x18] sm:$0xf]
      %v2577 = vld [vmem:[%s1044 + $0x1c] sm:$0xf]
      %v2578 = vld [vmem:[%s1044 + $0x20] sm:$0xf]
      %v2579 = vld [vmem:[%s1044 + $0x24] sm:$0xf]
      %v2580 = vld [vmem:[%s1044 + $0x28] sm:$0xf]
      %v2581 = vld [vmem:[%s1044 + $0x2c] sm:$0xf]
      %v2582 = vld [vmem:[%s1044 + $0x30] sm:$0xf]
      %v2583 = vld [vmem:[%s1044 + $0x34] sm:$0xf]
      %v2584 = vld [vmem:[%s1044 + $0x38] sm:$0xf]
      %v2585 = vld [vmem:[%s1044 + $0x3c] sm:$0xf]
      %v2586 = vld [vmem:[%s1044 + $0x40] sm:$0xf]
      %v2587 = vld [vmem:[%s1044 + $0x44] sm:$0xf]
      %v2588 = vld [vmem:[%s1044 + $0x48] sm:$0xf]
      %v2589 = vld [vmem:[%s1044 + $0x4c] sm:$0xf]
      %v2590 = vld [vmem:[%s1044 + $0x50] sm:$0xf]
      %v2591 = vld [vmem:[%s1044 + $0x54] sm:$0xf]
      %v2592 = vld [vmem:[%s1044 + $0x58] sm:$0xf]
      %v2593 = vld [vmem:[%s1044 + $0x5c] sm:$0xf]
      %v2596 = vrot.slane %v2449, 1
      %v2597 = vrot.slane %v2457, 1
      %v2598 = vsel %vm2473, %v2596, %v2597
      %2599 = vrot.lane.b32.xlu0 %v2598, 64
      %v2600 = vpop.permute.xlu0 %2599
      %v2602 = vrot.slane %v2449, 2
      %v2603 = vrot.slane %v2457, 2
      %v2604 = vsel %vm2521, %v2602, %v2603
      %v2606 = vsel %vm2553, %v2449, %v2600
      %v2607 = vpack.c.bf16 %v2556, %v2555
      %v2608 = vpack.c.bf16 %v2529, %v2526
      %v2609 = vpack.c.bf16 %v2558, %v2557
      %v2610 = vpack.c.bf16 %v2535, %v2532
      %v2611 = vpack.c.bf16 %v2560, %v2559
      %v2612 = vpack.c.bf16 %v2541, %v2538
      %v2613 = vpack.c.bf16 %v2606, %v2561
      %v2614 = vpack.c.bf16 %v2604, %v2544
      %s2615 = scalar_lea.vmem %s1044, 96
      %v2616 = vld [vmem:[%s2615] sm:$0xf]
      %v2617 = vld [vmem:[%s2615 + $0x4] sm:$0xf]
      %v2618 = vld [vmem:[%s2615 + $0x8] sm:$0xf]
      %v2619 = vld [vmem:[%s2615 + $0xc] sm:$0xf]
      %v2620 = vld [vmem:[%s2615 + $0x10] sm:$0xf]
      %v2621 = vld [vmem:[%s2615 + $0x14] sm:$0xf]
      %v2622 = vld [vmem:[%s2615 + $0x18] sm:$0xf]
      %v2623 = vld [vmem:[%s2615 + $0x1c] sm:$0xf]
      %v2624 = vld [vmem:[%s2615 + $0x20] sm:$0xf]
      %v2625 = vld [vmem:[%s2615 + $0x24] sm:$0xf]
      %v2626 = vld [vmem:[%s2615 + $0x28] sm:$0xf]
      %v2627 = vld [vmem:[%s2615 + $0x2c] sm:$0xf]
      %v2628 = vld [vmem:[%s2615 + $0x30] sm:$0xf]
      %v2629 = vld [vmem:[%s2615 + $0x34] sm:$0xf]
      %v2630 = vld [vmem:[%s2615 + $0x38] sm:$0xf]
      %v2631 = vld [vmem:[%s2615 + $0x3c] sm:$0xf]
      %v2632 = vld [vmem:[%s2615 + $0x40] sm:$0xf]
      %v2633 = vld [vmem:[%s2615 + $0x44] sm:$0xf]
      %v2634 = vld [vmem:[%s2615 + $0x48] sm:$0xf]
      %v2635 = vld [vmem:[%s2615 + $0x4c] sm:$0xf]
      %v2636 = vld [vmem:[%s2615 + $0x50] sm:$0xf]
      %v2637 = vld [vmem:[%s2615 + $0x54] sm:$0xf]
      %v2638 = vld [vmem:[%s2615 + $0x58] sm:$0xf]
      %v2639 = vld [vmem:[%s2615 + $0x5c] sm:$0xf]
      %v2664 = vunpack.c.l.b16 %v2616
      %v2665 = vunpack.c.l.b16 %v2617
      %v2666 = vunpack.c.l.b16 %v2618
      %v2667 = vunpack.c.l.b16 %v2619
      %v2668 = vunpack.c.l.b16 %v2620
      %v2669 = vunpack.c.l.b16 %v2621
      %v2670 = vunpack.c.l.b16 %v2622
      %v2671 = vunpack.c.l.b16 %v2623
      %v2672 = vunpack.c.l.b16 %v2624
      %v2673 = vunpack.c.l.b16 %v2625
      %v2674 = vunpack.c.l.b16 %v2626
      %v2675 = vunpack.c.l.b16 %v2627
      %v2676 = vunpack.c.l.b16 %v2628
      %v2677 = vunpack.c.l.b16 %v2629
      %v2678 = vunpack.c.l.b16 %v2630
      %v2679 = vunpack.c.l.b16 %v2631
      %v2680 = vunpack.c.l.b16 %v2632
      %v2681 = vunpack.c.l.b16 %v2633
      %v2682 = vunpack.c.l.b16 %v2634
      %v2683 = vunpack.c.l.b16 %v2635
      %v2684 = vunpack.c.l.b16 %v2636
      %v2685 = vunpack.c.l.b16 %v2637
      %v2686 = vunpack.c.l.b16 %v2638
      %v2687 = vunpack.c.l.b16 %v2639
      %v2688 = vpack.c.b16 %v2665, %v2664
      %v2689 = vpack.c.b16 %v2667, %v2666
      %v2690 = vpack.c.b16 %v2669, %v2668
      %v2691 = vpack.c.b16 %v2671, %v2670
      %v2692 = vpack.c.b16 %v2673, %v2672
      %v2693 = vpack.c.b16 %v2675, %v2674
      %v2694 = vpack.c.b16 %v2677, %v2676
      %v2695 = vpack.c.b16 %v2679, %v2678
      %v2696 = vpack.c.b16 %v2681, %v2680
      %v2697 = vpack.c.b16 %v2683, %v2682
      %v2698 = vpack.c.b16 %v2685, %v2684
      %v2699 = vpack.c.b16 %v2687, %v2686
      %v2713 = vsel %vm2553, %v2608, 0
      %v2716 = vsel %vm2553, %v2610, 0
      %v2719 = vsel %vm2553, %v2612, 0
      %v2722 = vsel %vm2553, %v2614, 0
      %2724 = vmatpush.bf16.msra.mxu0 %v2695
      %2725 = vmatpush.bf16.msra.mxu0 %v2694
      %2726 = vmatpush.bf16.msra.mxu0 %v2693
      %2727 = vmatpush.bf16.msra.mxu0 %v2692
      %2728 = vmatpush.bf16.msra.mxu0 %v2691
      %2729 = vmatpush.bf16.msra.mxu0 %v2690
      %2730 = vmatpush.bf16.msra.mxu0 %v2689
      %2731 = vmatpush.bf16.msra.mxu0 %v2688
      %2732 = vmatmul.bf16.gmra.mxu0 %v2607
      %v2733 = vpop.f32.mrf.mxu0
      %v2734 = vadd.f32 0.0, %v2733
      %v2735 = vpop.f32.mrf.mxu0
      %v2736 = vadd.f32 0.0, %v2735
      %2737 = vmatmul.bf16.gmra.mxu0 %v2609
      %v2738 = vpop.f32.mrf.mxu0
      %v2739 = vadd.f32 0.0, %v2738
      %v2740 = vpop.f32.mrf.mxu0
      %v2741 = vadd.f32 0.0, %v2740
      %2742 = vmatmul.bf16.gmra.mxu0 %v2611
      %v2743 = vpop.f32.mrf.mxu0
      %v2744 = vadd.f32 0.0, %v2743
      %v2745 = vpop.f32.mrf.mxu0
      %v2746 = vadd.f32 0.0, %v2745
      %2747 = vmatmul.bf16.gmra.mxu0 %v2613
      %v2748 = vpop.f32.mrf.mxu0
      %v2749 = vadd.f32 0.0, %v2748
      %v2750 = vpop.f32.mrf.mxu0
      %v2751 = vadd.f32 0.0, %v2750
      %2752 = vdwg.mxu0
      %2753 = vmatpush.bf16.msra.mxu0 0
      %2754 = vmatpush.bf16.msra.mxu0 0
      %2755 = vmatpush.bf16.msra.mxu0 0
      %2756 = vmatpush.bf16.msra.mxu0 0
      %2757 = vmatpush.bf16.msra.mxu0 %v2699
      %2758 = vmatpush.bf16.msra.mxu0 %v2698
      %2759 = vmatpush.bf16.msra.mxu0 %v2697
      %2760 = vmatpush.bf16.msra.mxu0 %v2696
      %2761 = vmatmul.bf16.gmra.mxu0 %v2713
      %v2762 = vpop.f32.mrf.mxu0
      %v2763 = vadd.f32 %v2734, %v2762
      %v2764 = vpop.f32.mrf.mxu0
      %v2765 = vadd.f32 %v2736, %v2764
      %2766 = vmatmul.bf16.gmra.mxu0 %v2716
      %v2767 = vpop.f32.mrf.mxu0
      %v2768 = vadd.f32 %v2739, %v2767
      %v2769 = vpop.f32.mrf.mxu0
      %v2770 = vadd.f32 %v2741, %v2769
      %2771 = vmatmul.bf16.gmra.mxu0 %v2719
      %v2772 = vpop.f32.mrf.mxu0
      %v2773 = vadd.f32 %v2744, %v2772
      %v2774 = vpop.f32.mrf.mxu0
      %v2775 = vadd.f32 %v2746, %v2774
      %2776 = vmatmul.bf16.gmra.mxu0 %v2722
      %v2777 = vpop.f32.mrf.mxu0
      %v2778 = vadd.f32 %v2749, %v2777
      %v2779 = vpop.f32.mrf.mxu0
      %v2780 = vadd.f32 %v2751, %v2779
      %2781 = vdwg.mxu0
      %v2806 = vunpack.c.l.b16 %v2570
      %v2807 = vunpack.c.l.b16 %v2571
      %v2808 = vunpack.c.l.b16 %v2572
      %v2809 = vunpack.c.l.b16 %v2573
      %v2810 = vunpack.c.l.b16 %v2574
      %v2811 = vunpack.c.l.b16 %v2575
      %v2812 = vunpack.c.l.b16 %v2576
      %v2813 = vunpack.c.l.b16 %v2577
      %v2814 = vunpack.c.l.b16 %v2578
      %v2815 = vunpack.c.l.b16 %v2579
      %v2816 = vunpack.c.l.b16 %v2580
      %v2817 = vunpack.c.l.b16 %v2581
      %v2818 = vunpack.c.l.b16 %v2582
      %v2819 = vunpack.c.l.b16 %v2583
      %v2820 = vunpack.c.l.b16 %v2584
      %v2821 = vunpack.c.l.b16 %v2585
      %v2822 = vunpack.c.l.b16 %v2586
      %v2823 = vunpack.c.l.b16 %v2587
      %v2824 = vunpack.c.l.b16 %v2588
      %v2825 = vunpack.c.l.b16 %v2589
      %v2826 = vunpack.c.l.b16 %v2590
      %v2827 = vunpack.c.l.b16 %v2591
      %v2828 = vunpack.c.l.b16 %v2592
      %v2829 = vunpack.c.l.b16 %v2593
      %v2830 = vpack.c.b16 %v2807, %v2806
      %v2831 = vpack.c.b16 %v2809, %v2808
      %v2832 = vpack.c.b16 %v2811, %v2810
      %v2833 = vpack.c.b16 %v2813, %v2812
      %v2834 = vpack.c.b16 %v2815, %v2814
      %v2835 = vpack.c.b16 %v2817, %v2816
      %v2836 = vpack.c.b16 %v2819, %v2818
      %v2837 = vpack.c.b16 %v2821, %v2820
      %v2838 = vpack.c.b16 %v2823, %v2822
      %v2839 = vpack.c.b16 %v2825, %v2824
      %v2840 = vpack.c.b16 %v2827, %v2826
      %v2841 = vpack.c.b16 %v2829, %v2828
      %v2855 = vsel %vm2553, %v2563, 0
      %v2858 = vsel %vm2553, %v2565, 0
      %v2861 = vsel %vm2553, %v2567, 0
      %v2864 = vsel %vm2553, %v2569, 0
      %2866 = vmatpush.bf16.msra.mxu0 %v2837
      %2867 = vmatpush.bf16.msra.mxu0 %v2836
      %2868 = vmatpush.bf16.msra.mxu0 %v2835
      %2869 = vmatpush.bf16.msra.mxu0 %v2834
      %2870 = vmatpush.bf16.msra.mxu0 %v2833
      %2871 = vmatpush.bf16.msra.mxu0 %v2832
      %2872 = vmatpush.bf16.msra.mxu0 %v2831
      %2873 = vmatpush.bf16.msra.mxu0 %v2830
      %2874 = vmatmul.bf16.gmra.mxu0 %v2562
      %v2875 = vpop.f32.mrf.mxu0
      %v2876 = vadd.f32 %v2763, %v2875
      %v2877 = vpop.f32.mrf.mxu0
      %v2878 = vadd.f32 %v2765, %v2877
      %2879 = vmatmul.bf16.gmra.mxu0 %v2564
      %v2880 = vpop.f32.mrf.mxu0
      %v2881 = vadd.f32 %v2768, %v2880
      %v2882 = vpop.f32.mrf.mxu0
      %v2883 = vadd.f32 %v2770, %v2882
      %2884 = vmatmul.bf16.gmra.mxu0 %v2566
      %v2885 = vpop.f32.mrf.mxu0
      %v2886 = vadd.f32 %v2773, %v2885
      %v2887 = vpop.f32.mrf.mxu0
      %v2888 = vadd.f32 %v2775, %v2887
      %2889 = vmatmul.bf16.gmra.mxu0 %v2568
      %v2890 = vpop.f32.mrf.mxu0
      %v2891 = vadd.f32 %v2778, %v2890
      %v2892 = vpop.f32.mrf.mxu0
      %v2893 = vadd.f32 %v2780, %v2892
      %2894 = vdwg.mxu0
      %2895 = vmatpush.bf16.msra.mxu0 0
      %2896 = vmatpush.bf16.msra.mxu0 0
      %2897 = vmatpush.bf16.msra.mxu0 0
      %2898 = vmatpush.bf16.msra.mxu0 0
      %2899 = vmatpush.bf16.msra.mxu0 %v2841
      %2900 = vmatpush.bf16.msra.mxu0 %v2840
      %2901 = vmatpush.bf16.msra.mxu0 %v2839
      %2902 = vmatpush.bf16.msra.mxu0 %v2838
      %2903 = vmatmul.bf16.gmra.mxu0 %v2855
      %v2904 = vpop.f32.mrf.mxu0
      %v2905 = vadd.f32 %v2876, %v2904
      %v2906 = vpop.f32.mrf.mxu0
      %v2907 = vadd.f32 %v2878, %v2906
      %2908 = vmatmul.bf16.gmra.mxu0 %v2858
      %v2909 = vpop.f32.mrf.mxu0
      %v2910 = vadd.f32 %v2881, %v2909
      %v2911 = vpop.f32.mrf.mxu0
      %v2912 = vadd.f32 %v2883, %v2911
      %2913 = vmatmul.bf16.gmra.mxu0 %v2861
      %v2914 = vpop.f32.mrf.mxu0
      %v2915 = vadd.f32 %v2886, %v2914
      %v2916 = vpop.f32.mrf.mxu0
      %v2917 = vadd.f32 %v2888, %v2916
      %2918 = vmatmul.bf16.gmra.mxu0 %v2864
      %v2919 = vpop.f32.mrf.mxu0
      %v2920 = vadd.f32 %v2891, %v2919
      %v2921 = vpop.f32.mrf.mxu0
      %v2922 = vadd.f32 %v2893, %v2921
      %2923 = vdwg.mxu0
      %v2924 = vpack.c.bf16 %v2554, %v2606
      %v2925 = vpack.c.bf16 %v2523, %v2604
      %s2926 = scalar_lea.vmem %s1044, 192
      %v2927 = vld [vmem:[%s2926] sm:$0xf]
      %v2928 = vld [vmem:[%s2926 + $0x4] sm:$0xf]
      %v2929 = vld [vmem:[%s2926 + $0x8] sm:$0xf]
      %v2930 = vld [vmem:[%s2926 + $0xc] sm:$0xf]
      %v2931 = vld [vmem:[%s2926 + $0x10] sm:$0xf]
      %v2932 = vld [vmem:[%s2926 + $0x14] sm:$0xf]
      %v2933 = vld [vmem:[%s2926 + $0x18] sm:$0xf]
      %v2934 = vld [vmem:[%s2926 + $0x1c] sm:$0xf]
      %v2935 = vld [vmem:[%s2926 + $0x20] sm:$0xf]
      %v2936 = vld [vmem:[%s2926 + $0x24] sm:$0xf]
      %v2937 = vld [vmem:[%s2926 + $0x28] sm:$0xf]
      %v2938 = vld [vmem:[%s2926 + $0x2c] sm:$0xf]
      %v2939 = vld [vmem:[%s2926 + $0x30] sm:$0xf]
      %v2940 = vld [vmem:[%s2926 + $0x34] sm:$0xf]
      %v2941 = vld [vmem:[%s2926 + $0x38] sm:$0xf]
      %v2942 = vld [vmem:[%s2926 + $0x3c] sm:$0xf]
      %v2943 = vld [vmem:[%s2926 + $0x40] sm:$0xf]
      %v2944 = vld [vmem:[%s2926 + $0x44] sm:$0xf]
      %v2945 = vld [vmem:[%s2926 + $0x48] sm:$0xf]
      %v2946 = vld [vmem:[%s2926 + $0x4c] sm:$0xf]
      %v2947 = vld [vmem:[%s2926 + $0x50] sm:$0xf]
      %v2948 = vld [vmem:[%s2926 + $0x54] sm:$0xf]
      %v2949 = vld [vmem:[%s2926 + $0x58] sm:$0xf]
      %v2950 = vld [vmem:[%s2926 + $0x5c] sm:$0xf]
      %v2975 = vunpack.c.l.b16 %v2927
      %v2976 = vunpack.c.l.b16 %v2928
      %v2977 = vunpack.c.l.b16 %v2929
      %v2978 = vunpack.c.l.b16 %v2930
      %v2979 = vunpack.c.l.b16 %v2931
      %v2980 = vunpack.c.l.b16 %v2932
      %v2981 = vunpack.c.l.b16 %v2933
      %v2982 = vunpack.c.l.b16 %v2934
      %v2983 = vunpack.c.l.b16 %v2935
      %v2984 = vunpack.c.l.b16 %v2936
      %v2985 = vunpack.c.l.b16 %v2937
      %v2986 = vunpack.c.l.b16 %v2938
      %v2987 = vunpack.c.l.b16 %v2939
      %v2988 = vunpack.c.l.b16 %v2940
      %v2989 = vunpack.c.l.b16 %v2941
      %v2990 = vunpack.c.l.b16 %v2942
      %v2991 = vunpack.c.l.b16 %v2943
      %v2992 = vunpack.c.l.b16 %v2944
      %v2993 = vunpack.c.l.b16 %v2945
      %v2994 = vunpack.c.l.b16 %v2946
      %v2995 = vunpack.c.l.b16 %v2947
      %v2996 = vunpack.c.l.b16 %v2948
      %v2997 = vunpack.c.l.b16 %v2949
      %v2998 = vunpack.c.l.b16 %v2950
      %v2999 = vpack.c.b16 %v2976, %v2975
      %v3000 = vpack.c.b16 %v2978, %v2977
      %v3001 = vpack.c.b16 %v2980, %v2979
      %v3002 = vpack.c.b16 %v2982, %v2981
      %v3003 = vpack.c.b16 %v2984, %v2983
      %v3004 = vpack.c.b16 %v2986, %v2985
      %v3005 = vpack.c.b16 %v2988, %v2987
      %v3006 = vpack.c.b16 %v2990, %v2989
      %v3007 = vpack.c.b16 %v2992, %v2991
      %v3008 = vpack.c.b16 %v2994, %v2993
      %v3009 = vpack.c.b16 %v2996, %v2995
      %v3010 = vpack.c.b16 %v2998, %v2997
      %v3024 = vsel %vm2553, %v2925, 0
      %3026 = vmatpush.bf16.msra.mxu0 %v3006
      %3027 = vmatpush.bf16.msra.mxu0 %v3005
      %3028 = vmatpush.bf16.msra.mxu0 %v3004
      %3029 = vmatpush.bf16.msra.mxu0 %v3003
      %3030 = vmatpush.bf16.msra.mxu0 %v3002
      %3031 = vmatpush.bf16.msra.mxu0 %v3001
      %3032 = vmatpush.bf16.msra.mxu0 %v3000
      %3033 = vmatpush.bf16.msra.mxu0 %v2999
      %3034 = vmatmul.bf16.gmra.mxu0 %v2564
      %v3035 = vpop.f32.mrf.mxu0
      %v3036 = vadd.f32 0.0, %v3035
      %v3037 = vpop.f32.mrf.mxu0
      %v3038 = vadd.f32 0.0, %v3037
      %3039 = vmatmul.bf16.gmra.mxu0 %v2566
      %v3040 = vpop.f32.mrf.mxu0
      %v3041 = vadd.f32 0.0, %v3040
      %v3042 = vpop.f32.mrf.mxu0
      %v3043 = vadd.f32 0.0, %v3042
      %3044 = vmatmul.bf16.gmra.mxu0 %v2568
      %v3045 = vpop.f32.mrf.mxu0
      %v3046 = vadd.f32 0.0, %v3045
      %v3047 = vpop.f32.mrf.mxu0
      %v3048 = vadd.f32 0.0, %v3047
      %3049 = vmatmul.bf16.gmra.mxu0 %v2924
      %v3050 = vpop.f32.mrf.mxu0
      %v3051 = vadd.f32 0.0, %v3050
      %v3052 = vpop.f32.mrf.mxu0
      %v3053 = vadd.f32 0.0, %v3052
      %3054 = vdwg.mxu0
      %3055 = vmatpush.bf16.msra.mxu0 0
      %3056 = vmatpush.bf16.msra.mxu0 0
      %3057 = vmatpush.bf16.msra.mxu0 0
      %3058 = vmatpush.bf16.msra.mxu0 0
      %3059 = vmatpush.bf16.msra.mxu0 %v3010
      %3060 = vmatpush.bf16.msra.mxu0 %v3009
      %3061 = vmatpush.bf16.msra.mxu0 %v3008
      %3062 = vmatpush.bf16.msra.mxu0 %v3007
      %3063 = vmatmul.bf16.gmra.mxu0 %v2858
      %v3064 = vpop.f32.mrf.mxu0
      %v3065 = vadd.f32 %v3036, %v3064
      %v3066 = vpop.f32.mrf.mxu0
      %v3067 = vadd.f32 %v3038, %v3066
      %3068 = vmatmul.bf16.gmra.mxu0 %v2861
      %v3069 = vpop.f32.mrf.mxu0
      %v3070 = vadd.f32 %v3041, %v3069
      %v3071 = vpop.f32.mrf.mxu0
      %v3072 = vadd.f32 %v3043, %v3071
      %3073 = vmatmul.bf16.gmra.mxu0 %v2864
      %v3074 = vpop.f32.mrf.mxu0
      %v3075 = vadd.f32 %v3046, %v3074
      %v3076 = vpop.f32.mrf.mxu0
      %v3077 = vadd.f32 %v3048, %v3076
      %3078 = vmatmul.bf16.gmra.mxu0 %v3024
      %v3079 = vpop.f32.mrf.mxu0
      %v3080 = vadd.f32 %v3051, %v3079
      %v3081 = vpop.f32.mrf.mxu0
      %v3082 = vadd.f32 %v3053, %v3081
      %3083 = vdwg.mxu0
      %v3084 = vadd.f32 %v2905, %v3065
      %v3085 = vadd.f32 %v2907, %v3067
      %v3086 = vadd.f32 %v2910, %v3070
      %v3087 = vadd.f32 %v2912, %v3072
      %v3088 = vadd.f32 %v2915, %v3075
      %v3089 = vadd.f32 %v2917, %v3077
      %v3090 = vadd.f32 %v2920, %v3080
      %v3091 = vadd.f32 %v2922, %v3082
      %v3093 = vperm.slane %v2416, 0
      %v3095 = vadd.f32 %v3084, %v3093
      %v3096 = vadd.f32 %v3085, %v3093
      %v3097 = vadd.f32 %v3086, %v3093
      %v3098 = vadd.f32 %v3087, %v3093
      %v3099 = vadd.f32 %v3088, %v3093
      %v3100 = vadd.f32 %v3089, %v3093
      %v3101 = vadd.f32 %v3090, %v3093
      %v3102 = vadd.f32 %v3091, %v3093
      %v3103 = vmax.f32 %v3095, 0.0
      %v3104 = vmax.f32 %v3096, 0.0
      %v3105 = vmax.f32 %v3097, 0.0
      %v3106 = vmax.f32 %v3098, 0.0
      %v3107 = vmax.f32 %v3099, 0.0
      %v3108 = vmax.f32 %v3100, 0.0
      %v3109 = vmax.f32 %v3101, 0.0
      %v3110 = vmax.f32 %v3102, 0.0
      %v3111 = vadd.f32 %v2341, 1.0
      %v3112 = vadd.f32 %v2343, 1.0
      %v3113 = vadd.f32 %v2346, 1.0
      %v3114 = vadd.f32 %v2348, 1.0
      %v3115 = vadd.f32 %v2351, 1.0
      %v3116 = vadd.f32 %v2353, 1.0
      %v3117 = vadd.f32 %v2356, 1.0
      %v3118 = vadd.f32 %v2358, 1.0
      %v3119 = vmul.f32 %v3103, %v3111
      %v3120 = vmul.f32 %v3104, %v3112
      %v3121 = vmul.f32 %v3105, %v3113
      %v3122 = vmul.f32 %v3106, %v3114
      %v3123 = vmul.f32 %v3107, %v3115
      %v3124 = vmul.f32 %v3108, %v3116
      %v3125 = vmul.f32 %v3109, %v3117
      %v3126 = vmul.f32 %v3110, %v3118
      %3135 = vrot.lane.b32.xlu0 %v2341, 64
      %v3136 = vpop.permute.xlu0 %3135
      %3137 = vrot.lane.b32.xlu0 %v2343, 64
      %v3138 = vpop.permute.xlu0 %3137
      %3139 = vrot.lane.b32.xlu0 %v2346, 64
      %v3140 = vpop.permute.xlu0 %3139
      %3141 = vrot.lane.b32.xlu0 %v2348, 64
      %v3142 = vpop.permute.xlu0 %3141
      %3143 = vrot.lane.b32.xlu0 %v2351, 64
      %v3144 = vpop.permute.xlu0 %3143
      %3145 = vrot.lane.b32.xlu0 %v2353, 64
      %v3146 = vpop.permute.xlu0 %3145
      %3147 = vrot.lane.b32.xlu0 %v2356, 64
      %v3148 = vpop.permute.xlu0 %3147
      %3149 = vrot.lane.b32.xlu0 %v2358, 64
      %v3150 = vpop.permute.xlu0 %3149
      %v3159 = vadd.f32 %v3119, %v3136
      %v3160 = vadd.f32 %v3120, %v3138
      %v3161 = vadd.f32 %v3121, %v3140
      %v3162 = vadd.f32 %v3122, %v3142
      %v3163 = vadd.f32 %v3123, %v3144
      %v3164 = vadd.f32 %v3124, %v3146
      %v3165 = vadd.f32 %v3125, %v3148
      %v3166 = vadd.f32 %v3126, %v3150
      %s3167 = scalar_lea.vmem %s1048, 1
      %v3168 = vld [vmem:[%s3167] sm:$0x1]
      %v3177 = vrot.slane %v3159, 7
      %v3178 = vrot.slane %v3160, 7
      %v3179 = vrot.slane %v3161, 7
      %v3180 = vrot.slane %v3162, 7
      %v3181 = vrot.slane %v3163, 7
      %v3182 = vrot.slane %v3164, 7
      %v3183 = vrot.slane %v3165, 7
      %v3184 = vrot.slane %v3166, 7
      %v3193 = vsel %vm2441, 0.0, %v3177
      %v3194 = vsel %vm2441, 0.0, %v3178
      %v3195 = vsel %vm2441, 0.0, %v3179
      %v3196 = vsel %vm2441, 0.0, %v3180
      %v3197 = vsel %vm2441, 0.0, %v3181
      %v3198 = vsel %vm2441, 0.0, %v3182
      %v3199 = vsel %vm2441, 0.0, %v3183
      %v3200 = vsel %vm2441, 0.0, %v3184
      %v3201 = vsel %vm2441, %v3177, 0.0
      %v3202 = vsel %vm2441, %v3178, 0.0
      %v3203 = vsel %vm2441, %v3179, 0.0
      %v3204 = vsel %vm2441, %v3180, 0.0
      %v3205 = vsel %vm2441, %v3181, 0.0
      %v3206 = vsel %vm2441, %v3182, 0.0
      %v3207 = vsel %vm2441, %v3183, 0.0
      %v3208 = vsel %vm2441, %v3184, 0.0
      %v3223 = vrot.slane %v3193, 1
      %v3224 = vrot.slane %v3201, 1
      %v3225 = vsel %vm2473, %v3223, %v3224
      %v3226 = vrot.slane %v3194, 1
      %v3227 = vrot.slane %v3202, 1
      %v3228 = vsel %vm2473, %v3226, %v3227
      %v3229 = vrot.slane %v3195, 1
      %v3230 = vrot.slane %v3203, 1
      %v3231 = vsel %vm2473, %v3229, %v3230
      %v3232 = vrot.slane %v3196, 1
      %v3233 = vrot.slane %v3204, 1
      %v3234 = vsel %vm2473, %v3232, %v3233
      %v3235 = vrot.slane %v3197, 1
      %v3236 = vrot.slane %v3205, 1
      %v3237 = vsel %vm2473, %v3235, %v3236
      %v3238 = vrot.slane %v3198, 1
      %v3239 = vrot.slane %v3206, 1
      %v3240 = vsel %vm2473, %v3238, %v3239
      %v3241 = vrot.slane %v3199, 1
      %v3242 = vrot.slane %v3207, 1
      %v3243 = vsel %vm2473, %v3241, %v3242
      %3244 = vrot.lane.b32.xlu0 %v3225, 64
      %v3245 = vpop.permute.xlu0 %3244
      %3246 = vrot.lane.b32.xlu0 %v3228, 64
      %v3247 = vpop.permute.xlu0 %3246
      %3248 = vrot.lane.b32.xlu0 %v3231, 64
      %v3249 = vpop.permute.xlu0 %3248
      %3250 = vrot.lane.b32.xlu0 %v3234, 64
      %v3251 = vpop.permute.xlu0 %3250
      %3252 = vrot.lane.b32.xlu0 %v3237, 64
      %v3253 = vpop.permute.xlu0 %3252
      %3254 = vrot.lane.b32.xlu0 %v3240, 64
      %v3255 = vpop.permute.xlu0 %3254
      %3256 = vrot.lane.b32.xlu0 %v3243, 64
      %v3257 = vpop.permute.xlu0 %3256
      %v3265 = vrot.slane %v3193, 2
      %v3266 = vrot.slane %v3201, 2
      %v3267 = vsel %vm2521, %v3265, %v3266
      %v3268 = vrot.slane %v3194, 2
      %v3269 = vrot.slane %v3202, 2
      %v3270 = vsel %vm2521, %v3268, %v3269
      %v3271 = vrot.slane %v3195, 2
      %v3272 = vrot.slane %v3203, 2
      %v3273 = vsel %vm2521, %v3271, %v3272
      %v3274 = vrot.slane %v3196, 2
      %v3275 = vrot.slane %v3204, 2
      %v3276 = vsel %vm2521, %v3274, %v3275
      %v3277 = vrot.slane %v3197, 2
      %v3278 = vrot.slane %v3205, 2
      %v3279 = vsel %vm2521, %v3277, %v3278
      %v3280 = vrot.slane %v3198, 2
      %v3281 = vrot.slane %v3206, 2
      %v3282 = vsel %vm2521, %v3280, %v3281
      %v3283 = vrot.slane %v3199, 2
      %v3284 = vrot.slane %v3207, 2
      %v3285 = vsel %vm2521, %v3283, %v3284
      %v3293 = vsel %vm2553, %v3193, %v3245
      %v3294 = vsel %vm2553, %v3194, %v3247
      %v3295 = vsel %vm2553, %v3195, %v3249
      %v3296 = vsel %vm2553, %v3196, %v3251
      %v3297 = vsel %vm2553, %v3197, %v3253
      %v3298 = vsel %vm2553, %v3198, %v3255
      %v3299 = vsel %vm2553, %v3199, %v3257
      %v3300 = vpack.c.bf16 %v3293, %v2554
      %v3301 = vpack.c.bf16 %v3267, %v2523
      %v3302 = vpack.c.bf16 %v3295, %v3294
      %v3303 = vpack.c.bf16 %v3273, %v3270
      %v3304 = vpack.c.bf16 %v3297, %v3296
      %v3305 = vpack.c.bf16 %v3279, %v3276
      %v3306 = vpack.c.bf16 %v3299, %v3298
      %v3307 = vpack.c.bf16 %v3285, %v3282
      %s3308 = scalar_lea.vmem %s1044, 288
      %v3309 = vld [vmem:[%s3308] sm:$0xf]
      %v3310 = vld [vmem:[%s3308 + $0x4] sm:$0xf]
      %v3311 = vld [vmem:[%s3308 + $0x8] sm:$0xf]
      %v3312 = vld [vmem:[%s3308 + $0xc] sm:$0xf]
      %v3313 = vld [vmem:[%s3308 + $0x10] sm:$0xf]
      %v3314 = vld [vmem:[%s3308 + $0x14] sm:$0xf]
      %v3315 = vld [vmem:[%s3308 + $0x18] sm:$0xf]
      %v3316 = vld [vmem:[%s3308 + $0x1c] sm:$0xf]
      %v3317 = vld [vmem:[%s3308 + $0x20] sm:$0xf]
      %v3318 = vld [vmem:[%s3308 + $0x24] sm:$0xf]
      %v3319 = vld [vmem:[%s3308 + $0x28] sm:$0xf]
      %v3320 = vld [vmem:[%s3308 + $0x2c] sm:$0xf]
      %v3321 = vld [vmem:[%s3308 + $0x30] sm:$0xf]
      %v3322 = vld [vmem:[%s3308 + $0x34] sm:$0xf]
      %v3323 = vld [vmem:[%s3308 + $0x38] sm:$0xf]
      %v3324 = vld [vmem:[%s3308 + $0x3c] sm:$0xf]
      %v3325 = vld [vmem:[%s3308 + $0x40] sm:$0xf]
      %v3326 = vld [vmem:[%s3308 + $0x44] sm:$0xf]
      %v3327 = vld [vmem:[%s3308 + $0x48] sm:$0xf]
      %v3328 = vld [vmem:[%s3308 + $0x4c] sm:$0xf]
      %v3329 = vld [vmem:[%s3308 + $0x50] sm:$0xf]
      %v3330 = vld [vmem:[%s3308 + $0x54] sm:$0xf]
      %v3331 = vld [vmem:[%s3308 + $0x58] sm:$0xf]
      %v3332 = vld [vmem:[%s3308 + $0x5c] sm:$0xf]
      %v3335 = vrot.slane %v3200, 1
      %v3336 = vrot.slane %v3208, 1
      %v3337 = vsel %vm2473, %v3335, %v3336
      %3338 = vrot.lane.b32.xlu0 %v3337, 64
      %v3339 = vpop.permute.xlu0 %3338
      %v3341 = vrot.slane %v3200, 2
      %v3342 = vrot.slane %v3208, 2
      %v3343 = vsel %vm2521, %v3341, %v3342
      %v3345 = vsel %vm2553, %v3200, %v3339
      %v3346 = vpack.c.bf16 %v3294, %v3293
      %v3347 = vpack.c.bf16 %v3270, %v3267
      %v3348 = vpack.c.bf16 %v3296, %v3295
      %v3349 = vpack.c.bf16 %v3276, %v3273
      %v3350 = vpack.c.bf16 %v3298, %v3297
      %v3351 = vpack.c.bf16 %v3282, %v3279
      %v3352 = vpack.c.bf16 %v3345, %v3299
      %v3353 = vpack.c.bf16 %v3343, %v3285
      %s3354 = scalar_lea.vmem %s1044, 384
      %v3355 = vld [vmem:[%s3354] sm:$0xf]
      %v3356 = vld [vmem:[%s3354 + $0x4] sm:$0xf]
      %v3357 = vld [vmem:[%s3354 + $0x8] sm:$0xf]
      %v3358 = vld [vmem:[%s3354 + $0xc] sm:$0xf]
      %v3359 = vld [vmem:[%s3354 + $0x10] sm:$0xf]
      %v3360 = vld [vmem:[%s3354 + $0x14] sm:$0xf]
      %v3361 = vld [vmem:[%s3354 + $0x18] sm:$0xf]
      %v3362 = vld [vmem:[%s3354 + $0x1c] sm:$0xf]
      %v3363 = vld [vmem:[%s3354 + $0x20] sm:$0xf]
      %v3364 = vld [vmem:[%s3354 + $0x24] sm:$0xf]
      %v3365 = vld [vmem:[%s3354 + $0x28] sm:$0xf]
      %v3366 = vld [vmem:[%s3354 + $0x2c] sm:$0xf]
      %v3367 = vld [vmem:[%s3354 + $0x30] sm:$0xf]
      %v3368 = vld [vmem:[%s3354 + $0x34] sm:$0xf]
      %v3369 = vld [vmem:[%s3354 + $0x38] sm:$0xf]
      %v3370 = vld [vmem:[%s3354 + $0x3c] sm:$0xf]
      %v3371 = vld [vmem:[%s3354 + $0x40] sm:$0xf]
      %v3372 = vld [vmem:[%s3354 + $0x44] sm:$0xf]
      %v3373 = vld [vmem:[%s3354 + $0x48] sm:$0xf]
      %v3374 = vld [vmem:[%s3354 + $0x4c] sm:$0xf]
      %v3375 = vld [vmem:[%s3354 + $0x50] sm:$0xf]
      %v3376 = vld [vmem:[%s3354 + $0x54] sm:$0xf]
      %v3377 = vld [vmem:[%s3354 + $0x58] sm:$0xf]
      %v3378 = vld [vmem:[%s3354 + $0x5c] sm:$0xf]
      %v3403 = vunpack.c.l.b16 %v3355
      %v3404 = vunpack.c.l.b16 %v3356
      %v3405 = vunpack.c.l.b16 %v3357
      %v3406 = vunpack.c.l.b16 %v3358
      %v3407 = vunpack.c.l.b16 %v3359
      %v3408 = vunpack.c.l.b16 %v3360
      %v3409 = vunpack.c.l.b16 %v3361
      %v3410 = vunpack.c.l.b16 %v3362
      %v3411 = vunpack.c.l.b16 %v3363
      %v3412 = vunpack.c.l.b16 %v3364
      %v3413 = vunpack.c.l.b16 %v3365
      %v3414 = vunpack.c.l.b16 %v3366
      %v3415 = vunpack.c.l.b16 %v3367
      %v3416 = vunpack.c.l.b16 %v3368
      %v3417 = vunpack.c.l.b16 %v3369
      %v3418 = vunpack.c.l.b16 %v3370
      %v3419 = vunpack.c.l.b16 %v3371
      %v3420 = vunpack.c.l.b16 %v3372
      %v3421 = vunpack.c.l.b16 %v3373
      %v3422 = vunpack.c.l.b16 %v3374
      %v3423 = vunpack.c.l.b16 %v3375
      %v3424 = vunpack.c.l.b16 %v3376
      %v3425 = vunpack.c.l.b16 %v3377
      %v3426 = vunpack.c.l.b16 %v3378
      %v3427 = vpack.c.b16 %v3404, %v3403
      %v3428 = vpack.c.b16 %v3406, %v3405
      %v3429 = vpack.c.b16 %v3408, %v3407
      %v3430 = vpack.c.b16 %v3410, %v3409
      %v3431 = vpack.c.b16 %v3412, %v3411
      %v3432 = vpack.c.b16 %v3414, %v3413
      %v3433 = vpack.c.b16 %v3416, %v3415
      %v3434 = vpack.c.b16 %v3418, %v3417
      %v3435 = vpack.c.b16 %v3420, %v3419
      %v3436 = vpack.c.b16 %v3422, %v3421
      %v3437 = vpack.c.b16 %v3424, %v3423
      %v3438 = vpack.c.b16 %v3426, %v3425
      %v3452 = vsel %vm2553, %v3347, 0
      %v3455 = vsel %vm2553, %v3349, 0
      %v3458 = vsel %vm2553, %v3351, 0
      %v3461 = vsel %vm2553, %v3353, 0
      %3463 = vmatpush.bf16.msra.mxu0 %v3434
      %3464 = vmatpush.bf16.msra.mxu0 %v3433
      %3465 = vmatpush.bf16.msra.mxu0 %v3432
      %3466 = vmatpush.bf16.msra.mxu0 %v3431
      %3467 = vmatpush.bf16.msra.mxu0 %v3430
      %3468 = vmatpush.bf16.msra.mxu0 %v3429
      %3469 = vmatpush.bf16.msra.mxu0 %v3428
      %3470 = vmatpush.bf16.msra.mxu0 %v3427
      %3471 = vmatmul.bf16.gmra.mxu0 %v3346
      %v3472 = vpop.f32.mrf.mxu0
      %v3473 = vadd.f32 0.0, %v3472
      %v3474 = vpop.f32.mrf.mxu0
      %v3475 = vadd.f32 0.0, %v3474
      %3476 = vmatmul.bf16.gmra.mxu0 %v3348
      %v3477 = vpop.f32.mrf.mxu0
      %v3478 = vadd.f32 0.0, %v3477
      %v3479 = vpop.f32.mrf.mxu0
      %v3480 = vadd.f32 0.0, %v3479
      %3481 = vmatmul.bf16.gmra.mxu0 %v3350
      %v3482 = vpop.f32.mrf.mxu0
      %v3483 = vadd.f32 0.0, %v3482
      %v3484 = vpop.f32.mrf.mxu0
      %v3485 = vadd.f32 0.0, %v3484
      %3486 = vmatmul.bf16.gmra.mxu0 %v3352
      %v3487 = vpop.f32.mrf.mxu0
      %v3488 = vadd.f32 0.0, %v3487
      %v3489 = vpop.f32.mrf.mxu0
      %v3490 = vadd.f32 0.0, %v3489
      %3491 = vdwg.mxu0
      %3492 = vmatpush.bf16.msra.mxu0 0
      %3493 = vmatpush.bf16.msra.mxu0 0
      %3494 = vmatpush.bf16.msra.mxu0 0
      %3495 = vmatpush.bf16.msra.mxu0 0
      %3496 = vmatpush.bf16.msra.mxu0 %v3438
      %3497 = vmatpush.bf16.msra.mxu0 %v3437
      %3498 = vmatpush.bf16.msra.mxu0 %v3436
      %3499 = vmatpush.bf16.msra.mxu0 %v3435
      %3500 = vmatmul.bf16.gmra.mxu0 %v3452
      %v3501 = vpop.f32.mrf.mxu0
      %v3502 = vadd.f32 %v3473, %v3501
      %v3503 = vpop.f32.mrf.mxu0
      %v3504 = vadd.f32 %v3475, %v3503
      %3505 = vmatmul.bf16.gmra.mxu0 %v3455
      %v3506 = vpop.f32.mrf.mxu0
      %v3507 = vadd.f32 %v3478, %v3506
      %v3508 = vpop.f32.mrf.mxu0
      %v3509 = vadd.f32 %v3480, %v3508
      %3510 = vmatmul.bf16.gmra.mxu0 %v3458
      %v3511 = vpop.f32.mrf.mxu0
      %v3512 = vadd.f32 %v3483, %v3511
      %v3513 = vpop.f32.mrf.mxu0
      %v3514 = vadd.f32 %v3485, %v3513
      %3515 = vmatmul.bf16.gmra.mxu0 %v3461
      %v3516 = vpop.f32.mrf.mxu0
      %v3517 = vadd.f32 %v3488, %v3516
      %v3518 = vpop.f32.mrf.mxu0
      %v3519 = vadd.f32 %v3490, %v3518
      %3520 = vdwg.mxu0
      %v3545 = vunpack.c.l.b16 %v3309
      %v3546 = vunpack.c.l.b16 %v3310
      %v3547 = vunpack.c.l.b16 %v3311
      %v3548 = vunpack.c.l.b16 %v3312
      %v3549 = vunpack.c.l.b16 %v3313
      %v3550 = vunpack.c.l.b16 %v3314
      %v3551 = vunpack.c.l.b16 %v3315
      %v3552 = vunpack.c.l.b16 %v3316
      %v3553 = vunpack.c.l.b16 %v3317
      %v3554 = vunpack.c.l.b16 %v3318
      %v3555 = vunpack.c.l.b16 %v3319
      %v3556 = vunpack.c.l.b16 %v3320
      %v3557 = vunpack.c.l.b16 %v3321
      %v3558 = vunpack.c.l.b16 %v3322
      %v3559 = vunpack.c.l.b16 %v3323
      %v3560 = vunpack.c.l.b16 %v3324
      %v3561 = vunpack.c.l.b16 %v3325
      %v3562 = vunpack.c.l.b16 %v3326
      %v3563 = vunpack.c.l.b16 %v3327
      %v3564 = vunpack.c.l.b16 %v3328
      %v3565 = vunpack.c.l.b16 %v3329
      %v3566 = vunpack.c.l.b16 %v3330
      %v3567 = vunpack.c.l.b16 %v3331
      %v3568 = vunpack.c.l.b16 %v3332
      %v3569 = vpack.c.b16 %v3546, %v3545
      %v3570 = vpack.c.b16 %v3548, %v3547
      %v3571 = vpack.c.b16 %v3550, %v3549
      %v3572 = vpack.c.b16 %v3552, %v3551
      %v3573 = vpack.c.b16 %v3554, %v3553
      %v3574 = vpack.c.b16 %v3556, %v3555
      %v3575 = vpack.c.b16 %v3558, %v3557
      %v3576 = vpack.c.b16 %v3560, %v3559
      %v3577 = vpack.c.b16 %v3562, %v3561
      %v3578 = vpack.c.b16 %v3564, %v3563
      %v3579 = vpack.c.b16 %v3566, %v3565
      %v3580 = vpack.c.b16 %v3568, %v3567
      %v3594 = vsel %vm2553, %v3301, 0
      %v3597 = vsel %vm2553, %v3303, 0
      %v3600 = vsel %vm2553, %v3305, 0
      %v3603 = vsel %vm2553, %v3307, 0
      %3605 = vmatpush.bf16.msra.mxu0 %v3576
      %3606 = vmatpush.bf16.msra.mxu0 %v3575
      %3607 = vmatpush.bf16.msra.mxu0 %v3574
      %3608 = vmatpush.bf16.msra.mxu0 %v3573
      %3609 = vmatpush.bf16.msra.mxu0 %v3572
      %3610 = vmatpush.bf16.msra.mxu0 %v3571
      %3611 = vmatpush.bf16.msra.mxu0 %v3570
      %3612 = vmatpush.bf16.msra.mxu0 %v3569
      %3613 = vmatmul.bf16.gmra.mxu0 %v3300
      %v3614 = vpop.f32.mrf.mxu0
      %v3615 = vadd.f32 %v3502, %v3614
      %v3616 = vpop.f32.mrf.mxu0
      %v3617 = vadd.f32 %v3504, %v3616
      %3618 = vmatmul.bf16.gmra.mxu0 %v3302
      %v3619 = vpop.f32.mrf.mxu0
      %v3620 = vadd.f32 %v3507, %v3619
      %v3621 = vpop.f32.mrf.mxu0
      %v3622 = vadd.f32 %v3509, %v3621
      %3623 = vmatmul.bf16.gmra.mxu0 %v3304
      %v3624 = vpop.f32.mrf.mxu0
      %v3625 = vadd.f32 %v3512, %v3624
      %v3626 = vpop.f32.mrf.mxu0
      %v3627 = vadd.f32 %v3514, %v3626
      %3628 = vmatmul.bf16.gmra.mxu0 %v3306
      %v3629 = vpop.f32.mrf.mxu0
      %v3630 = vadd.f32 %v3517, %v3629
      %v3631 = vpop.f32.mrf.mxu0
      %v3632 = vadd.f32 %v3519, %v3631
      %3633 = vdwg.mxu0
      %3634 = vmatpush.bf16.msra.mxu0 0
      %3635 = vmatpush.bf16.msra.mxu0 0
      %3636 = vmatpush.bf16.msra.mxu0 0
      %3637 = vmatpush.bf16.msra.mxu0 0
      %3638 = vmatpush.bf16.msra.mxu0 %v3580
      %3639 = vmatpush.bf16.msra.mxu0 %v3579
      %3640 = vmatpush.bf16.msra.mxu0 %v3578
      %3641 = vmatpush.bf16.msra.mxu0 %v3577
      %3642 = vmatmul.bf16.gmra.mxu0 %v3594
      %v3643 = vpop.f32.mrf.mxu0
      %v3644 = vadd.f32 %v3615, %v3643
      %v3645 = vpop.f32.mrf.mxu0
      %v3646 = vadd.f32 %v3617, %v3645
      %3647 = vmatmul.bf16.gmra.mxu0 %v3597
      %v3648 = vpop.f32.mrf.mxu0
      %v3649 = vadd.f32 %v3620, %v3648
      %v3650 = vpop.f32.mrf.mxu0
      %v3651 = vadd.f32 %v3622, %v3650
      %3652 = vmatmul.bf16.gmra.mxu0 %v3600
      %v3653 = vpop.f32.mrf.mxu0
      %v3654 = vadd.f32 %v3625, %v3653
      %v3655 = vpop.f32.mrf.mxu0
      %v3656 = vadd.f32 %v3627, %v3655
      %3657 = vmatmul.bf16.gmra.mxu0 %v3603
      %v3658 = vpop.f32.mrf.mxu0
      %v3659 = vadd.f32 %v3630, %v3658
      %v3660 = vpop.f32.mrf.mxu0
      %v3661 = vadd.f32 %v3632, %v3660
      %3662 = vdwg.mxu0
      %v3663 = vpack.c.bf16 %v2554, %v3345
      %v3664 = vpack.c.bf16 %v2523, %v3343
      %s3665 = scalar_lea.vmem %s1044, 480
      %v3666 = vld [vmem:[%s3665] sm:$0xf]
      %v3667 = vld [vmem:[%s3665 + $0x4] sm:$0xf]
      %v3668 = vld [vmem:[%s3665 + $0x8] sm:$0xf]
      %v3669 = vld [vmem:[%s3665 + $0xc] sm:$0xf]
      %v3670 = vld [vmem:[%s3665 + $0x10] sm:$0xf]
      %v3671 = vld [vmem:[%s3665 + $0x14] sm:$0xf]
      %v3672 = vld [vmem:[%s3665 + $0x18] sm:$0xf]
      %v3673 = vld [vmem:[%s3665 + $0x1c] sm:$0xf]
      %v3674 = vld [vmem:[%s3665 + $0x20] sm:$0xf]
      %v3675 = vld [vmem:[%s3665 + $0x24] sm:$0xf]
      %v3676 = vld [vmem:[%s3665 + $0x28] sm:$0xf]
      %v3677 = vld [vmem:[%s3665 + $0x2c] sm:$0xf]
      %v3678 = vld [vmem:[%s3665 + $0x30] sm:$0xf]
      %v3679 = vld [vmem:[%s3665 + $0x34] sm:$0xf]
      %v3680 = vld [vmem:[%s3665 + $0x38] sm:$0xf]
      %v3681 = vld [vmem:[%s3665 + $0x3c] sm:$0xf]
      %v3682 = vld [vmem:[%s3665 + $0x40] sm:$0xf]
      %v3683 = vld [vmem:[%s3665 + $0x44] sm:$0xf]
      %v3684 = vld [vmem:[%s3665 + $0x48] sm:$0xf]
      %v3685 = vld [vmem:[%s3665 + $0x4c] sm:$0xf]
      %v3686 = vld [vmem:[%s3665 + $0x50] sm:$0xf]
      %v3687 = vld [vmem:[%s3665 + $0x54] sm:$0xf]
      %v3688 = vld [vmem:[%s3665 + $0x58] sm:$0xf]
      %v3689 = vld [vmem:[%s3665 + $0x5c] sm:$0xf]
      %v3714 = vunpack.c.l.b16 %v3666
      %v3715 = vunpack.c.l.b16 %v3667
      %v3716 = vunpack.c.l.b16 %v3668
      %v3717 = vunpack.c.l.b16 %v3669
      %v3718 = vunpack.c.l.b16 %v3670
      %v3719 = vunpack.c.l.b16 %v3671
      %v3720 = vunpack.c.l.b16 %v3672
      %v3721 = vunpack.c.l.b16 %v3673
      %v3722 = vunpack.c.l.b16 %v3674
      %v3723 = vunpack.c.l.b16 %v3675
      %v3724 = vunpack.c.l.b16 %v3676
      %v3725 = vunpack.c.l.b16 %v3677
      %v3726 = vunpack.c.l.b16 %v3678
      %v3727 = vunpack.c.l.b16 %v3679
      %v3728 = vunpack.c.l.b16 %v3680
      %v3729 = vunpack.c.l.b16 %v3681
      %v3730 = vunpack.c.l.b16 %v3682
      %v3731 = vunpack.c.l.b16 %v3683
      %v3732 = vunpack.c.l.b16 %v3684
      %v3733 = vunpack.c.l.b16 %v3685
      %v3734 = vunpack.c.l.b16 %v3686
      %v3735 = vunpack.c.l.b16 %v3687
      %v3736 = vunpack.c.l.b16 %v3688
      %v3737 = vunpack.c.l.b16 %v3689
      %v3738 = vpack.c.b16 %v3715, %v3714
      %v3739 = vpack.c.b16 %v3717, %v3716
      %v3740 = vpack.c.b16 %v3719, %v3718
      %v3741 = vpack.c.b16 %v3721, %v3720
      %v3742 = vpack.c.b16 %v3723, %v3722
      %v3743 = vpack.c.b16 %v3725, %v3724
      %v3744 = vpack.c.b16 %v3727, %v3726
      %v3745 = vpack.c.b16 %v3729, %v3728
      %v3746 = vpack.c.b16 %v3731, %v3730
      %v3747 = vpack.c.b16 %v3733, %v3732
      %v3748 = vpack.c.b16 %v3735, %v3734
      %v3749 = vpack.c.b16 %v3737, %v3736
      %v3763 = vsel %vm2553, %v3664, 0
      %3765 = vmatpush.bf16.msra.mxu0 %v3745
      %3766 = vmatpush.bf16.msra.mxu0 %v3744
      %3767 = vmatpush.bf16.msra.mxu0 %v3743
      %3768 = vmatpush.bf16.msra.mxu0 %v3742
      %3769 = vmatpush.bf16.msra.mxu0 %v3741
      %3770 = vmatpush.bf16.msra.mxu0 %v3740
      %3771 = vmatpush.bf16.msra.mxu0 %v3739
      %3772 = vmatpush.bf16.msra.mxu0 %v3738
      %3773 = vmatmul.bf16.gmra.mxu0 %v3302
      %v3774 = vpop.f32.mrf.mxu0
      %v3775 = vadd.f32 0.0, %v3774
      %v3776 = vpop.f32.mrf.mxu0
      %v3777 = vadd.f32 0.0, %v3776
      %3778 = vmatmul.bf16.gmra.mxu0 %v3304
      %v3779 = vpop.f32.mrf.mxu0
      %v3780 = vadd.f32 0.0, %v3779
      %v3781 = vpop.f32.mrf.mxu0
      %v3782 = vadd.f32 0.0, %v3781
      %3783 = vmatmul.bf16.gmra.mxu0 %v3306
      %v3784 = vpop.f32.mrf.mxu0
      %v3785 = vadd.f32 0.0, %v3784
      %v3786 = vpop.f32.mrf.mxu0
      %v3787 = vadd.f32 0.0, %v3786
      %3788 = vmatmul.bf16.gmra.mxu0 %v3663
      %v3789 = vpop.f32.mrf.mxu0
      %v3790 = vadd.f32 0.0, %v3789
      %v3791 = vpop.f32.mrf.mxu0
      %v3792 = vadd.f32 0.0, %v3791
      %3793 = vdwg.mxu0
      %3794 = vmatpush.bf16.msra.mxu0 0
      %3795 = vmatpush.bf16.msra.mxu0 0
      %3796 = vmatpush.bf16.msra.mxu0 0
      %3797 = vmatpush.bf16.msra.mxu0 0
      %3798 = vmatpush.bf16.msra.mxu0 %v3749
      %3799 = vmatpush.bf16.msra.mxu0 %v3748
      %3800 = vmatpush.bf16.msra.mxu0 %v3747
      %3801 = vmatpush.bf16.msra.mxu0 %v3746
      %3802 = vmatmul.bf16.gmra.mxu0 %v3597
      %v3803 = vpop.f32.mrf.mxu0
      %v3804 = vadd.f32 %v3775, %v3803
      %v3805 = vpop.f32.mrf.mxu0
      %v3806 = vadd.f32 %v3777, %v3805
      %3807 = vmatmul.bf16.gmra.mxu0 %v3600
      %v3808 = vpop.f32.mrf.mxu0
      %v3809 = vadd.f32 %v3780, %v3808
      %v3810 = vpop.f32.mrf.mxu0
      %v3811 = vadd.f32 %v3782, %v3810
      %3812 = vmatmul.bf16.gmra.mxu0 %v3603
      %v3813 = vpop.f32.mrf.mxu0
      %v3814 = vadd.f32 %v3785, %v3813
      %v3815 = vpop.f32.mrf.mxu0
      %v3816 = vadd.f32 %v3787, %v3815
      %3817 = vmatmul.bf16.gmra.mxu0 %v3763
      %v3818 = vpop.f32.mrf.mxu0
      %v3819 = vadd.f32 %v3790, %v3818
      %v3820 = vpop.f32.mrf.mxu0
      %v3821 = vadd.f32 %v3792, %v3820
      %3822 = vdwg.mxu0
      %v3823 = vadd.f32 %v3644, %v3804
      %v3824 = vadd.f32 %v3646, %v3806
      %v3825 = vadd.f32 %v3649, %v3809
      %v3826 = vadd.f32 %v3651, %v3811
      %v3827 = vadd.f32 %v3654, %v3814
      %v3828 = vadd.f32 %v3656, %v3816
      %v3829 = vadd.f32 %v3659, %v3819
      %v3830 = vadd.f32 %v3661, %v3821
      %v3832 = vperm.slane %v3168, 0
      %v3834 = vadd.f32 %v3823, %v3832
      %v3835 = vadd.f32 %v3824, %v3832
      %v3836 = vadd.f32 %v3825, %v3832
      %v3837 = vadd.f32 %v3826, %v3832
      %v3838 = vadd.f32 %v3827, %v3832
      %v3839 = vadd.f32 %v3828, %v3832
      %v3840 = vadd.f32 %v3829, %v3832
      %v3841 = vadd.f32 %v3830, %v3832
      %v3842 = vadd.f32 %v2082, %v3834
      %v3843 = vadd.f32 %v2083, %v3835
      %v3844 = vadd.f32 %v2084, %v3836
      %v3845 = vadd.f32 %v2085, %v3837
      %v3846 = vadd.f32 %v2086, %v3838
      %v3847 = vadd.f32 %v2087, %v3839
      %v3848 = vadd.f32 %v2088, %v3840
      %v3849 = vadd.f32 %v2089, %v3841
      %3850 = vst.msk [vmem:[#allocation3] sm:$0xff] %vm2553, %v3842
      %3851 = vst.msk [vmem:[#allocation3 + $0x8] sm:$0xff] %vm2553, %v3843
      %3852 = vst.msk [vmem:[#allocation3 + $0x10] sm:$0xff] %vm2553, %v3844
      %3853 = vst.msk [vmem:[#allocation3 + $0x18] sm:$0xff] %vm2553, %v3845
      %3854 = vst.msk [vmem:[#allocation3 + $0x20] sm:$0xff] %vm2553, %v3846
      %3855 = vst.msk [vmem:[#allocation3 + $0x28] sm:$0xff] %vm2553, %v3847
      %3856 = vst.msk [vmem:[#allocation3 + $0x30] sm:$0xff] %vm2553, %v3848
      %3857 = vst.msk [vmem:[#allocation3 + $0x38] sm:$0xff] %vm2553, %v3849
      %p3858 = scmp.eq.s32.totalorder %s77, 15
      // Predicated region
      $region145: #{sft_net_forward.1} parent=139 // pred_check
        %p3859 = pneg %p3858
      $region146: #{sft_net_forward.1} parent=139 // pred_check_branch
        %3861 = sbr.rel (%p3859) target = $region148
      $region147: #{sft_net_forward.1} parent=139 // pred_region
        %v3862 = vld [vmem:[#allocation3] sm:$0xff]
        %v3863 = vld [vmem:[#allocation3 + $0x8] sm:$0xff]
        %v3864 = vld [vmem:[#allocation3 + $0x10] sm:$0xff]
        %v3865 = vld [vmem:[#allocation3 + $0x18] sm:$0xff]
        %v3866 = vld [vmem:[#allocation3 + $0x20] sm:$0xff]
        %v3867 = vld [vmem:[#allocation3 + $0x28] sm:$0xff]
        %v3868 = vld [vmem:[#allocation3 + $0x30] sm:$0xff]
        %v3869 = vld [vmem:[#allocation3 + $0x38] sm:$0xff]
        %v3870 = vld [vmem:[#allocation2] sm:$0xf]
        %v3871 = vld [vmem:[#allocation2 + $0x4] sm:$0xf]
        %v3872 = vld [vmem:[#allocation2 + $0x8] sm:$0xf]
        %v3873 = vld [vmem:[#allocation2 + $0xc] sm:$0xf]
        %v3874 = vld [vmem:[#allocation2 + $0x10] sm:$0xf]
        %v3875 = vld [vmem:[#allocation2 + $0x14] sm:$0xf]
        %v3876 = vld [vmem:[#allocation2 + $0x18] sm:$0xf]
        %v3877 = vld [vmem:[#allocation2 + $0x1c] sm:$0xf]
        %v3878 = vld [vmem:[%s33] sm:$0xf]
        %v3879 = vld [vmem:[%s33 + $0x4] sm:$0xf]
        %v3880 = vld [vmem:[%s33 + $0x8] sm:$0xf]
        %v3881 = vld [vmem:[%s33 + $0xc] sm:$0xf]
        %v3882 = vld [vmem:[%s35] sm:$0x1]
        %v3884 = vperm.slane %v3882, 0
        %v3894 = vunpack.c.l.b16 %v3870
        %v3895 = vunpack.c.l.b16 %v3871
        %v3896 = vunpack.c.l.b16 %v3872
        %v3897 = vunpack.c.l.b16 %v3873
        %v3898 = vunpack.c.l.b16 %v3874
        %v3899 = vunpack.c.l.b16 %v3875
        %v3900 = vunpack.c.l.b16 %v3876
        %v3901 = vunpack.c.l.b16 %v3877
        %v3902 = vpack.c.b16 %v3895, %v3894
        %v3903 = vpack.c.b16 %v3897, %v3896
        %v3904 = vpack.c.b16 %v3899, %v3898
        %v3905 = vpack.c.b16 %v3901, %v3900
        %v3910 = vunpack.c.l.b16 %v3878
        %v3911 = vunpack.c.l.b16 %v3879
        %v3912 = vunpack.c.l.b16 %v3880
        %v3913 = vunpack.c.l.b16 %v3881
        %v3914 = vpack.c.b16 %v3911, %v3910
        %v3915 = vpack.c.b16 %v3913, %v3912
        %v3919 = vsel %vm2130, %v3902, 0
        %v3922 = vsel %vm2130, %v3903, 0
        %v3925 = vsel %vm2130, %v3904, 0
        %v3928 = vsel %vm2130, %v3905, 0
        %3930 = vmatpush.bf16.msra.mxu0 0
        %3931 = vmatpush.bf16.msra.mxu0 0
        %3932 = vmatpush.bf16.msra.mxu0 0
        %3933 = vmatpush.bf16.msra.mxu0 0
        %3934 = vmatpush.bf16.msra.mxu0 0
        %3935 = vmatpush.bf16.msra.mxu0 0
        %3936 = vmatpush.bf16.msra.mxu0 %v3915
        %3937 = vmatpush.bf16.msra.mxu0 %v3914
        %3938 = vmatmul.bf16.gmra.mxu0 %v3919
        %v3939 = vpop.f32.mrf.mxu0
        %v3940 = vadd.f32 %v3884, %v3939
        %v3941 = vpop.f32.mrf.mxu0
        %v3942 = vadd.f32 %v3884, %v3941
        %3943 = vmatmul.bf16.gmra.mxu0 %v3922
        %v3944 = vpop.f32.mrf.mxu0
        %v3945 = vadd.f32 %v3884, %v3944
        %v3946 = vpop.f32.mrf.mxu0
        %v3947 = vadd.f32 %v3884, %v3946
        %3948 = vmatmul.bf16.gmra.mxu0 %v3925
        %v3949 = vpop.f32.mrf.mxu0
        %v3950 = vadd.f32 %v3884, %v3949
        %v3951 = vpop.f32.mrf.mxu0
        %v3952 = vadd.f32 %v3884, %v3951
        %3953 = vmatmul.bf16.gmra.mxu0 %v3928
        %v3954 = vpop.f32.mrf.mxu0
        %v3955 = vadd.f32 %v3884, %v3954
        %v3956 = vpop.f32.mrf.mxu0
        %v3957 = vadd.f32 %v3884, %v3956
        %3958 = vdwg.mxu0
        %vm3959 = vcmp.ge.f32.partialorder %v3940, 0.0
        %vm3960 = vcmp.ge.f32.partialorder %v3942, 0.0
        %vm3961 = vcmp.ge.f32.partialorder %v3945, 0.0
        %vm3962 = vcmp.ge.f32.partialorder %v3947, 0.0
        %vm3963 = vcmp.ge.f32.partialorder %v3950, 0.0
        %vm3964 = vcmp.ge.f32.partialorder %v3952, 0.0
        %vm3965 = vcmp.ge.f32.partialorder %v3955, 0.0
        %vm3966 = vcmp.ge.f32.partialorder %v3957, 0.0
        %v3967 = vmul.f32 %v3940, 0.1
        %v3968 = vmul.f32 %v3942, 0.1
        %v3969 = vmul.f32 %v3945, 0.1
        %v3970 = vmul.f32 %v3947, 0.1
        %v3971 = vmul.f32 %v3950, 0.1
        %v3972 = vmul.f32 %v3952, 0.1
        %v3973 = vmul.f32 %v3955, 0.1
        %v3974 = vmul.f32 %v3957, 0.1
        %v3975 = vsel %vm3959, %v3940, %v3967
        %v3976 = vsel %vm3960, %v3942, %v3968
        %v3977 = vsel %vm3961, %v3945, %v3969
        %v3978 = vsel %vm3962, %v3947, %v3970
        %v3979 = vsel %vm3963, %v3950, %v3971
        %v3980 = vsel %vm3964, %v3952, %v3972
        %v3981 = vsel %vm3965, %v3955, %v3973
        %v3982 = vsel %vm3966, %v3957, %v3974
        %v3983 = vpack.c.bf16 %v3976, %v3975
        %v3984 = vpack.c.bf16 %v3978, %v3977
        %v3985 = vpack.c.bf16 %v3980, %v3979
        %v3986 = vpack.c.bf16 %v3982, %v3981
        %v3987 = vld [vmem:[%s37] sm:$0xf]
        %v3988 = vld [vmem:[%s37 + $0x4] sm:$0xf]
        %v3989 = vld [vmem:[%s37 + $0x8] sm:$0xf]
        %v3990 = vld [vmem:[%s37 + $0xc] sm:$0xf]
        %v3991 = vld [vmem:[%s37 + $0x10] sm:$0xf]
        %v3992 = vld [vmem:[%s37 + $0x14] sm:$0xf]
        %v3993 = vld [vmem:[%s37 + $0x18] sm:$0xf]
        %v3994 = vld [vmem:[%s37 + $0x1c] sm:$0xf]
        %v3995 = vld [vmem:[%s39] sm:$0x1]
        %v3997 = vperm.slane %v3995, 0
        %v4007 = vunpack.c.l.b16 %v3987
        %v4008 = vunpack.c.l.b16 %v3988
        %v4009 = vunpack.c.l.b16 %v3989
        %v4010 = vunpack.c.l.b16 %v3990
        %v4011 = vunpack.c.l.b16 %v3991
        %v4012 = vunpack.c.l.b16 %v3992
        %v4013 = vunpack.c.l.b16 %v3993
        %v4014 = vunpack.c.l.b16 %v3994
        %v4015 = vpack.c.b16 %v4008, %v4007
        %v4016 = vpack.c.b16 %v4010, %v4009
        %v4017 = vpack.c.b16 %v4012, %v4011
        %v4018 = vpack.c.b16 %v4014, %v4013
        %v4024 = vsel %vm2553, %v3983, 0
        %v4027 = vsel %vm2553, %v3984, 0
        %v4030 = vsel %vm2553, %v3985, 0
        %v4033 = vsel %vm2553, %v3986, 0
        %4035 = vmatpush.bf16.msra.mxu0 0
        %4036 = vmatpush.bf16.msra.mxu0 0
        %4037 = vmatpush.bf16.msra.mxu0 0
        %4038 = vmatpush.bf16.msra.mxu0 0
        %4039 = vmatpush.bf16.msra.mxu0 %v4018
        %4040 = vmatpush.bf16.msra.mxu0 %v4017
        %4041 = vmatpush.bf16.msra.mxu0 %v4016
        %4042 = vmatpush.bf16.msra.mxu0 %v4015
        %4043 = vmatmul.bf16.gmra.mxu0 %v4024
        %v4044 = vpop.f32.mrf.mxu0
        %v4045 = vadd.f32 %v3997, %v4044
        %v4046 = vpop.f32.mrf.mxu0
        %v4047 = vadd.f32 %v3997, %v4046
        %4048 = vmatmul.bf16.gmra.mxu0 %v4027
        %v4049 = vpop.f32.mrf.mxu0
        %v4050 = vadd.f32 %v3997, %v4049
        %v4051 = vpop.f32.mrf.mxu0
        %v4052 = vadd.f32 %v3997, %v4051
        %4053 = vmatmul.bf16.gmra.mxu0 %v4030
        %v4054 = vpop.f32.mrf.mxu0
        %v4055 = vadd.f32 %v3997, %v4054
        %v4056 = vpop.f32.mrf.mxu0
        %v4057 = vadd.f32 %v3997, %v4056
        %4058 = vmatmul.bf16.gmra.mxu0 %v4033
        %v4059 = vpop.f32.mrf.mxu0
        %v4060 = vadd.f32 %v3997, %v4059
        %v4061 = vpop.f32.mrf.mxu0
        %v4062 = vadd.f32 %v3997, %v4061
        %4063 = vdwg.mxu0
        %v4064 = vadd.f32 %v4045, 1.0
        %v4065 = vadd.f32 %v4047, 1.0
        %v4066 = vadd.f32 %v4050, 1.0
        %v4067 = vadd.f32 %v4052, 1.0
        %v4068 = vadd.f32 %v4055, 1.0
        %v4069 = vadd.f32 %v4057, 1.0
        %v4070 = vadd.f32 %v4060, 1.0
        %v4071 = vadd.f32 %v4062, 1.0
        %v4072 = vmul.f32 %v3862, %v4064
        %v4073 = vmul.f32 %v3863, %v4065
        %v4074 = vmul.f32 %v3864, %v4066
        %v4075 = vmul.f32 %v3865, %v4067
        %v4076 = vmul.f32 %v3866, %v4068
        %v4077 = vmul.f32 %v3867, %v4069
        %v4078 = vmul.f32 %v3868, %v4070
        %v4079 = vmul.f32 %v3869, %v4071
        %4088 = vrot.lane.b32.xlu0 %v4045, 64
        %v4089 = vpop.permute.xlu0 %4088
        %4090 = vrot.lane.b32.xlu0 %v4047, 64
        %v4091 = vpop.permute.xlu0 %4090
        %4092 = vrot.lane.b32.xlu0 %v4050, 64
        %v4093 = vpop.permute.xlu0 %4092
        %4094 = vrot.lane.b32.xlu0 %v4052, 64
        %v4095 = vpop.permute.xlu0 %4094
        %4096 = vrot.lane.b32.xlu0 %v4055, 64
        %v4097 = vpop.permute.xlu0 %4096
        %4098 = vrot.lane.b32.xlu0 %v4057, 64
        %v4099 = vpop.permute.xlu0 %4098
        %4100 = vrot.lane.b32.xlu0 %v4060, 64
        %v4101 = vpop.permute.xlu0 %4100
        %4102 = vrot.lane.b32.xlu0 %v4062, 64
        %v4103 = vpop.permute.xlu0 %4102
        %v4112 = vadd.f32 %v4072, %v4089
        %v4113 = vadd.f32 %v4073, %v4091
        %v4114 = vadd.f32 %v4074, %v4093
        %v4115 = vadd.f32 %v4075, %v4095
        %v4116 = vadd.f32 %v4076, %v4097
        %v4117 = vadd.f32 %v4077, %v4099
        %v4118 = vadd.f32 %v4078, %v4101
        %v4119 = vadd.f32 %v4079, %v4103
        %v4120 = vld [vmem:[%s43] sm:$0x1]
        %v4129 = vrot.slane %v4112, 7
        %v4130 = vrot.slane %v4113, 7
        %v4131 = vrot.slane %v4114, 7
        %v4132 = vrot.slane %v4115, 7
        %v4133 = vrot.slane %v4116, 7
        %v4134 = vrot.slane %v4117, 7
        %v4135 = vrot.slane %v4118, 7
        %v4136 = vrot.slane %v4119, 7
        %v4145 = vsel %vm2441, 0.0, %v4129
        %v4146 = vsel %vm2441, 0.0, %v4130
        %v4147 = vsel %vm2441, 0.0, %v4131
        %v4148 = vsel %vm2441, 0.0, %v4132
        %v4149 = vsel %vm2441, 0.0, %v4133
        %v4150 = vsel %vm2441, 0.0, %v4134
        %v4151 = vsel %vm2441, 0.0, %v4135
        %v4152 = vsel %vm2441, 0.0, %v4136
        %v4153 = vsel %vm2441, %v4129, 0.0
        %v4154 = vsel %vm2441, %v4130, 0.0
        %v4155 = vsel %vm2441, %v4131, 0.0
        %v4156 = vsel %vm2441, %v4132, 0.0
        %v4157 = vsel %vm2441, %v4133, 0.0
        %v4158 = vsel %vm2441, %v4134, 0.0
        %v4159 = vsel %vm2441, %v4135, 0.0
        %v4160 = vsel %vm2441, %v4136, 0.0
        %v4175 = vrot.slane %v4145, 1
        %v4176 = vrot.slane %v4153, 1
        %v4177 = vsel %vm2473, %v4175, %v4176
        %v4178 = vrot.slane %v4146, 1
        %v4179 = vrot.slane %v4154, 1
        %v4180 = vsel %vm2473, %v4178, %v4179
        %v4181 = vrot.slane %v4147, 1
        %v4182 = vrot.slane %v4155, 1
        %v4183 = vsel %vm2473, %v4181, %v4182
        %v4184 = vrot.slane %v4148, 1
        %v4185 = vrot.slane %v4156, 1
        %v4186 = vsel %vm2473, %v4184, %v4185
        %v4187 = vrot.slane %v4149, 1
        %v4188 = vrot.slane %v4157, 1
        %v4189 = vsel %vm2473, %v4187, %v4188
        %v4190 = vrot.slane %v4150, 1
        %v4191 = vrot.slane %v4158, 1
        %v4192 = vsel %vm2473, %v4190, %v4191
        %v4193 = vrot.slane %v4151, 1
        %v4194 = vrot.slane %v4159, 1
        %v4195 = vsel %vm2473, %v4193, %v4194
        %4196 = vrot.lane.b32.xlu0 %v4177, 64
        %v4197 = vpop.permute.xlu0 %4196
        %4198 = vrot.lane.b32.xlu0 %v4180, 64
        %v4199 = vpop.permute.xlu0 %4198
        %4200 = vrot.lane.b32.xlu0 %v4183, 64
        %v4201 = vpop.permute.xlu0 %4200
        %4202 = vrot.lane.b32.xlu0 %v4186, 64
        %v4203 = vpop.permute.xlu0 %4202
        %4204 = vrot.lane.b32.xlu0 %v4189, 64
        %v4205 = vpop.permute.xlu0 %4204
        %4206 = vrot.lane.b32.xlu0 %v4192, 64
        %v4207 = vpop.permute.xlu0 %4206
        %4208 = vrot.lane.b32.xlu0 %v4195, 64
        %v4209 = vpop.permute.xlu0 %4208
        %v4217 = vrot.slane %v4145, 2
        %v4218 = vrot.slane %v4153, 2
        %v4219 = vsel %vm2521, %v4217, %v4218
        %v4220 = vrot.slane %v4146, 2
        %v4221 = vrot.slane %v4154, 2
        %v4222 = vsel %vm2521, %v4220, %v4221
        %v4223 = vrot.slane %v4147, 2
        %v4224 = vrot.slane %v4155, 2
        %v4225 = vsel %vm2521, %v4223, %v4224
        %v4226 = vrot.slane %v4148, 2
        %v4227 = vrot.slane %v4156, 2
        %v4228 = vsel %vm2521, %v4226, %v4227
        %v4229 = vrot.slane %v4149, 2
        %v4230 = vrot.slane %v4157, 2
        %v4231 = vsel %vm2521, %v4229, %v4230
        %v4232 = vrot.slane %v4150, 2
        %v4233 = vrot.slane %v4158, 2
        %v4234 = vsel %vm2521, %v4232, %v4233
        %v4235 = vrot.slane %v4151, 2
        %v4236 = vrot.slane %v4159, 2
        %v4237 = vsel %vm2521, %v4235, %v4236
        %v4245 = vsel %vm2553, %v4145, %v4197
        %v4246 = vsel %vm2553, %v4146, %v4199
        %v4247 = vsel %vm2553, %v4147, %v4201
        %v4248 = vsel %vm2553, %v4148, %v4203
        %v4249 = vsel %vm2553, %v4149, %v4205
        %v4250 = vsel %vm2553, %v4150, %v4207
        %v4251 = vsel %vm2553, %v4151, %v4209
        %v4252 = vpack.c.bf16 %v4245, %v2554
        %v4253 = vpack.c.bf16 %v4219, %v2523
        %v4254 = vpack.c.bf16 %v4247, %v4246
        %v4255 = vpack.c.bf16 %v4225, %v4222
        %v4256 = vpack.c.bf16 %v4249, %v4248
        %v4257 = vpack.c.bf16 %v4231, %v4228
        %v4258 = vpack.c.bf16 %v4251, %v4250
        %v4259 = vpack.c.bf16 %v4237, %v4234
        %v4260 = vld [vmem:[%s41] sm:$0xf]
        %v4261 = vld [vmem:[%s41 + $0x4] sm:$0xf]
        %v4262 = vld [vmem:[%s41 + $0x8] sm:$0xf]
        %v4263 = vld [vmem:[%s41 + $0xc] sm:$0xf]
        %v4264 = vld [vmem:[%s41 + $0x10] sm:$0xf]
        %v4265 = vld [vmem:[%s41 + $0x14] sm:$0xf]
        %v4266 = vld [vmem:[%s41 + $0x18] sm:$0xf]
        %v4267 = vld [vmem:[%s41 + $0x1c] sm:$0xf]
        %v4268 = vld [vmem:[%s41 + $0x20] sm:$0xf]
        %v4269 = vld [vmem:[%s41 + $0x24] sm:$0xf]
        %v4270 = vld [vmem:[%s41 + $0x28] sm:$0xf]
        %v4271 = vld [vmem:[%s41 + $0x2c] sm:$0xf]
        %v4272 = vld [vmem:[%s41 + $0x30] sm:$0xf]
        %v4273 = vld [vmem:[%s41 + $0x34] sm:$0xf]
        %v4274 = vld [vmem:[%s41 + $0x38] sm:$0xf]
        %v4275 = vld [vmem:[%s41 + $0x3c] sm:$0xf]
        %v4276 = vld [vmem:[%s41 + $0x40] sm:$0xf]
        %v4277 = vld [vmem:[%s41 + $0x44] sm:$0xf]
        %v4278 = vld [vmem:[%s41 + $0x48] sm:$0xf]
        %v4279 = vld [vmem:[%s41 + $0x4c] sm:$0xf]
        %v4280 = vld [vmem:[%s41 + $0x50] sm:$0xf]
        %v4281 = vld [vmem:[%s41 + $0x54] sm:$0xf]
        %v4282 = vld [vmem:[%s41 + $0x58] sm:$0xf]
        %v4283 = vld [vmem:[%s41 + $0x5c] sm:$0xf]
        %v4286 = vrot.slane %v4152, 1
        %v4287 = vrot.slane %v4160, 1
        %v4288 = vsel %vm2473, %v4286, %v4287
        %4289 = vrot.lane.b32.xlu0 %v4288, 64
        %v4290 = vpop.permute.xlu0 %4289
        %v4292 = vrot.slane %v4152, 2
        %v4293 = vrot.slane %v4160, 2
        %v4294 = vsel %vm2521, %v4292, %v4293
        %v4296 = vsel %vm2553, %v4152, %v4290
        %v4297 = vpack.c.bf16 %v4246, %v4245
        %v4298 = vpack.c.bf16 %v4222, %v4219
        %v4299 = vpack.c.bf16 %v4248, %v4247
        %v4300 = vpack.c.bf16 %v4228, %v4225
        %v4301 = vpack.c.bf16 %v4250, %v4249
        %v4302 = vpack.c.bf16 %v4234, %v4231
        %v4303 = vpack.c.bf16 %v4296, %v4251
        %v4304 = vpack.c.bf16 %v4294, %v4237
        %s4305 = scalar_lea.vmem %s41, 96
        %v4306 = vld [vmem:[%s4305] sm:$0xf]
        %v4307 = vld [vmem:[%s4305 + $0x4] sm:$0xf]
        %v4308 = vld [vmem:[%s4305 + $0x8] sm:$0xf]
        %v4309 = vld [vmem:[%s4305 + $0xc] sm:$0xf]
        %v4310 = vld [vmem:[%s4305 + $0x10] sm:$0xf]
        %v4311 = vld [vmem:[%s4305 + $0x14] sm:$0xf]
        %v4312 = vld [vmem:[%s4305 + $0x18] sm:$0xf]
        %v4313 = vld [vmem:[%s4305 + $0x1c] sm:$0xf]
        %v4314 = vld [vmem:[%s4305 + $0x20] sm:$0xf]
        %v4315 = vld [vmem:[%s4305 + $0x24] sm:$0xf]
        %v4316 = vld [vmem:[%s4305 + $0x28] sm:$0xf]
        %v4317 = vld [vmem:[%s4305 + $0x2c] sm:$0xf]
        %v4318 = vld [vmem:[%s4305 + $0x30] sm:$0xf]
        %v4319 = vld [vmem:[%s4305 + $0x34] sm:$0xf]
        %v4320 = vld [vmem:[%s4305 + $0x38] sm:$0xf]
        %v4321 = vld [vmem:[%s4305 + $0x3c] sm:$0xf]
        %v4322 = vld [vmem:[%s4305 + $0x40] sm:$0xf]
        %v4323 = vld [vmem:[%s4305 + $0x44] sm:$0xf]
        %v4324 = vld [vmem:[%s4305 + $0x48] sm:$0xf]
        %v4325 = vld [vmem:[%s4305 + $0x4c] sm:$0xf]
        %v4326 = vld [vmem:[%s4305 + $0x50] sm:$0xf]
        %v4327 = vld [vmem:[%s4305 + $0x54] sm:$0xf]
        %v4328 = vld [vmem:[%s4305 + $0x58] sm:$0xf]
        %v4329 = vld [vmem:[%s4305 + $0x5c] sm:$0xf]
        %v4354 = vunpack.c.l.b16 %v4306
        %v4355 = vunpack.c.l.b16 %v4307
        %v4356 = vunpack.c.l.b16 %v4308
        %v4357 = vunpack.c.l.b16 %v4309
        %v4358 = vunpack.c.l.b16 %v4310
        %v4359 = vunpack.c.l.b16 %v4311
        %v4360 = vunpack.c.l.b16 %v4312
        %v4361 = vunpack.c.l.b16 %v4313
        %v4362 = vunpack.c.l.b16 %v4314
        %v4363 = vunpack.c.l.b16 %v4315
        %v4364 = vunpack.c.l.b16 %v4316
        %v4365 = vunpack.c.l.b16 %v4317
        %v4366 = vunpack.c.l.b16 %v4318
        %v4367 = vunpack.c.l.b16 %v4319
        %v4368 = vunpack.c.l.b16 %v4320
        %v4369 = vunpack.c.l.b16 %v4321
        %v4370 = vunpack.c.l.b16 %v4322
        %v4371 = vunpack.c.l.b16 %v4323
        %v4372 = vunpack.c.l.b16 %v4324
        %v4373 = vunpack.c.l.b16 %v4325
        %v4374 = vunpack.c.l.b16 %v4326
        %v4375 = vunpack.c.l.b16 %v4327
        %v4376 = vunpack.c.l.b16 %v4328
        %v4377 = vunpack.c.l.b16 %v4329
        %v4378 = vpack.c.b16 %v4355, %v4354
        %v4379 = vpack.c.b16 %v4357, %v4356
        %v4380 = vpack.c.b16 %v4359, %v4358
        %v4381 = vpack.c.b16 %v4361, %v4360
        %v4382 = vpack.c.b16 %v4363, %v4362
        %v4383 = vpack.c.b16 %v4365, %v4364
        %v4384 = vpack.c.b16 %v4367, %v4366
        %v4385 = vpack.c.b16 %v4369, %v4368
        %v4386 = vpack.c.b16 %v4371, %v4370
        %v4387 = vpack.c.b16 %v4373, %v4372
        %v4388 = vpack.c.b16 %v4375, %v4374
        %v4389 = vpack.c.b16 %v4377, %v4376
        %v4403 = vsel %vm2553, %v4298, 0
        %v4406 = vsel %vm2553, %v4300, 0
        %v4409 = vsel %vm2553, %v4302, 0
        %v4412 = vsel %vm2553, %v4304, 0
        %4414 = vmatpush.bf16.msra.mxu0 %v4385
        %4415 = vmatpush.bf16.msra.mxu0 %v4384
        %4416 = vmatpush.bf16.msra.mxu0 %v4383
        %4417 = vmatpush.bf16.msra.mxu0 %v4382
        %4418 = vmatpush.bf16.msra.mxu0 %v4381
        %4419 = vmatpush.bf16.msra.mxu0 %v4380
        %4420 = vmatpush.bf16.msra.mxu0 %v4379
        %4421 = vmatpush.bf16.msra.mxu0 %v4378
        %4422 = vmatmul.bf16.gmra.mxu0 %v4297
        %v4423 = vpop.f32.mrf.mxu0
        %v4424 = vadd.f32 0.0, %v4423
        %v4425 = vpop.f32.mrf.mxu0
        %v4426 = vadd.f32 0.0, %v4425
        %4427 = vmatmul.bf16.gmra.mxu0 %v4299
        %v4428 = vpop.f32.mrf.mxu0
        %v4429 = vadd.f32 0.0, %v4428
        %v4430 = vpop.f32.mrf.mxu0
        %v4431 = vadd.f32 0.0, %v4430
        %4432 = vmatmul.bf16.gmra.mxu0 %v4301
        %v4433 = vpop.f32.mrf.mxu0
        %v4434 = vadd.f32 0.0, %v4433
        %v4435 = vpop.f32.mrf.mxu0
        %v4436 = vadd.f32 0.0, %v4435
        %4437 = vmatmul.bf16.gmra.mxu0 %v4303
        %v4438 = vpop.f32.mrf.mxu0
        %v4439 = vadd.f32 0.0, %v4438
        %v4440 = vpop.f32.mrf.mxu0
        %v4441 = vadd.f32 0.0, %v4440
        %4442 = vdwg.mxu0
        %4443 = vmatpush.bf16.msra.mxu0 0
        %4444 = vmatpush.bf16.msra.mxu0 0
        %4445 = vmatpush.bf16.msra.mxu0 0
        %4446 = vmatpush.bf16.msra.mxu0 0
        %4447 = vmatpush.bf16.msra.mxu0 %v4389
        %4448 = vmatpush.bf16.msra.mxu0 %v4388
        %4449 = vmatpush.bf16.msra.mxu0 %v4387
        %4450 = vmatpush.bf16.msra.mxu0 %v4386
        %4451 = vmatmul.bf16.gmra.mxu0 %v4403
        %v4452 = vpop.f32.mrf.mxu0
        %v4453 = vadd.f32 %v4424, %v4452
        %v4454 = vpop.f32.mrf.mxu0
        %v4455 = vadd.f32 %v4426, %v4454
        %4456 = vmatmul.bf16.gmra.mxu0 %v4406
        %v4457 = vpop.f32.mrf.mxu0
        %v4458 = vadd.f32 %v4429, %v4457
        %v4459 = vpop.f32.mrf.mxu0
        %v4460 = vadd.f32 %v4431, %v4459
        %4461 = vmatmul.bf16.gmra.mxu0 %v4409
        %v4462 = vpop.f32.mrf.mxu0
        %v4463 = vadd.f32 %v4434, %v4462
        %v4464 = vpop.f32.mrf.mxu0
        %v4465 = vadd.f32 %v4436, %v4464
        %4466 = vmatmul.bf16.gmra.mxu0 %v4412
        %v4467 = vpop.f32.mrf.mxu0
        %v4468 = vadd.f32 %v4439, %v4467
        %v4469 = vpop.f32.mrf.mxu0
        %v4470 = vadd.f32 %v4441, %v4469
        %4471 = vdwg.mxu0
        %v4496 = vunpack.c.l.b16 %v4260
        %v4497 = vunpack.c.l.b16 %v4261
        %v4498 = vunpack.c.l.b16 %v4262
        %v4499 = vunpack.c.l.b16 %v4263
        %v4500 = vunpack.c.l.b16 %v4264
        %v4501 = vunpack.c.l.b16 %v4265
        %v4502 = vunpack.c.l.b16 %v4266
        %v4503 = vunpack.c.l.b16 %v4267
        %v4504 = vunpack.c.l.b16 %v4268
        %v4505 = vunpack.c.l.b16 %v4269
        %v4506 = vunpack.c.l.b16 %v4270
        %v4507 = vunpack.c.l.b16 %v4271
        %v4508 = vunpack.c.l.b16 %v4272
        %v4509 = vunpack.c.l.b16 %v4273
        %v4510 = vunpack.c.l.b16 %v4274
        %v4511 = vunpack.c.l.b16 %v4275
        %v4512 = vunpack.c.l.b16 %v4276
        %v4513 = vunpack.c.l.b16 %v4277
        %v4514 = vunpack.c.l.b16 %v4278
        %v4515 = vunpack.c.l.b16 %v4279
        %v4516 = vunpack.c.l.b16 %v4280
        %v4517 = vunpack.c.l.b16 %v4281
        %v4518 = vunpack.c.l.b16 %v4282
        %v4519 = vunpack.c.l.b16 %v4283
        %v4520 = vpack.c.b16 %v4497, %v4496
        %v4521 = vpack.c.b16 %v4499, %v4498
        %v4522 = vpack.c.b16 %v4501, %v4500
        %v4523 = vpack.c.b16 %v4503, %v4502
        %v4524 = vpack.c.b16 %v4505, %v4504
        %v4525 = vpack.c.b16 %v4507, %v4506
        %v4526 = vpack.c.b16 %v4509, %v4508
        %v4527 = vpack.c.b16 %v4511, %v4510
        %v4528 = vpack.c.b16 %v4513, %v4512
        %v4529 = vpack.c.b16 %v4515, %v4514
        %v4530 = vpack.c.b16 %v4517, %v4516
        %v4531 = vpack.c.b16 %v4519, %v4518
        %v4545 = vsel %vm2553, %v4253, 0
        %v4548 = vsel %vm2553, %v4255, 0
        %v4551 = vsel %vm2553, %v4257, 0
        %v4554 = vsel %vm2553, %v4259, 0
        %4556 = vmatpush.bf16.msra.mxu0 %v4527
        %4557 = vmatpush.bf16.msra.mxu0 %v4526
        %4558 = vmatpush.bf16.msra.mxu0 %v4525
        %4559 = vmatpush.bf16.msra.mxu0 %v4524
        %4560 = vmatpush.bf16.msra.mxu0 %v4523
        %4561 = vmatpush.bf16.msra.mxu0 %v4522
        %4562 = vmatpush.bf16.msra.mxu0 %v4521
        %4563 = vmatpush.bf16.msra.mxu0 %v4520
        %4564 = vmatmul.bf16.gmra.mxu0 %v4252
        %v4565 = vpop.f32.mrf.mxu0
        %v4566 = vadd.f32 %v4453, %v4565
        %v4567 = vpop.f32.mrf.mxu0
        %v4568 = vadd.f32 %v4455, %v4567
        %4569 = vmatmul.bf16.gmra.mxu0 %v4254
        %v4570 = vpop.f32.mrf.mxu0
        %v4571 = vadd.f32 %v4458, %v4570
        %v4572 = vpop.f32.mrf.mxu0
        %v4573 = vadd.f32 %v4460, %v4572
        %4574 = vmatmul.bf16.gmra.mxu0 %v4256
        %v4575 = vpop.f32.mrf.mxu0
        %v4576 = vadd.f32 %v4463, %v4575
        %v4577 = vpop.f32.mrf.mxu0
        %v4578 = vadd.f32 %v4465, %v4577
        %4579 = vmatmul.bf16.gmra.mxu0 %v4258
        %v4580 = vpop.f32.mrf.mxu0
        %v4581 = vadd.f32 %v4468, %v4580
        %v4582 = vpop.f32.mrf.mxu0
        %v4583 = vadd.f32 %v4470, %v4582
        %4584 = vdwg.mxu0
        %4585 = vmatpush.bf16.msra.mxu0 0
        %4586 = vmatpush.bf16.msra.mxu0 0
        %4587 = vmatpush.bf16.msra.mxu0 0
        %4588 = vmatpush.bf16.msra.mxu0 0
        %4589 = vmatpush.bf16.msra.mxu0 %v4531
        %4590 = vmatpush.bf16.msra.mxu0 %v4530
        %4591 = vmatpush.bf16.msra.mxu0 %v4529
        %4592 = vmatpush.bf16.msra.mxu0 %v4528
        %4593 = vmatmul.bf16.gmra.mxu0 %v4545
        %v4594 = vpop.f32.mrf.mxu0
        %v4595 = vadd.f32 %v4566, %v4594
        %v4596 = vpop.f32.mrf.mxu0
        %v4597 = vadd.f32 %v4568, %v4596
        %4598 = vmatmul.bf16.gmra.mxu0 %v4548
        %v4599 = vpop.f32.mrf.mxu0
        %v4600 = vadd.f32 %v4571, %v4599
        %v4601 = vpop.f32.mrf.mxu0
        %v4602 = vadd.f32 %v4573, %v4601
        %4603 = vmatmul.bf16.gmra.mxu0 %v4551
        %v4604 = vpop.f32.mrf.mxu0
        %v4605 = vadd.f32 %v4576, %v4604
        %v4606 = vpop.f32.mrf.mxu0
        %v4607 = vadd.f32 %v4578, %v4606
        %4608 = vmatmul.bf16.gmra.mxu0 %v4554
        %v4609 = vpop.f32.mrf.mxu0
        %v4610 = vadd.f32 %v4581, %v4609
        %v4611 = vpop.f32.mrf.mxu0
        %v4612 = vadd.f32 %v4583, %v4611
        %4613 = vdwg.mxu0
        %v4614 = vpack.c.bf16 %v2554, %v4296
        %v4615 = vpack.c.bf16 %v2523, %v4294
        %s4616 = scalar_lea.vmem %s41, 192
        %v4617 = vld [vmem:[%s4616] sm:$0xf]
        %v4618 = vld [vmem:[%s4616 + $0x4] sm:$0xf]
        %v4619 = vld [vmem:[%s4616 + $0x8] sm:$0xf]
        %v4620 = vld [vmem:[%s4616 + $0xc] sm:$0xf]
        %v4621 = vld [vmem:[%s4616 + $0x10] sm:$0xf]
        %v4622 = vld [vmem:[%s4616 + $0x14] sm:$0xf]
        %v4623 = vld [vmem:[%s4616 + $0x18] sm:$0xf]
        %v4624 = vld [vmem:[%s4616 + $0x1c] sm:$0xf]
        %v4625 = vld [vmem:[%s4616 + $0x20] sm:$0xf]
        %v4626 = vld [vmem:[%s4616 + $0x24] sm:$0xf]
        %v4627 = vld [vmem:[%s4616 + $0x28] sm:$0xf]
        %v4628 = vld [vmem:[%s4616 + $0x2c] sm:$0xf]
        %v4629 = vld [vmem:[%s4616 + $0x30] sm:$0xf]
        %v4630 = vld [vmem:[%s4616 + $0x34] sm:$0xf]
        %v4631 = vld [vmem:[%s4616 + $0x38] sm:$0xf]
        %v4632 = vld [vmem:[%s4616 + $0x3c] sm:$0xf]
        %v4633 = vld [vmem:[%s4616 + $0x40] sm:$0xf]
        %v4634 = vld [vmem:[%s4616 + $0x44] sm:$0xf]
        %v4635 = vld [vmem:[%s4616 + $0x48] sm:$0xf]
        %v4636 = vld [vmem:[%s4616 + $0x4c] sm:$0xf]
        %v4637 = vld [vmem:[%s4616 + $0x50] sm:$0xf]
        %v4638 = vld [vmem:[%s4616 + $0x54] sm:$0xf]
        %v4639 = vld [vmem:[%s4616 + $0x58] sm:$0xf]
        %v4640 = vld [vmem:[%s4616 + $0x5c] sm:$0xf]
        %v4665 = vunpack.c.l.b16 %v4617
        %v4666 = vunpack.c.l.b16 %v4618
        %v4667 = vunpack.c.l.b16 %v4619
        %v4668 = vunpack.c.l.b16 %v4620
        %v4669 = vunpack.c.l.b16 %v4621
        %v4670 = vunpack.c.l.b16 %v4622
        %v4671 = vunpack.c.l.b16 %v4623
        %v4672 = vunpack.c.l.b16 %v4624
        %v4673 = vunpack.c.l.b16 %v4625
        %v4674 = vunpack.c.l.b16 %v4626
        %v4675 = vunpack.c.l.b16 %v4627
        %v4676 = vunpack.c.l.b16 %v4628
        %v4677 = vunpack.c.l.b16 %v4629
        %v4678 = vunpack.c.l.b16 %v4630
        %v4679 = vunpack.c.l.b16 %v4631
        %v4680 = vunpack.c.l.b16 %v4632
        %v4681 = vunpack.c.l.b16 %v4633
        %v4682 = vunpack.c.l.b16 %v4634
        %v4683 = vunpack.c.l.b16 %v4635
        %v4684 = vunpack.c.l.b16 %v4636
        %v4685 = vunpack.c.l.b16 %v4637
        %v4686 = vunpack.c.l.b16 %v4638
        %v4687 = vunpack.c.l.b16 %v4639
        %v4688 = vunpack.c.l.b16 %v4640
        %v4689 = vpack.c.b16 %v4666, %v4665
        %v4690 = vpack.c.b16 %v4668, %v4667
        %v4691 = vpack.c.b16 %v4670, %v4669
        %v4692 = vpack.c.b16 %v4672, %v4671
        %v4693 = vpack.c.b16 %v4674, %v4673
        %v4694 = vpack.c.b16 %v4676, %v4675
        %v4695 = vpack.c.b16 %v4678, %v4677
        %v4696 = vpack.c.b16 %v4680, %v4679
        %v4697 = vpack.c.b16 %v4682, %v4681
        %v4698 = vpack.c.b16 %v4684, %v4683
        %v4699 = vpack.c.b16 %v4686, %v4685
        %v4700 = vpack.c.b16 %v4688, %v4687
        %v4714 = vsel %vm2553, %v4615, 0
        %4716 = vmatpush.bf16.msra.mxu0 %v4696
        %4717 = vmatpush.bf16.msra.mxu0 %v4695
        %4718 = vmatpush.bf16.msra.mxu0 %v4694
        %4719 = vmatpush.bf16.msra.mxu0 %v4693
        %4720 = vmatpush.bf16.msra.mxu0 %v4692
        %4721 = vmatpush.bf16.msra.mxu0 %v4691
        %4722 = vmatpush.bf16.msra.mxu0 %v4690
        %4723 = vmatpush.bf16.msra.mxu0 %v4689
        %4724 = vmatmul.bf16.gmra.mxu0 %v4254
        %v4725 = vpop.f32.mrf.mxu0
        %v4726 = vadd.f32 0.0, %v4725
        %v4727 = vpop.f32.mrf.mxu0
        %v4728 = vadd.f32 0.0, %v4727
        %4729 = vmatmul.bf16.gmra.mxu0 %v4256
        %v4730 = vpop.f32.mrf.mxu0
        %v4731 = vadd.f32 0.0, %v4730
        %v4732 = vpop.f32.mrf.mxu0
        %v4733 = vadd.f32 0.0, %v4732
        %4734 = vmatmul.bf16.gmra.mxu0 %v4258
        %v4735 = vpop.f32.mrf.mxu0
        %v4736 = vadd.f32 0.0, %v4735
        %v4737 = vpop.f32.mrf.mxu0
        %v4738 = vadd.f32 0.0, %v4737
        %4739 = vmatmul.bf16.gmra.mxu0 %v4614
        %v4740 = vpop.f32.mrf.mxu0
        %v4741 = vadd.f32 0.0, %v4740
        %v4742 = vpop.f32.mrf.mxu0
        %v4743 = vadd.f32 0.0, %v4742
        %4744 = vdwg.mxu0
        %4745 = vmatpush.bf16.msra.mxu0 0
        %4746 = vmatpush.bf16.msra.mxu0 0
        %4747 = vmatpush.bf16.msra.mxu0 0
        %4748 = vmatpush.bf16.msra.mxu0 0
        %4749 = vmatpush.bf16.msra.mxu0 %v4700
        %4750 = vmatpush.bf16.msra.mxu0 %v4699
        %4751 = vmatpush.bf16.msra.mxu0 %v4698
        %4752 = vmatpush.bf16.msra.mxu0 %v4697
        %4753 = vmatmul.bf16.gmra.mxu0 %v4548
        %v4754 = vpop.f32.mrf.mxu0
        %v4755 = vadd.f32 %v4726, %v4754
        %v4756 = vpop.f32.mrf.mxu0
        %v4757 = vadd.f32 %v4728, %v4756
        %4758 = vmatmul.bf16.gmra.mxu0 %v4551
        %v4759 = vpop.f32.mrf.mxu0
        %v4760 = vadd.f32 %v4731, %v4759
        %v4761 = vpop.f32.mrf.mxu0
        %v4762 = vadd.f32 %v4733, %v4761
        %4763 = vmatmul.bf16.gmra.mxu0 %v4554
        %v4764 = vpop.f32.mrf.mxu0
        %v4765 = vadd.f32 %v4736, %v4764
        %v4766 = vpop.f32.mrf.mxu0
        %v4767 = vadd.f32 %v4738, %v4766
        %4768 = vmatmul.bf16.gmra.mxu0 %v4714
        %v4769 = vpop.f32.mrf.mxu0
        %v4770 = vadd.f32 %v4741, %v4769
        %v4771 = vpop.f32.mrf.mxu0
        %v4772 = vadd.f32 %v4743, %v4771
        %4773 = vdwg.mxu0
        %v4774 = vadd.f32 %v4595, %v4755
        %v4775 = vadd.f32 %v4597, %v4757
        %v4776 = vadd.f32 %v4600, %v4760
        %v4777 = vadd.f32 %v4602, %v4762
        %v4778 = vadd.f32 %v4605, %v4765
        %v4779 = vadd.f32 %v4607, %v4767
        %v4780 = vadd.f32 %v4610, %v4770
        %v4781 = vadd.f32 %v4612, %v4772
        %v4783 = vperm.slane %v4120, 0
        %v4785 = vadd.f32 %v4774, %v4783
        %v4786 = vadd.f32 %v4775, %v4783
        %v4787 = vadd.f32 %v4776, %v4783
        %v4788 = vadd.f32 %v4777, %v4783
        %v4789 = vadd.f32 %v4778, %v4783
        %v4790 = vadd.f32 %v4779, %v4783
        %v4791 = vadd.f32 %v4780, %v4783
        %v4792 = vadd.f32 %v4781, %v4783
        %v4793 = vld [vmem:[#allocation4] sm:$0xff]
        %v4794 = vld [vmem:[#allocation4 + $0x8] sm:$0xff]
        %v4795 = vld [vmem:[#allocation4 + $0x10] sm:$0xff]
        %v4796 = vld [vmem:[#allocation4 + $0x18] sm:$0xff]
        %v4797 = vld [vmem:[#allocation4 + $0x20] sm:$0xff]
        %v4798 = vld [vmem:[#allocation4 + $0x28] sm:$0xff]
        %v4799 = vld [vmem:[#allocation4 + $0x30] sm:$0xff]
        %v4800 = vld [vmem:[#allocation4 + $0x38] sm:$0xff]
        %v4801 = vadd.f32 %v4793, %v4785
        %v4802 = vadd.f32 %v4794, %v4786
        %v4803 = vadd.f32 %v4795, %v4787
        %v4804 = vadd.f32 %v4796, %v4788
        %v4805 = vadd.f32 %v4797, %v4789
        %v4806 = vadd.f32 %v4798, %v4790
        %v4807 = vadd.f32 %v4799, %v4791
        %v4808 = vadd.f32 %v4800, %v4792
        %v4809 = vld [vmem:[%s47] sm:$0x1]
        %v4818 = vrot.slane %v4801, 6
        %v4819 = vrot.slane %v4802, 6
        %v4820 = vrot.slane %v4803, 6
        %v4821 = vrot.slane %v4804, 6
        %v4822 = vrot.slane %v4805, 6
        %v4823 = vrot.slane %v4806, 6
        %v4824 = vrot.slane %v4807, 6
        %v4825 = vrot.slane %v4808, 6
        %vm4834 = vcmask 1041408
        %v4835 = vsel %vm4834, 0.0, %v4818
        %v4836 = vsel %vm4834, 0.0, %v4819
        %v4837 = vsel %vm4834, 0.0, %v4820
        %v4838 = vsel %vm4834, 0.0, %v4821
        %v4839 = vsel %vm4834, 0.0, %v4822
        %v4840 = vsel %vm4834, 0.0, %v4823
        %v4841 = vsel %vm4834, 0.0, %v4824
        %v4842 = vsel %vm4834, 0.0, %v4825
        %v4843 = vsel %vm4834, %v4818, 0.0
        %v4844 = vsel %vm4834, %v4819, 0.0
        %v4845 = vsel %vm4834, %v4820, 0.0
        %v4846 = vsel %vm4834, %v4821, 0.0
        %v4847 = vsel %vm4834, %v4822, 0.0
        %v4848 = vsel %vm4834, %v4823, 0.0
        %v4849 = vsel %vm4834, %v4824, 0.0
        %v4850 = vsel %vm4834, %v4825, 0.0
        %v4863 = vrot.slane %v4835, 1
        %v4864 = vrot.slane %v4843, 1
        %v4865 = vsel %vm2473, %v4863, %v4864
        %v4866 = vrot.slane %v4836, 1
        %v4867 = vrot.slane %v4844, 1
        %v4868 = vsel %vm2473, %v4866, %v4867
        %v4869 = vrot.slane %v4837, 1
        %v4870 = vrot.slane %v4845, 1
        %v4871 = vsel %vm2473, %v4869, %v4870
        %v4872 = vrot.slane %v4838, 1
        %v4873 = vrot.slane %v4846, 1
        %v4874 = vsel %vm2473, %v4872, %v4873
        %v4875 = vrot.slane %v4839, 1
        %v4876 = vrot.slane %v4847, 1
        %v4877 = vsel %vm2473, %v4875, %v4876
        %v4878 = vrot.slane %v4840, 1
        %v4879 = vrot.slane %v4848, 1
        %v4880 = vsel %vm2473, %v4878, %v4879
        %4881 = vrot.lane.b32.xlu0 %v4865, 64
        %v4882 = vpop.permute.xlu0 %4881
        %4883 = vrot.lane.b32.xlu0 %v4868, 64
        %v4884 = vpop.permute.xlu0 %4883
        %4885 = vrot.lane.b32.xlu0 %v4871, 64
        %v4886 = vpop.permute.xlu0 %4885
        %4887 = vrot.lane.b32.xlu0 %v4874, 64
        %v4888 = vpop.permute.xlu0 %4887
        %4889 = vrot.lane.b32.xlu0 %v4877, 64
        %v4890 = vpop.permute.xlu0 %4889
        %4891 = vrot.lane.b32.xlu0 %v4880, 64
        %v4892 = vpop.permute.xlu0 %4891
        %v4899 = vrot.slane %v4835, 2
        %v4900 = vrot.slane %v4843, 2
        %v4901 = vsel %vm2521, %v4899, %v4900
        %v4902 = vrot.slane %v4836, 2
        %v4903 = vrot.slane %v4844, 2
        %v4904 = vsel %vm2521, %v4902, %v4903
        %v4905 = vrot.slane %v4837, 2
        %v4906 = vrot.slane %v4845, 2
        %v4907 = vsel %vm2521, %v4905, %v4906
        %v4908 = vrot.slane %v4838, 2
        %v4909 = vrot.slane %v4846, 2
        %v4910 = vsel %vm2521, %v4908, %v4909
        %v4911 = vrot.slane %v4839, 2
        %v4912 = vrot.slane %v4847, 2
        %v4913 = vsel %vm2521, %v4911, %v4912
        %v4914 = vrot.slane %v4840, 2
        %v4915 = vrot.slane %v4848, 2
        %v4916 = vsel %vm2521, %v4914, %v4915
        %vm4923 = vcmask 1044480
        %v4924 = vrot.slane 0.0, 3
        %v4925 = vsel %vm4923, %v4924, %v4924
        %v4926 = vrot.slane %v4835, 3
        %v4927 = vrot.slane %v4843, 3
        %v4928 = vsel %vm4923, %v4926, %v4927
        %v4929 = vrot.slane %v4836, 3
        %v4930 = vrot.slane %v4844, 3
        %v4931 = vsel %vm4923, %v4929, %v4930
        %v4932 = vrot.slane %v4837, 3
        %v4933 = vrot.slane %v4845, 3
        %v4934 = vsel %vm4923, %v4932, %v4933
        %v4935 = vrot.slane %v4838, 3
        %v4936 = vrot.slane %v4846, 3
        %v4937 = vsel %vm4923, %v4935, %v4936
        %v4938 = vrot.slane %v4839, 3
        %v4939 = vrot.slane %v4847, 3
        %v4940 = vsel %vm4923, %v4938, %v4939
        %v4941 = vrot.slane %v4840, 3
        %v4942 = vrot.slane %v4848, 3
        %v4943 = vsel %vm4923, %v4941, %v4942
        %4944 = vrot.lane.b32.xlu0 %v4925, 64
        %v4945 = vpop.permute.xlu0 %4944
        %4946 = vrot.lane.b32.xlu0 %v4928, 64
        %v4947 = vpop.permute.xlu0 %4946
        %4948 = vrot.lane.b32.xlu0 %v4931, 64
        %v4949 = vpop.permute.xlu0 %4948
        %4950 = vrot.lane.b32.xlu0 %v4934, 64
        %v4951 = vpop.permute.xlu0 %4950
        %4952 = vrot.lane.b32.xlu0 %v4937, 64
        %v4953 = vpop.permute.xlu0 %4952
        %4954 = vrot.lane.b32.xlu0 %v4940, 64
        %v4955 = vpop.permute.xlu0 %4954
        %4956 = vrot.lane.b32.xlu0 %v4943, 64
        %v4957 = vpop.permute.xlu0 %4956
        %vm4965 = vcmask 1043456
        %v4966 = vrot.slane 0.0, 4
        %v4967 = vsel %vm4965, %v4966, %v4966
        %v4968 = vrot.slane %v4835, 4
        %v4969 = vrot.slane %v4843, 4
        %v4970 = vsel %vm4965, %v4968, %v4969
        %v4971 = vrot.slane %v4836, 4
        %v4972 = vrot.slane %v4844, 4
        %v4973 = vsel %vm4965, %v4971, %v4972
        %v4974 = vrot.slane %v4837, 4
        %v4975 = vrot.slane %v4845, 4
        %v4976 = vsel %vm4965, %v4974, %v4975
        %v4977 = vrot.slane %v4838, 4
        %v4978 = vrot.slane %v4846, 4
        %v4979 = vsel %vm4965, %v4977, %v4978
        %v4980 = vrot.slane %v4839, 4
        %v4981 = vrot.slane %v4847, 4
        %v4982 = vsel %vm4965, %v4980, %v4981
        %v4983 = vrot.slane %v4840, 4
        %v4984 = vrot.slane %v4848, 4
        %v4985 = vsel %vm4965, %v4983, %v4984
        %v4993 = vsel %vm2553, %v4835, %v4882
        %v4994 = vsel %vm2553, %v4836, %v4884
        %v4995 = vsel %vm2553, %v4837, %v4886
        %v4996 = vsel %vm2553, %v4838, %v4888
        %v4997 = vsel %vm2553, %v4839, %v4890
        %v4998 = vsel %vm2553, %v4840, %v4892
        %v4999 = vsel %vm2553, %v2523, %v4945
        %v5000 = vsel %vm2553, %v4901, %v4947
        %v5001 = vsel %vm2553, %v4904, %v4949
        %v5002 = vsel %vm2553, %v4907, %v4951
        %v5003 = vsel %vm2553, %v4910, %v4953
        %v5004 = vsel %vm2553, %v4913, %v4955
        %v5005 = vsel %vm2553, %v4916, %v4957
        %v5006 = vpack.c.bf16 %v2554, %v2554
        %v5007 = vpack.c.bf16 %v4999, %v4999
        %v5008 = vpack.c.bf16 %v4967, %v4967
        %v5009 = vpack.c.bf16 %v4994, %v4993
        %v5010 = vpack.c.bf16 %v5001, %v5000
        %v5011 = vpack.c.bf16 %v4973, %v4970
        %v5012 = vpack.c.bf16 %v4996, %v4995
        %v5013 = vpack.c.bf16 %v5003, %v5002
        %v5014 = vpack.c.bf16 %v4979, %v4976
        %v5015 = vpack.c.bf16 %v4998, %v4997
        %v5016 = vpack.c.bf16 %v5005, %v5004
        %v5017 = vpack.c.bf16 %v4985, %v4982
        %v5018 = vld [vmem:[%s45] sm:$0xf]
        %v5019 = vld [vmem:[%s45 + $0x4] sm:$0xf]
        %v5020 = vld [vmem:[%s45 + $0x8] sm:$0xf]
        %v5021 = vld [vmem:[%s45 + $0xc] sm:$0xf]
        %v5022 = vld [vmem:[%s45 + $0x10] sm:$0xf]
        %v5023 = vld [vmem:[%s45 + $0x14] sm:$0xf]
        %v5024 = vld [vmem:[%s45 + $0x18] sm:$0xf]
        %v5025 = vld [vmem:[%s45 + $0x1c] sm:$0xf]
        %v5026 = vld [vmem:[%s45 + $0x20] sm:$0xf]
        %v5027 = vld [vmem:[%s45 + $0x24] sm:$0xf]
        %v5028 = vld [vmem:[%s45 + $0x28] sm:$0xf]
        %v5029 = vld [vmem:[%s45 + $0x2c] sm:$0xf]
        %v5030 = vld [vmem:[%s45 + $0x30] sm:$0xf]
        %v5031 = vld [vmem:[%s45 + $0x34] sm:$0xf]
        %v5032 = vld [vmem:[%s45 + $0x38] sm:$0xf]
        %v5033 = vld [vmem:[%s45 + $0x3c] sm:$0xf]
        %v5034 = vld [vmem:[%s45 + $0x40] sm:$0xf]
        %v5035 = vld [vmem:[%s45 + $0x44] sm:$0xf]
        %v5036 = vld [vmem:[%s45 + $0x48] sm:$0xf]
        %v5037 = vld [vmem:[%s45 + $0x4c] sm:$0xf]
        %v5038 = vld [vmem:[%s45 + $0x50] sm:$0xf]
        %v5039 = vld [vmem:[%s45 + $0x54] sm:$0xf]
        %v5040 = vld [vmem:[%s45 + $0x58] sm:$0xf]
        %v5041 = vld [vmem:[%s45 + $0x5c] sm:$0xf]
        %v5042 = vld [vmem:[%s45 + $0x60] sm:$0xf]
        %v5043 = vld [vmem:[%s45 + $0x64] sm:$0xf]
        %v5044 = vld [vmem:[%s45 + $0x68] sm:$0xf]
        %v5045 = vld [vmem:[%s45 + $0x6c] sm:$0xf]
        %v5046 = vld [vmem:[%s45 + $0x70] sm:$0xf]
        %v5047 = vld [vmem:[%s45 + $0x74] sm:$0xf]
        %v5048 = vld [vmem:[%s45 + $0x78] sm:$0xf]
        %v5049 = vld [vmem:[%s45 + $0x7c] sm:$0xf]
        %v5050 = vld [vmem:[%s45 + $0x80] sm:$0xf]
        %v5051 = vld [vmem:[%s45 + $0x84] sm:$0xf]
        %v5052 = vld [vmem:[%s45 + $0x88] sm:$0xf]
        %v5053 = vld [vmem:[%s45 + $0x8c] sm:$0xf]
        %v5054 = vld [vmem:[%s45 + $0x90] sm:$0xf]
        %v5055 = vld [vmem:[%s45 + $0x94] sm:$0xf]
        %v5056 = vld [vmem:[%s45 + $0x98] sm:$0xf]
        %v5057 = vld [vmem:[%s45 + $0x9c] sm:$0xf]
        %v5060 = vrot.slane %v4841, 1
        %v5061 = vrot.slane %v4849, 1
        %v5062 = vsel %vm2473, %v5060, %v5061
        %5063 = vrot.lane.b32.xlu0 %v5062, 64
        %v5064 = vpop.permute.xlu0 %5063
        %v5066 = vrot.slane %v4841, 2
        %v5067 = vrot.slane %v4849, 2
        %v5068 = vsel %vm2521, %v5066, %v5067
        %v5070 = vrot.slane %v4841, 3
        %v5071 = vrot.slane %v4849, 3
        %v5072 = vsel %vm4923, %v5070, %v5071
        %5073 = vrot.lane.b32.xlu0 %v5072, 64
        %v5074 = vpop.permute.xlu0 %5073
        %v5076 = vrot.slane %v4841, 4
        %v5077 = vrot.slane %v4849, 4
        %v5078 = vsel %vm4965, %v5076, %v5077
        %v5080 = vsel %vm2553, %v4841, %v5064
        %v5081 = vsel %vm2553, %v5068, %v5074
        %v5082 = vpack.c.bf16 %v4993, %v2554
        %v5083 = vpack.c.bf16 %v5000, %v4999
        %v5084 = vpack.c.bf16 %v4970, %v4967
        %v5085 = vpack.c.bf16 %v4995, %v4994
        %v5086 = vpack.c.bf16 %v5002, %v5001
        %v5087 = vpack.c.bf16 %v4976, %v4973
        %v5088 = vpack.c.bf16 %v4997, %v4996
        %v5089 = vpack.c.bf16 %v5004, %v5003
        %v5090 = vpack.c.bf16 %v4982, %v4979
        %v5091 = vpack.c.bf16 %v5080, %v4998
        %v5092 = vpack.c.bf16 %v5081, %v5005
        %v5093 = vpack.c.bf16 %v5078, %v4985
        %s5094 = scalar_lea.vmem %s45, 160
        %v5095 = vld [vmem:[%s5094] sm:$0xf]
        %v5096 = vld [vmem:[%s5094 + $0x4] sm:$0xf]
        %v5097 = vld [vmem:[%s5094 + $0x8] sm:$0xf]
        %v5098 = vld [vmem:[%s5094 + $0xc] sm:$0xf]
        %v5099 = vld [vmem:[%s5094 + $0x10] sm:$0xf]
        %v5100 = vld [vmem:[%s5094 + $0x14] sm:$0xf]
        %v5101 = vld [vmem:[%s5094 + $0x18] sm:$0xf]
        %v5102 = vld [vmem:[%s5094 + $0x1c] sm:$0xf]
        %v5103 = vld [vmem:[%s5094 + $0x20] sm:$0xf]
        %v5104 = vld [vmem:[%s5094 + $0x24] sm:$0xf]
        %v5105 = vld [vmem:[%s5094 + $0x28] sm:$0xf]
        %v5106 = vld [vmem:[%s5094 + $0x2c] sm:$0xf]
        %v5107 = vld [vmem:[%s5094 + $0x30] sm:$0xf]
        %v5108 = vld [vmem:[%s5094 + $0x34] sm:$0xf]
        %v5109 = vld [vmem:[%s5094 + $0x38] sm:$0xf]
        %v5110 = vld [vmem:[%s5094 + $0x3c] sm:$0xf]
        %v5111 = vld [vmem:[%s5094 + $0x40] sm:$0xf]
        %v5112 = vld [vmem:[%s5094 + $0x44] sm:$0xf]
        %v5113 = vld [vmem:[%s5094 + $0x48] sm:$0xf]
        %v5114 = vld [vmem:[%s5094 + $0x4c] sm:$0xf]
        %v5115 = vld [vmem:[%s5094 + $0x50] sm:$0xf]
        %v5116 = vld [vmem:[%s5094 + $0x54] sm:$0xf]
        %v5117 = vld [vmem:[%s5094 + $0x58] sm:$0xf]
        %v5118 = vld [vmem:[%s5094 + $0x5c] sm:$0xf]
        %v5119 = vld [vmem:[%s5094 + $0x60] sm:$0xf]
        %v5120 = vld [vmem:[%s5094 + $0x64] sm:$0xf]
        %v5121 = vld [vmem:[%s5094 + $0x68] sm:$0xf]
        %v5122 = vld [vmem:[%s5094 + $0x6c] sm:$0xf]
        %v5123 = vld [vmem:[%s5094 + $0x70] sm:$0xf]
        %v5124 = vld [vmem:[%s5094 + $0x74] sm:$0xf]
        %v5125 = vld [vmem:[%s5094 + $0x78] sm:$0xf]
        %v5126 = vld [vmem:[%s5094 + $0x7c] sm:$0xf]
        %v5127 = vld [vmem:[%s5094 + $0x80] sm:$0xf]
        %v5128 = vld [vmem:[%s5094 + $0x84] sm:$0xf]
        %v5129 = vld [vmem:[%s5094 + $0x88] sm:$0xf]
        %v5130 = vld [vmem:[%s5094 + $0x8c] sm:$0xf]
        %v5131 = vld [vmem:[%s5094 + $0x90] sm:$0xf]
        %v5132 = vld [vmem:[%s5094 + $0x94] sm:$0xf]
        %v5133 = vld [vmem:[%s5094 + $0x98] sm:$0xf]
        %v5134 = vld [vmem:[%s5094 + $0x9c] sm:$0xf]
        %v5175 = vunpack.c.l.b16 %v5095
        %v5176 = vunpack.c.l.b16 %v5096
        %v5177 = vunpack.c.l.b16 %v5097
        %v5178 = vunpack.c.l.b16 %v5098
        %v5179 = vunpack.c.l.b16 %v5099
        %v5180 = vunpack.c.l.b16 %v5100
        %v5181 = vunpack.c.l.b16 %v5101
        %v5182 = vunpack.c.l.b16 %v5102
        %v5183 = vunpack.c.l.b16 %v5103
        %v5184 = vunpack.c.l.b16 %v5104
        %v5185 = vunpack.c.l.b16 %v5105
        %v5186 = vunpack.c.l.b16 %v5106
        %v5187 = vunpack.c.l.b16 %v5107
        %v5188 = vunpack.c.l.b16 %v5108
        %v5189 = vunpack.c.l.b16 %v5109
        %v5190 = vunpack.c.l.b16 %v5110
        %v5191 = vunpack.c.l.b16 %v5111
        %v5192 = vunpack.c.l.b16 %v5112
        %v5193 = vunpack.c.l.b16 %v5113
        %v5194 = vunpack.c.l.b16 %v5114
        %v5195 = vunpack.c.l.b16 %v5115
        %v5196 = vunpack.c.l.b16 %v5116
        %v5197 = vunpack.c.l.b16 %v5117
        %v5198 = vunpack.c.l.b16 %v5118
        %v5199 = vunpack.c.l.b16 %v5119
        %v5200 = vunpack.c.l.b16 %v5120
        %v5201 = vunpack.c.l.b16 %v5121
        %v5202 = vunpack.c.l.b16 %v5122
        %v5203 = vunpack.c.l.b16 %v5123
        %v5204 = vunpack.c.l.b16 %v5124
        %v5205 = vunpack.c.l.b16 %v5125
        %v5206 = vunpack.c.l.b16 %v5126
        %v5207 = vunpack.c.l.b16 %v5127
        %v5208 = vunpack.c.l.b16 %v5128
        %v5209 = vunpack.c.l.b16 %v5129
        %v5210 = vunpack.c.l.b16 %v5130
        %v5211 = vunpack.c.l.b16 %v5131
        %v5212 = vunpack.c.l.b16 %v5132
        %v5213 = vunpack.c.l.b16 %v5133
        %v5214 = vunpack.c.l.b16 %v5134
        %v5215 = vpack.c.b16 %v5176, %v5175
        %v5216 = vpack.c.b16 %v5178, %v5177
        %v5217 = vpack.c.b16 %v5180, %v5179
        %v5218 = vpack.c.b16 %v5182, %v5181
        %v5219 = vpack.c.b16 %v5184, %v5183
        %v5220 = vpack.c.b16 %v5186, %v5185
        %v5221 = vpack.c.b16 %v5188, %v5187
        %v5222 = vpack.c.b16 %v5190, %v5189
        %v5223 = vpack.c.b16 %v5192, %v5191
        %v5224 = vpack.c.b16 %v5194, %v5193
        %v5225 = vpack.c.b16 %v5196, %v5195
        %v5226 = vpack.c.b16 %v5198, %v5197
        %v5227 = vpack.c.b16 %v5200, %v5199
        %v5228 = vpack.c.b16 %v5202, %v5201
        %v5229 = vpack.c.b16 %v5204, %v5203
        %v5230 = vpack.c.b16 %v5206, %v5205
        %v5231 = vpack.c.b16 %v5208, %v5207
        %v5232 = vpack.c.b16 %v5210, %v5209
        %v5233 = vpack.c.b16 %v5212, %v5211
        %v5234 = vpack.c.b16 %v5214, %v5213
        %v5256 = vsel %vm2553, %v5084, 0
        %v5259 = vsel %vm2553, %v5087, 0
        %v5262 = vsel %vm2553, %v5090, 0
        %v5265 = vsel %vm2553, %v5093, 0
        %5267 = vmatpush.bf16.msra.mxu0 %v5222
        %5268 = vmatpush.bf16.msra.mxu0 %v5221
        %5269 = vmatpush.bf16.msra.mxu0 %v5220
        %5270 = vmatpush.bf16.msra.mxu0 %v5219
        %5271 = vmatpush.bf16.msra.mxu0 %v5218
        %5272 = vmatpush.bf16.msra.mxu0 %v5217
        %5273 = vmatpush.bf16.msra.mxu0 %v5216
        %5274 = vmatpush.bf16.msra.mxu0 %v5215
        %5275 = vmatmul.bf16.gmra.mxu0 %v5082
        %v5276 = vpop.f32.mrf.mxu0
        %v5277 = vadd.f32 0.0, %v5276
        %v5278 = vpop.f32.mrf.mxu0
        %v5279 = vadd.f32 0.0, %v5278
        %5280 = vmatmul.bf16.gmra.mxu0 %v5085
        %v5281 = vpop.f32.mrf.mxu0
        %v5282 = vadd.f32 0.0, %v5281
        %v5283 = vpop.f32.mrf.mxu0
        %v5284 = vadd.f32 0.0, %v5283
        %5285 = vmatmul.bf16.gmra.mxu0 %v5088
        %v5286 = vpop.f32.mrf.mxu0
        %v5287 = vadd.f32 0.0, %v5286
        %v5288 = vpop.f32.mrf.mxu0
        %v5289 = vadd.f32 0.0, %v5288
        %5290 = vmatmul.bf16.gmra.mxu0 %v5091
        %v5291 = vpop.f32.mrf.mxu0
        %v5292 = vadd.f32 0.0, %v5291
        %v5293 = vpop.f32.mrf.mxu0
        %v5294 = vadd.f32 0.0, %v5293
        %5295 = vdwg.mxu0
        %5296 = vmatpush.bf16.msra.mxu0 %v5230
        %5297 = vmatpush.bf16.msra.mxu0 %v5229
        %5298 = vmatpush.bf16.msra.mxu0 %v5228
        %5299 = vmatpush.bf16.msra.mxu0 %v5227
        %5300 = vmatpush.bf16.msra.mxu0 %v5226
        %5301 = vmatpush.bf16.msra.mxu0 %v5225
        %5302 = vmatpush.bf16.msra.mxu0 %v5224
        %5303 = vmatpush.bf16.msra.mxu0 %v5223
        %5304 = vmatmul.bf16.gmra.mxu0 %v5083
        %v5305 = vpop.f32.mrf.mxu0
        %v5306 = vadd.f32 %v5277, %v5305
        %v5307 = vpop.f32.mrf.mxu0
        %v5308 = vadd.f32 %v5279, %v5307
        %5309 = vmatmul.bf16.gmra.mxu0 %v5086
        %v5310 = vpop.f32.mrf.mxu0
        %v5311 = vadd.f32 %v5282, %v5310
        %v5312 = vpop.f32.mrf.mxu0
        %v5313 = vadd.f32 %v5284, %v5312
        %5314 = vmatmul.bf16.gmra.mxu0 %v5089
        %v5315 = vpop.f32.mrf.mxu0
        %v5316 = vadd.f32 %v5287, %v5315
        %v5317 = vpop.f32.mrf.mxu0
        %v5318 = vadd.f32 %v5289, %v5317
        %5319 = vmatmul.bf16.gmra.mxu0 %v5092
        %v5320 = vpop.f32.mrf.mxu0
        %v5321 = vadd.f32 %v5292, %v5320
        %v5322 = vpop.f32.mrf.mxu0
        %v5323 = vadd.f32 %v5294, %v5322
        %5324 = vdwg.mxu0
        %5325 = vmatpush.bf16.msra.mxu0 0
        %5326 = vmatpush.bf16.msra.mxu0 0
        %5327 = vmatpush.bf16.msra.mxu0 0
        %5328 = vmatpush.bf16.msra.mxu0 0
        %5329 = vmatpush.bf16.msra.mxu0 %v5234
        %5330 = vmatpush.bf16.msra.mxu0 %v5233
        %5331 = vmatpush.bf16.msra.mxu0 %v5232
        %5332 = vmatpush.bf16.msra.mxu0 %v5231
        %5333 = vmatmul.bf16.gmra.mxu0 %v5256
        %v5334 = vpop.f32.mrf.mxu0
        %v5335 = vadd.f32 %v5306, %v5334
        %v5336 = vpop.f32.mrf.mxu0
        %v5337 = vadd.f32 %v5308, %v5336
        %5338 = vmatmul.bf16.gmra.mxu0 %v5259
        %v5339 = vpop.f32.mrf.mxu0
        %v5340 = vadd.f32 %v5311, %v5339
        %v5341 = vpop.f32.mrf.mxu0
        %v5342 = vadd.f32 %v5313, %v5341
        %5343 = vmatmul.bf16.gmra.mxu0 %v5262
        %v5344 = vpop.f32.mrf.mxu0
        %v5345 = vadd.f32 %v5316, %v5344
        %v5346 = vpop.f32.mrf.mxu0
        %v5347 = vadd.f32 %v5318, %v5346
        %5348 = vmatmul.bf16.gmra.mxu0 %v5265
        %v5349 = vpop.f32.mrf.mxu0
        %v5350 = vadd.f32 %v5321, %v5349
        %v5351 = vpop.f32.mrf.mxu0
        %v5352 = vadd.f32 %v5323, %v5351
        %5353 = vdwg.mxu0
        %v5394 = vunpack.c.l.b16 %v5018
        %v5395 = vunpack.c.l.b16 %v5019
        %v5396 = vunpack.c.l.b16 %v5020
        %v5397 = vunpack.c.l.b16 %v5021
        %v5398 = vunpack.c.l.b16 %v5022
        %v5399 = vunpack.c.l.b16 %v5023
        %v5400 = vunpack.c.l.b16 %v5024
        %v5401 = vunpack.c.l.b16 %v5025
        %v5402 = vunpack.c.l.b16 %v5026
        %v5403 = vunpack.c.l.b16 %v5027
        %v5404 = vunpack.c.l.b16 %v5028
        %v5405 = vunpack.c.l.b16 %v5029
        %v5406 = vunpack.c.l.b16 %v5030
        %v5407 = vunpack.c.l.b16 %v5031
        %v5408 = vunpack.c.l.b16 %v5032
        %v5409 = vunpack.c.l.b16 %v5033
        %v5410 = vunpack.c.l.b16 %v5034
        %v5411 = vunpack.c.l.b16 %v5035
        %v5412 = vunpack.c.l.b16 %v5036
        %v5413 = vunpack.c.l.b16 %v5037
        %v5414 = vunpack.c.l.b16 %v5038
        %v5415 = vunpack.c.l.b16 %v5039
        %v5416 = vunpack.c.l.b16 %v5040
        %v5417 = vunpack.c.l.b16 %v5041
        %v5418 = vunpack.c.l.b16 %v5042
        %v5419 = vunpack.c.l.b16 %v5043
        %v5420 = vunpack.c.l.b16 %v5044
        %v5421 = vunpack.c.l.b16 %v5045
        %v5422 = vunpack.c.l.b16 %v5046
        %v5423 = vunpack.c.l.b16 %v5047
        %v5424 = vunpack.c.l.b16 %v5048
        %v5425 = vunpack.c.l.b16 %v5049
        %v5426 = vunpack.c.l.b16 %v5050
        %v5427 = vunpack.c.l.b16 %v5051
        %v5428 = vunpack.c.l.b16 %v5052
        %v5429 = vunpack.c.l.b16 %v5053
        %v5430 = vunpack.c.l.b16 %v5054
        %v5431 = vunpack.c.l.b16 %v5055
        %v5432 = vunpack.c.l.b16 %v5056
        %v5433 = vunpack.c.l.b16 %v5057
        %v5434 = vpack.c.b16 %v5395, %v5394
        %v5435 = vpack.c.b16 %v5397, %v5396
        %v5436 = vpack.c.b16 %v5399, %v5398
        %v5437 = vpack.c.b16 %v5401, %v5400
        %v5438 = vpack.c.b16 %v5403, %v5402
        %v5439 = vpack.c.b16 %v5405, %v5404
        %v5440 = vpack.c.b16 %v5407, %v5406
        %v5441 = vpack.c.b16 %v5409, %v5408
        %v5442 = vpack.c.b16 %v5411, %v5410
        %v5443 = vpack.c.b16 %v5413, %v5412
        %v5444 = vpack.c.b16 %v5415, %v5414
        %v5445 = vpack.c.b16 %v5417, %v5416
        %v5446 = vpack.c.b16 %v5419, %v5418
        %v5447 = vpack.c.b16 %v5421, %v5420
        %v5448 = vpack.c.b16 %v5423, %v5422
        %v5449 = vpack.c.b16 %v5425, %v5424
        %v5450 = vpack.c.b16 %v5427, %v5426
        %v5451 = vpack.c.b16 %v5429, %v5428
        %v5452 = vpack.c.b16 %v5431, %v5430
        %v5453 = vpack.c.b16 %v5433, %v5432
        %v5475 = vsel %vm2553, %v5008, 0
        %v5478 = vsel %vm2553, %v5011, 0
        %v5481 = vsel %vm2553, %v5014, 0
        %v5484 = vsel %vm2553, %v5017, 0
        %5486 = vmatpush.bf16.msra.mxu0 %v5441
        %5487 = vmatpush.bf16.msra.mxu0 %v5440
        %5488 = vmatpush.bf16.msra.mxu0 %v5439
        %5489 = vmatpush.bf16.msra.mxu0 %v5438
        %5490 = vmatpush.bf16.msra.mxu0 %v5437
        %5491 = vmatpush.bf16.msra.mxu0 %v5436
        %5492 = vmatpush.bf16.msra.mxu0 %v5435
        %5493 = vmatpush.bf16.msra.mxu0 %v5434
        %5494 = vmatmul.bf16.gmra.mxu0 %v5006
        %v5495 = vpop.f32.mrf.mxu0
        %v5496 = vadd.f32 %v5335, %v5495
        %v5497 = vpop.f32.mrf.mxu0
        %v5498 = vadd.f32 %v5337, %v5497
        %5499 = vmatmul.bf16.gmra.mxu0 %v5009
        %v5500 = vpop.f32.mrf.mxu0
        %v5501 = vadd.f32 %v5340, %v5500
        %v5502 = vpop.f32.mrf.mxu0
        %v5503 = vadd.f32 %v5342, %v5502
        %5504 = vmatmul.bf16.gmra.mxu0 %v5012
        %v5505 = vpop.f32.mrf.mxu0
        %v5506 = vadd.f32 %v5345, %v5505
        %v5507 = vpop.f32.mrf.mxu0
        %v5508 = vadd.f32 %v5347, %v5507
        %5509 = vmatmul.bf16.gmra.mxu0 %v5015
        %v5510 = vpop.f32.mrf.mxu0
        %v5511 = vadd.f32 %v5350, %v5510
        %v5512 = vpop.f32.mrf.mxu0
        %v5513 = vadd.f32 %v5352, %v5512
        %5514 = vdwg.mxu0
        %5515 = vmatpush.bf16.msra.mxu0 %v5449
        %5516 = vmatpush.bf16.msra.mxu0 %v5448
        %5517 = vmatpush.bf16.msra.mxu0 %v5447
        %5518 = vmatpush.bf16.msra.mxu0 %v5446
        %5519 = vmatpush.bf16.msra.mxu0 %v5445
        %5520 = vmatpush.bf16.msra.mxu0 %v5444
        %5521 = vmatpush.bf16.msra.mxu0 %v5443
        %5522 = vmatpush.bf16.msra.mxu0 %v5442
        %5523 = vmatmul.bf16.gmra.mxu0 %v5007
        %v5524 = vpop.f32.mrf.mxu0
        %v5525 = vadd.f32 %v5496, %v5524
        %v5526 = vpop.f32.mrf.mxu0
        %v5527 = vadd.f32 %v5498, %v5526
        %5528 = vmatmul.bf16.gmra.mxu0 %v5010
        %v5529 = vpop.f32.mrf.mxu0
        %v5530 = vadd.f32 %v5501, %v5529
        %v5531 = vpop.f32.mrf.mxu0
        %v5532 = vadd.f32 %v5503, %v5531
        %5533 = vmatmul.bf16.gmra.mxu0 %v5013
        %v5534 = vpop.f32.mrf.mxu0
        %v5535 = vadd.f32 %v5506, %v5534
        %v5536 = vpop.f32.mrf.mxu0
        %v5537 = vadd.f32 %v5508, %v5536
        %5538 = vmatmul.bf16.gmra.mxu0 %v5016
        %v5539 = vpop.f32.mrf.mxu0
        %v5540 = vadd.f32 %v5511, %v5539
        %v5541 = vpop.f32.mrf.mxu0
        %v5542 = vadd.f32 %v5513, %v5541
        %5543 = vdwg.mxu0
        %5544 = vmatpush.bf16.msra.mxu0 0
        %5545 = vmatpush.bf16.msra.mxu0 0
        %5546 = vmatpush.bf16.msra.mxu0 0
        %5547 = vmatpush.bf16.msra.mxu0 0
        %5548 = vmatpush.bf16.msra.mxu0 %v5453
        %5549 = vmatpush.bf16.msra.mxu0 %v5452
        %5550 = vmatpush.bf16.msra.mxu0 %v5451
        %5551 = vmatpush.bf16.msra.mxu0 %v5450
        %5552 = vmatmul.bf16.gmra.mxu0 %v5475
        %v5553 = vpop.f32.mrf.mxu0
        %v5554 = vadd.f32 %v5525, %v5553
        %v5555 = vpop.f32.mrf.mxu0
        %v5556 = vadd.f32 %v5527, %v5555
        %5557 = vmatmul.bf16.gmra.mxu0 %v5478
        %v5558 = vpop.f32.mrf.mxu0
        %v5559 = vadd.f32 %v5530, %v5558
        %v5560 = vpop.f32.mrf.mxu0
        %v5561 = vadd.f32 %v5532, %v5560
        %5562 = vmatmul.bf16.gmra.mxu0 %v5481
        %v5563 = vpop.f32.mrf.mxu0
        %v5564 = vadd.f32 %v5535, %v5563
        %v5565 = vpop.f32.mrf.mxu0
        %v5566 = vadd.f32 %v5537, %v5565
        %5567 = vmatmul.bf16.gmra.mxu0 %v5484
        %v5568 = vpop.f32.mrf.mxu0
        %v5569 = vadd.f32 %v5540, %v5568
        %v5570 = vpop.f32.mrf.mxu0
        %v5571 = vadd.f32 %v5542, %v5570
        %5572 = vdwg.mxu0
        %v5575 = vrot.slane %v4842, 1
        %v5576 = vrot.slane %v4850, 1
        %v5577 = vsel %vm2473, %v5575, %v5576
        %5578 = vrot.lane.b32.xlu0 %v5577, 64
        %v5579 = vpop.permute.xlu0 %5578
        %v5581 = vrot.slane %v4842, 2
        %v5582 = vrot.slane %v4850, 2
        %v5583 = vsel %vm2521, %v5581, %v5582
        %v5585 = vrot.slane %v4842, 3
        %v5586 = vrot.slane %v4850, 3
        %v5587 = vsel %vm4923, %v5585, %v5586
        %5588 = vrot.lane.b32.xlu0 %v5587, 64
        %v5589 = vpop.permute.xlu0 %5588
        %v5591 = vrot.slane %v4842, 4
        %v5592 = vrot.slane %v4850, 4
        %v5593 = vsel %vm4965, %v5591, %v5592
        %v5595 = vsel %vm2553, %v4842, %v5579
        %v5596 = vsel %vm2553, %v5583, %v5589
        %v5597 = vpack.c.bf16 %v5595, %v5080
        %v5598 = vpack.c.bf16 %v5596, %v5081
        %v5599 = vpack.c.bf16 %v5593, %v5078
        %s5600 = scalar_lea.vmem %s45, 320
        %v5601 = vld [vmem:[%s5600] sm:$0xf]
        %v5602 = vld [vmem:[%s5600 + $0x4] sm:$0xf]
        %v5603 = vld [vmem:[%s5600 + $0x8] sm:$0xf]
        %v5604 = vld [vmem:[%s5600 + $0xc] sm:$0xf]
        %v5605 = vld [vmem:[%s5600 + $0x10] sm:$0xf]
        %v5606 = vld [vmem:[%s5600 + $0x14] sm:$0xf]
        %v5607 = vld [vmem:[%s5600 + $0x18] sm:$0xf]
        %v5608 = vld [vmem:[%s5600 + $0x1c] sm:$0xf]
        %v5609 = vld [vmem:[%s5600 + $0x20] sm:$0xf]
        %v5610 = vld [vmem:[%s5600 + $0x24] sm:$0xf]
        %v5611 = vld [vmem:[%s5600 + $0x28] sm:$0xf]
        %v5612 = vld [vmem:[%s5600 + $0x2c] sm:$0xf]
        %v5613 = vld [vmem:[%s5600 + $0x30] sm:$0xf]
        %v5614 = vld [vmem:[%s5600 + $0x34] sm:$0xf]
        %v5615 = vld [vmem:[%s5600 + $0x38] sm:$0xf]
        %v5616 = vld [vmem:[%s5600 + $0x3c] sm:$0xf]
        %v5617 = vld [vmem:[%s5600 + $0x40] sm:$0xf]
        %v5618 = vld [vmem:[%s5600 + $0x44] sm:$0xf]
        %v5619 = vld [vmem:[%s5600 + $0x48] sm:$0xf]
        %v5620 = vld [vmem:[%s5600 + $0x4c] sm:$0xf]
        %v5621 = vld [vmem:[%s5600 + $0x50] sm:$0xf]
        %v5622 = vld [vmem:[%s5600 + $0x54] sm:$0xf]
        %v5623 = vld [vmem:[%s5600 + $0x58] sm:$0xf]
        %v5624 = vld [vmem:[%s5600 + $0x5c] sm:$0xf]
        %v5625 = vld [vmem:[%s5600 + $0x60] sm:$0xf]
        %v5626 = vld [vmem:[%s5600 + $0x64] sm:$0xf]
        %v5627 = vld [vmem:[%s5600 + $0x68] sm:$0xf]
        %v5628 = vld [vmem:[%s5600 + $0x6c] sm:$0xf]
        %v5629 = vld [vmem:[%s5600 + $0x70] sm:$0xf]
        %v5630 = vld [vmem:[%s5600 + $0x74] sm:$0xf]
        %v5631 = vld [vmem:[%s5600 + $0x78] sm:$0xf]
        %v5632 = vld [vmem:[%s5600 + $0x7c] sm:$0xf]
        %v5633 = vld [vmem:[%s5600 + $0x80] sm:$0xf]
        %v5634 = vld [vmem:[%s5600 + $0x84] sm:$0xf]
        %v5635 = vld [vmem:[%s5600 + $0x88] sm:$0xf]
        %v5636 = vld [vmem:[%s5600 + $0x8c] sm:$0xf]
        %v5637 = vld [vmem:[%s5600 + $0x90] sm:$0xf]
        %v5638 = vld [vmem:[%s5600 + $0x94] sm:$0xf]
        %v5639 = vld [vmem:[%s5600 + $0x98] sm:$0xf]
        %v5640 = vld [vmem:[%s5600 + $0x9c] sm:$0xf]
        %v5681 = vunpack.c.l.b16 %v5601
        %v5682 = vunpack.c.l.b16 %v5602
        %v5683 = vunpack.c.l.b16 %v5603
        %v5684 = vunpack.c.l.b16 %v5604
        %v5685 = vunpack.c.l.b16 %v5605
        %v5686 = vunpack.c.l.b16 %v5606
        %v5687 = vunpack.c.l.b16 %v5607
        %v5688 = vunpack.c.l.b16 %v5608
        %v5689 = vunpack.c.l.b16 %v5609
        %v5690 = vunpack.c.l.b16 %v5610
        %v5691 = vunpack.c.l.b16 %v5611
        %v5692 = vunpack.c.l.b16 %v5612
        %v5693 = vunpack.c.l.b16 %v5613
        %v5694 = vunpack.c.l.b16 %v5614
        %v5695 = vunpack.c.l.b16 %v5615
        %v5696 = vunpack.c.l.b16 %v5616
        %v5697 = vunpack.c.l.b16 %v5617
        %v5698 = vunpack.c.l.b16 %v5618
        %v5699 = vunpack.c.l.b16 %v5619
        %v5700 = vunpack.c.l.b16 %v5620
        %v5701 = vunpack.c.l.b16 %v5621
        %v5702 = vunpack.c.l.b16 %v5622
        %v5703 = vunpack.c.l.b16 %v5623
        %v5704 = vunpack.c.l.b16 %v5624
        %v5705 = vunpack.c.l.b16 %v5625
        %v5706 = vunpack.c.l.b16 %v5626
        %v5707 = vunpack.c.l.b16 %v5627
        %v5708 = vunpack.c.l.b16 %v5628
        %v5709 = vunpack.c.l.b16 %v5629
        %v5710 = vunpack.c.l.b16 %v5630
        %v5711 = vunpack.c.l.b16 %v5631
        %v5712 = vunpack.c.l.b16 %v5632
        %v5713 = vunpack.c.l.b16 %v5633
        %v5714 = vunpack.c.l.b16 %v5634
        %v5715 = vunpack.c.l.b16 %v5635
        %v5716 = vunpack.c.l.b16 %v5636
        %v5717 = vunpack.c.l.b16 %v5637
        %v5718 = vunpack.c.l.b16 %v5638
        %v5719 = vunpack.c.l.b16 %v5639
        %v5720 = vunpack.c.l.b16 %v5640
        %v5721 = vpack.c.b16 %v5682, %v5681
        %v5722 = vpack.c.b16 %v5684, %v5683
        %v5723 = vpack.c.b16 %v5686, %v5685
        %v5724 = vpack.c.b16 %v5688, %v5687
        %v5725 = vpack.c.b16 %v5690, %v5689
        %v5726 = vpack.c.b16 %v5692, %v5691
        %v5727 = vpack.c.b16 %v5694, %v5693
        %v5728 = vpack.c.b16 %v5696, %v5695
        %v5729 = vpack.c.b16 %v5698, %v5697
        %v5730 = vpack.c.b16 %v5700, %v5699
        %v5731 = vpack.c.b16 %v5702, %v5701
        %v5732 = vpack.c.b16 %v5704, %v5703
        %v5733 = vpack.c.b16 %v5706, %v5705
        %v5734 = vpack.c.b16 %v5708, %v5707
        %v5735 = vpack.c.b16 %v5710, %v5709
        %v5736 = vpack.c.b16 %v5712, %v5711
        %v5737 = vpack.c.b16 %v5714, %v5713
        %v5738 = vpack.c.b16 %v5716, %v5715
        %v5739 = vpack.c.b16 %v5718, %v5717
        %v5740 = vpack.c.b16 %v5720, %v5719
        %v5762 = vsel %vm2553, %v5599, 0
        %5764 = vmatpush.bf16.msra.mxu0 %v5728
        %5765 = vmatpush.bf16.msra.mxu0 %v5727
        %5766 = vmatpush.bf16.msra.mxu0 %v5726
        %5767 = vmatpush.bf16.msra.mxu0 %v5725
        %5768 = vmatpush.bf16.msra.mxu0 %v5724
        %5769 = vmatpush.bf16.msra.mxu0 %v5723
        %5770 = vmatpush.bf16.msra.mxu0 %v5722
        %5771 = vmatpush.bf16.msra.mxu0 %v5721
        %5772 = vmatmul.bf16.gmra.mxu0 %v5009
        %v5773 = vpop.f32.mrf.mxu0
        %v5774 = vadd.f32 0.0, %v5773
        %v5775 = vpop.f32.mrf.mxu0
        %v5776 = vadd.f32 0.0, %v5775
        %5777 = vmatmul.bf16.gmra.mxu0 %v5012
        %v5778 = vpop.f32.mrf.mxu0
        %v5779 = vadd.f32 0.0, %v5778
        %v5780 = vpop.f32.mrf.mxu0
        %v5781 = vadd.f32 0.0, %v5780
        %5782 = vmatmul.bf16.gmra.mxu0 %v5015
        %v5783 = vpop.f32.mrf.mxu0
        %v5784 = vadd.f32 0.0, %v5783
        %v5785 = vpop.f32.mrf.mxu0
        %v5786 = vadd.f32 0.0, %v5785
        %5787 = vmatmul.bf16.gmra.mxu0 %v5597
        %v5788 = vpop.f32.mrf.mxu0
        %v5789 = vadd.f32 0.0, %v5788
        %v5790 = vpop.f32.mrf.mxu0
        %v5791 = vadd.f32 0.0, %v5790
        %5792 = vdwg.mxu0
        %5793 = vmatpush.bf16.msra.mxu0 %v5736
        %5794 = vmatpush.bf16.msra.mxu0 %v5735
        %5795 = vmatpush.bf16.msra.mxu0 %v5734
        %5796 = vmatpush.bf16.msra.mxu0 %v5733
        %5797 = vmatpush.bf16.msra.mxu0 %v5732
        %5798 = vmatpush.bf16.msra.mxu0 %v5731
        %5799 = vmatpush.bf16.msra.mxu0 %v5730
        %5800 = vmatpush.bf16.msra.mxu0 %v5729
        %5801 = vmatmul.bf16.gmra.mxu0 %v5010
        %v5802 = vpop.f32.mrf.mxu0
        %v5803 = vadd.f32 %v5774, %v5802
        %v5804 = vpop.f32.mrf.mxu0
        %v5805 = vadd.f32 %v5776, %v5804
        %5806 = vmatmul.bf16.gmra.mxu0 %v5013
        %v5807 = vpop.f32.mrf.mxu0
        %v5808 = vadd.f32 %v5779, %v5807
        %v5809 = vpop.f32.mrf.mxu0
        %v5810 = vadd.f32 %v5781, %v5809
        %5811 = vmatmul.bf16.gmra.mxu0 %v5016
        %v5812 = vpop.f32.mrf.mxu0
        %v5813 = vadd.f32 %v5784, %v5812
        %v5814 = vpop.f32.mrf.mxu0
        %v5815 = vadd.f32 %v5786, %v5814
        %5816 = vmatmul.bf16.gmra.mxu0 %v5598
        %v5817 = vpop.f32.mrf.mxu0
        %v5818 = vadd.f32 %v5789, %v5817
        %v5819 = vpop.f32.mrf.mxu0
        %v5820 = vadd.f32 %v5791, %v5819
        %5821 = vdwg.mxu0
        %5822 = vmatpush.bf16.msra.mxu0 0
        %5823 = vmatpush.bf16.msra.mxu0 0
        %5824 = vmatpush.bf16.msra.mxu0 0
        %5825 = vmatpush.bf16.msra.mxu0 0
        %5826 = vmatpush.bf16.msra.mxu0 %v5740
        %5827 = vmatpush.bf16.msra.mxu0 %v5739
        %5828 = vmatpush.bf16.msra.mxu0 %v5738
        %5829 = vmatpush.bf16.msra.mxu0 %v5737
        %5830 = vmatmul.bf16.gmra.mxu0 %v5478
        %v5831 = vpop.f32.mrf.mxu0
        %v5832 = vadd.f32 %v5803, %v5831
        %v5833 = vpop.f32.mrf.mxu0
        %v5834 = vadd.f32 %v5805, %v5833
        %5835 = vmatmul.bf16.gmra.mxu0 %v5481
        %v5836 = vpop.f32.mrf.mxu0
        %v5837 = vadd.f32 %v5808, %v5836
        %v5838 = vpop.f32.mrf.mxu0
        %v5839 = vadd.f32 %v5810, %v5838
        %5840 = vmatmul.bf16.gmra.mxu0 %v5484
        %v5841 = vpop.f32.mrf.mxu0
        %v5842 = vadd.f32 %v5813, %v5841
        %v5843 = vpop.f32.mrf.mxu0
        %v5844 = vadd.f32 %v5815, %v5843
        %5845 = vmatmul.bf16.gmra.mxu0 %v5762
        %v5846 = vpop.f32.mrf.mxu0
        %v5847 = vadd.f32 %v5818, %v5846
        %v5848 = vpop.f32.mrf.mxu0
        %v5849 = vadd.f32 %v5820, %v5848
        %5850 = vdwg.mxu0
        %v5851 = vadd.f32 %v5554, %v5832
        %v5852 = vadd.f32 %v5556, %v5834
        %v5853 = vadd.f32 %v5559, %v5837
        %v5854 = vadd.f32 %v5561, %v5839
        %v5855 = vadd.f32 %v5564, %v5842
        %v5856 = vadd.f32 %v5566, %v5844
        %v5857 = vadd.f32 %v5569, %v5847
        %v5858 = vadd.f32 %v5571, %v5849
        %v5859 = vpack.c.bf16 %v2554, %v5595
        %v5860 = vpack.c.bf16 %v4999, %v5596
        %v5861 = vpack.c.bf16 %v4967, %v5593
        %s5862 = scalar_lea.vmem %s45, 480
        %v5863 = vld [vmem:[%s5862] sm:$0xf]
        %v5864 = vld [vmem:[%s5862 + $0x4] sm:$0xf]
        %v5865 = vld [vmem:[%s5862 + $0x8] sm:$0xf]
        %v5866 = vld [vmem:[%s5862 + $0xc] sm:$0xf]
        %v5867 = vld [vmem:[%s5862 + $0x10] sm:$0xf]
        %v5868 = vld [vmem:[%s5862 + $0x14] sm:$0xf]
        %v5869 = vld [vmem:[%s5862 + $0x18] sm:$0xf]
        %v5870 = vld [vmem:[%s5862 + $0x1c] sm:$0xf]
        %v5871 = vld [vmem:[%s5862 + $0x20] sm:$0xf]
        %v5872 = vld [vmem:[%s5862 + $0x24] sm:$0xf]
        %v5873 = vld [vmem:[%s5862 + $0x28] sm:$0xf]
        %v5874 = vld [vmem:[%s5862 + $0x2c] sm:$0xf]
        %v5875 = vld [vmem:[%s5862 + $0x30] sm:$0xf]
        %v5876 = vld [vmem:[%s5862 + $0x34] sm:$0xf]
        %v5877 = vld [vmem:[%s5862 + $0x38] sm:$0xf]
        %v5878 = vld [vmem:[%s5862 + $0x3c] sm:$0xf]
        %v5879 = vld [vmem:[%s5862 + $0x40] sm:$0xf]
        %v5880 = vld [vmem:[%s5862 + $0x44] sm:$0xf]
        %v5881 = vld [vmem:[%s5862 + $0x48] sm:$0xf]
        %v5882 = vld [vmem:[%s5862 + $0x4c] sm:$0xf]
        %v5883 = vld [vmem:[%s5862 + $0x50] sm:$0xf]
        %v5884 = vld [vmem:[%s5862 + $0x54] sm:$0xf]
        %v5885 = vld [vmem:[%s5862 + $0x58] sm:$0xf]
        %v5886 = vld [vmem:[%s5862 + $0x5c] sm:$0xf]
        %v5887 = vld [vmem:[%s5862 + $0x60] sm:$0xf]
        %v5888 = vld [vmem:[%s5862 + $0x64] sm:$0xf]
        %v5889 = vld [vmem:[%s5862 + $0x68] sm:$0xf]
        %v5890 = vld [vmem:[%s5862 + $0x6c] sm:$0xf]
        %v5891 = vld [vmem:[%s5862 + $0x70] sm:$0xf]
        %v5892 = vld [vmem:[%s5862 + $0x74] sm:$0xf]
        %v5893 = vld [vmem:[%s5862 + $0x78] sm:$0xf]
        %v5894 = vld [vmem:[%s5862 + $0x7c] sm:$0xf]
        %v5895 = vld [vmem:[%s5862 + $0x80] sm:$0xf]
        %v5896 = vld [vmem:[%s5862 + $0x84] sm:$0xf]
        %v5897 = vld [vmem:[%s5862 + $0x88] sm:$0xf]
        %v5898 = vld [vmem:[%s5862 + $0x8c] sm:$0xf]
        %v5899 = vld [vmem:[%s5862 + $0x90] sm:$0xf]
        %v5900 = vld [vmem:[%s5862 + $0x94] sm:$0xf]
        %v5901 = vld [vmem:[%s5862 + $0x98] sm:$0xf]
        %v5902 = vld [vmem:[%s5862 + $0x9c] sm:$0xf]
        %v5943 = vunpack.c.l.b16 %v5863
        %v5944 = vunpack.c.l.b16 %v5864
        %v5945 = vunpack.c.l.b16 %v5865
        %v5946 = vunpack.c.l.b16 %v5866
        %v5947 = vunpack.c.l.b16 %v5867
        %v5948 = vunpack.c.l.b16 %v5868
        %v5949 = vunpack.c.l.b16 %v5869
        %v5950 = vunpack.c.l.b16 %v5870
        %v5951 = vunpack.c.l.b16 %v5871
        %v5952 = vunpack.c.l.b16 %v5872
        %v5953 = vunpack.c.l.b16 %v5873
        %v5954 = vunpack.c.l.b16 %v5874
        %v5955 = vunpack.c.l.b16 %v5875
        %v5956 = vunpack.c.l.b16 %v5876
        %v5957 = vunpack.c.l.b16 %v5877
        %v5958 = vunpack.c.l.b16 %v5878
        %v5959 = vunpack.c.l.b16 %v5879
        %v5960 = vunpack.c.l.b16 %v5880
        %v5961 = vunpack.c.l.b16 %v5881
        %v5962 = vunpack.c.l.b16 %v5882
        %v5963 = vunpack.c.l.b16 %v5883
        %v5964 = vunpack.c.l.b16 %v5884
        %v5965 = vunpack.c.l.b16 %v5885
        %v5966 = vunpack.c.l.b16 %v5886
        %v5967 = vunpack.c.l.b16 %v5887
        %v5968 = vunpack.c.l.b16 %v5888
        %v5969 = vunpack.c.l.b16 %v5889
        %v5970 = vunpack.c.l.b16 %v5890
        %v5971 = vunpack.c.l.b16 %v5891
        %v5972 = vunpack.c.l.b16 %v5892
        %v5973 = vunpack.c.l.b16 %v5893
        %v5974 = vunpack.c.l.b16 %v5894
        %v5975 = vunpack.c.l.b16 %v5895
        %v5976 = vunpack.c.l.b16 %v5896
        %v5977 = vunpack.c.l.b16 %v5897
        %v5978 = vunpack.c.l.b16 %v5898
        %v5979 = vunpack.c.l.b16 %v5899
        %v5980 = vunpack.c.l.b16 %v5900
        %v5981 = vunpack.c.l.b16 %v5901
        %v5982 = vunpack.c.l.b16 %v5902
        %v5983 = vpack.c.b16 %v5944, %v5943
        %v5984 = vpack.c.b16 %v5946, %v5945
        %v5985 = vpack.c.b16 %v5948, %v5947
        %v5986 = vpack.c.b16 %v5950, %v5949
        %v5987 = vpack.c.b16 %v5952, %v5951
        %v5988 = vpack.c.b16 %v5954, %v5953
        %v5989 = vpack.c.b16 %v5956, %v5955
        %v5990 = vpack.c.b16 %v5958, %v5957
        %v5991 = vpack.c.b16 %v5960, %v5959
        %v5992 = vpack.c.b16 %v5962, %v5961
        %v5993 = vpack.c.b16 %v5964, %v5963
        %v5994 = vpack.c.b16 %v5966, %v5965
        %v5995 = vpack.c.b16 %v5968, %v5967
        %v5996 = vpack.c.b16 %v5970, %v5969
        %v5997 = vpack.c.b16 %v5972, %v5971
        %v5998 = vpack.c.b16 %v5974, %v5973
        %v5999 = vpack.c.b16 %v5976, %v5975
        %v6000 = vpack.c.b16 %v5978, %v5977
        %v6001 = vpack.c.b16 %v5980, %v5979
        %v6002 = vpack.c.b16 %v5982, %v5981
        %v6024 = vsel %vm2553, %v5861, 0
        %6026 = vmatpush.bf16.msra.mxu0 %v5990
        %6027 = vmatpush.bf16.msra.mxu0 %v5989
        %6028 = vmatpush.bf16.msra.mxu0 %v5988
        %6029 = vmatpush.bf16.msra.mxu0 %v5987
        %6030 = vmatpush.bf16.msra.mxu0 %v5986
        %6031 = vmatpush.bf16.msra.mxu0 %v5985
        %6032 = vmatpush.bf16.msra.mxu0 %v5984
        %6033 = vmatpush.bf16.msra.mxu0 %v5983
        %6034 = vmatmul.bf16.gmra.mxu0 %v5085
        %v6035 = vpop.f32.mrf.mxu0
        %v6036 = vadd.f32 0.0, %v6035
        %v6037 = vpop.f32.mrf.mxu0
        %v6038 = vadd.f32 0.0, %v6037
        %6039 = vmatmul.bf16.gmra.mxu0 %v5088
        %v6040 = vpop.f32.mrf.mxu0
        %v6041 = vadd.f32 0.0, %v6040
        %v6042 = vpop.f32.mrf.mxu0
        %v6043 = vadd.f32 0.0, %v6042
        %6044 = vmatmul.bf16.gmra.mxu0 %v5091
        %v6045 = vpop.f32.mrf.mxu0
        %v6046 = vadd.f32 0.0, %v6045
        %v6047 = vpop.f32.mrf.mxu0
        %v6048 = vadd.f32 0.0, %v6047
        %6049 = vmatmul.bf16.gmra.mxu0 %v5859
        %v6050 = vpop.f32.mrf.mxu0
        %v6051 = vadd.f32 0.0, %v6050
        %v6052 = vpop.f32.mrf.mxu0
        %v6053 = vadd.f32 0.0, %v6052
        %6054 = vdwg.mxu0
        %6055 = vmatpush.bf16.msra.mxu0 %v5998
        %6056 = vmatpush.bf16.msra.mxu0 %v5997
        %6057 = vmatpush.bf16.msra.mxu0 %v5996
        %6058 = vmatpush.bf16.msra.mxu0 %v5995
        %6059 = vmatpush.bf16.msra.mxu0 %v5994
        %6060 = vmatpush.bf16.msra.mxu0 %v5993
        %6061 = vmatpush.bf16.msra.mxu0 %v5992
        %6062 = vmatpush.bf16.msra.mxu0 %v5991
        %6063 = vmatmul.bf16.gmra.mxu0 %v5086
        %v6064 = vpop.f32.mrf.mxu0
        %v6065 = vadd.f32 %v6036, %v6064
        %v6066 = vpop.f32.mrf.mxu0
        %v6067 = vadd.f32 %v6038, %v6066
        %6068 = vmatmul.bf16.gmra.mxu0 %v5089
        %v6069 = vpop.f32.mrf.mxu0
        %v6070 = vadd.f32 %v6041, %v6069
        %v6071 = vpop.f32.mrf.mxu0
        %v6072 = vadd.f32 %v6043, %v6071
        %6073 = vmatmul.bf16.gmra.mxu0 %v5092
        %v6074 = vpop.f32.mrf.mxu0
        %v6075 = vadd.f32 %v6046, %v6074
        %v6076 = vpop.f32.mrf.mxu0
        %v6077 = vadd.f32 %v6048, %v6076
        %6078 = vmatmul.bf16.gmra.mxu0 %v5860
        %v6079 = vpop.f32.mrf.mxu0
        %v6080 = vadd.f32 %v6051, %v6079
        %v6081 = vpop.f32.mrf.mxu0
        %v6082 = vadd.f32 %v6053, %v6081
        %6083 = vdwg.mxu0
        %6084 = vmatpush.bf16.msra.mxu0 0
        %6085 = vmatpush.bf16.msra.mxu0 0
        %6086 = vmatpush.bf16.msra.mxu0 0
        %6087 = vmatpush.bf16.msra.mxu0 0
        %6088 = vmatpush.bf16.msra.mxu0 %v6002
        %6089 = vmatpush.bf16.msra.mxu0 %v6001
        %6090 = vmatpush.bf16.msra.mxu0 %v6000
        %6091 = vmatpush.bf16.msra.mxu0 %v5999
        %6092 = vmatmul.bf16.gmra.mxu0 %v5259
        %v6093 = vpop.f32.mrf.mxu0
        %v6094 = vadd.f32 %v6065, %v6093
        %v6095 = vpop.f32.mrf.mxu0
        %v6096 = vadd.f32 %v6067, %v6095
        %6097 = vmatmul.bf16.gmra.mxu0 %v5262
        %v6098 = vpop.f32.mrf.mxu0
        %v6099 = vadd.f32 %v6070, %v6098
        %v6100 = vpop.f32.mrf.mxu0
        %v6101 = vadd.f32 %v6072, %v6100
        %6102 = vmatmul.bf16.gmra.mxu0 %v5265
        %v6103 = vpop.f32.mrf.mxu0
        %v6104 = vadd.f32 %v6075, %v6103
        %v6105 = vpop.f32.mrf.mxu0
        %v6106 = vadd.f32 %v6077, %v6105
        %6107 = vmatmul.bf16.gmra.mxu0 %v6024
        %v6108 = vpop.f32.mrf.mxu0
        %v6109 = vadd.f32 %v6080, %v6108
        %v6110 = vpop.f32.mrf.mxu0
        %v6111 = vadd.f32 %v6082, %v6110
        %6112 = vdwg.mxu0
        %v6113 = vadd.f32 %v5851, %v6094
        %v6114 = vadd.f32 %v5852, %v6096
        %v6115 = vadd.f32 %v5853, %v6099
        %v6116 = vadd.f32 %v5854, %v6101
        %v6117 = vadd.f32 %v5855, %v6104
        %v6118 = vadd.f32 %v5856, %v6106
        %v6119 = vadd.f32 %v5857, %v6109
        %v6120 = vadd.f32 %v5858, %v6111
        %s6121 = scalar_lea.vmem %s45, 640
        %v6122 = vld [vmem:[%s6121] sm:$0xf]
        %v6123 = vld [vmem:[%s6121 + $0x4] sm:$0xf]
        %v6124 = vld [vmem:[%s6121 + $0x8] sm:$0xf]
        %v6125 = vld [vmem:[%s6121 + $0xc] sm:$0xf]
        %v6126 = vld [vmem:[%s6121 + $0x10] sm:$0xf]
        %v6127 = vld [vmem:[%s6121 + $0x14] sm:$0xf]
        %v6128 = vld [vmem:[%s6121 + $0x18] sm:$0xf]
        %v6129 = vld [vmem:[%s6121 + $0x1c] sm:$0xf]
        %v6130 = vld [vmem:[%s6121 + $0x20] sm:$0xf]
        %v6131 = vld [vmem:[%s6121 + $0x24] sm:$0xf]
        %v6132 = vld [vmem:[%s6121 + $0x28] sm:$0xf]
        %v6133 = vld [vmem:[%s6121 + $0x2c] sm:$0xf]
        %v6134 = vld [vmem:[%s6121 + $0x30] sm:$0xf]
        %v6135 = vld [vmem:[%s6121 + $0x34] sm:$0xf]
        %v6136 = vld [vmem:[%s6121 + $0x38] sm:$0xf]
        %v6137 = vld [vmem:[%s6121 + $0x3c] sm:$0xf]
        %v6138 = vld [vmem:[%s6121 + $0x40] sm:$0xf]
        %v6139 = vld [vmem:[%s6121 + $0x44] sm:$0xf]
        %v6140 = vld [vmem:[%s6121 + $0x48] sm:$0xf]
        %v6141 = vld [vmem:[%s6121 + $0x4c] sm:$0xf]
        %v6142 = vld [vmem:[%s6121 + $0x50] sm:$0xf]
        %v6143 = vld [vmem:[%s6121 + $0x54] sm:$0xf]
        %v6144 = vld [vmem:[%s6121 + $0x58] sm:$0xf]
        %v6145 = vld [vmem:[%s6121 + $0x5c] sm:$0xf]
        %v6146 = vld [vmem:[%s6121 + $0x60] sm:$0xf]
        %v6147 = vld [vmem:[%s6121 + $0x64] sm:$0xf]
        %v6148 = vld [vmem:[%s6121 + $0x68] sm:$0xf]
        %v6149 = vld [vmem:[%s6121 + $0x6c] sm:$0xf]
        %v6150 = vld [vmem:[%s6121 + $0x70] sm:$0xf]
        %v6151 = vld [vmem:[%s6121 + $0x74] sm:$0xf]
        %v6152 = vld [vmem:[%s6121 + $0x78] sm:$0xf]
        %v6153 = vld [vmem:[%s6121 + $0x7c] sm:$0xf]
        %v6154 = vld [vmem:[%s6121 + $0x80] sm:$0xf]
        %v6155 = vld [vmem:[%s6121 + $0x84] sm:$0xf]
        %v6156 = vld [vmem:[%s6121 + $0x88] sm:$0xf]
        %v6157 = vld [vmem:[%s6121 + $0x8c] sm:$0xf]
        %v6158 = vld [vmem:[%s6121 + $0x90] sm:$0xf]
        %v6159 = vld [vmem:[%s6121 + $0x94] sm:$0xf]
        %v6160 = vld [vmem:[%s6121 + $0x98] sm:$0xf]
        %v6161 = vld [vmem:[%s6121 + $0x9c] sm:$0xf]
        %v6202 = vunpack.c.l.b16 %v6122
        %v6203 = vunpack.c.l.b16 %v6123
        %v6204 = vunpack.c.l.b16 %v6124
        %v6205 = vunpack.c.l.b16 %v6125
        %v6206 = vunpack.c.l.b16 %v6126
        %v6207 = vunpack.c.l.b16 %v6127
        %v6208 = vunpack.c.l.b16 %v6128
        %v6209 = vunpack.c.l.b16 %v6129
        %v6210 = vunpack.c.l.b16 %v6130
        %v6211 = vunpack.c.l.b16 %v6131
        %v6212 = vunpack.c.l.b16 %v6132
        %v6213 = vunpack.c.l.b16 %v6133
        %v6214 = vunpack.c.l.b16 %v6134
        %v6215 = vunpack.c.l.b16 %v6135
        %v6216 = vunpack.c.l.b16 %v6136
        %v6217 = vunpack.c.l.b16 %v6137
        %v6218 = vunpack.c.l.b16 %v6138
        %v6219 = vunpack.c.l.b16 %v6139
        %v6220 = vunpack.c.l.b16 %v6140
        %v6221 = vunpack.c.l.b16 %v6141
        %v6222 = vunpack.c.l.b16 %v6142
        %v6223 = vunpack.c.l.b16 %v6143
        %v6224 = vunpack.c.l.b16 %v6144
        %v6225 = vunpack.c.l.b16 %v6145
        %v6226 = vunpack.c.l.b16 %v6146
        %v6227 = vunpack.c.l.b16 %v6147
        %v6228 = vunpack.c.l.b16 %v6148
        %v6229 = vunpack.c.l.b16 %v6149
        %v6230 = vunpack.c.l.b16 %v6150
        %v6231 = vunpack.c.l.b16 %v6151
        %v6232 = vunpack.c.l.b16 %v6152
        %v6233 = vunpack.c.l.b16 %v6153
        %v6234 = vunpack.c.l.b16 %v6154
        %v6235 = vunpack.c.l.b16 %v6155
        %v6236 = vunpack.c.l.b16 %v6156
        %v6237 = vunpack.c.l.b16 %v6157
        %v6238 = vunpack.c.l.b16 %v6158
        %v6239 = vunpack.c.l.b16 %v6159
        %v6240 = vunpack.c.l.b16 %v6160
        %v6241 = vunpack.c.l.b16 %v6161
        %v6242 = vpack.c.b16 %v6203, %v6202
        %v6243 = vpack.c.b16 %v6205, %v6204
        %v6244 = vpack.c.b16 %v6207, %v6206
        %v6245 = vpack.c.b16 %v6209, %v6208
        %v6246 = vpack.c.b16 %v6211, %v6210
        %v6247 = vpack.c.b16 %v6213, %v6212
        %v6248 = vpack.c.b16 %v6215, %v6214
        %v6249 = vpack.c.b16 %v6217, %v6216
        %v6250 = vpack.c.b16 %v6219, %v6218
        %v6251 = vpack.c.b16 %v6221, %v6220
        %v6252 = vpack.c.b16 %v6223, %v6222
        %v6253 = vpack.c.b16 %v6225, %v6224
        %v6254 = vpack.c.b16 %v6227, %v6226
        %v6255 = vpack.c.b16 %v6229, %v6228
        %v6256 = vpack.c.b16 %v6231, %v6230
        %v6257 = vpack.c.b16 %v6233, %v6232
        %v6258 = vpack.c.b16 %v6235, %v6234
        %v6259 = vpack.c.b16 %v6237, %v6236
        %v6260 = vpack.c.b16 %v6239, %v6238
        %v6261 = vpack.c.b16 %v6241, %v6240
        %6282 = vmatpush.bf16.msra.mxu0 %v6249
        %6283 = vmatpush.bf16.msra.mxu0 %v6248
        %6284 = vmatpush.bf16.msra.mxu0 %v6247
        %6285 = vmatpush.bf16.msra.mxu0 %v6246
        %6286 = vmatpush.bf16.msra.mxu0 %v6245
        %6287 = vmatpush.bf16.msra.mxu0 %v6244
        %6288 = vmatpush.bf16.msra.mxu0 %v6243
        %6289 = vmatpush.bf16.msra.mxu0 %v6242
        %6290 = vmatmul.bf16.gmra.mxu0 %v5012
        %v6291 = vpop.f32.mrf.mxu0
        %v6292 = vadd.f32 0.0, %v6291
        %v6293 = vpop.f32.mrf.mxu0
        %v6294 = vadd.f32 0.0, %v6293
        %6295 = vmatmul.bf16.gmra.mxu0 %v5015
        %v6296 = vpop.f32.mrf.mxu0
        %v6297 = vadd.f32 0.0, %v6296
        %v6298 = vpop.f32.mrf.mxu0
        %v6299 = vadd.f32 0.0, %v6298
        %6300 = vmatmul.bf16.gmra.mxu0 %v5597
        %v6301 = vpop.f32.mrf.mxu0
        %v6302 = vadd.f32 0.0, %v6301
        %v6303 = vpop.f32.mrf.mxu0
        %v6304 = vadd.f32 0.0, %v6303
        %6305 = vmatmul.bf16.gmra.mxu0 %v5006
        %v6306 = vpop.f32.mrf.mxu0
        %v6307 = vadd.f32 0.0, %v6306
        %v6308 = vpop.f32.mrf.mxu0
        %v6309 = vadd.f32 0.0, %v6308
        %6310 = vdwg.mxu0
        %6311 = vmatpush.bf16.msra.mxu0 %v6257
        %6312 = vmatpush.bf16.msra.mxu0 %v6256
        %6313 = vmatpush.bf16.msra.mxu0 %v6255
        %6314 = vmatpush.bf16.msra.mxu0 %v6254
        %6315 = vmatpush.bf16.msra.mxu0 %v6253
        %6316 = vmatpush.bf16.msra.mxu0 %v6252
        %6317 = vmatpush.bf16.msra.mxu0 %v6251
        %6318 = vmatpush.bf16.msra.mxu0 %v6250
        %6319 = vmatmul.bf16.gmra.mxu0 %v5013
        %v6320 = vpop.f32.mrf.mxu0
        %v6321 = vadd.f32 %v6292, %v6320
        %v6322 = vpop.f32.mrf.mxu0
        %v6323 = vadd.f32 %v6294, %v6322
        %6324 = vmatmul.bf16.gmra.mxu0 %v5016
        %v6325 = vpop.f32.mrf.mxu0
        %v6326 = vadd.f32 %v6297, %v6325
        %v6327 = vpop.f32.mrf.mxu0
        %v6328 = vadd.f32 %v6299, %v6327
        %6329 = vmatmul.bf16.gmra.mxu0 %v5598
        %v6330 = vpop.f32.mrf.mxu0
        %v6331 = vadd.f32 %v6302, %v6330
        %v6332 = vpop.f32.mrf.mxu0
        %v6333 = vadd.f32 %v6304, %v6332
        %6334 = vmatmul.bf16.gmra.mxu0 %v5007
        %v6335 = vpop.f32.mrf.mxu0
        %v6336 = vadd.f32 %v6307, %v6335
        %v6337 = vpop.f32.mrf.mxu0
        %v6338 = vadd.f32 %v6309, %v6337
        %6339 = vdwg.mxu0
        %6340 = vmatpush.bf16.msra.mxu0 0
        %6341 = vmatpush.bf16.msra.mxu0 0
        %6342 = vmatpush.bf16.msra.mxu0 0
        %6343 = vmatpush.bf16.msra.mxu0 0
        %6344 = vmatpush.bf16.msra.mxu0 %v6261
        %6345 = vmatpush.bf16.msra.mxu0 %v6260
        %6346 = vmatpush.bf16.msra.mxu0 %v6259
        %6347 = vmatpush.bf16.msra.mxu0 %v6258
        %6348 = vmatmul.bf16.gmra.mxu0 %v5481
        %v6349 = vpop.f32.mrf.mxu0
        %v6350 = vadd.f32 %v6321, %v6349
        %v6351 = vpop.f32.mrf.mxu0
        %v6352 = vadd.f32 %v6323, %v6351
        %6353 = vmatmul.bf16.gmra.mxu0 %v5484
        %v6354 = vpop.f32.mrf.mxu0
        %v6355 = vadd.f32 %v6326, %v6354
        %v6356 = vpop.f32.mrf.mxu0
        %v6357 = vadd.f32 %v6328, %v6356
        %6358 = vmatmul.bf16.gmra.mxu0 %v5762
        %v6359 = vpop.f32.mrf.mxu0
        %v6360 = vadd.f32 %v6331, %v6359
        %v6361 = vpop.f32.mrf.mxu0
        %v6362 = vadd.f32 %v6333, %v6361
        %6363 = vmatmul.bf16.gmra.mxu0 %v5475
        %v6364 = vpop.f32.mrf.mxu0
        %v6365 = vadd.f32 %v6336, %v6364
        %v6366 = vpop.f32.mrf.mxu0
        %v6367 = vadd.f32 %v6338, %v6366
        %6368 = vdwg.mxu0
        %v6369 = vadd.f32 %v6113, %v6350
        %v6370 = vadd.f32 %v6114, %v6352
        %v6371 = vadd.f32 %v6115, %v6355
        %v6372 = vadd.f32 %v6116, %v6357
        %v6373 = vadd.f32 %v6117, %v6360
        %v6374 = vadd.f32 %v6118, %v6362
        %v6375 = vadd.f32 %v6119, %v6365
        %v6376 = vadd.f32 %v6120, %v6367
        %v6378 = vperm.slane %v4809, 0
        %v6380 = vadd.f32 %v6369, %v6378
        %v6381 = vadd.f32 %v6370, %v6378
        %v6382 = vadd.f32 %v6371, %v6378
        %v6383 = vadd.f32 %v6372, %v6378
        %v6384 = vadd.f32 %v6373, %v6378
        %v6385 = vadd.f32 %v6374, %v6378
        %v6386 = vadd.f32 %v6375, %v6378
        %v6387 = vadd.f32 %v6376, %v6378
        %v6388 = vmax.f32 %v6380, 0.0
        %v6389 = vmax.f32 %v6381, 0.0
        %v6390 = vmax.f32 %v6382, 0.0
        %v6391 = vmax.f32 %v6383, 0.0
        %v6392 = vmax.f32 %v6384, 0.0
        %v6393 = vmax.f32 %v6385, 0.0
        %v6394 = vmax.f32 %v6386, 0.0
        %v6395 = vmax.f32 %v6387, 0.0
        %v6396 = vld [vmem:[%s51] sm:$0x1]
        %v6405 = vrot.slane %v6388, 7
        %v6406 = vrot.slane %v6389, 7
        %v6407 = vrot.slane %v6390, 7
        %v6408 = vrot.slane %v6391, 7
        %v6409 = vrot.slane %v6392, 7
        %v6410 = vrot.slane %v6393, 7
        %v6411 = vrot.slane %v6394, 7
        %v6412 = vrot.slane %v6395, 7
        %v6421 = vsel %vm2441, 0.0, %v6405
        %v6422 = vsel %vm2441, 0.0, %v6406
        %v6423 = vsel %vm2441, 0.0, %v6407
        %v6424 = vsel %vm2441, 0.0, %v6408
        %v6425 = vsel %vm2441, 0.0, %v6409
        %v6426 = vsel %vm2441, 0.0, %v6410
        %v6427 = vsel %vm2441, 0.0, %v6411
        %v6428 = vsel %vm2441, 0.0, %v6412
        %v6429 = vsel %vm2441, %v6405, 0.0
        %v6430 = vsel %vm2441, %v6406, 0.0
        %v6431 = vsel %vm2441, %v6407, 0.0
        %v6432 = vsel %vm2441, %v6408, 0.0
        %v6433 = vsel %vm2441, %v6409, 0.0
        %v6434 = vsel %vm2441, %v6410, 0.0
        %v6435 = vsel %vm2441, %v6411, 0.0
        %v6436 = vsel %vm2441, %v6412, 0.0
        %v6451 = vrot.slane %v6421, 1
        %v6452 = vrot.slane %v6429, 1
        %v6453 = vsel %vm2473, %v6451, %v6452
        %v6454 = vrot.slane %v6422, 1
        %v6455 = vrot.slane %v6430, 1
        %v6456 = vsel %vm2473, %v6454, %v6455
        %v6457 = vrot.slane %v6423, 1
        %v6458 = vrot.slane %v6431, 1
        %v6459 = vsel %vm2473, %v6457, %v6458
        %v6460 = vrot.slane %v6424, 1
        %v6461 = vrot.slane %v6432, 1
        %v6462 = vsel %vm2473, %v6460, %v6461
        %v6463 = vrot.slane %v6425, 1
        %v6464 = vrot.slane %v6433, 1
        %v6465 = vsel %vm2473, %v6463, %v6464
        %v6466 = vrot.slane %v6426, 1
        %v6467 = vrot.slane %v6434, 1
        %v6468 = vsel %vm2473, %v6466, %v6467
        %v6469 = vrot.slane %v6427, 1
        %v6470 = vrot.slane %v6435, 1
        %v6471 = vsel %vm2473, %v6469, %v6470
        %6472 = vrot.lane.b32.xlu0 %v6453, 64
        %v6473 = vpop.permute.xlu0 %6472
        %6474 = vrot.lane.b32.xlu0 %v6456, 64
        %v6475 = vpop.permute.xlu0 %6474
        %6476 = vrot.lane.b32.xlu0 %v6459, 64
        %v6477 = vpop.permute.xlu0 %6476
        %6478 = vrot.lane.b32.xlu0 %v6462, 64
        %v6479 = vpop.permute.xlu0 %6478
        %6480 = vrot.lane.b32.xlu0 %v6465, 64
        %v6481 = vpop.permute.xlu0 %6480
        %6482 = vrot.lane.b32.xlu0 %v6468, 64
        %v6483 = vpop.permute.xlu0 %6482
        %6484 = vrot.lane.b32.xlu0 %v6471, 64
        %v6485 = vpop.permute.xlu0 %6484
        %v6493 = vrot.slane %v6421, 2
        %v6494 = vrot.slane %v6429, 2
        %v6495 = vsel %vm2521, %v6493, %v6494
        %v6496 = vrot.slane %v6422, 2
        %v6497 = vrot.slane %v6430, 2
        %v6498 = vsel %vm2521, %v6496, %v6497
        %v6499 = vrot.slane %v6423, 2
        %v6500 = vrot.slane %v6431, 2
        %v6501 = vsel %vm2521, %v6499, %v6500
        %v6502 = vrot.slane %v6424, 2
        %v6503 = vrot.slane %v6432, 2
        %v6504 = vsel %vm2521, %v6502, %v6503
        %v6505 = vrot.slane %v6425, 2
        %v6506 = vrot.slane %v6433, 2
        %v6507 = vsel %vm2521, %v6505, %v6506
        %v6508 = vrot.slane %v6426, 2
        %v6509 = vrot.slane %v6434, 2
        %v6510 = vsel %vm2521, %v6508, %v6509
        %v6511 = vrot.slane %v6427, 2
        %v6512 = vrot.slane %v6435, 2
        %v6513 = vsel %vm2521, %v6511, %v6512
        %v6521 = vsel %vm2553, %v6421, %v6473
        %v6522 = vsel %vm2553, %v6422, %v6475
        %v6523 = vsel %vm2553, %v6423, %v6477
        %v6524 = vsel %vm2553, %v6424, %v6479
        %v6525 = vsel %vm2553, %v6425, %v6481
        %v6526 = vsel %vm2553, %v6426, %v6483
        %v6527 = vsel %vm2553, %v6427, %v6485
        %v6528 = vpack.c.bf16 %v6521, %v2554
        %v6529 = vpack.c.bf16 %v6495, %v2523
        %v6530 = vpack.c.bf16 %v6523, %v6522
        %v6531 = vpack.c.bf16 %v6501, %v6498
        %v6532 = vpack.c.bf16 %v6525, %v6524
        %v6533 = vpack.c.bf16 %v6507, %v6504
        %v6534 = vpack.c.bf16 %v6527, %v6526
        %v6535 = vpack.c.bf16 %v6513, %v6510
        %v6536 = vld [vmem:[%s49] sm:$0xf]
        %v6537 = vld [vmem:[%s49 + $0x4] sm:$0xf]
        %v6538 = vld [vmem:[%s49 + $0x8] sm:$0xf]
        %v6539 = vld [vmem:[%s49 + $0xc] sm:$0xf]
        %v6540 = vld [vmem:[%s49 + $0x10] sm:$0xf]
        %v6541 = vld [vmem:[%s49 + $0x14] sm:$0xf]
        %v6542 = vld [vmem:[%s49 + $0x18] sm:$0xf]
        %v6543 = vld [vmem:[%s49 + $0x1c] sm:$0xf]
        %v6544 = vld [vmem:[%s49 + $0x20] sm:$0xf]
        %v6545 = vld [vmem:[%s49 + $0x24] sm:$0xf]
        %v6546 = vld [vmem:[%s49 + $0x28] sm:$0xf]
        %v6547 = vld [vmem:[%s49 + $0x2c] sm:$0xf]
        %v6548 = vld [vmem:[%s49 + $0x30] sm:$0xf]
        %v6549 = vld [vmem:[%s49 + $0x34] sm:$0xf]
        %v6550 = vld [vmem:[%s49 + $0x38] sm:$0xf]
        %v6551 = vld [vmem:[%s49 + $0x3c] sm:$0xf]
        %v6552 = vld [vmem:[%s49 + $0x40] sm:$0xf]
        %v6553 = vld [vmem:[%s49 + $0x44] sm:$0xf]
        %v6554 = vld [vmem:[%s49 + $0x48] sm:$0xf]
        %v6555 = vld [vmem:[%s49 + $0x4c] sm:$0xf]
        %v6556 = vld [vmem:[%s49 + $0x50] sm:$0xf]
        %v6557 = vld [vmem:[%s49 + $0x54] sm:$0xf]
        %v6558 = vld [vmem:[%s49 + $0x58] sm:$0xf]
        %v6559 = vld [vmem:[%s49 + $0x5c] sm:$0xf]
        %v6562 = vrot.slane %v6428, 1
        %v6563 = vrot.slane %v6436, 1
        %v6564 = vsel %vm2473, %v6562, %v6563
        %6565 = vrot.lane.b32.xlu0 %v6564, 64
        %v6566 = vpop.permute.xlu0 %6565
        %v6568 = vrot.slane %v6428, 2
        %v6569 = vrot.slane %v6436, 2
        %v6570 = vsel %vm2521, %v6568, %v6569
        %v6572 = vsel %vm2553, %v6428, %v6566
        %v6573 = vpack.c.bf16 %v6522, %v6521
        %v6574 = vpack.c.bf16 %v6498, %v6495
        %v6575 = vpack.c.bf16 %v6524, %v6523
        %v6576 = vpack.c.bf16 %v6504, %v6501
        %v6577 = vpack.c.bf16 %v6526, %v6525
        %v6578 = vpack.c.bf16 %v6510, %v6507
        %v6579 = vpack.c.bf16 %v6572, %v6527
        %v6580 = vpack.c.bf16 %v6570, %v6513
        %s6581 = scalar_lea.vmem %s49, 96
        %v6582 = vld [vmem:[%s6581] sm:$0xf]
        %v6583 = vld [vmem:[%s6581 + $0x4] sm:$0xf]
        %v6584 = vld [vmem:[%s6581 + $0x8] sm:$0xf]
        %v6585 = vld [vmem:[%s6581 + $0xc] sm:$0xf]
        %v6586 = vld [vmem:[%s6581 + $0x10] sm:$0xf]
        %v6587 = vld [vmem:[%s6581 + $0x14] sm:$0xf]
        %v6588 = vld [vmem:[%s6581 + $0x18] sm:$0xf]
        %v6589 = vld [vmem:[%s6581 + $0x1c] sm:$0xf]
        %v6590 = vld [vmem:[%s6581 + $0x20] sm:$0xf]
        %v6591 = vld [vmem:[%s6581 + $0x24] sm:$0xf]
        %v6592 = vld [vmem:[%s6581 + $0x28] sm:$0xf]
        %v6593 = vld [vmem:[%s6581 + $0x2c] sm:$0xf]
        %v6594 = vld [vmem:[%s6581 + $0x30] sm:$0xf]
        %v6595 = vld [vmem:[%s6581 + $0x34] sm:$0xf]
        %v6596 = vld [vmem:[%s6581 + $0x38] sm:$0xf]
        %v6597 = vld [vmem:[%s6581 + $0x3c] sm:$0xf]
        %v6598 = vld [vmem:[%s6581 + $0x40] sm:$0xf]
        %v6599 = vld [vmem:[%s6581 + $0x44] sm:$0xf]
        %v6600 = vld [vmem:[%s6581 + $0x48] sm:$0xf]
        %v6601 = vld [vmem:[%s6581 + $0x4c] sm:$0xf]
        %v6602 = vld [vmem:[%s6581 + $0x50] sm:$0xf]
        %v6603 = vld [vmem:[%s6581 + $0x54] sm:$0xf]
        %v6604 = vld [vmem:[%s6581 + $0x58] sm:$0xf]
        %v6605 = vld [vmem:[%s6581 + $0x5c] sm:$0xf]
        %v6630 = vunpack.c.l.b16 %v6582
        %v6631 = vunpack.c.l.b16 %v6583
        %v6632 = vunpack.c.l.b16 %v6584
        %v6633 = vunpack.c.l.b16 %v6585
        %v6634 = vunpack.c.l.b16 %v6586
        %v6635 = vunpack.c.l.b16 %v6587
        %v6636 = vunpack.c.l.b16 %v6588
        %v6637 = vunpack.c.l.b16 %v6589
        %v6638 = vunpack.c.l.b16 %v6590
        %v6639 = vunpack.c.l.b16 %v6591
        %v6640 = vunpack.c.l.b16 %v6592
        %v6641 = vunpack.c.l.b16 %v6593
        %v6642 = vunpack.c.l.b16 %v6594
        %v6643 = vunpack.c.l.b16 %v6595
        %v6644 = vunpack.c.l.b16 %v6596
        %v6645 = vunpack.c.l.b16 %v6597
        %v6646 = vunpack.c.l.b16 %v6598
        %v6647 = vunpack.c.l.b16 %v6599
        %v6648 = vunpack.c.l.b16 %v6600
        %v6649 = vunpack.c.l.b16 %v6601
        %v6650 = vunpack.c.l.b16 %v6602
        %v6651 = vunpack.c.l.b16 %v6603
        %v6652 = vunpack.c.l.b16 %v6604
        %v6653 = vunpack.c.l.b16 %v6605
        %v6654 = vpack.c.b16 %v6631, %v6630
        %v6655 = vpack.c.b16 %v6633, %v6632
        %v6656 = vpack.c.b16 %v6635, %v6634
        %v6657 = vpack.c.b16 %v6637, %v6636
        %v6658 = vpack.c.b16 %v6639, %v6638
        %v6659 = vpack.c.b16 %v6641, %v6640
        %v6660 = vpack.c.b16 %v6643, %v6642
        %v6661 = vpack.c.b16 %v6645, %v6644
        %v6662 = vpack.c.b16 %v6647, %v6646
        %v6663 = vpack.c.b16 %v6649, %v6648
        %v6664 = vpack.c.b16 %v6651, %v6650
        %v6665 = vpack.c.b16 %v6653, %v6652
        %v6679 = vsel %vm2553, %v6574, 0
        %v6682 = vsel %vm2553, %v6576, 0
        %v6685 = vsel %vm2553, %v6578, 0
        %v6688 = vsel %vm2553, %v6580, 0
        %6690 = vmatpush.bf16.msra.mxu0 %v6661
        %6691 = vmatpush.bf16.msra.mxu0 %v6660
        %6692 = vmatpush.bf16.msra.mxu0 %v6659
        %6693 = vmatpush.bf16.msra.mxu0 %v6658
        %6694 = vmatpush.bf16.msra.mxu0 %v6657
        %6695 = vmatpush.bf16.msra.mxu0 %v6656
        %6696 = vmatpush.bf16.msra.mxu0 %v6655
        %6697 = vmatpush.bf16.msra.mxu0 %v6654
        %6698 = vmatmul.bf16.gmra.mxu0 %v6573
        %v6699 = vpop.f32.mrf.mxu0
        %v6700 = vadd.f32 0.0, %v6699
        %v6701 = vpop.f32.mrf.mxu0
        %v6702 = vadd.f32 0.0, %v6701
        %6703 = vmatmul.bf16.gmra.mxu0 %v6575
        %v6704 = vpop.f32.mrf.mxu0
        %v6705 = vadd.f32 0.0, %v6704
        %v6706 = vpop.f32.mrf.mxu0
        %v6707 = vadd.f32 0.0, %v6706
        %6708 = vmatmul.bf16.gmra.mxu0 %v6577
        %v6709 = vpop.f32.mrf.mxu0
        %v6710 = vadd.f32 0.0, %v6709
        %v6711 = vpop.f32.mrf.mxu0
        %v6712 = vadd.f32 0.0, %v6711
        %6713 = vmatmul.bf16.gmra.mxu0 %v6579
        %v6714 = vpop.f32.mrf.mxu0
        %v6715 = vadd.f32 0.0, %v6714
        %v6716 = vpop.f32.mrf.mxu0
        %v6717 = vadd.f32 0.0, %v6716
        %6718 = vdwg.mxu0
        %6719 = vmatpush.bf16.msra.mxu0 0
        %6720 = vmatpush.bf16.msra.mxu0 0
        %6721 = vmatpush.bf16.msra.mxu0 0
        %6722 = vmatpush.bf16.msra.mxu0 0
        %6723 = vmatpush.bf16.msra.mxu0 %v6665
        %6724 = vmatpush.bf16.msra.mxu0 %v6664
        %6725 = vmatpush.bf16.msra.mxu0 %v6663
        %6726 = vmatpush.bf16.msra.mxu0 %v6662
        %6727 = vmatmul.bf16.gmra.mxu0 %v6679
        %v6728 = vpop.f32.mrf.mxu0
        %v6729 = vadd.f32 %v6700, %v6728
        %v6730 = vpop.f32.mrf.mxu0
        %v6731 = vadd.f32 %v6702, %v6730
        %6732 = vmatmul.bf16.gmra.mxu0 %v6682
        %v6733 = vpop.f32.mrf.mxu0
        %v6734 = vadd.f32 %v6705, %v6733
        %v6735 = vpop.f32.mrf.mxu0
        %v6736 = vadd.f32 %v6707, %v6735
        %6737 = vmatmul.bf16.gmra.mxu0 %v6685
        %v6738 = vpop.f32.mrf.mxu0
        %v6739 = vadd.f32 %v6710, %v6738
        %v6740 = vpop.f32.mrf.mxu0
        %v6741 = vadd.f32 %v6712, %v6740
        %6742 = vmatmul.bf16.gmra.mxu0 %v6688
        %v6743 = vpop.f32.mrf.mxu0
        %v6744 = vadd.f32 %v6715, %v6743
        %v6745 = vpop.f32.mrf.mxu0
        %v6746 = vadd.f32 %v6717, %v6745
        %6747 = vdwg.mxu0
        %v6772 = vunpack.c.l.b16 %v6536
        %v6773 = vunpack.c.l.b16 %v6537
        %v6774 = vunpack.c.l.b16 %v6538
        %v6775 = vunpack.c.l.b16 %v6539
        %v6776 = vunpack.c.l.b16 %v6540
        %v6777 = vunpack.c.l.b16 %v6541
        %v6778 = vunpack.c.l.b16 %v6542
        %v6779 = vunpack.c.l.b16 %v6543
        %v6780 = vunpack.c.l.b16 %v6544
        %v6781 = vunpack.c.l.b16 %v6545
        %v6782 = vunpack.c.l.b16 %v6546
        %v6783 = vunpack.c.l.b16 %v6547
        %v6784 = vunpack.c.l.b16 %v6548
        %v6785 = vunpack.c.l.b16 %v6549
        %v6786 = vunpack.c.l.b16 %v6550
        %v6787 = vunpack.c.l.b16 %v6551
        %v6788 = vunpack.c.l.b16 %v6552
        %v6789 = vunpack.c.l.b16 %v6553
        %v6790 = vunpack.c.l.b16 %v6554
        %v6791 = vunpack.c.l.b16 %v6555
        %v6792 = vunpack.c.l.b16 %v6556
        %v6793 = vunpack.c.l.b16 %v6557
        %v6794 = vunpack.c.l.b16 %v6558
        %v6795 = vunpack.c.l.b16 %v6559
        %v6796 = vpack.c.b16 %v6773, %v6772
        %v6797 = vpack.c.b16 %v6775, %v6774
        %v6798 = vpack.c.b16 %v6777, %v6776
        %v6799 = vpack.c.b16 %v6779, %v6778
        %v6800 = vpack.c.b16 %v6781, %v6780
        %v6801 = vpack.c.b16 %v6783, %v6782
        %v6802 = vpack.c.b16 %v6785, %v6784
        %v6803 = vpack.c.b16 %v6787, %v6786
        %v6804 = vpack.c.b16 %v6789, %v6788
        %v6805 = vpack.c.b16 %v6791, %v6790
        %v6806 = vpack.c.b16 %v6793, %v6792
        %v6807 = vpack.c.b16 %v6795, %v6794
        %v6821 = vsel %vm2553, %v6529, 0
        %v6824 = vsel %vm2553, %v6531, 0
        %v6827 = vsel %vm2553, %v6533, 0
        %v6830 = vsel %vm2553, %v6535, 0
        %6832 = vmatpush.bf16.msra.mxu0 %v6803
        %6833 = vmatpush.bf16.msra.mxu0 %v6802
        %6834 = vmatpush.bf16.msra.mxu0 %v6801
        %6835 = vmatpush.bf16.msra.mxu0 %v6800
        %6836 = vmatpush.bf16.msra.mxu0 %v6799
        %6837 = vmatpush.bf16.msra.mxu0 %v6798
        %6838 = vmatpush.bf16.msra.mxu0 %v6797
        %6839 = vmatpush.bf16.msra.mxu0 %v6796
        %6840 = vmatmul.bf16.gmra.mxu0 %v6528
        %v6841 = vpop.f32.mrf.mxu0
        %v6842 = vadd.f32 %v6729, %v6841
        %v6843 = vpop.f32.mrf.mxu0
        %v6844 = vadd.f32 %v6731, %v6843
        %6845 = vmatmul.bf16.gmra.mxu0 %v6530
        %v6846 = vpop.f32.mrf.mxu0
        %v6847 = vadd.f32 %v6734, %v6846
        %v6848 = vpop.f32.mrf.mxu0
        %v6849 = vadd.f32 %v6736, %v6848
        %6850 = vmatmul.bf16.gmra.mxu0 %v6532
        %v6851 = vpop.f32.mrf.mxu0
        %v6852 = vadd.f32 %v6739, %v6851
        %v6853 = vpop.f32.mrf.mxu0
        %v6854 = vadd.f32 %v6741, %v6853
        %6855 = vmatmul.bf16.gmra.mxu0 %v6534
        %v6856 = vpop.f32.mrf.mxu0
        %v6857 = vadd.f32 %v6744, %v6856
        %v6858 = vpop.f32.mrf.mxu0
        %v6859 = vadd.f32 %v6746, %v6858
        %6860 = vdwg.mxu0
        %6861 = vmatpush.bf16.msra.mxu0 0
        %6862 = vmatpush.bf16.msra.mxu0 0
        %6863 = vmatpush.bf16.msra.mxu0 0
        %6864 = vmatpush.bf16.msra.mxu0 0
        %6865 = vmatpush.bf16.msra.mxu0 %v6807
        %6866 = vmatpush.bf16.msra.mxu0 %v6806
        %6867 = vmatpush.bf16.msra.mxu0 %v6805
        %6868 = vmatpush.bf16.msra.mxu0 %v6804
        %6869 = vmatmul.bf16.gmra.mxu0 %v6821
        %v6870 = vpop.f32.mrf.mxu0
        %v6871 = vadd.f32 %v6842, %v6870
        %v6872 = vpop.f32.mrf.mxu0
        %v6873 = vadd.f32 %v6844, %v6872
        %6874 = vmatmul.bf16.gmra.mxu0 %v6824
        %v6875 = vpop.f32.mrf.mxu0
        %v6876 = vadd.f32 %v6847, %v6875
        %v6877 = vpop.f32.mrf.mxu0
        %v6878 = vadd.f32 %v6849, %v6877
        %6879 = vmatmul.bf16.gmra.mxu0 %v6827
        %v6880 = vpop.f32.mrf.mxu0
        %v6881 = vadd.f32 %v6852, %v6880
        %v6882 = vpop.f32.mrf.mxu0
        %v6883 = vadd.f32 %v6854, %v6882
        %6884 = vmatmul.bf16.gmra.mxu0 %v6830
        %v6885 = vpop.f32.mrf.mxu0
        %v6886 = vadd.f32 %v6857, %v6885
        %v6887 = vpop.f32.mrf.mxu0
        %v6888 = vadd.f32 %v6859, %v6887
        %6889 = vdwg.mxu0
        %v6890 = vpack.c.bf16 %v2554, %v6572
        %v6891 = vpack.c.bf16 %v2523, %v6570
        %s6892 = scalar_lea.vmem %s49, 192
        %v6893 = vld [vmem:[%s6892] sm:$0xf]
        %v6894 = vld [vmem:[%s6892 + $0x4] sm:$0xf]
        %v6895 = vld [vmem:[%s6892 + $0x8] sm:$0xf]
        %v6896 = vld [vmem:[%s6892 + $0xc] sm:$0xf]
        %v6897 = vld [vmem:[%s6892 + $0x10] sm:$0xf]
        %v6898 = vld [vmem:[%s6892 + $0x14] sm:$0xf]
        %v6899 = vld [vmem:[%s6892 + $0x18] sm:$0xf]
        %v6900 = vld [vmem:[%s6892 + $0x1c] sm:$0xf]
        %v6901 = vld [vmem:[%s6892 + $0x20] sm:$0xf]
        %v6902 = vld [vmem:[%s6892 + $0x24] sm:$0xf]
        %v6903 = vld [vmem:[%s6892 + $0x28] sm:$0xf]
        %v6904 = vld [vmem:[%s6892 + $0x2c] sm:$0xf]
        %v6905 = vld [vmem:[%s6892 + $0x30] sm:$0xf]
        %v6906 = vld [vmem:[%s6892 + $0x34] sm:$0xf]
        %v6907 = vld [vmem:[%s6892 + $0x38] sm:$0xf]
        %v6908 = vld [vmem:[%s6892 + $0x3c] sm:$0xf]
        %v6909 = vld [vmem:[%s6892 + $0x40] sm:$0xf]
        %v6910 = vld [vmem:[%s6892 + $0x44] sm:$0xf]
        %v6911 = vld [vmem:[%s6892 + $0x48] sm:$0xf]
        %v6912 = vld [vmem:[%s6892 + $0x4c] sm:$0xf]
        %v6913 = vld [vmem:[%s6892 + $0x50] sm:$0xf]
        %v6914 = vld [vmem:[%s6892 + $0x54] sm:$0xf]
        %v6915 = vld [vmem:[%s6892 + $0x58] sm:$0xf]
        %v6916 = vld [vmem:[%s6892 + $0x5c] sm:$0xf]
        %v6941 = vunpack.c.l.b16 %v6893
        %v6942 = vunpack.c.l.b16 %v6894
        %v6943 = vunpack.c.l.b16 %v6895
        %v6944 = vunpack.c.l.b16 %v6896
        %v6945 = vunpack.c.l.b16 %v6897
        %v6946 = vunpack.c.l.b16 %v6898
        %v6947 = vunpack.c.l.b16 %v6899
        %v6948 = vunpack.c.l.b16 %v6900
        %v6949 = vunpack.c.l.b16 %v6901
        %v6950 = vunpack.c.l.b16 %v6902
        %v6951 = vunpack.c.l.b16 %v6903
        %v6952 = vunpack.c.l.b16 %v6904
        %v6953 = vunpack.c.l.b16 %v6905
        %v6954 = vunpack.c.l.b16 %v6906
        %v6955 = vunpack.c.l.b16 %v6907
        %v6956 = vunpack.c.l.b16 %v6908
        %v6957 = vunpack.c.l.b16 %v6909
        %v6958 = vunpack.c.l.b16 %v6910
        %v6959 = vunpack.c.l.b16 %v6911
        %v6960 = vunpack.c.l.b16 %v6912
        %v6961 = vunpack.c.l.b16 %v6913
        %v6962 = vunpack.c.l.b16 %v6914
        %v6963 = vunpack.c.l.b16 %v6915
        %v6964 = vunpack.c.l.b16 %v6916
        %v6965 = vpack.c.b16 %v6942, %v6941
        %v6966 = vpack.c.b16 %v6944, %v6943
        %v6967 = vpack.c.b16 %v6946, %v6945
        %v6968 = vpack.c.b16 %v6948, %v6947
        %v6969 = vpack.c.b16 %v6950, %v6949
        %v6970 = vpack.c.b16 %v6952, %v6951
        %v6971 = vpack.c.b16 %v6954, %v6953
        %v6972 = vpack.c.b16 %v6956, %v6955
        %v6973 = vpack.c.b16 %v6958, %v6957
        %v6974 = vpack.c.b16 %v6960, %v6959
        %v6975 = vpack.c.b16 %v6962, %v6961
        %v6976 = vpack.c.b16 %v6964, %v6963
        %v6990 = vsel %vm2553, %v6891, 0
        %6992 = vmatpush.bf16.msra.mxu0 %v6972
        %6993 = vmatpush.bf16.msra.mxu0 %v6971
        %6994 = vmatpush.bf16.msra.mxu0 %v6970
        %6995 = vmatpush.bf16.msra.mxu0 %v6969
        %6996 = vmatpush.bf16.msra.mxu0 %v6968
        %6997 = vmatpush.bf16.msra.mxu0 %v6967
        %6998 = vmatpush.bf16.msra.mxu0 %v6966
        %6999 = vmatpush.bf16.msra.mxu0 %v6965
        %7000 = vmatmul.bf16.gmra.mxu0 %v6530
        %v7001 = vpop.f32.mrf.mxu0
        %v7002 = vadd.f32 0.0, %v7001
        %v7003 = vpop.f32.mrf.mxu0
        %v7004 = vadd.f32 0.0, %v7003
        %7005 = vmatmul.bf16.gmra.mxu0 %v6532
        %v7006 = vpop.f32.mrf.mxu0
        %v7007 = vadd.f32 0.0, %v7006
        %v7008 = vpop.f32.mrf.mxu0
        %v7009 = vadd.f32 0.0, %v7008
        %7010 = vmatmul.bf16.gmra.mxu0 %v6534
        %v7011 = vpop.f32.mrf.mxu0
        %v7012 = vadd.f32 0.0, %v7011
        %v7013 = vpop.f32.mrf.mxu0
        %v7014 = vadd.f32 0.0, %v7013
        %7015 = vmatmul.bf16.gmra.mxu0 %v6890
        %v7016 = vpop.f32.mrf.mxu0
        %v7017 = vadd.f32 0.0, %v7016
        %v7018 = vpop.f32.mrf.mxu0
        %v7019 = vadd.f32 0.0, %v7018
        %7020 = vdwg.mxu0
        %7021 = vmatpush.bf16.msra.mxu0 0
        %7022 = vmatpush.bf16.msra.mxu0 0
        %7023 = vmatpush.bf16.msra.mxu0 0
        %7024 = vmatpush.bf16.msra.mxu0 0
        %7025 = vmatpush.bf16.msra.mxu0 %v6976
        %7026 = vmatpush.bf16.msra.mxu0 %v6975
        %7027 = vmatpush.bf16.msra.mxu0 %v6974
        %7028 = vmatpush.bf16.msra.mxu0 %v6973
        %7029 = vmatmul.bf16.gmra.mxu0 %v6824
        %v7030 = vpop.f32.mrf.mxu0
        %v7031 = vadd.f32 %v7002, %v7030
        %v7032 = vpop.f32.mrf.mxu0
        %v7033 = vadd.f32 %v7004, %v7032
        %7034 = vmatmul.bf16.gmra.mxu0 %v6827
        %v7035 = vpop.f32.mrf.mxu0
        %v7036 = vadd.f32 %v7007, %v7035
        %v7037 = vpop.f32.mrf.mxu0
        %v7038 = vadd.f32 %v7009, %v7037
        %7039 = vmatmul.bf16.gmra.mxu0 %v6830
        %v7040 = vpop.f32.mrf.mxu0
        %v7041 = vadd.f32 %v7012, %v7040
        %v7042 = vpop.f32.mrf.mxu0
        %v7043 = vadd.f32 %v7014, %v7042
        %7044 = vmatmul.bf16.gmra.mxu0 %v6990
        %v7045 = vpop.f32.mrf.mxu0
        %v7046 = vadd.f32 %v7017, %v7045
        %v7047 = vpop.f32.mrf.mxu0
        %v7048 = vadd.f32 %v7019, %v7047
        %7049 = vdwg.mxu0
        %v7050 = vadd.f32 %v6871, %v7031
        %v7051 = vadd.f32 %v6873, %v7033
        %v7052 = vadd.f32 %v6876, %v7036
        %v7053 = vadd.f32 %v6878, %v7038
        %v7054 = vadd.f32 %v6881, %v7041
        %v7055 = vadd.f32 %v6883, %v7043
        %v7056 = vadd.f32 %v6886, %v7046
        %v7057 = vadd.f32 %v6888, %v7048
        %v7059 = vperm.slane %v6396, 0
        %v7061 = vadd.f32 %v7050, %v7059
        %v7062 = vadd.f32 %v7051, %v7059
        %v7063 = vadd.f32 %v7052, %v7059
        %v7064 = vadd.f32 %v7053, %v7059
        %v7065 = vadd.f32 %v7054, %v7059
        %v7066 = vadd.f32 %v7055, %v7059
        %v7067 = vadd.f32 %v7056, %v7059
        %v7068 = vadd.f32 %v7057, %v7059
        %v7069 = vmax.f32 %v7061, 0.0
        %v7070 = vmax.f32 %v7062, 0.0
        %v7071 = vmax.f32 %v7063, 0.0
        %v7072 = vmax.f32 %v7064, 0.0
        %v7073 = vmax.f32 %v7065, 0.0
        %v7074 = vmax.f32 %v7066, 0.0
        %v7075 = vmax.f32 %v7067, 0.0
        %v7076 = vmax.f32 %v7068, 0.0
        %v7077 = vld [vmem:[%s55] sm:$0x1]
        %v7086 = vrot.slane %v7069, 7
        %v7087 = vrot.slane %v7070, 7
        %v7088 = vrot.slane %v7071, 7
        %v7089 = vrot.slane %v7072, 7
        %v7090 = vrot.slane %v7073, 7
        %v7091 = vrot.slane %v7074, 7
        %v7092 = vrot.slane %v7075, 7
        %v7093 = vrot.slane %v7076, 7
        %v7102 = vsel %vm2441, 0.0, %v7086
        %v7103 = vsel %vm2441, 0.0, %v7087
        %v7104 = vsel %vm2441, 0.0, %v7088
        %v7105 = vsel %vm2441, 0.0, %v7089
        %v7106 = vsel %vm2441, 0.0, %v7090
        %v7107 = vsel %vm2441, 0.0, %v7091
        %v7108 = vsel %vm2441, 0.0, %v7092
        %v7109 = vsel %vm2441, 0.0, %v7093
        %v7110 = vsel %vm2441, %v7086, 0.0
        %v7111 = vsel %vm2441, %v7087, 0.0
        %v7112 = vsel %vm2441, %v7088, 0.0
        %v7113 = vsel %vm2441, %v7089, 0.0
        %v7114 = vsel %vm2441, %v7090, 0.0
        %v7115 = vsel %vm2441, %v7091, 0.0
        %v7116 = vsel %vm2441, %v7092, 0.0
        %v7117 = vsel %vm2441, %v7093, 0.0
        %v7132 = vrot.slane %v7102, 1
        %v7133 = vrot.slane %v7110, 1
        %v7134 = vsel %vm2473, %v7132, %v7133
        %v7135 = vrot.slane %v7103, 1
        %v7136 = vrot.slane %v7111, 1
        %v7137 = vsel %vm2473, %v7135, %v7136
        %v7138 = vrot.slane %v7104, 1
        %v7139 = vrot.slane %v7112, 1
        %v7140 = vsel %vm2473, %v7138, %v7139
        %v7141 = vrot.slane %v7105, 1
        %v7142 = vrot.slane %v7113, 1
        %v7143 = vsel %vm2473, %v7141, %v7142
        %v7144 = vrot.slane %v7106, 1
        %v7145 = vrot.slane %v7114, 1
        %v7146 = vsel %vm2473, %v7144, %v7145
        %v7147 = vrot.slane %v7107, 1
        %v7148 = vrot.slane %v7115, 1
        %v7149 = vsel %vm2473, %v7147, %v7148
        %v7150 = vrot.slane %v7108, 1
        %v7151 = vrot.slane %v7116, 1
        %v7152 = vsel %vm2473, %v7150, %v7151
        %7153 = vrot.lane.b32.xlu0 %v7134, 64
        %v7154 = vpop.permute.xlu0 %7153
        %7155 = vrot.lane.b32.xlu0 %v7137, 64
        %v7156 = vpop.permute.xlu0 %7155
        %7157 = vrot.lane.b32.xlu0 %v7140, 64
        %v7158 = vpop.permute.xlu0 %7157
        %7159 = vrot.lane.b32.xlu0 %v7143, 64
        %v7160 = vpop.permute.xlu0 %7159
        %7161 = vrot.lane.b32.xlu0 %v7146, 64
        %v7162 = vpop.permute.xlu0 %7161
        %7163 = vrot.lane.b32.xlu0 %v7149, 64
        %v7164 = vpop.permute.xlu0 %7163
        %7165 = vrot.lane.b32.xlu0 %v7152, 64
        %v7166 = vpop.permute.xlu0 %7165
        %v7174 = vrot.slane %v7102, 2
        %v7175 = vrot.slane %v7110, 2
        %v7176 = vsel %vm2521, %v7174, %v7175
        %v7177 = vrot.slane %v7103, 2
        %v7178 = vrot.slane %v7111, 2
        %v7179 = vsel %vm2521, %v7177, %v7178
        %v7180 = vrot.slane %v7104, 2
        %v7181 = vrot.slane %v7112, 2
        %v7182 = vsel %vm2521, %v7180, %v7181
        %v7183 = vrot.slane %v7105, 2
        %v7184 = vrot.slane %v7113, 2
        %v7185 = vsel %vm2521, %v7183, %v7184
        %v7186 = vrot.slane %v7106, 2
        %v7187 = vrot.slane %v7114, 2
        %v7188 = vsel %vm2521, %v7186, %v7187
        %v7189 = vrot.slane %v7107, 2
        %v7190 = vrot.slane %v7115, 2
        %v7191 = vsel %vm2521, %v7189, %v7190
        %v7192 = vrot.slane %v7108, 2
        %v7193 = vrot.slane %v7116, 2
        %v7194 = vsel %vm2521, %v7192, %v7193
        %v7202 = vsel %vm2553, %v7102, %v7154
        %v7203 = vsel %vm2553, %v7103, %v7156
        %v7204 = vsel %vm2553, %v7104, %v7158
        %v7205 = vsel %vm2553, %v7105, %v7160
        %v7206 = vsel %vm2553, %v7106, %v7162
        %v7207 = vsel %vm2553, %v7107, %v7164
        %v7208 = vsel %vm2553, %v7108, %v7166
        %v7209 = vpack.c.bf16 %v7202, %v2554
        %v7210 = vpack.c.bf16 %v7176, %v2523
        %v7211 = vpack.c.bf16 %v7204, %v7203
        %v7212 = vpack.c.bf16 %v7182, %v7179
        %v7213 = vpack.c.bf16 %v7206, %v7205
        %v7214 = vpack.c.bf16 %v7188, %v7185
        %v7215 = vpack.c.bf16 %v7208, %v7207
        %v7216 = vpack.c.bf16 %v7194, %v7191
        %v7217 = vld [vmem:[%s53] sm:$0xf]
        %v7218 = vld [vmem:[%s53 + $0x4] sm:$0xf]
        %v7219 = vld [vmem:[%s53 + $0x8] sm:$0xf]
        %v7220 = vld [vmem:[%s53 + $0xc] sm:$0xf]
        %v7221 = vld [vmem:[%s53 + $0x10] sm:$0xf]
        %v7222 = vld [vmem:[%s53 + $0x14] sm:$0xf]
        %v7223 = vld [vmem:[%s53 + $0x18] sm:$0xf]
        %v7224 = vld [vmem:[%s53 + $0x1c] sm:$0xf]
        %v7225 = vld [vmem:[%s53 + $0x20] sm:$0xf]
        %v7226 = vld [vmem:[%s53 + $0x24] sm:$0xf]
        %v7227 = vld [vmem:[%s53 + $0x28] sm:$0xf]
        %v7228 = vld [vmem:[%s53 + $0x2c] sm:$0xf]
        %v7229 = vld [vmem:[%s53 + $0x30] sm:$0xf]
        %v7230 = vld [vmem:[%s53 + $0x34] sm:$0xf]
        %v7231 = vld [vmem:[%s53 + $0x38] sm:$0xf]
        %v7232 = vld [vmem:[%s53 + $0x3c] sm:$0xf]
        %v7233 = vld [vmem:[%s53 + $0x40] sm:$0xf]
        %v7234 = vld [vmem:[%s53 + $0x44] sm:$0xf]
        %v7235 = vld [vmem:[%s53 + $0x48] sm:$0xf]
        %v7236 = vld [vmem:[%s53 + $0x4c] sm:$0xf]
        %v7237 = vld [vmem:[%s53 + $0x50] sm:$0xf]
        %v7238 = vld [vmem:[%s53 + $0x54] sm:$0xf]
        %v7239 = vld [vmem:[%s53 + $0x58] sm:$0xf]
        %v7240 = vld [vmem:[%s53 + $0x5c] sm:$0xf]
        %v7243 = vrot.slane %v7109, 1
        %v7244 = vrot.slane %v7117, 1
        %v7245 = vsel %vm2473, %v7243, %v7244
        %7246 = vrot.lane.b32.xlu0 %v7245, 64
        %v7247 = vpop.permute.xlu0 %7246
        %v7249 = vrot.slane %v7109, 2
        %v7250 = vrot.slane %v7117, 2
        %v7251 = vsel %vm2521, %v7249, %v7250
        %v7253 = vsel %vm2553, %v7109, %v7247
        %v7254 = vpack.c.bf16 %v7203, %v7202
        %v7255 = vpack.c.bf16 %v7179, %v7176
        %v7256 = vpack.c.bf16 %v7205, %v7204
        %v7257 = vpack.c.bf16 %v7185, %v7182
        %v7258 = vpack.c.bf16 %v7207, %v7206
        %v7259 = vpack.c.bf16 %v7191, %v7188
        %v7260 = vpack.c.bf16 %v7253, %v7208
        %v7261 = vpack.c.bf16 %v7251, %v7194
        %s7262 = scalar_lea.vmem %s53, 96
        %v7263 = vld [vmem:[%s7262] sm:$0xf]
        %v7264 = vld [vmem:[%s7262 + $0x4] sm:$0xf]
        %v7265 = vld [vmem:[%s7262 + $0x8] sm:$0xf]
        %v7266 = vld [vmem:[%s7262 + $0xc] sm:$0xf]
        %v7267 = vld [vmem:[%s7262 + $0x10] sm:$0xf]
        %v7268 = vld [vmem:[%s7262 + $0x14] sm:$0xf]
        %v7269 = vld [vmem:[%s7262 + $0x18] sm:$0xf]
        %v7270 = vld [vmem:[%s7262 + $0x1c] sm:$0xf]
        %v7271 = vld [vmem:[%s7262 + $0x20] sm:$0xf]
        %v7272 = vld [vmem:[%s7262 + $0x24] sm:$0xf]
        %v7273 = vld [vmem:[%s7262 + $0x28] sm:$0xf]
        %v7274 = vld [vmem:[%s7262 + $0x2c] sm:$0xf]
        %v7275 = vld [vmem:[%s7262 + $0x30] sm:$0xf]
        %v7276 = vld [vmem:[%s7262 + $0x34] sm:$0xf]
        %v7277 = vld [vmem:[%s7262 + $0x38] sm:$0xf]
        %v7278 = vld [vmem:[%s7262 + $0x3c] sm:$0xf]
        %v7279 = vld [vmem:[%s7262 + $0x40] sm:$0xf]
        %v7280 = vld [vmem:[%s7262 + $0x44] sm:$0xf]
        %v7281 = vld [vmem:[%s7262 + $0x48] sm:$0xf]
        %v7282 = vld [vmem:[%s7262 + $0x4c] sm:$0xf]
        %v7283 = vld [vmem:[%s7262 + $0x50] sm:$0xf]
        %v7284 = vld [vmem:[%s7262 + $0x54] sm:$0xf]
        %v7285 = vld [vmem:[%s7262 + $0x58] sm:$0xf]
        %v7286 = vld [vmem:[%s7262 + $0x5c] sm:$0xf]
        %v7311 = vunpack.c.l.b16 %v7263
        %v7312 = vunpack.c.l.b16 %v7264
        %v7313 = vunpack.c.l.b16 %v7265
        %v7314 = vunpack.c.l.b16 %v7266
        %v7315 = vunpack.c.l.b16 %v7267
        %v7316 = vunpack.c.l.b16 %v7268
        %v7317 = vunpack.c.l.b16 %v7269
        %v7318 = vunpack.c.l.b16 %v7270
        %v7319 = vunpack.c.l.b16 %v7271
        %v7320 = vunpack.c.l.b16 %v7272
        %v7321 = vunpack.c.l.b16 %v7273
        %v7322 = vunpack.c.l.b16 %v7274
        %v7323 = vunpack.c.l.b16 %v7275
        %v7324 = vunpack.c.l.b16 %v7276
        %v7325 = vunpack.c.l.b16 %v7277
        %v7326 = vunpack.c.l.b16 %v7278
        %v7327 = vunpack.c.l.b16 %v7279
        %v7328 = vunpack.c.l.b16 %v7280
        %v7329 = vunpack.c.l.b16 %v7281
        %v7330 = vunpack.c.l.b16 %v7282
        %v7331 = vunpack.c.l.b16 %v7283
        %v7332 = vunpack.c.l.b16 %v7284
        %v7333 = vunpack.c.l.b16 %v7285
        %v7334 = vunpack.c.l.b16 %v7286
        %v7335 = vpack.c.b16 %v7312, %v7311
        %v7336 = vpack.c.b16 %v7314, %v7313
        %v7337 = vpack.c.b16 %v7316, %v7315
        %v7338 = vpack.c.b16 %v7318, %v7317
        %v7339 = vpack.c.b16 %v7320, %v7319
        %v7340 = vpack.c.b16 %v7322, %v7321
        %v7341 = vpack.c.b16 %v7324, %v7323
        %v7342 = vpack.c.b16 %v7326, %v7325
        %v7343 = vpack.c.b16 %v7328, %v7327
        %v7344 = vpack.c.b16 %v7330, %v7329
        %v7345 = vpack.c.b16 %v7332, %v7331
        %v7346 = vpack.c.b16 %v7334, %v7333
        %v7360 = vsel %vm2553, %v7255, 0
        %v7363 = vsel %vm2553, %v7257, 0
        %v7366 = vsel %vm2553, %v7259, 0
        %v7369 = vsel %vm2553, %v7261, 0
        %7371 = vmatpush.bf16.msra.mxu0 %v7342
        %7372 = vmatpush.bf16.msra.mxu0 %v7341
        %7373 = vmatpush.bf16.msra.mxu0 %v7340
        %7374 = vmatpush.bf16.msra.mxu0 %v7339
        %7375 = vmatpush.bf16.msra.mxu0 %v7338
        %7376 = vmatpush.bf16.msra.mxu0 %v7337
        %7377 = vmatpush.bf16.msra.mxu0 %v7336
        %7378 = vmatpush.bf16.msra.mxu0 %v7335
        %7379 = vmatmul.bf16.gmra.mxu0 %v7254
        %v7380 = vpop.f32.mrf.mxu0
        %v7381 = vadd.f32 0.0, %v7380
        %v7382 = vpop.f32.mrf.mxu0
        %v7383 = vadd.f32 0.0, %v7382
        %7384 = vmatmul.bf16.gmra.mxu0 %v7256
        %v7385 = vpop.f32.mrf.mxu0
        %v7386 = vadd.f32 0.0, %v7385
        %v7387 = vpop.f32.mrf.mxu0
        %v7388 = vadd.f32 0.0, %v7387
        %7389 = vmatmul.bf16.gmra.mxu0 %v7258
        %v7390 = vpop.f32.mrf.mxu0
        %v7391 = vadd.f32 0.0, %v7390
        %v7392 = vpop.f32.mrf.mxu0
        %v7393 = vadd.f32 0.0, %v7392
        %7394 = vmatmul.bf16.gmra.mxu0 %v7260
        %v7395 = vpop.f32.mrf.mxu0
        %v7396 = vadd.f32 0.0, %v7395
        %v7397 = vpop.f32.mrf.mxu0
        %v7398 = vadd.f32 0.0, %v7397
        %7399 = vdwg.mxu0
        %7400 = vmatpush.bf16.msra.mxu0 0
        %7401 = vmatpush.bf16.msra.mxu0 0
        %7402 = vmatpush.bf16.msra.mxu0 0
        %7403 = vmatpush.bf16.msra.mxu0 0
        %7404 = vmatpush.bf16.msra.mxu0 %v7346
        %7405 = vmatpush.bf16.msra.mxu0 %v7345
        %7406 = vmatpush.bf16.msra.mxu0 %v7344
        %7407 = vmatpush.bf16.msra.mxu0 %v7343
        %7408 = vmatmul.bf16.gmra.mxu0 %v7360
        %v7409 = vpop.f32.mrf.mxu0
        %v7410 = vadd.f32 %v7381, %v7409
        %v7411 = vpop.f32.mrf.mxu0
        %v7412 = vadd.f32 %v7383, %v7411
        %7413 = vmatmul.bf16.gmra.mxu0 %v7363
        %v7414 = vpop.f32.mrf.mxu0
        %v7415 = vadd.f32 %v7386, %v7414
        %v7416 = vpop.f32.mrf.mxu0
        %v7417 = vadd.f32 %v7388, %v7416
        %7418 = vmatmul.bf16.gmra.mxu0 %v7366
        %v7419 = vpop.f32.mrf.mxu0
        %v7420 = vadd.f32 %v7391, %v7419
        %v7421 = vpop.f32.mrf.mxu0
        %v7422 = vadd.f32 %v7393, %v7421
        %7423 = vmatmul.bf16.gmra.mxu0 %v7369
        %v7424 = vpop.f32.mrf.mxu0
        %v7425 = vadd.f32 %v7396, %v7424
        %v7426 = vpop.f32.mrf.mxu0
        %v7427 = vadd.f32 %v7398, %v7426
        %7428 = vdwg.mxu0
        %v7453 = vunpack.c.l.b16 %v7217
        %v7454 = vunpack.c.l.b16 %v7218
        %v7455 = vunpack.c.l.b16 %v7219
        %v7456 = vunpack.c.l.b16 %v7220
        %v7457 = vunpack.c.l.b16 %v7221
        %v7458 = vunpack.c.l.b16 %v7222
        %v7459 = vunpack.c.l.b16 %v7223
        %v7460 = vunpack.c.l.b16 %v7224
        %v7461 = vunpack.c.l.b16 %v7225
        %v7462 = vunpack.c.l.b16 %v7226
        %v7463 = vunpack.c.l.b16 %v7227
        %v7464 = vunpack.c.l.b16 %v7228
        %v7465 = vunpack.c.l.b16 %v7229
        %v7466 = vunpack.c.l.b16 %v7230
        %v7467 = vunpack.c.l.b16 %v7231
        %v7468 = vunpack.c.l.b16 %v7232
        %v7469 = vunpack.c.l.b16 %v7233
        %v7470 = vunpack.c.l.b16 %v7234
        %v7471 = vunpack.c.l.b16 %v7235
        %v7472 = vunpack.c.l.b16 %v7236
        %v7473 = vunpack.c.l.b16 %v7237
        %v7474 = vunpack.c.l.b16 %v7238
        %v7475 = vunpack.c.l.b16 %v7239
        %v7476 = vunpack.c.l.b16 %v7240
        %v7477 = vpack.c.b16 %v7454, %v7453
        %v7478 = vpack.c.b16 %v7456, %v7455
        %v7479 = vpack.c.b16 %v7458, %v7457
        %v7480 = vpack.c.b16 %v7460, %v7459
        %v7481 = vpack.c.b16 %v7462, %v7461
        %v7482 = vpack.c.b16 %v7464, %v7463
        %v7483 = vpack.c.b16 %v7466, %v7465
        %v7484 = vpack.c.b16 %v7468, %v7467
        %v7485 = vpack.c.b16 %v7470, %v7469
        %v7486 = vpack.c.b16 %v7472, %v7471
        %v7487 = vpack.c.b16 %v7474, %v7473
        %v7488 = vpack.c.b16 %v7476, %v7475
        %v7502 = vsel %vm2553, %v7210, 0
        %v7505 = vsel %vm2553, %v7212, 0
        %v7508 = vsel %vm2553, %v7214, 0
        %v7511 = vsel %vm2553, %v7216, 0
        %7513 = vmatpush.bf16.msra.mxu0 %v7484
        %7514 = vmatpush.bf16.msra.mxu0 %v7483
        %7515 = vmatpush.bf16.msra.mxu0 %v7482
        %7516 = vmatpush.bf16.msra.mxu0 %v7481
        %7517 = vmatpush.bf16.msra.mxu0 %v7480
        %7518 = vmatpush.bf16.msra.mxu0 %v7479
        %7519 = vmatpush.bf16.msra.mxu0 %v7478
        %7520 = vmatpush.bf16.msra.mxu0 %v7477
        %7521 = vmatmul.bf16.gmra.mxu0 %v7209
        %v7522 = vpop.f32.mrf.mxu0
        %v7523 = vadd.f32 %v7410, %v7522
        %v7524 = vpop.f32.mrf.mxu0
        %v7525 = vadd.f32 %v7412, %v7524
        %7526 = vmatmul.bf16.gmra.mxu0 %v7211
        %v7527 = vpop.f32.mrf.mxu0
        %v7528 = vadd.f32 %v7415, %v7527
        %v7529 = vpop.f32.mrf.mxu0
        %v7530 = vadd.f32 %v7417, %v7529
        %7531 = vmatmul.bf16.gmra.mxu0 %v7213
        %v7532 = vpop.f32.mrf.mxu0
        %v7533 = vadd.f32 %v7420, %v7532
        %v7534 = vpop.f32.mrf.mxu0
        %v7535 = vadd.f32 %v7422, %v7534
        %7536 = vmatmul.bf16.gmra.mxu0 %v7215
        %v7537 = vpop.f32.mrf.mxu0
        %v7538 = vadd.f32 %v7425, %v7537
        %v7539 = vpop.f32.mrf.mxu0
        %v7540 = vadd.f32 %v7427, %v7539
        %7541 = vdwg.mxu0
        %7542 = vmatpush.bf16.msra.mxu0 0
        %7543 = vmatpush.bf16.msra.mxu0 0
        %7544 = vmatpush.bf16.msra.mxu0 0
        %7545 = vmatpush.bf16.msra.mxu0 0
        %7546 = vmatpush.bf16.msra.mxu0 %v7488
        %7547 = vmatpush.bf16.msra.mxu0 %v7487
        %7548 = vmatpush.bf16.msra.mxu0 %v7486
        %7549 = vmatpush.bf16.msra.mxu0 %v7485
        %7550 = vmatmul.bf16.gmra.mxu0 %v7502
        %v7551 = vpop.f32.mrf.mxu0
        %v7552 = vadd.f32 %v7523, %v7551
        %v7553 = vpop.f32.mrf.mxu0
        %v7554 = vadd.f32 %v7525, %v7553
        %7555 = vmatmul.bf16.gmra.mxu0 %v7505
        %v7556 = vpop.f32.mrf.mxu0
        %v7557 = vadd.f32 %v7528, %v7556
        %v7558 = vpop.f32.mrf.mxu0
        %v7559 = vadd.f32 %v7530, %v7558
        %7560 = vmatmul.bf16.gmra.mxu0 %v7508
        %v7561 = vpop.f32.mrf.mxu0
        %v7562 = vadd.f32 %v7533, %v7561
        %v7563 = vpop.f32.mrf.mxu0
        %v7564 = vadd.f32 %v7535, %v7563
        %7565 = vmatmul.bf16.gmra.mxu0 %v7511
        %v7566 = vpop.f32.mrf.mxu0
        %v7567 = vadd.f32 %v7538, %v7566
        %v7568 = vpop.f32.mrf.mxu0
        %v7569 = vadd.f32 %v7540, %v7568
        %7570 = vdwg.mxu0
        %v7571 = vpack.c.bf16 %v2554, %v7253
        %v7572 = vpack.c.bf16 %v2523, %v7251
        %s7573 = scalar_lea.vmem %s53, 192
        %v7574 = vld [vmem:[%s7573] sm:$0xf]
        %v7575 = vld [vmem:[%s7573 + $0x4] sm:$0xf]
        %v7576 = vld [vmem:[%s7573 + $0x8] sm:$0xf]
        %v7577 = vld [vmem:[%s7573 + $0xc] sm:$0xf]
        %v7578 = vld [vmem:[%s7573 + $0x10] sm:$0xf]
        %v7579 = vld [vmem:[%s7573 + $0x14] sm:$0xf]
        %v7580 = vld [vmem:[%s7573 + $0x18] sm:$0xf]
        %v7581 = vld [vmem:[%s7573 + $0x1c] sm:$0xf]
        %v7582 = vld [vmem:[%s7573 + $0x20] sm:$0xf]
        %v7583 = vld [vmem:[%s7573 + $0x24] sm:$0xf]
        %v7584 = vld [vmem:[%s7573 + $0x28] sm:$0xf]
        %v7585 = vld [vmem:[%s7573 + $0x2c] sm:$0xf]
        %v7586 = vld [vmem:[%s7573 + $0x30] sm:$0xf]
        %v7587 = vld [vmem:[%s7573 + $0x34] sm:$0xf]
        %v7588 = vld [vmem:[%s7573 + $0x38] sm:$0xf]
        %v7589 = vld [vmem:[%s7573 + $0x3c] sm:$0xf]
        %v7590 = vld [vmem:[%s7573 + $0x40] sm:$0xf]
        %v7591 = vld [vmem:[%s7573 + $0x44] sm:$0xf]
        %v7592 = vld [vmem:[%s7573 + $0x48] sm:$0xf]
        %v7593 = vld [vmem:[%s7573 + $0x4c] sm:$0xf]
        %v7594 = vld [vmem:[%s7573 + $0x50] sm:$0xf]
        %v7595 = vld [vmem:[%s7573 + $0x54] sm:$0xf]
        %v7596 = vld [vmem:[%s7573 + $0x58] sm:$0xf]
        %v7597 = vld [vmem:[%s7573 + $0x5c] sm:$0xf]
        %v7622 = vunpack.c.l.b16 %v7574
        %v7623 = vunpack.c.l.b16 %v7575
        %v7624 = vunpack.c.l.b16 %v7576
        %v7625 = vunpack.c.l.b16 %v7577
        %v7626 = vunpack.c.l.b16 %v7578
        %v7627 = vunpack.c.l.b16 %v7579
        %v7628 = vunpack.c.l.b16 %v7580
        %v7629 = vunpack.c.l.b16 %v7581
        %v7630 = vunpack.c.l.b16 %v7582
        %v7631 = vunpack.c.l.b16 %v7583
        %v7632 = vunpack.c.l.b16 %v7584
        %v7633 = vunpack.c.l.b16 %v7585
        %v7634 = vunpack.c.l.b16 %v7586
        %v7635 = vunpack.c.l.b16 %v7587
        %v7636 = vunpack.c.l.b16 %v7588
        %v7637 = vunpack.c.l.b16 %v7589
        %v7638 = vunpack.c.l.b16 %v7590
        %v7639 = vunpack.c.l.b16 %v7591
        %v7640 = vunpack.c.l.b16 %v7592
        %v7641 = vunpack.c.l.b16 %v7593
        %v7642 = vunpack.c.l.b16 %v7594
        %v7643 = vunpack.c.l.b16 %v7595
        %v7644 = vunpack.c.l.b16 %v7596
        %v7645 = vunpack.c.l.b16 %v7597
        %v7646 = vpack.c.b16 %v7623, %v7622
        %v7647 = vpack.c.b16 %v7625, %v7624
        %v7648 = vpack.c.b16 %v7627, %v7626
        %v7649 = vpack.c.b16 %v7629, %v7628
        %v7650 = vpack.c.b16 %v7631, %v7630
        %v7651 = vpack.c.b16 %v7633, %v7632
        %v7652 = vpack.c.b16 %v7635, %v7634
        %v7653 = vpack.c.b16 %v7637, %v7636
        %v7654 = vpack.c.b16 %v7639, %v7638
        %v7655 = vpack.c.b16 %v7641, %v7640
        %v7656 = vpack.c.b16 %v7643, %v7642
        %v7657 = vpack.c.b16 %v7645, %v7644
        %v7671 = vsel %vm2553, %v7572, 0
        %7673 = vmatpush.bf16.msra.mxu0 %v7653
        %7674 = vmatpush.bf16.msra.mxu0 %v7652
        %7675 = vmatpush.bf16.msra.mxu0 %v7651
        %7676 = vmatpush.bf16.msra.mxu0 %v7650
        %7677 = vmatpush.bf16.msra.mxu0 %v7649
        %7678 = vmatpush.bf16.msra.mxu0 %v7648
        %7679 = vmatpush.bf16.msra.mxu0 %v7647
        %7680 = vmatpush.bf16.msra.mxu0 %v7646
        %7681 = vmatmul.bf16.gmra.mxu0 %v7211
        %v7682 = vpop.f32.mrf.mxu0
        %v7683 = vadd.f32 0.0, %v7682
        %v7684 = vpop.f32.mrf.mxu0
        %v7685 = vadd.f32 0.0, %v7684
        %7686 = vmatmul.bf16.gmra.mxu0 %v7213
        %v7687 = vpop.f32.mrf.mxu0
        %v7688 = vadd.f32 0.0, %v7687
        %v7689 = vpop.f32.mrf.mxu0
        %v7690 = vadd.f32 0.0, %v7689
        %7691 = vmatmul.bf16.gmra.mxu0 %v7215
        %v7692 = vpop.f32.mrf.mxu0
        %v7693 = vadd.f32 0.0, %v7692
        %v7694 = vpop.f32.mrf.mxu0
        %v7695 = vadd.f32 0.0, %v7694
        %7696 = vmatmul.bf16.gmra.mxu0 %v7571
        %v7697 = vpop.f32.mrf.mxu0
        %v7698 = vadd.f32 0.0, %v7697
        %v7699 = vpop.f32.mrf.mxu0
        %v7700 = vadd.f32 0.0, %v7699
        %7701 = vdwg.mxu0
        %7702 = vmatpush.bf16.msra.mxu0 0
        %7703 = vmatpush.bf16.msra.mxu0 0
        %7704 = vmatpush.bf16.msra.mxu0 0
        %7705 = vmatpush.bf16.msra.mxu0 0
        %7706 = vmatpush.bf16.msra.mxu0 %v7657
        %7707 = vmatpush.bf16.msra.mxu0 %v7656
        %7708 = vmatpush.bf16.msra.mxu0 %v7655
        %7709 = vmatpush.bf16.msra.mxu0 %v7654
        %7710 = vmatmul.bf16.gmra.mxu0 %v7505
        %v7711 = vpop.f32.mrf.mxu0
        %v7712 = vadd.f32 %v7683, %v7711
        %v7713 = vpop.f32.mrf.mxu0
        %v7714 = vadd.f32 %v7685, %v7713
        %7715 = vmatmul.bf16.gmra.mxu0 %v7508
        %v7716 = vpop.f32.mrf.mxu0
        %v7717 = vadd.f32 %v7688, %v7716
        %v7718 = vpop.f32.mrf.mxu0
        %v7719 = vadd.f32 %v7690, %v7718
        %7720 = vmatmul.bf16.gmra.mxu0 %v7511
        %v7721 = vpop.f32.mrf.mxu0
        %v7722 = vadd.f32 %v7693, %v7721
        %v7723 = vpop.f32.mrf.mxu0
        %v7724 = vadd.f32 %v7695, %v7723
        %7725 = vmatmul.bf16.gmra.mxu0 %v7671
        %v7726 = vpop.f32.mrf.mxu0
        %v7727 = vadd.f32 %v7698, %v7726
        %v7728 = vpop.f32.mrf.mxu0
        %v7729 = vadd.f32 %v7700, %v7728
        %7730 = vdwg.mxu0
        %v7731 = vadd.f32 %v7552, %v7712
        %v7732 = vadd.f32 %v7554, %v7714
        %v7733 = vadd.f32 %v7557, %v7717
        %v7734 = vadd.f32 %v7559, %v7719
        %v7735 = vadd.f32 %v7562, %v7722
        %v7736 = vadd.f32 %v7564, %v7724
        %v7737 = vadd.f32 %v7567, %v7727
        %v7738 = vadd.f32 %v7569, %v7729
        %v7740 = vperm.slane %v7077, 0
        %v7742 = vadd.f32 %v7731, %v7740
        %v7743 = vadd.f32 %v7732, %v7740
        %v7744 = vadd.f32 %v7733, %v7740
        %v7745 = vadd.f32 %v7734, %v7740
        %v7746 = vadd.f32 %v7735, %v7740
        %v7747 = vadd.f32 %v7736, %v7740
        %v7748 = vadd.f32 %v7737, %v7740
        %v7749 = vadd.f32 %v7738, %v7740
        %v7750 = vmax.f32 %v7742, 0.0
        %v7751 = vmax.f32 %v7743, 0.0
        %v7752 = vmax.f32 %v7744, 0.0
        %v7753 = vmax.f32 %v7745, 0.0
        %v7754 = vmax.f32 %v7746, 0.0
        %v7755 = vmax.f32 %v7747, 0.0
        %v7756 = vmax.f32 %v7748, 0.0
        %v7757 = vmax.f32 %v7749, 0.0
        %v7758 = vld [vmem:[%s59] sm:$0x1]
        %v7767 = vrot.slane %v7750, 7
        %v7768 = vrot.slane %v7751, 7
        %v7769 = vrot.slane %v7752, 7
        %v7770 = vrot.slane %v7753, 7
        %v7771 = vrot.slane %v7754, 7
        %v7772 = vrot.slane %v7755, 7
        %v7773 = vrot.slane %v7756, 7
        %v7774 = vrot.slane %v7757, 7
        %v7783 = vsel %vm2441, 0.0, %v7767
        %v7784 = vsel %vm2441, 0.0, %v7768
        %v7785 = vsel %vm2441, 0.0, %v7769
        %v7786 = vsel %vm2441, 0.0, %v7770
        %v7787 = vsel %vm2441, 0.0, %v7771
        %v7788 = vsel %vm2441, 0.0, %v7772
        %v7789 = vsel %vm2441, 0.0, %v7773
        %v7790 = vsel %vm2441, 0.0, %v7774
        %v7791 = vsel %vm2441, %v7767, 0.0
        %v7792 = vsel %vm2441, %v7768, 0.0
        %v7793 = vsel %vm2441, %v7769, 0.0
        %v7794 = vsel %vm2441, %v7770, 0.0
        %v7795 = vsel %vm2441, %v7771, 0.0
        %v7796 = vsel %vm2441, %v7772, 0.0
        %v7797 = vsel %vm2441, %v7773, 0.0
        %v7798 = vsel %vm2441, %v7774, 0.0
        %v7813 = vrot.slane %v7783, 1
        %v7814 = vrot.slane %v7791, 1
        %v7815 = vsel %vm2473, %v7813, %v7814
        %v7816 = vrot.slane %v7784, 1
        %v7817 = vrot.slane %v7792, 1
        %v7818 = vsel %vm2473, %v7816, %v7817
        %v7819 = vrot.slane %v7785, 1
        %v7820 = vrot.slane %v7793, 1
        %v7821 = vsel %vm2473, %v7819, %v7820
        %v7822 = vrot.slane %v7786, 1
        %v7823 = vrot.slane %v7794, 1
        %v7824 = vsel %vm2473, %v7822, %v7823
        %v7825 = vrot.slane %v7787, 1
        %v7826 = vrot.slane %v7795, 1
        %v7827 = vsel %vm2473, %v7825, %v7826
        %v7828 = vrot.slane %v7788, 1
        %v7829 = vrot.slane %v7796, 1
        %v7830 = vsel %vm2473, %v7828, %v7829
        %v7831 = vrot.slane %v7789, 1
        %v7832 = vrot.slane %v7797, 1
        %v7833 = vsel %vm2473, %v7831, %v7832
        %7834 = vrot.lane.b32.xlu0 %v2475, 32
        %v7835 = vpop.permute.xlu0 %7834
        %7836 = vrot.lane.b32.xlu0 %v7815, 32
        %v7837 = vpop.permute.xlu0 %7836
        %7838 = vrot.lane.b32.xlu0 %v7818, 32
        %v7839 = vpop.permute.xlu0 %7838
        %7840 = vrot.lane.b32.xlu0 %v7821, 32
        %v7841 = vpop.permute.xlu0 %7840
        %7842 = vrot.lane.b32.xlu0 %v7824, 32
        %v7843 = vpop.permute.xlu0 %7842
        %7844 = vrot.lane.b32.xlu0 %v7827, 32
        %v7845 = vpop.permute.xlu0 %7844
        %7846 = vrot.lane.b32.xlu0 %v7830, 32
        %v7847 = vpop.permute.xlu0 %7846
        %7848 = vrot.lane.b32.xlu0 %v7833, 32
        %v7849 = vpop.permute.xlu0 %7848
        %v7858 = vrot.slane %v7783, 2
        %v7859 = vrot.slane %v7791, 2
        %v7860 = vsel %vm2521, %v7858, %v7859
        %v7861 = vrot.slane %v7784, 2
        %v7862 = vrot.slane %v7792, 2
        %v7863 = vsel %vm2521, %v7861, %v7862
        %v7864 = vrot.slane %v7785, 2
        %v7865 = vrot.slane %v7793, 2
        %v7866 = vsel %vm2521, %v7864, %v7865
        %v7867 = vrot.slane %v7786, 2
        %v7868 = vrot.slane %v7794, 2
        %v7869 = vsel %vm2521, %v7867, %v7868
        %v7870 = vrot.slane %v7787, 2
        %v7871 = vrot.slane %v7795, 2
        %v7872 = vsel %vm2521, %v7870, %v7871
        %v7873 = vrot.slane %v7788, 2
        %v7874 = vrot.slane %v7796, 2
        %v7875 = vsel %vm2521, %v7873, %v7874
        %v7876 = vrot.slane %v7789, 2
        %v7877 = vrot.slane %v7797, 2
        %v7878 = vsel %vm2521, %v7876, %v7877
        %7879 = vrot.lane.b32.xlu0 %v2523, 64
        %v7880 = vpop.permute.xlu0 %7879
        %7881 = vrot.lane.b32.xlu0 %v7860, 64
        %v7882 = vpop.permute.xlu0 %7881
        %7883 = vrot.lane.b32.xlu0 %v7863, 64
        %v7884 = vpop.permute.xlu0 %7883
        %7885 = vrot.lane.b32.xlu0 %v7866, 64
        %v7886 = vpop.permute.xlu0 %7885
        %7887 = vrot.lane.b32.xlu0 %v7869, 64
        %v7888 = vpop.permute.xlu0 %7887
        %7889 = vrot.lane.b32.xlu0 %v7872, 64
        %v7890 = vpop.permute.xlu0 %7889
        %7891 = vrot.lane.b32.xlu0 %v7875, 64
        %v7892 = vpop.permute.xlu0 %7891
        %7893 = vrot.lane.b32.xlu0 %v7878, 64
        %v7894 = vpop.permute.xlu0 %7893
        %v7903 = vsel %vm2130, 0.0, %v7835
        %v7904 = vsel %vm2130, %v7783, %v7837
        %v7905 = vsel %vm2130, %v7784, %v7839
        %v7906 = vsel %vm2130, %v7785, %v7841
        %v7907 = vsel %vm2130, %v7786, %v7843
        %v7908 = vsel %vm2130, %v7787, %v7845
        %v7909 = vsel %vm2130, %v7788, %v7847
        %v7910 = vsel %vm2130, %v7789, %v7849
        %v7911 = vsel %vm2553, %v7903, %v7880
        %v7912 = vsel %vm2553, %v7904, %v7882
        %v7913 = vsel %vm2553, %v7905, %v7884
        %v7914 = vsel %vm2553, %v7906, %v7886
        %v7915 = vsel %vm2553, %v7907, %v7888
        %v7916 = vsel %vm2553, %v7908, %v7890
        %v7917 = vsel %vm2553, %v7909, %v7892
        %v7918 = vsel %vm2553, %v7910, %v7894
        %v7919 = vpack.c.bf16 %v7912, %v7911
        %v7920 = vpack.c.bf16 %v7914, %v7913
        %v7921 = vpack.c.bf16 %v7916, %v7915
        %v7922 = vpack.c.bf16 %v7918, %v7917
        %v7923 = vld [vmem:[%s57] sm:$0xf]
        %v7924 = vld [vmem:[%s57 + $0x4] sm:$0xf]
        %v7925 = vld [vmem:[%s57 + $0x8] sm:$0xf]
        %v7926 = vld [vmem:[%s57 + $0xc] sm:$0xf]
        %v7927 = vld [vmem:[%s57 + $0x10] sm:$0xf]
        %v7928 = vld [vmem:[%s57 + $0x14] sm:$0xf]
        %v7929 = vld [vmem:[%s57 + $0x18] sm:$0xf]
        %v7930 = vld [vmem:[%s57 + $0x1c] sm:$0xf]
        %v7931 = vld [vmem:[%s57 + $0x20] sm:$0xf]
        %v7932 = vld [vmem:[%s57 + $0x24] sm:$0xf]
        %v7933 = vld [vmem:[%s57 + $0x28] sm:$0xf]
        %v7934 = vld [vmem:[%s57 + $0x2c] sm:$0xf]
        %v7937 = vrot.slane %v7790, 1
        %v7938 = vrot.slane %v7798, 1
        %v7939 = vsel %vm2473, %v7937, %v7938
        %7940 = vrot.lane.b32.xlu0 %v7939, 32
        %v7941 = vpop.permute.xlu0 %7940
        %v7943 = vrot.slane %v7790, 2
        %v7944 = vrot.slane %v7798, 2
        %v7945 = vsel %vm2521, %v7943, %v7944
        %7946 = vrot.lane.b32.xlu0 %v7945, 64
        %v7947 = vpop.permute.xlu0 %7946
        %v7949 = vsel %vm2130, %v7790, %v7941
        %v7950 = vsel %vm2553, %v7949, %v7947
        %v7951 = vpack.c.bf16 %v7913, %v7912
        %v7952 = vpack.c.bf16 %v7915, %v7914
        %v7953 = vpack.c.bf16 %v7917, %v7916
        %v7954 = vpack.c.bf16 %v7950, %v7918
        %s7955 = scalar_lea.vmem %s57, 48
        %v7956 = vld [vmem:[%s7955] sm:$0xf]
        %v7957 = vld [vmem:[%s7955 + $0x4] sm:$0xf]
        %v7958 = vld [vmem:[%s7955 + $0x8] sm:$0xf]
        %v7959 = vld [vmem:[%s7955 + $0xc] sm:$0xf]
        %v7960 = vld [vmem:[%s7955 + $0x10] sm:$0xf]
        %v7961 = vld [vmem:[%s7955 + $0x14] sm:$0xf]
        %v7962 = vld [vmem:[%s7955 + $0x18] sm:$0xf]
        %v7963 = vld [vmem:[%s7955 + $0x1c] sm:$0xf]
        %v7964 = vld [vmem:[%s7955 + $0x20] sm:$0xf]
        %v7965 = vld [vmem:[%s7955 + $0x24] sm:$0xf]
        %v7966 = vld [vmem:[%s7955 + $0x28] sm:$0xf]
        %v7967 = vld [vmem:[%s7955 + $0x2c] sm:$0xf]
        %v7980 = vunpack.c.l.b16 %v7956
        %v7981 = vunpack.c.l.b16 %v7957
        %v7982 = vunpack.c.l.b16 %v7958
        %v7983 = vunpack.c.l.b16 %v7959
        %v7984 = vunpack.c.l.b16 %v7960
        %v7985 = vunpack.c.l.b16 %v7961
        %v7986 = vunpack.c.l.b16 %v7962
        %v7987 = vunpack.c.l.b16 %v7963
        %v7988 = vunpack.c.l.b16 %v7964
        %v7989 = vunpack.c.l.b16 %v7965
        %v7990 = vunpack.c.l.b16 %v7966
        %v7991 = vunpack.c.l.b16 %v7967
        %v7992 = vpack.c.b16 %v7981, %v7980
        %v7993 = vpack.c.b16 %v7983, %v7982
        %v7994 = vpack.c.b16 %v7985, %v7984
        %v7995 = vpack.c.b16 %v7987, %v7986
        %v7996 = vpack.c.b16 %v7989, %v7988
        %v7997 = vpack.c.b16 %v7991, %v7990
        %vm8004 = vcmask 785408
        %v8006 = vsel %vm8004, %v7951, 0
        %v8009 = vsel %vm8004, %v7952, 0
        %v8012 = vsel %vm8004, %v7953, 0
        %v8015 = vsel %vm8004, %v7954, 0
        %8017 = vmatpush.bf16.msra.mxu0 0
        %8018 = vmatpush.bf16.msra.mxu0 0
        %8019 = vmatpush.bf16.msra.mxu0 %v7997
        %8020 = vmatpush.bf16.msra.mxu0 %v7996
        %8021 = vmatpush.bf16.msra.mxu0 %v7995
        %8022 = vmatpush.bf16.msra.mxu0 %v7994
        %8023 = vmatpush.bf16.msra.mxu0 %v7993
        %8024 = vmatpush.bf16.msra.mxu0 %v7992
        %8025 = vmatmul.bf16.gmra.mxu0 %v8006
        %v8026 = vpop.f32.mrf.mxu0
        %v8027 = vadd.f32 0.0, %v8026
        %v8028 = vpop.f32.mrf.mxu0
        %v8029 = vadd.f32 0.0, %v8028
        %8030 = vmatmul.bf16.gmra.mxu0 %v8009
        %v8031 = vpop.f32.mrf.mxu0
        %v8032 = vadd.f32 0.0, %v8031
        %v8033 = vpop.f32.mrf.mxu0
        %v8034 = vadd.f32 0.0, %v8033
        %8035 = vmatmul.bf16.gmra.mxu0 %v8012
        %v8036 = vpop.f32.mrf.mxu0
        %v8037 = vadd.f32 0.0, %v8036
        %v8038 = vpop.f32.mrf.mxu0
        %v8039 = vadd.f32 0.0, %v8038
        %8040 = vmatmul.bf16.gmra.mxu0 %v8015
        %v8041 = vpop.f32.mrf.mxu0
        %v8042 = vadd.f32 0.0, %v8041
        %v8043 = vpop.f32.mrf.mxu0
        %v8044 = vadd.f32 0.0, %v8043
        %8045 = vdwg.mxu0
        %v8058 = vunpack.c.l.b16 %v7923
        %v8059 = vunpack.c.l.b16 %v7924
        %v8060 = vunpack.c.l.b16 %v7925
        %v8061 = vunpack.c.l.b16 %v7926
        %v8062 = vunpack.c.l.b16 %v7927
        %v8063 = vunpack.c.l.b16 %v7928
        %v8064 = vunpack.c.l.b16 %v7929
        %v8065 = vunpack.c.l.b16 %v7930
        %v8066 = vunpack.c.l.b16 %v7931
        %v8067 = vunpack.c.l.b16 %v7932
        %v8068 = vunpack.c.l.b16 %v7933
        %v8069 = vunpack.c.l.b16 %v7934
        %v8070 = vpack.c.b16 %v8059, %v8058
        %v8071 = vpack.c.b16 %v8061, %v8060
        %v8072 = vpack.c.b16 %v8063, %v8062
        %v8073 = vpack.c.b16 %v8065, %v8064
        %v8074 = vpack.c.b16 %v8067, %v8066
        %v8075 = vpack.c.b16 %v8069, %v8068
        %v8083 = vsel %vm8004, %v7919, 0
        %v8086 = vsel %vm8004, %v7920, 0
        %v8089 = vsel %vm8004, %v7921, 0
        %v8092 = vsel %vm8004, %v7922, 0
        %8094 = vmatpush.bf16.msra.mxu0 0
        %8095 = vmatpush.bf16.msra.mxu0 0
        %8096 = vmatpush.bf16.msra.mxu0 %v8075
        %8097 = vmatpush.bf16.msra.mxu0 %v8074
        %8098 = vmatpush.bf16.msra.mxu0 %v8073
        %8099 = vmatpush.bf16.msra.mxu0 %v8072
        %8100 = vmatpush.bf16.msra.mxu0 %v8071
        %8101 = vmatpush.bf16.msra.mxu0 %v8070
        %8102 = vmatmul.bf16.gmra.mxu0 %v8083
        %v8103 = vpop.f32.mrf.mxu0
        %v8104 = vadd.f32 %v8027, %v8103
        %v8105 = vpop.f32.mrf.mxu0
        %v8106 = vadd.f32 %v8029, %v8105
        %8107 = vmatmul.bf16.gmra.mxu0 %v8086
        %v8108 = vpop.f32.mrf.mxu0
        %v8109 = vadd.f32 %v8032, %v8108
        %v8110 = vpop.f32.mrf.mxu0
        %v8111 = vadd.f32 %v8034, %v8110
        %8112 = vmatmul.bf16.gmra.mxu0 %v8089
        %v8113 = vpop.f32.mrf.mxu0
        %v8114 = vadd.f32 %v8037, %v8113
        %v8115 = vpop.f32.mrf.mxu0
        %v8116 = vadd.f32 %v8039, %v8115
        %8117 = vmatmul.bf16.gmra.mxu0 %v8092
        %v8118 = vpop.f32.mrf.mxu0
        %v8119 = vadd.f32 %v8042, %v8118
        %v8120 = vpop.f32.mrf.mxu0
        %v8121 = vadd.f32 %v8044, %v8120
        %8122 = vdwg.mxu0
        %v8123 = vpack.c.bf16 %v7911, %v7950
        %s8124 = scalar_lea.vmem %s57, 96
        %v8125 = vld [vmem:[%s8124] sm:$0xf]
        %v8126 = vld [vmem:[%s8124 + $0x4] sm:$0xf]
        %v8127 = vld [vmem:[%s8124 + $0x8] sm:$0xf]
        %v8128 = vld [vmem:[%s8124 + $0xc] sm:$0xf]
        %v8129 = vld [vmem:[%s8124 + $0x10] sm:$0xf]
        %v8130 = vld [vmem:[%s8124 + $0x14] sm:$0xf]
        %v8131 = vld [vmem:[%s8124 + $0x18] sm:$0xf]
        %v8132 = vld [vmem:[%s8124 + $0x1c] sm:$0xf]
        %v8133 = vld [vmem:[%s8124 + $0x20] sm:$0xf]
        %v8134 = vld [vmem:[%s8124 + $0x24] sm:$0xf]
        %v8135 = vld [vmem:[%s8124 + $0x28] sm:$0xf]
        %v8136 = vld [vmem:[%s8124 + $0x2c] sm:$0xf]
        %v8149 = vunpack.c.l.b16 %v8125
        %v8150 = vunpack.c.l.b16 %v8126
        %v8151 = vunpack.c.l.b16 %v8127
        %v8152 = vunpack.c.l.b16 %v8128
        %v8153 = vunpack.c.l.b16 %v8129
        %v8154 = vunpack.c.l.b16 %v8130
        %v8155 = vunpack.c.l.b16 %v8131
        %v8156 = vunpack.c.l.b16 %v8132
        %v8157 = vunpack.c.l.b16 %v8133
        %v8158 = vunpack.c.l.b16 %v8134
        %v8159 = vunpack.c.l.b16 %v8135
        %v8160 = vunpack.c.l.b16 %v8136
        %v8161 = vpack.c.b16 %v8150, %v8149
        %v8162 = vpack.c.b16 %v8152, %v8151
        %v8163 = vpack.c.b16 %v8154, %v8153
        %v8164 = vpack.c.b16 %v8156, %v8155
        %v8165 = vpack.c.b16 %v8158, %v8157
        %v8166 = vpack.c.b16 %v8160, %v8159
        %v8174 = vsel %vm8004, %v8123, 0
        %8176 = vmatpush.bf16.msra.mxu0 0
        %8177 = vmatpush.bf16.msra.mxu0 0
        %8178 = vmatpush.bf16.msra.mxu0 %v8166
        %8179 = vmatpush.bf16.msra.mxu0 %v8165
        %8180 = vmatpush.bf16.msra.mxu0 %v8164
        %8181 = vmatpush.bf16.msra.mxu0 %v8163
        %8182 = vmatpush.bf16.msra.mxu0 %v8162
        %8183 = vmatpush.bf16.msra.mxu0 %v8161
        %8184 = vmatmul.bf16.gmra.mxu0 %v8086
        %v8185 = vpop.f32.mrf.mxu0
        %v8186 = vadd.f32 0.0, %v8185
        %v8187 = vpop.f32.mrf.mxu0
        %v8188 = vadd.f32 0.0, %v8187
        %8189 = vmatmul.bf16.gmra.mxu0 %v8089
        %v8190 = vpop.f32.mrf.mxu0
        %v8191 = vadd.f32 0.0, %v8190
        %v8192 = vpop.f32.mrf.mxu0
        %v8193 = vadd.f32 0.0, %v8192
        %8194 = vmatmul.bf16.gmra.mxu0 %v8092
        %v8195 = vpop.f32.mrf.mxu0
        %v8196 = vadd.f32 0.0, %v8195
        %v8197 = vpop.f32.mrf.mxu0
        %v8198 = vadd.f32 0.0, %v8197
        %8199 = vmatmul.bf16.gmra.mxu0 %v8174
        %v8200 = vpop.f32.mrf.mxu0
        %v8201 = vadd.f32 0.0, %v8200
        %v8202 = vpop.f32.mrf.mxu0
        %v8203 = vadd.f32 0.0, %v8202
        %8204 = vdwg.mxu0
        %v8205 = vadd.f32 %v8104, %v8186
        %v8206 = vadd.f32 %v8106, %v8188
        %v8207 = vadd.f32 %v8109, %v8191
        %v8208 = vadd.f32 %v8111, %v8193
        %v8209 = vadd.f32 %v8114, %v8196
        %v8210 = vadd.f32 %v8116, %v8198
        %v8211 = vadd.f32 %v8119, %v8201
        %v8212 = vadd.f32 %v8121, %v8203
        %v8214 = vperm.slane %v7758, 0
        %v8216 = vadd.f32 %v8205, %v8214
        %v8217 = vadd.f32 %v8206, %v8214
        %v8218 = vadd.f32 %v8207, %v8214
        %v8219 = vadd.f32 %v8208, %v8214
        %v8220 = vadd.f32 %v8209, %v8214
        %v8221 = vadd.f32 %v8210, %v8214
        %v8222 = vadd.f32 %v8211, %v8214
        %v8223 = vadd.f32 %v8212, %v8214
        %vm8224 = vcmask 130048
        %8225 = vst.msk [vmem:[%s1070] sm:$0xff] %vm8224, %v8216
        %8226 = vst.msk [vmem:[%s1070 + $0x8] sm:$0xff] %vm8224, %v8217
        %8227 = vst.msk [vmem:[%s1070 + $0x10] sm:$0xff] %vm8224, %v8218
        %8228 = vst.msk [vmem:[%s1070 + $0x18] sm:$0xff] %vm8224, %v8219
        %8229 = vst.msk [vmem:[%s1070 + $0x20] sm:$0xff] %vm8224, %v8220
        %8230 = vst.msk [vmem:[%s1070 + $0x28] sm:$0xff] %vm8224, %v8221
        %8231 = vst.msk [vmem:[%s1070 + $0x30] sm:$0xff] %vm8224, %v8222
        %8232 = vst.msk [vmem:[%s1070 + $0x38] sm:$0xff] %vm8224, %v8223
      $region148: #{sft_net_forward.1} parent=139 // pred_fallthru
        _
      %p8233 = scmp.lt.s32.totalorder %s76, 1
      %s8234 = scalar_select %p8233, %s76, 1
      %s8235 = smul.addr %s8234, 8
      %s8236 = smul.addr %s8235, 8
      %s8237 = scalar_lea.vmem %s61, %s8236
      // Predicated region
      $region149: #{sft_net_forward.1} parent=139 // pred_check
        %p8238 = pneg %p772
      $region150: #{sft_net_forward.1} parent=139 // pred_check_branch
        %8240 = sbr.rel (%p8238) target = $region152
      $region151: #{sft_net_forward.1} parent=139 // pred_region
        _
      $region152: #{sft_net_forward.1} parent=139 // pred_fallthru
        _
    $region140: #{sft_net_forward.1} parent=5 // pred_fallthru
      _
    %p8241 = scmp.le.s32.totalorder 2, %s67
    // Predicated region
    $region153: #{sft_net_forward.1} parent=5 // pred_check
      %p8242 = pneg %p8241
    $region154: #{sft_net_forward.1} parent=5 // pred_check_branch
      %8244 = sbr.rel (%p8242) target = $region156
    $region155: #{sft_net_forward.1} parent=5 // pred_region
      %s8245 = ssub.s32 %s67, 2
      // Predicated region
      $region157: #{sft_net_forward.1} parent=155 // pred_check
        %p8246 = pneg %p778
      $region158: #{sft_net_forward.1} parent=155 // pred_check_branch
        %8248 = sbr.rel (%p8246) target = $region160
      $region159: #{sft_net_forward.1} parent=155 // pred_region
        %p8249 = scmp.lt.s32.totalorder %s78, 1
        %s8250 = scalar_select %p8249, %s78, 1
        %s8251 = smul.addr %s8250, 8
        %s8252 = smul.addr %s8251, 8
        %s8253 = scalar_lea.vmem %s61, %s8252
      $region160: #{sft_net_forward.1} parent=155 // pred_fallthru
        _
    $region156: #{sft_net_forward.1} parent=5 // pred_fallthru
      _
  $region6: #{sft_net_forward.1} parent=0 // loop_footer
    %s71 = sadd.s32 1, %s67
  $region7: #{sft_net_forward.1} parent=0 // loop_footer_branch
    %66 = sbr.rel target = $region3
  $region8: #{sft_net_forward.1} parent=0 // loop_exit
    _

</llo_original>
